<compile_context>
chip_gen: v7x
topology: tpu7x:2x2x1
jax: 0.10.0
libtpu: 0.0.40
codegen_flags: <defaults>
</compile_context>

<pallas_src>
import jax
import jax.numpy as jnp
import numpy as np
from jax import lax
from jax.experimental import pallas as pl
from jax.experimental.pallas import tpu as pltpu

NET_DEPTH = 8
NET_WIDTH = 256
SKIP_LAYER = 4
SUBLANE = 8
LANE = 128


def _round_up(x, m):
    return (x + m - 1) // m * m


def mlp_kernel(x_ref, w0cat_ref, wstack_ref, bstack_ref, wout_ref, bout_ref,
               o_ref, h_ref, skip_ref):
    """One batch tile through the whole MLP.

    x_ref:      (TILE, D_pad)        f32 input tile
    w0cat_ref:  (D_pad, 2*W)         f32  fused [W0 | W5b] (layer 0 + skip projection)
    wstack_ref: (NET_DEPTH-1, W, W)  bf16 layers 1..7 ('h' part of layer 5 at index 4)
    bstack_ref: (NET_DEPTH, 1, W)    f32  hidden biases
    wout_ref:   (W, OUT_pad)         bf16
    bout_ref:   (1, OUT_pad)         f32
    o_ref:      (TILE, OUT_pad)      f32 output tile
    h_ref:      (TILE, W)            bf16 scratch: activations between layers
    skip_ref:   (TILE, W)            f32  scratch: x @ W5b, consumed at layer 5
    """
    W = NET_WIDTH

    # ---- layer 0 + skip projection, fused: x goes through the MXU once (f32,
    # tiny K) and the raw input's live range ends right here.
    pre = jnp.dot(x_ref[...], w0cat_ref[...], preferred_element_type=jnp.float32)
    skip_ref[...] = pre[:, W:]                                  # x @ W5b (f32)
    h0 = pre[:, :W].astype(jnp.bfloat16)                        # bf16 epilogue
    h_ref[...] = jnp.maximum(h0 + bstack_ref[0].astype(jnp.bfloat16), 0)

    # ---- hidden layers: bf16 MXU operands, f32 accumulate, bf16 bias+ReLU.
    def hidden_layer(i, carry):
        acc = jnp.dot(h_ref[...], wstack_ref[i - 1],
                      preferred_element_type=jnp.float32)
        h = acc.astype(jnp.bfloat16) + bstack_ref[i].astype(jnp.bfloat16)
        h_ref[...] = jnp.maximum(h, 0)
        return carry

    # layers 1 .. SKIP_LAYER  (bounded liveness / LLO visibility)
    lax.fori_loop(1, SKIP_LAYER + 1, hidden_layer, 0, unroll=True)

    # layer SKIP_LAYER+1:  cat([h, x]) @ W5 == h @ W5a + x @ W5b (precomputed)
    acc = jnp.dot(h_ref[...], wstack_ref[SKIP_LAYER],
                  preferred_element_type=jnp.float32)
    acc = acc + skip_ref[...]
    h = acc.astype(jnp.bfloat16) + bstack_ref[SKIP_LAYER + 1].astype(jnp.bfloat16)
    h_ref[...] = jnp.maximum(h, 0)

    # layers SKIP_LAYER+2 .. NET_DEPTH-1
    lax.fori_loop(SKIP_LAYER + 2, NET_DEPTH, hidden_layer, 0, unroll=True)

    # ---- output layer (Identity activation): f32 epilogue, lane-dense store.
    out = jnp.dot(h_ref[...], wout_ref[...], preferred_element_type=jnp.float32)
    o_ref[...] = (out + bout_ref[...]).astype(o_ref.dtype)


def mlp_forward(x, params, *, tile=512):
    """x: (N, input_dim) float32 -> (N, output_dim) float32."""
    w0cat, wstack, bstack, wout, bout = params["kernel"]
    N, D = x.shape
    D_pad, OUT_PAD, OUT = params["d_pad"], params["out_pad"], params["output_dim"]
    W = NET_WIDTH

    # --- tile selection -----------------------------------------------------
    # Multiple of 16 (bf16 sublane packing), no larger than the batch, and
    # capped so 2x(x + out) blocks (lane-padded) + h/skip scratch + ~2 MiB of
    # weights stay well inside v7x's 64 MiB VMEM (~3.5 KiB/row on-chip).
    tile = max(16, min(_round_up(tile, 16), _round_up(N, 16), 6144))
    grid_len = -(-N // tile)
    if grid_len > 1 and grid_len % 2:
        grid_len += 1                      # v7x megacore: even number of steps
    tile = _round_up(-(-N // grid_len), 16)   # also minimizes padded rows
    n_pad = grid_len * tile

    x_pad = jnp.zeros((n_pad, D_pad), x.dtype).at[:N, :D].set(x)

    flops = 2 * n_pad * (D_pad * 2 * W + (NET_DEPTH - 1) * W * W + W * OUT_PAD)
    bytes_accessed = int(
        x_pad.size * x_pad.dtype.itemsize
        + n_pad * OUT_PAD * x.dtype.itemsize
        + sum(int(np.prod(a.shape)) * a.dtype.itemsize for a in params["kernel"])
    )

    out = pl.pallas_call(
        mlp_kernel,
        out_shape=jax.ShapeDtypeStruct((n_pad, OUT_PAD), x.dtype),
        grid_spec=pltpu.PrefetchScalarGridSpec(
            num_scalar_prefetch=0,
            grid=(grid_len,),
            in_specs=[
                pl.BlockSpec((tile, D_pad), lambda i: (i, 0)),                # x tile (f32)
                pl.BlockSpec((D_pad, 2 * W), lambda i: (0, 0)),               # [W0 | W5b] (f32)
                pl.BlockSpec((NET_DEPTH - 1, W, W), lambda i: (0, 0, 0)),     # W1..W7 (bf16)
                pl.BlockSpec((NET_DEPTH, 1, W), lambda i: (0, 0, 0)),         # hidden biases (f32)
                pl.BlockSpec((W, OUT_PAD), lambda i: (0, 0)),                 # output weight (bf16)
                pl.BlockSpec((1, OUT_PAD), lambda i: (0, 0)),                 # output bias (f32)
            ],
            out_specs=pl.BlockSpec((tile, OUT_PAD), lambda i: (i, 0)),
            scratch_shapes=[
                pltpu.VMEM((tile, W), jnp.bfloat16),   # inter-layer activations
                pltpu.VMEM((tile, W), jnp.float32),    # x @ W5b, used at layer 5
            ],
        ),
        compiler_params=pltpu.CompilerParams(dimension_semantics=("parallel",)),
        cost_estimate=pl.CostEstimate(flops=flops, transcendentals=0,
                                      bytes_accessed=bytes_accessed),
    )(x_pad, w0cat, wstack, bstack, wout, bout)

    return out[:N, :OUT]


def init_params(key, input_dim, output_dim):
    """Deterministic init mirroring the PyTorch module (xavier_uniform weights, zero bias)."""
    D, W, OUT = input_dim, NET_WIDTH, output_dim
    D_pad = _round_up(D, SUBLANE)
    OUT_PAD = _round_up(OUT, LANE)

    # in_features per hidden layer exactly as in MLP.__init__
    in_feats, f = [], D
    for i in range(NET_DEPTH):
        in_feats.append(f)
        f = W + D if (i % SKIP_LAYER == 0 and i > 0) else W

    keys = jax.random.split(key, NET_DEPTH + 1)

    def xavier_t(k, fan_in, fan_out):
        # torch weight is (out, in); xavier_uniform_ limit = sqrt(6/(fan_in+fan_out)).
        limit = (6.0 / (fan_in + fan_out)) ** 0.5
        w = jax.random.uniform(k, (fan_out, fan_in), jnp.float32, -limit, limit)
        return w.T  # -> (in, out) so y = x @ w

    ws = [xavier_t(keys[i], in_feats[i], W) for i in range(NET_DEPTH)]
    bs = [jnp.zeros((W,), jnp.float32) for _ in range(NET_DEPTH)]
    wout = xavier_t(keys[-1], W, OUT)
    bout = jnp.zeros((OUT,), jnp.float32)

    # ---- kernel-side packing -------------------------------------------------
    # Split layer-5 weight into the 'h' part and the 'input' (skip) part:
    #   cat([h, x]) @ W5 == h @ W5a + x @ W5b
    w5 = ws[SKIP_LAYER + 1]                                   # (W + D, W)
    w5a, w5b = w5[:W], w5[W:]

    # Layer-0 weight and the skip projection fused: x @ [W0 | W5b], kept f32
    # (K = D_pad is tiny, so f32 MXU passes here are free and tighten accuracy).
    w0cat_k = jnp.zeros((D_pad, 2 * W), jnp.float32)
    w0cat_k = w0cat_k.at[:D, :W].set(ws[0]).at[:D, W:].set(w5b)

    wstack_k = jnp.stack(
        [w5a if i == SKIP_LAYER + 1 else ws[i] for i in range(1, NET_DEPTH)]
    ).astype(jnp.bfloat16)                                    # (NET_DEPTH-1, W, W)
    bstack_k = jnp.stack(bs).reshape(NET_DEPTH, 1, W)         # f32; cast to bf16 in-kernel
    wout_k = jnp.zeros((W, OUT_PAD), jnp.float32).at[:, :OUT].set(wout).astype(jnp.bfloat16)
    bout_k = jnp.zeros((1, OUT_PAD), jnp.float32).at[0, :OUT].set(bout)

    return {
        "kernel": (w0cat_k, wstack_k, bstack_k, wout_k, bout_k),
        "reference": (ws, bs, wout, bout),
        "input_dim": D,
        "output_dim": OUT,
        "d_pad": D_pad,
        "out_pad": OUT_PAD,
    }


def mlp_reference(x, params):
    """Pure-JAX f32 reference that literally mirrors the PyTorch forward (with concat)."""
    ws, bs, wout, bout = params["reference"]
    inputs = x
    h = x
    for i in range(NET_DEPTH):
        h = jnp.maximum(h @ ws[i] + bs[i], 0.0)
        if i % SKIP_LAYER == 0 and i > 0:
            h = jnp.concatenate([h, inputs], axis=-1)
    return h @ wout + bout


if __name__ == "__main__":
    key = jax.random.PRNGKey(0)
    k_x, k_p = jax.random.split(key)

    # Small NeRF-like problem: 1024 points, 3-d input, 4-d output.
    N, INPUT_DIM, OUTPUT_DIM = 1024, 3, 4
    x = jax.random.normal(k_x, (N, INPUT_DIM), jnp.float32)
    params = init_params(k_p, INPUT_DIM, OUTPUT_DIM)

    out = jax.block_until_ready(mlp_forward(x, params, tile=512))
    ref = jax.block_until_ready(mlp_reference(x, params))

    assert out.shape == (N, OUTPUT_DIM)
    # Hidden activations / weights are bf16 with f32 accumulation -> loose tolerance.
    assert np.allclose(np.asarray(out), np.asarray(ref), rtol=2e-2, atol=2e-2)

    print("KERNEL_OK")
</pallas_src>

<mosaic_0001>
module attributes {stable_mosaic.version = 11 : i64} {
  func.func @mlp_kernel(%arg0: i32, %arg1: memref<512x8xf32, #tpu.memory_space<vmem>>, %arg2: memref<8x512xf32, #tpu.memory_space<vmem>>, %arg3: memref<7x256x256xbf16, #tpu.memory_space<vmem>>, %arg4: memref<8x1x256xf32, #tpu.memory_space<vmem>>, %arg5: memref<256x128xbf16, #tpu.memory_space<vmem>>, %arg6: memref<1x128xf32, #tpu.memory_space<vmem>>, %arg7: memref<512x128xf32, #tpu.memory_space<vmem>>, %arg8: memref<512x256xbf16, #tpu.memory_space<vmem>>, %arg9: memref<512x256xf32, #tpu.memory_space<vmem>>) attributes {dimension_semantics = [#tpu.dimension_semantics<parallel>], iteration_bounds = array<i64: 2>, scalar_prefetch = 0 : i64, scratch_operands = 2 : i64, tpu.core_type = #tpu.core_type<tc>, window_params = [{transform_indices = @transform_0, window_bounds = array<i64: 512, 8>}, {pipeline_mode = #tpu.pipeline_mode<synchronous>, transform_indices = @transform_1, window_bounds = array<i64: 8, 512>}, {pipeline_mode = #tpu.pipeline_mode<synchronous>, transform_indices = @transform_2, window_bounds = array<i64: 7, 256, 256>}, {pipeline_mode = #tpu.pipeline_mode<synchronous>, transform_indices = @transform_3, window_bounds = array<i64: 8, 1, 256>}, {pipeline_mode = #tpu.pipeline_mode<synchronous>, transform_indices = @transform_4, window_bounds = array<i64: 256, 128>}, {pipeline_mode = #tpu.pipeline_mode<synchronous>, transform_indices = @transform_5, window_bounds = array<i64: 1, 128>}, {transform_indices = @transform_6, window_bounds = array<i64: 512, 128>}]} {
    %c0 = arith.constant 0 : index
    %c0_0 = arith.constant 0 : index
    %0 = vector.load %arg1[%c0, %c0_0] : memref<512x8xf32, #tpu.memory_space<vmem>>, vector<512x8xf32>
    %c0_1 = arith.constant 0 : index
    %c0_2 = arith.constant 0 : index
    %1 = vector.load %arg2[%c0_1, %c0_2] : memref<8x512xf32, #tpu.memory_space<vmem>>, vector<8x512xf32>
    %cst = arith.constant dense<0.000000e+00> : vector<512x512xf32>
    %2 = tpu.matmul %0, %1, %cst {dimension_numbers = #tpu.dot_dimension_numbers<[1], [0], [0], [1], [0, 0, 1, 1], [], []>} : vector<512x8xf32>, vector<8x512xf32>, vector<512x512xf32> -> vector<512x512xf32>
    %3 = vector.extract_strided_slice %2 {offsets = [0, 256], sizes = [512, 256], strides = [1, 1]} : vector<512x512xf32> to vector<512x256xf32>
    %c0_3 = arith.constant 0 : index
    %c0_4 = arith.constant 0 : index
    %4 = vector.load %arg9[%c0_3, %c0_4] : memref<512x256xf32, #tpu.memory_space<vmem>>, vector<512x256xf32>
    tpu.vector_store %arg9[%c0_3, %c0_4], %3 {strides = array<i32>} : memref<512x256xf32, #tpu.memory_space<vmem>>, vector<512x256xf32>,
    %5 = vector.extract_strided_slice %2 {offsets = [0, 0], sizes = [512, 256], strides = [1, 1]} : vector<512x512xf32> to vector<512x256xf32>
    %6 = arith.truncf %5 : vector<512x256xf32> to vector<512x256xbf16>
    %c0_5 = arith.constant 0 : index
    %c0_6 = arith.constant 0 : index
    %c0_7 = arith.constant 0 : index
    %7 = vector.load %arg4[%c0_5, %c0_6, %c0_7] : memref<8x1x256xf32, #tpu.memory_space<vmem>>, vector<1x1x256xf32>
    %8 = vector.shape_cast %7 : vector<1x1x256xf32> to vector<1x256xf32>
    %9 = arith.truncf %8 : vector<1x256xf32> to vector<1x256xbf16>
    %10 = vector.broadcast %9 : vector<1x256xbf16> to vector<512x256xbf16>
    %11 = arith.addf %6, %10 : vector<512x256xbf16>
    %cst_8 = arith.constant 0.000000e+00 : bf16
    %12 = vector.broadcast %cst_8 : bf16 to vector<512x256xbf16>
    %13 = arith.maximumf %11, %12 : vector<512x256xbf16>
    %c0_9 = arith.constant 0 : index
    %c0_10 = arith.constant 0 : index
    %14 = vector.load %arg8[%c0_9, %c0_10] : memref<512x256xbf16, #tpu.memory_space<vmem>>, vector<512x256xbf16>
    tpu.vector_store %arg8[%c0_9, %c0_10], %13 {strides = array<i32>} : memref<512x256xbf16, #tpu.memory_space<vmem>>, vector<512x256xbf16>,
    %c1_i32 = arith.constant 1 : i32
    %c0_11 = arith.constant 0 : index
    %c0_12 = arith.constant 0 : index
    %15 = vector.load %arg8[%c0_11, %c0_12] : memref<512x256xbf16, #tpu.memory_space<vmem>>, vector<512x256xbf16>
    %c1_i32_13 = arith.constant 1 : i32
    %16 = arith.subi %c1_i32, %c1_i32_13 : i32
    %17 = arith.index_cast %16 : i32 to index
    %c0_14 = arith.constant 0 : index
    %c0_15 = arith.constant 0 : index
    %18 = vector.load %arg3[%17, %c0_14, %c0_15] : memref<7x256x256xbf16, #tpu.memory_space<vmem>>, vector<1x256x256xbf16>
    %19 = vector.shape_cast %18 : vector<1x256x256xbf16> to vector<256x256xbf16>
    %cst_16 = arith.constant dense<0.000000e+00> : vector<512x256xf32>
    %20 = tpu.matmul %15, %19, %cst_16 {dimension_numbers = #tpu.dot_dimension_numbers<[1], [0], [0], [1], [0, 0, 1, 1], [], []>} : vector<512x256xbf16>, vector<256x256xbf16>, vector<512x256xf32> -> vector<512x256xf32>
    %21 = arith.truncf %20 : vector<512x256xf32> to vector<512x256xbf16>
    %22 = arith.index_cast %c1_i32 : i32 to index
    %c0_17 = arith.constant 0 : index
    %c0_18 = arith.constant 0 : index
    %23 = vector.load %arg4[%22, %c0_17, %c0_18] : memref<8x1x256xf32, #tpu.memory_space<vmem>>, vector<1x1x256xf32>
    %24 = vector.shape_cast %23 : vector<1x1x256xf32> to vector<1x256xf32>
    %25 = arith.truncf %24 : vector<1x256xf32> to vector<1x256xbf16>
    %26 = vector.broadcast %25 : vector<1x256xbf16> to vector<512x256xbf16>
    %27 = arith.addf %21, %26 : vector<512x256xbf16>
    %cst_19 = arith.constant 0.000000e+00 : bf16
    %28 = vector.broadcast %cst_19 : bf16 to vector<512x256xbf16>
    %29 = arith.maximumf %27, %28 : vector<512x256xbf16>
    %c0_20 = arith.constant 0 : index
    %c0_21 = arith.constant 0 : index
    %30 = vector.load %arg8[%c0_20, %c0_21] : memref<512x256xbf16, #tpu.memory_space<vmem>>, vector<512x256xbf16>
    tpu.vector_store %arg8[%c0_20, %c0_21], %29 {strides = array<i32>} : memref<512x256xbf16, #tpu.memory_space<vmem>>, vector<512x256xbf16>,
    %c2_i32 = arith.constant 2 : i32
    %c0_22 = arith.constant 0 : index
    %c0_23 = arith.constant 0 : index
    %31 = vector.load %arg8[%c0_22, %c0_23] : memref<512x256xbf16, #tpu.memory_space<vmem>>, vector<512x256xbf16>
    %c1_i32_24 = arith.constant 1 : i32
    %32 = arith.subi %c2_i32, %c1_i32_24 : i32
    %33 = arith.index_cast %32 : i32 to index
    %c0_25 = arith.constant 0 : index
    %c0_26 = arith.constant 0 : index
    %34 = vector.load %arg3[%33, %c0_25, %c0_26] : memref<7x256x256xbf16, #tpu.memory_space<vmem>>, vector<1x256x256xbf16>
    %35 = vector.shape_cast %34 : vector<1x256x256xbf16> to vector<256x256xbf16>
    %cst_27 = arith.constant dense<0.000000e+00> : vector<512x256xf32>
    %36 = tpu.matmul %31, %35, %cst_27 {dimension_numbers = #tpu.dot_dimension_numbers<[1], [0], [0], [1], [0, 0, 1, 1], [], []>} : vector<512x256xbf16>, vector<256x256xbf16>, vector<512x256xf32> -> vector<512x256xf32>
    %37 = arith.truncf %36 : vector<512x256xf32> to vector<512x256xbf16>
    %38 = arith.index_cast %c2_i32 : i32 to index
    %c0_28 = arith.constant 0 : index
    %c0_29 = arith.constant 0 : index
    %39 = vector.load %arg4[%38, %c0_28, %c0_29] : memref<8x1x256xf32, #tpu.memory_space<vmem>>, vector<1x1x256xf32>
    %40 = vector.shape_cast %39 : vector<1x1x256xf32> to vector<1x256xf32>
    %41 = arith.truncf %40 : vector<1x256xf32> to vector<1x256xbf16>
    %42 = vector.broadcast %41 : vector<1x256xbf16> to vector<512x256xbf16>
    %43 = arith.addf %37, %42 : vector<512x256xbf16>
    %cst_30 = arith.constant 0.000000e+00 : bf16
    %44 = vector.broadcast %cst_30 : bf16 to vector<512x256xbf16>
    %45 = arith.maximumf %43, %44 : vector<512x256xbf16>
    %c0_31 = arith.constant 0 : index
    %c0_32 = arith.constant 0 : index
    %46 = vector.load %arg8[%c0_31, %c0_32] : memref<512x256xbf16, #tpu.memory_space<vmem>>, vector<512x256xbf16>
    tpu.vector_store %arg8[%c0_31, %c0_32], %45 {strides = array<i32>} : memref<512x256xbf16, #tpu.memory_space<vmem>>, vector<512x256xbf16>,
    %c3_i32 = arith.constant 3 : i32
    %c0_33 = arith.constant 0 : index
    %c0_34 = arith.constant 0 : index
    %47 = vector.load %arg8[%c0_33, %c0_34] : memref<512x256xbf16, #tpu.memory_space<vmem>>, vector<512x256xbf16>
    %c1_i32_35 = arith.constant 1 : i32
    %48 = arith.subi %c3_i32, %c1_i32_35 : i32
    %49 = arith.index_cast %48 : i32 to index
    %c0_36 = arith.constant 0 : index
    %c0_37 = arith.constant 0 : index
    %50 = vector.load %arg3[%49, %c0_36, %c0_37] : memref<7x256x256xbf16, #tpu.memory_space<vmem>>, vector<1x256x256xbf16>
    %51 = vector.shape_cast %50 : vector<1x256x256xbf16> to vector<256x256xbf16>
    %cst_38 = arith.constant dense<0.000000e+00> : vector<512x256xf32>
    %52 = tpu.matmul %47, %51, %cst_38 {dimension_numbers = #tpu.dot_dimension_numbers<[1], [0], [0], [1], [0, 0, 1, 1], [], []>} : vector<512x256xbf16>, vector<256x256xbf16>, vector<512x256xf32> -> vector<512x256xf32>
    %53 = arith.truncf %52 : vector<512x256xf32> to vector<512x256xbf16>
    %54 = arith.index_cast %c3_i32 : i32 to index
    %c0_39 = arith.constant 0 : index
    %c0_40 = arith.constant 0 : index
    %55 = vector.load %arg4[%54, %c0_39, %c0_40] : memref<8x1x256xf32, #tpu.memory_space<vmem>>, vector<1x1x256xf32>
    %56 = vector.shape_cast %55 : vector<1x1x256xf32> to vector<1x256xf32>
    %57 = arith.truncf %56 : vector<1x256xf32> to vector<1x256xbf16>
    %58 = vector.broadcast %57 : vector<1x256xbf16> to vector<512x256xbf16>
    %59 = arith.addf %53, %58 : vector<512x256xbf16>
    %cst_41 = arith.constant 0.000000e+00 : bf16
    %60 = vector.broadcast %cst_41 : bf16 to vector<512x256xbf16>
    %61 = arith.maximumf %59, %60 : vector<512x256xbf16>
    %c0_42 = arith.constant 0 : index
    %c0_43 = arith.constant 0 : index
    %62 = vector.load %arg8[%c0_42, %c0_43] : memref<512x256xbf16, #tpu.memory_space<vmem>>, vector<512x256xbf16>
    tpu.vector_store %arg8[%c0_42, %c0_43], %61 {strides = array<i32>} : memref<512x256xbf16, #tpu.memory_space<vmem>>, vector<512x256xbf16>,
    %c4_i32 = arith.constant 4 : i32
    %c0_44 = arith.constant 0 : index
    %c0_45 = arith.constant 0 : index
    %63 = vector.load %arg8[%c0_44, %c0_45] : memref<512x256xbf16, #tpu.memory_space<vmem>>, vector<512x256xbf16>
    %c1_i32_46 = arith.constant 1 : i32
    %64 = arith.subi %c4_i32, %c1_i32_46 : i32
    %65 = arith.index_cast %64 : i32 to index
    %c0_47 = arith.constant 0 : index
    %c0_48 = arith.constant 0 : index
    %66 = vector.load %arg3[%65, %c0_47, %c0_48] : memref<7x256x256xbf16, #tpu.memory_space<vmem>>, vector<1x256x256xbf16>
    %67 = vector.shape_cast %66 : vector<1x256x256xbf16> to vector<256x256xbf16>
    %cst_49 = arith.constant dense<0.000000e+00> : vector<512x256xf32>
    %68 = tpu.matmul %63, %67, %cst_49 {dimension_numbers = #tpu.dot_dimension_numbers<[1], [0], [0], [1], [0, 0, 1, 1], [], []>} : vector<512x256xbf16>, vector<256x256xbf16>, vector<512x256xf32> -> vector<512x256xf32>
    %69 = arith.truncf %68 : vector<512x256xf32> to vector<512x256xbf16>
    %70 = arith.index_cast %c4_i32 : i32 to index
    %c0_50 = arith.constant 0 : index
    %c0_51 = arith.constant 0 : index
    %71 = vector.load %arg4[%70, %c0_50, %c0_51] : memref<8x1x256xf32, #tpu.memory_space<vmem>>, vector<1x1x256xf32>
    %72 = vector.shape_cast %71 : vector<1x1x256xf32> to vector<1x256xf32>
    %73 = arith.truncf %72 : vector<1x256xf32> to vector<1x256xbf16>
    %74 = vector.broadcast %73 : vector<1x256xbf16> to vector<512x256xbf16>
    %75 = arith.addf %69, %74 : vector<512x256xbf16>
    %cst_52 = arith.constant 0.000000e+00 : bf16
    %76 = vector.broadcast %cst_52 : bf16 to vector<512x256xbf16>
    %77 = arith.maximumf %75, %76 : vector<512x256xbf16>
    %c0_53 = arith.constant 0 : index
    %c0_54 = arith.constant 0 : index
    %78 = vector.load %arg8[%c0_53, %c0_54] : memref<512x256xbf16, #tpu.memory_space<vmem>>, vector<512x256xbf16>
    tpu.vector_store %arg8[%c0_53, %c0_54], %77 {strides = array<i32>} : memref<512x256xbf16, #tpu.memory_space<vmem>>, vector<512x256xbf16>,
    %c4_i32_55 = arith.constant 4 : i32
    %c0_56 = arith.constant 0 : index
    %c0_57 = arith.constant 0 : index
    %79 = vector.load %arg8[%c0_56, %c0_57] : memref<512x256xbf16, #tpu.memory_space<vmem>>, vector<512x256xbf16>
    %c4 = arith.constant 4 : index
    %c0_58 = arith.constant 0 : index
    %c0_59 = arith.constant 0 : index
    %80 = vector.load %arg3[%c4, %c0_58, %c0_59] : memref<7x256x256xbf16, #tpu.memory_space<vmem>>, vector<1x256x256xbf16>
    %81 = vector.shape_cast %80 : vector<1x256x256xbf16> to vector<256x256xbf16>
    %cst_60 = arith.constant dense<0.000000e+00> : vector<512x256xf32>
    %82 = tpu.matmul %79, %81, %cst_60 {dimension_numbers = #tpu.dot_dimension_numbers<[1], [0], [0], [1], [0, 0, 1, 1], [], []>} : vector<512x256xbf16>, vector<256x256xbf16>, vector<512x256xf32> -> vector<512x256xf32>
    %c0_61 = arith.constant 0 : index
    %c0_62 = arith.constant 0 : index
    %83 = vector.load %arg9[%c0_61, %c0_62] : memref<512x256xf32, #tpu.memory_space<vmem>>, vector<512x256xf32>
    %84 = arith.addf %82, %83 : vector<512x256xf32>
    %85 = arith.truncf %84 : vector<512x256xf32> to vector<512x256xbf16>
    %c5 = arith.constant 5 : index
    %c0_63 = arith.constant 0 : index
    %c0_64 = arith.constant 0 : index
    %86 = vector.load %arg4[%c5, %c0_63, %c0_64] : memref<8x1x256xf32, #tpu.memory_space<vmem>>, vector<1x1x256xf32>
    %87 = vector.shape_cast %86 : vector<1x1x256xf32> to vector<1x256xf32>
    %88 = arith.truncf %87 : vector<1x256xf32> to vector<1x256xbf16>
    %89 = vector.broadcast %88 : vector<1x256xbf16> to vector<512x256xbf16>
    %90 = arith.addf %85, %89 : vector<512x256xbf16>
    %cst_65 = arith.constant 0.000000e+00 : bf16
    %91 = vector.broadcast %cst_65 : bf16 to vector<512x256xbf16>
    %92 = arith.maximumf %90, %91 : vector<512x256xbf16>
    %c0_66 = arith.constant 0 : index
    %c0_67 = arith.constant 0 : index
    %93 = vector.load %arg8[%c0_66, %c0_67] : memref<512x256xbf16, #tpu.memory_space<vmem>>, vector<512x256xbf16>
    tpu.vector_store %arg8[%c0_66, %c0_67], %92 {strides = array<i32>} : memref<512x256xbf16, #tpu.memory_space<vmem>>, vector<512x256xbf16>,
    %c6_i32 = arith.constant 6 : i32
    %c0_68 = arith.constant 0 : index
    %c0_69 = arith.constant 0 : index
    %94 = vector.load %arg8[%c0_68, %c0_69] : memref<512x256xbf16, #tpu.memory_space<vmem>>, vector<512x256xbf16>
    %c1_i32_70 = arith.constant 1 : i32
    %95 = arith.subi %c6_i32, %c1_i32_70 : i32
    %96 = arith.index_cast %95 : i32 to index
    %c0_71 = arith.constant 0 : index
    %c0_72 = arith.constant 0 : index
    %97 = vector.load %arg3[%96, %c0_71, %c0_72] : memref<7x256x256xbf16, #tpu.memory_space<vmem>>, vector<1x256x256xbf16>
    %98 = vector.shape_cast %97 : vector<1x256x256xbf16> to vector<256x256xbf16>
    %cst_73 = arith.constant dense<0.000000e+00> : vector<512x256xf32>
    %99 = tpu.matmul %94, %98, %cst_73 {dimension_numbers = #tpu.dot_dimension_numbers<[1], [0], [0], [1], [0, 0, 1, 1], [], []>} : vector<512x256xbf16>, vector<256x256xbf16>, vector<512x256xf32> -> vector<512x256xf32>
    %100 = arith.truncf %99 : vector<512x256xf32> to vector<512x256xbf16>
    %101 = arith.index_cast %c6_i32 : i32 to index
    %c0_74 = arith.constant 0 : index
    %c0_75 = arith.constant 0 : index
    %102 = vector.load %arg4[%101, %c0_74, %c0_75] : memref<8x1x256xf32, #tpu.memory_space<vmem>>, vector<1x1x256xf32>
    %103 = vector.shape_cast %102 : vector<1x1x256xf32> to vector<1x256xf32>
    %104 = arith.truncf %103 : vector<1x256xf32> to vector<1x256xbf16>
    %105 = vector.broadcast %104 : vector<1x256xbf16> to vector<512x256xbf16>
    %106 = arith.addf %100, %105 : vector<512x256xbf16>
    %cst_76 = arith.constant 0.000000e+00 : bf16
    %107 = vector.broadcast %cst_76 : bf16 to vector<512x256xbf16>
    %108 = arith.maximumf %106, %107 : vector<512x256xbf16>
    %c0_77 = arith.constant 0 : index
    %c0_78 = arith.constant 0 : index
    %109 = vector.load %arg8[%c0_77, %c0_78] : memref<512x256xbf16, #tpu.memory_space<vmem>>, vector<512x256xbf16>
    tpu.vector_store %arg8[%c0_77, %c0_78], %108 {strides = array<i32>} : memref<512x256xbf16, #tpu.memory_space<vmem>>, vector<512x256xbf16>,
    %c7_i32 = arith.constant 7 : i32
    %c0_79 = arith.constant 0 : index
    %c0_80 = arith.constant 0 : index
    %110 = vector.load %arg8[%c0_79, %c0_80] : memref<512x256xbf16, #tpu.memory_space<vmem>>, vector<512x256xbf16>
    %c1_i32_81 = arith.constant 1 : i32
    %111 = arith.subi %c7_i32, %c1_i32_81 : i32
    %112 = arith.index_cast %111 : i32 to index
    %c0_82 = arith.constant 0 : index
    %c0_83 = arith.constant 0 : index
    %113 = vector.load %arg3[%112, %c0_82, %c0_83] : memref<7x256x256xbf16, #tpu.memory_space<vmem>>, vector<1x256x256xbf16>
    %114 = vector.shape_cast %113 : vector<1x256x256xbf16> to vector<256x256xbf16>
    %cst_84 = arith.constant dense<0.000000e+00> : vector<512x256xf32>
    %115 = tpu.matmul %110, %114, %cst_84 {dimension_numbers = #tpu.dot_dimension_numbers<[1], [0], [0], [1], [0, 0, 1, 1], [], []>} : vector<512x256xbf16>, vector<256x256xbf16>, vector<512x256xf32> -> vector<512x256xf32>
    %116 = arith.truncf %115 : vector<512x256xf32> to vector<512x256xbf16>
    %117 = arith.index_cast %c7_i32 : i32 to index
    %c0_85 = arith.constant 0 : index
    %c0_86 = arith.constant 0 : index
    %118 = vector.load %arg4[%117, %c0_85, %c0_86] : memref<8x1x256xf32, #tpu.memory_space<vmem>>, vector<1x1x256xf32>
    %119 = vector.shape_cast %118 : vector<1x1x256xf32> to vector<1x256xf32>
    %120 = arith.truncf %119 : vector<1x256xf32> to vector<1x256xbf16>
    %121 = vector.broadcast %120 : vector<1x256xbf16> to vector<512x256xbf16>
    %122 = arith.addf %116, %121 : vector<512x256xbf16>
    %cst_87 = arith.constant 0.000000e+00 : bf16
    %123 = vector.broadcast %cst_87 : bf16 to vector<512x256xbf16>
    %124 = arith.maximumf %122, %123 : vector<512x256xbf16>
    %c0_88 = arith.constant 0 : index
    %c0_89 = arith.constant 0 : index
    %125 = vector.load %arg8[%c0_88, %c0_89] : memref<512x256xbf16, #tpu.memory_space<vmem>>, vector<512x256xbf16>
    tpu.vector_store %arg8[%c0_88, %c0_89], %124 {strides = array<i32>} : memref<512x256xbf16, #tpu.memory_space<vmem>>, vector<512x256xbf16>,
    %c2_i32_90 = arith.constant 2 : i32
    %c0_91 = arith.constant 0 : index
    %c0_92 = arith.constant 0 : index
    %126 = vector.load %arg8[%c0_91, %c0_92] : memref<512x256xbf16, #tpu.memory_space<vmem>>, vector<512x256xbf16>
    %c0_93 = arith.constant 0 : index
    %c0_94 = arith.constant 0 : index
    %127 = vector.load %arg5[%c0_93, %c0_94] : memref<256x128xbf16, #tpu.memory_space<vmem>>, vector<256x128xbf16>
    %cst_95 = arith.constant dense<0.000000e+00> : vector<512x128xf32>
    %128 = tpu.matmul %126, %127, %cst_95 {dimension_numbers = #tpu.dot_dimension_numbers<[1], [0], [0], [1], [0, 0, 1, 1], [], []>} : vector<512x256xbf16>, vector<256x128xbf16>, vector<512x128xf32> -> vector<512x128xf32>
    %c0_96 = arith.constant 0 : index
    %c0_97 = arith.constant 0 : index
    %129 = vector.load %arg6[%c0_96, %c0_97] : memref<1x128xf32, #tpu.memory_space<vmem>>, vector<1x128xf32>
    %130 = vector.broadcast %129 : vector<1x128xf32> to vector<512x128xf32>
    %131 = arith.addf %128, %130 : vector<512x128xf32>
    %c0_98 = arith.constant 0 : index
    %c0_99 = arith.constant 0 : index
    %132 = vector.load %arg7[%c0_98, %c0_99] : memref<512x128xf32, #tpu.memory_space<vmem>>, vector<512x128xf32>
    tpu.vector_store %arg7[%c0_98, %c0_99], %131 {strides = array<i32>} : memref<512x128xf32, #tpu.memory_space<vmem>>, vector<512x128xf32>,
    return
  }
  func.func @transform_0(%arg0: i32) -> (i32, i32) {
    %c0_i32 = arith.constant 0 : i32
    %c0_i32_0 = arith.constant 0 : i32
    return %arg0, %c0_i32 : i32, i32
  }
  func.func @transform_1(%arg0: i32) -> (i32, i32) {
    %c0_i32 = arith.constant 0 : i32
    %c0_i32_0 = arith.constant 0 : i32
    %c0_i32_1 = arith.constant 0 : i32
    return %c0_i32, %c0_i32_0 : i32, i32
  }
  func.func @transform_2(%arg0: i32) -> (i32, i32, i32) {
    %c0_i32 = arith.constant 0 : i32
    %c0_i32_0 = arith.constant 0 : i32
    %c0_i32_1 = arith.constant 0 : i32
    %c0_i32_2 = arith.constant 0 : i32
    return %c0_i32, %c0_i32_0, %c0_i32_1 : i32, i32, i32
  }
  func.func @transform_3(%arg0: i32) -> (i32, i32, i32) {
    %c0_i32 = arith.constant 0 : i32
    %c0_i32_0 = arith.constant 0 : i32
    %c0_i32_1 = arith.constant 0 : i32
    %c0_i32_2 = arith.constant 0 : i32
    return %c0_i32, %c0_i32_0, %c0_i32_1 : i32, i32, i32
  }
  func.func @transform_4(%arg0: i32) -> (i32, i32) {
    %c0_i32 = arith.constant 0 : i32
    %c0_i32_0 = arith.constant 0 : i32
    %c0_i32_1 = arith.constant 0 : i32
    return %c0_i32, %c0_i32_0 : i32, i32
  }
  func.func @transform_5(%arg0: i32) -> (i32, i32) {
    %c0_i32 = arith.constant 0 : i32
    %c0_i32_0 = arith.constant 0 : i32
    %c0_i32_1 = arith.constant 0 : i32
    return %c0_i32, %c0_i32_0 : i32, i32
  }
  func.func @transform_6(%arg0: i32) -> (i32, i32) {
    %c0_i32 = arith.constant 0 : i32
    %c0_i32_0 = arith.constant 0 : i32
    return %arg0, %c0_i32 : i32, i32
  }
}

</mosaic_0001>

<llo_original>
// kernel: tpu_custom_call.1
$region0: #{tpu_custom_call.1}
  #allocation0 [shape = 'u32[]', space=smem, size = 0x4, offset = 0x4, fixed_abs, tag = 'smem constant byte address 0x4 - core index']
  #allocation1 [shape = 'u32[144,128]{1,0:T(1,128)}', space=vmem, size = 0x12000, scoped, tag = 'internal scratch']
  #allocation2 [shape = 'bf16[512,256]{1,0:T(16,128)(2,1)}', space=vmem, size = 0x40000, scoped, tag = 'scratch operand']
  #allocation3 [shape = 'f32[512,256]{1,0:T(8,128)}', space=vmem, size = 0x80000, scoped, tag = 'scratch operand']
  %s0 = inlined_call_operand.vmem [shape: f32[1024,8], index: 0, kind: input, shape index: {}]
  %s1 = inlined_call_operand.vmem [shape: f32[8,512], index: 1, kind: input, shape index: {}]
  %s2 = inlined_call_operand.hbm [shape: bf16[7,256,256], index: 2, kind: input, shape index: {}]
  %s3 = inlined_call_operand.vmem [shape: f32[8,1,256], index: 3, kind: input, shape index: {}]
  %s4 = inlined_call_operand.vmem [shape: bf16[256,128], index: 4, kind: input, shape index: {}]
  %s5 = inlined_call_operand.vmem [shape: f32[1,128], index: 5, kind: input, shape index: {}]
  %s6 = inlined_call_operand.hbm [shape: f32[1024,128], index: 6, kind: output, shape index: {}]
  %s7 = sld [smem:[#allocation0]]
  $region61: #{tpu_custom_call.1} parent=0
    _
  %s9 = ssub.s32 1, %s7
  %s10 = scalar_select 0, %s9, %s7
  $region1: #{tpu_custom_call.1} parent=0
    #allocation4 [shape = 'u8[917504]{0}', space=vmem, size = 0xe0000, scoped, tag = 'input window, operand 2, single buffered']
    #allocation5 [shape = 's32[2]{0}', space=sflag, size = 0x8, scoped, tag = 'scoped memory for tpu_custom_call.1']
    #allocation6 [shape = 's32[2]{0}', space=sflag, size = 0x8, scoped, tag = 'scoped memory for tpu_custom_call.1']
    #allocation7 [shape = 'u8[524288]{0}', space=vmem, size = 0x80000, scoped, tag = 'output window, operand 0']
    %11 = vsyncpa [#allocation5], 0
    %12 = vsyncpa [#allocation6], 0
    %s13 = scalar_lea.sflag [#allocation6], 1
    %14 = vsyncpa %s13, 0
    loop: start=0, step=1, limit=4
    $region2: #{tpu_custom_call.1} parent=1 // loop_pre_header
      _
    $region3: #{tpu_custom_call.1} parent=1 // loop_header
      %s16 = sphi 0, %s20
      %p17 = scmp.ge.s32.totalorder %s16, 4
      %s26 = sphi 0, %s28
      %s29 = sphi 0, %s26
      %s30 = sphi 0, %s29
      %s46 = sphi 0, %s30
      %s50 = sphi 0, %s50
      %s52 = sphi 0, %s50
      %s53 = sphi 0, %s52
      %s67 = sphi 0, %s53
      %s71 = sphi 0, %s71
      %s73 = sphi 0, %s71
      %s74 = sphi 0, %s73
      %s88 = sphi 0, %s74
      %s92 = sphi 0, %s92
      %s94 = sphi 0, %s92
      %s95 = sphi 0, %s94
      %s109 = sphi 0, %s95
      %s113 = sphi 0, %s113
      %s115 = sphi 0, %s113
      %s116 = sphi 0, %s115
      %s130 = sphi 0, %s116
      %s134 = sphi 0, %s134
      %s136 = sphi 0, %s134
      %s137 = sphi 0, %s136
      %s151 = sphi 0, %s137
      %s157 = sphi 0, %s159
      %s160 = sphi 0, %s157
      %s161 = sphi 0, %s160
      %s177 = sphi 0, %s161
    $region4: #{tpu_custom_call.1} parent=1 // loop_header_branch
      %19 = sbr.rel (%p17) target = $region8
    $region5: #{tpu_custom_call.1} parent=1 // loop_body
      %s21 = ssub.s32 %s16, 1
      %s22 = ssub.s32 %s16, 2
      %s23 = sadd.s32 %s16, 1
      %s24 = ssub.s32 %s16, %s23
      %p25 = scmp.eq.s32.totalorder %s24, 0
      %s27 = sadd.s32 %s26, 1
      %s28 = scalar_select %p25, %s26, %s27
      %p31 = pneg %p25
      %p32 = scmp.eq.s32.totalorder %s16, 1
      %p33 = por %p31, %p32
      %p34 = scmp.ne.s32.totalorder %s26, %s29
      %p35 = scmp.eq.s32.totalorder %s16, 0
      %p36 = por %p34, %p35
      %p37 = scmp.ne.s32.totalorder %s26, %s29
      %p38 = scmp.eq.s32.totalorder %s21, 1
      %p39 = por %p37, %p38
      %p40 = scmp.ne.s32.totalorder %s29, %s30
      %p41 = scmp.eq.s32.totalorder %s21, 0
      %p42 = por %p40, %p41
      %p43 = scmp.ne.s32.totalorder %s29, %s30
      %p44 = scmp.eq.s32.totalorder %s22, 1
      %p45 = por %p43, %p44
      %p47 = scmp.ne.s32.totalorder %s30, %s46
      %p48 = scmp.eq.s32.totalorder %s22, 0
      %p49 = por %p47, %p48
      %s51 = sadd.s32 %s50, 1
      %p54 = scmp.eq.s32.totalorder %s16, 1
      %p55 = scmp.ne.s32.totalorder %s50, %s52
      %p56 = scmp.eq.s32.totalorder %s16, 0
      %p57 = por %p55, %p56
      %p58 = scmp.ne.s32.totalorder %s50, %s52
      %p59 = scmp.eq.s32.totalorder %s21, 1
      %p60 = por %p58, %p59
      %p61 = scmp.ne.s32.totalorder %s52, %s53
      %p62 = scmp.eq.s32.totalorder %s21, 0
      %p63 = por %p61, %p62
      %p64 = scmp.ne.s32.totalorder %s52, %s53
      %p65 = scmp.eq.s32.totalorder %s22, 1
      %p66 = por %p64, %p65
      %p68 = scmp.ne.s32.totalorder %s53, %s67
      %p69 = scmp.eq.s32.totalorder %s22, 0
      %p70 = por %p68, %p69
      %s72 = sadd.s32 %s71, 1
      %p75 = scmp.eq.s32.totalorder %s16, 1
      %p76 = scmp.ne.s32.totalorder %s71, %s73
      %p77 = scmp.eq.s32.totalorder %s16, 0
      %p78 = por %p76, %p77
      %p79 = scmp.ne.s32.totalorder %s71, %s73
      %p80 = scmp.eq.s32.totalorder %s21, 1
      %p81 = por %p79, %p80
      %p82 = scmp.ne.s32.totalorder %s73, %s74
      %p83 = scmp.eq.s32.totalorder %s21, 0
      %p84 = por %p82, %p83
      %p85 = scmp.ne.s32.totalorder %s73, %s74
      %p86 = scmp.eq.s32.totalorder %s22, 1
      %p87 = por %p85, %p86
      %p89 = scmp.ne.s32.totalorder %s74, %s88
      %p90 = scmp.eq.s32.totalorder %s22, 0
      %p91 = por %p89, %p90
      %s93 = sadd.s32 %s92, 1
      %p96 = scmp.eq.s32.totalorder %s16, 1
      %p97 = scmp.ne.s32.totalorder %s92, %s94
      %p98 = scmp.eq.s32.totalorder %s16, 0
      %p99 = por %p97, %p98
      %p100 = scmp.ne.s32.totalorder %s92, %s94
      %p101 = scmp.eq.s32.totalorder %s21, 1
      %p102 = por %p100, %p101
      %p103 = scmp.ne.s32.totalorder %s94, %s95
      %p104 = scmp.eq.s32.totalorder %s21, 0
      %p105 = por %p103, %p104
      %p106 = scmp.ne.s32.totalorder %s94, %s95
      %p107 = scmp.eq.s32.totalorder %s22, 1
      %p108 = por %p106, %p107
      %p110 = scmp.ne.s32.totalorder %s95, %s109
      %p111 = scmp.eq.s32.totalorder %s22, 0
      %p112 = por %p110, %p111
      %s114 = sadd.s32 %s113, 1
      %p117 = scmp.eq.s32.totalorder %s16, 1
      %p118 = scmp.ne.s32.totalorder %s113, %s115
      %p119 = scmp.eq.s32.totalorder %s16, 0
      %p120 = por %p118, %p119
      %p121 = scmp.ne.s32.totalorder %s113, %s115
      %p122 = scmp.eq.s32.totalorder %s21, 1
      %p123 = por %p121, %p122
      %p124 = scmp.ne.s32.totalorder %s115, %s116
      %p125 = scmp.eq.s32.totalorder %s21, 0
      %p126 = por %p124, %p125
      %p127 = scmp.ne.s32.totalorder %s115, %s116
      %p128 = scmp.eq.s32.totalorder %s22, 1
      %p129 = por %p127, %p128
      %p131 = scmp.ne.s32.totalorder %s116, %s130
      %p132 = scmp.eq.s32.totalorder %s22, 0
      %p133 = por %p131, %p132
      %s135 = sadd.s32 %s134, 1
      %p138 = scmp.eq.s32.totalorder %s16, 1
      %p139 = scmp.ne.s32.totalorder %s134, %s136
      %p140 = scmp.eq.s32.totalorder %s16, 0
      %p141 = por %p139, %p140
      %p142 = scmp.ne.s32.totalorder %s134, %s136
      %p143 = scmp.eq.s32.totalorder %s21, 1
      %p144 = por %p142, %p143
      %p145 = scmp.ne.s32.totalorder %s136, %s137
      %p146 = scmp.eq.s32.totalorder %s21, 0
      %p147 = por %p145, %p146
      %p148 = scmp.ne.s32.totalorder %s136, %s137
      %p149 = scmp.eq.s32.totalorder %s22, 1
      %p150 = por %p148, %p149
      %p152 = scmp.ne.s32.totalorder %s137, %s151
      %p153 = scmp.eq.s32.totalorder %s22, 0
      %p154 = por %p152, %p153
      %s155 = ssub.s32 %s16, %s23
      %p156 = scmp.eq.s32.totalorder %s155, 0
      %s158 = sadd.s32 %s157, 1
      %s159 = scalar_select %p156, %s157, %s158
      %p162 = pneg %p156
      %p163 = scmp.eq.s32.totalorder %s16, 1
      %p164 = por %p162, %p163
      %p165 = scmp.ne.s32.totalorder %s157, %s160
      %p166 = scmp.eq.s32.totalorder %s16, 0
      %p167 = por %p165, %p166
      %p168 = scmp.ne.s32.totalorder %s157, %s160
      %p169 = scmp.eq.s32.totalorder %s21, 1
      %p170 = por %p168, %p169
      %p171 = scmp.ne.s32.totalorder %s160, %s161
      %p172 = scmp.eq.s32.totalorder %s21, 0
      %p173 = por %p171, %p172
      %p174 = scmp.ne.s32.totalorder %s160, %s161
      %p175 = scmp.eq.s32.totalorder %s22, 1
      %p176 = por %p174, %p175
      %p178 = scmp.ne.s32.totalorder %s161, %s177
      %p179 = scmp.eq.s32.totalorder %s22, 0
      %p180 = por %p178, %p179
      %p181 = scmp.le.s32.totalorder 1, %s16
      %p182 = scmp.lt.s32.totalorder %s16, 3
      %p183 = pnand %p181, %p182
      %p184 = pneg %p183
      // Predicated region
      $region9: #{tpu_custom_call.1} parent=5 // pred_check
        _
      $region10: #{tpu_custom_call.1} parent=5 // pred_check_branch
        %186 = sbr.rel (%p183) target = $region12
      $region11: #{tpu_custom_call.1} parent=5 // pred_region
        %s187 = ssub.s32 %s16, 1
        // Predicated region
        $region13: #{tpu_custom_call.1} parent=11 // pred_check
          %p188 = pneg %p63
        $region14: #{tpu_custom_call.1} parent=11 // pred_check_branch
          %190 = sbr.rel (%p188) target = $region16
        $region15: #{tpu_custom_call.1} parent=11 // pred_region
          _
        $region16: #{tpu_custom_call.1} parent=11 // pred_fallthru
          _
        // Predicated region
        $region17: #{tpu_custom_call.1} parent=11 // pred_check
          %p191 = pneg %p84
        $region18: #{tpu_custom_call.1} parent=11 // pred_check_branch
          %193 = sbr.rel (%p191) target = $region20
        $region19: #{tpu_custom_call.1} parent=11 // pred_region
          %s195 = ssub.s32 28672, 28672
          %196 = vsyncadd [#allocation5], %s195
          %s197 = sshll.u32 [#allocation4], 4
          %s198 = int_to_ptr.vmem [resolvable:$true] %s197
          %203 = dma.hbm_to_vmem [thread:$0]  %s2, 28672, %s198, [#allocation5], 128, 128, 8
        $region20: #{tpu_custom_call.1} parent=11 // pred_fallthru
          _
        // Predicated region
        $region21: #{tpu_custom_call.1} parent=11 // pred_check
          %p204 = pneg %p105
        $region22: #{tpu_custom_call.1} parent=11 // pred_check_branch
          %206 = sbr.rel (%p204) target = $region24
        $region23: #{tpu_custom_call.1} parent=11 // pred_region
          _
        $region24: #{tpu_custom_call.1} parent=11 // pred_fallthru
          _
        // Predicated region
        $region25: #{tpu_custom_call.1} parent=11 // pred_check
          %p207 = pneg %p126
        $region26: #{tpu_custom_call.1} parent=11 // pred_check_branch
          %209 = sbr.rel (%p207) target = $region28
        $region27: #{tpu_custom_call.1} parent=11 // pred_region
          _
        $region28: #{tpu_custom_call.1} parent=11 // pred_fallthru
          _
        // Predicated region
        $region29: #{tpu_custom_call.1} parent=11 // pred_check
          %p210 = pneg %p147
        $region30: #{tpu_custom_call.1} parent=11 // pred_check_branch
          %212 = sbr.rel (%p210) target = $region32
        $region31: #{tpu_custom_call.1} parent=11 // pred_region
          _
        $region32: #{tpu_custom_call.1} parent=11 // pred_fallthru
          _
      $region12: #{tpu_custom_call.1} parent=5 // pred_fallthru
        _
      %p213 = scmp.lt.s32.totalorder %s16, 2
      // Predicated region
      $region33: #{tpu_custom_call.1} parent=5 // pred_check
        %p214 = pneg %p213
      $region34: #{tpu_custom_call.1} parent=5 // pred_check_branch
        %216 = sbr.rel (%p214) target = $region36
      $region35: #{tpu_custom_call.1} parent=5 // pred_region
        // Predicated region
        $region37: #{tpu_custom_call.1} parent=35 // pred_check
          %p217 = pneg %p36
        $region38: #{tpu_custom_call.1} parent=35 // pred_check_branch
          %219 = sbr.rel (%p217) target = $region40
        $region39: #{tpu_custom_call.1} parent=35 // pred_region
          %s220 = smul.u32 64, %s16
          %p221 = scmp.lt.s32.totalorder %s220, 127
          %s222 = scalar_select %p221, %s220, 127
          %s223 = smul.addr %s222, 8
          %s224 = scalar_lea.vmem %s0, %s223
          %s225 = smul.u32 64, %s16
        $region40: #{tpu_custom_call.1} parent=35 // pred_fallthru
          _
      $region36: #{tpu_custom_call.1} parent=5 // pred_fallthru
        _
      %p226 = scmp.le.s32.totalorder 1, %s16
      %p227 = scmp.lt.s32.totalorder %s16, 3
      %p228 = pnand %p226, %p227
      %p229 = pneg %p228
      // Predicated region
      $region41: #{tpu_custom_call.1} parent=5 // pred_check
        _
      $region42: #{tpu_custom_call.1} parent=5 // pred_check_branch
        %231 = sbr.rel (%p228) target = $region44
      $region43: #{tpu_custom_call.1} parent=5 // pred_region
        %s232 = ssub.s32 %s16, 1
        // Predicated region
        $region45: #{tpu_custom_call.1} parent=43 // pred_check
          %p233 = pneg %p84
        $region46: #{tpu_custom_call.1} parent=43 // pred_check_branch
          %235 = sbr.rel (%p233) target = $region48
        $region47: #{tpu_custom_call.1} parent=43 // pred_region
          %236 = dma.done [#allocation5], 28672
        $region48: #{tpu_custom_call.1} parent=43 // pred_fallthru
          _
        %s237 = smul.u32 64, %s21
        %p238 = scmp.lt.s32.totalorder %s237, 127
        %s239 = scalar_select %p238, %s237, 127
        %s240 = smul.addr %s239, 8
        %s241 = scalar_lea.vmem %s0, %s240
        %p242 = pneg %p42
        %p243 = pneg %p39
        %p244 = pneg %p63
        %p245 = pneg %p60
        %p246 = pneg %p84
        %p247 = pneg %p81
        %p248 = pneg %p105
        %p249 = pneg %p102
        %p250 = pneg %p126
        %p251 = pneg %p123
        %p252 = pneg %p147
        %p253 = pneg %p144
        %p254 = pneg %p173
        %p255 = pneg %p170
        %s256 = sand.u32 %s160, 1
        %s257 = scalar_lea.sflag [#allocation6], %s256
        %s258 = sand.u32 %s160, 1
        %s259 = smul.addr %s258, 512
        %s260 = scalar_lea.vmem [#allocation7], %s259
        %s261 = smul.u32 64, %s21
        %p262 = scmp.lt.s32.totalorder %s261, 127
        %s263 = scalar_select %p262, %s261, 127
        %s264 = smul.addr %s263, 8
        %s265 = scalar_lea.vmem %s0, %s264
        %s266 = smul.u32 64, %s21
        %s267 = smul.u32 64, %s21
        %v269 = vld [vmem:[%s265] sm:$0xff]
        %v270 = vld [vmem:[%s265 + $0x8] sm:$0xff]
        %v271 = vld [vmem:[%s265 + $0x10] sm:$0xff]
        %v272 = vld [vmem:[%s265 + $0x18] sm:$0xff]
        %v273 = vld [vmem:[%s265 + $0x20] sm:$0xff]
        %v274 = vld [vmem:[%s265 + $0x28] sm:$0xff]
        %v275 = vld [vmem:[%s265 + $0x30] sm:$0xff]
        %v276 = vld [vmem:[%s265 + $0x38] sm:$0xff]
        %v277 = vld [vmem:[%s265 + $0x40] sm:$0xff]
        %v278 = vld [vmem:[%s265 + $0x48] sm:$0xff]
        %v279 = vld [vmem:[%s265 + $0x50] sm:$0xff]
        %v280 = vld [vmem:[%s265 + $0x58] sm:$0xff]
        %v281 = vld [vmem:[%s265 + $0x60] sm:$0xff]
        %v282 = vld [vmem:[%s265 + $0x68] sm:$0xff]
        %v283 = vld [vmem:[%s265 + $0x70] sm:$0xff]
        %v284 = vld [vmem:[%s265 + $0x78] sm:$0xff]
        %v285 = vld [vmem:[%s265 + $0x80] sm:$0xff]
        %v286 = vld [vmem:[%s265 + $0x88] sm:$0xff]
        %v287 = vld [vmem:[%s265 + $0x90] sm:$0xff]
        %v288 = vld [vmem:[%s265 + $0x98] sm:$0xff]
        %v289 = vld [vmem:[%s265 + $0xa0] sm:$0xff]
        %v290 = vld [vmem:[%s265 + $0xa8] sm:$0xff]
        %v291 = vld [vmem:[%s265 + $0xb0] sm:$0xff]
        %v292 = vld [vmem:[%s265 + $0xb8] sm:$0xff]
        %v293 = vld [vmem:[%s265 + $0xc0] sm:$0xff]
        %v294 = vld [vmem:[%s265 + $0xc8] sm:$0xff]
        %v295 = vld [vmem:[%s265 + $0xd0] sm:$0xff]
        %v296 = vld [vmem:[%s265 + $0xd8] sm:$0xff]
        %v297 = vld [vmem:[%s265 + $0xe0] sm:$0xff]
        %v298 = vld [vmem:[%s265 + $0xe8] sm:$0xff]
        %v299 = vld [vmem:[%s265 + $0xf0] sm:$0xff]
        %v300 = vld [vmem:[%s265 + $0xf8] sm:$0xff]
        %v301 = vld [vmem:[%s265 + $0x100] sm:$0xff]
        %v302 = vld [vmem:[%s265 + $0x108] sm:$0xff]
        %v303 = vld [vmem:[%s265 + $0x110] sm:$0xff]
        %v304 = vld [vmem:[%s265 + $0x118] sm:$0xff]
        %v305 = vld [vmem:[%s265 + $0x120] sm:$0xff]
        %v306 = vld [vmem:[%s265 + $0x128] sm:$0xff]
        %v307 = vld [vmem:[%s265 + $0x130] sm:$0xff]
        %v308 = vld [vmem:[%s265 + $0x138] sm:$0xff]
        %v309 = vld [vmem:[%s265 + $0x140] sm:$0xff]
        %v310 = vld [vmem:[%s265 + $0x148] sm:$0xff]
        %v311 = vld [vmem:[%s265 + $0x150] sm:$0xff]
        %v312 = vld [vmem:[%s265 + $0x158] sm:$0xff]
        %v313 = vld [vmem:[%s265 + $0x160] sm:$0xff]
        %v314 = vld [vmem:[%s265 + $0x168] sm:$0xff]
        %v315 = vld [vmem:[%s265 + $0x170] sm:$0xff]
        %v316 = vld [vmem:[%s265 + $0x178] sm:$0xff]
        %v317 = vld [vmem:[%s265 + $0x180] sm:$0xff]
        %v318 = vld [vmem:[%s265 + $0x188] sm:$0xff]
        %v319 = vld [vmem:[%s265 + $0x190] sm:$0xff]
        %v320 = vld [vmem:[%s265 + $0x198] sm:$0xff]
        %v321 = vld [vmem:[%s265 + $0x1a0] sm:$0xff]
        %v322 = vld [vmem:[%s265 + $0x1a8] sm:$0xff]
        %v323 = vld [vmem:[%s265 + $0x1b0] sm:$0xff]
        %v324 = vld [vmem:[%s265 + $0x1b8] sm:$0xff]
        %v325 = vld [vmem:[%s265 + $0x1c0] sm:$0xff]
        %v326 = vld [vmem:[%s265 + $0x1c8] sm:$0xff]
        %v327 = vld [vmem:[%s265 + $0x1d0] sm:$0xff]
        %v328 = vld [vmem:[%s265 + $0x1d8] sm:$0xff]
        %v329 = vld [vmem:[%s265 + $0x1e0] sm:$0xff]
        %v330 = vld [vmem:[%s265 + $0x1e8] sm:$0xff]
        %v331 = vld [vmem:[%s265 + $0x1f0] sm:$0xff]
        %v332 = vld [vmem:[%s265 + $0x1f8] sm:$0xff]
        %v333 = vld [vmem:[%s1] sm:$0xff]
        %v334 = vld [vmem:[%s1 + $0x8] sm:$0xff]
        %v335 = vld [vmem:[%s1 + $0x10] sm:$0xff]
        %v336 = vld [vmem:[%s1 + $0x18] sm:$0xff]
        %vm337 = vcmask 64512
        %v339 = vsel %vm337, %v269, 0
        %v342 = vsel %vm337, %v270, 0
        %v345 = vsel %vm337, %v271, 0
        %v348 = vsel %vm337, %v272, 0
        %v351 = vsel %vm337, %v273, 0
        %v354 = vsel %vm337, %v274, 0
        %v357 = vsel %vm337, %v275, 0
        %v360 = vsel %vm337, %v276, 0
        %v363 = vsel %vm337, %v277, 0
        %v366 = vsel %vm337, %v278, 0
        %v369 = vsel %vm337, %v279, 0
        %v372 = vsel %vm337, %v280, 0
        %v375 = vsel %vm337, %v281, 0
        %v378 = vsel %vm337, %v282, 0
        %v381 = vsel %vm337, %v283, 0
        %v384 = vsel %vm337, %v284, 0
        %v387 = vsel %vm337, %v285, 0
        %v390 = vsel %vm337, %v286, 0
        %v393 = vsel %vm337, %v287, 0
        %v396 = vsel %vm337, %v288, 0
        %v399 = vsel %vm337, %v289, 0
        %v402 = vsel %vm337, %v290, 0
        %v405 = vsel %vm337, %v291, 0
        %v408 = vsel %vm337, %v292, 0
        %v411 = vsel %vm337, %v293, 0
        %v414 = vsel %vm337, %v294, 0
        %v417 = vsel %vm337, %v295, 0
        %v420 = vsel %vm337, %v296, 0
        %v423 = vsel %vm337, %v297, 0
        %v426 = vsel %vm337, %v298, 0
        %v429 = vsel %vm337, %v299, 0
        %v432 = vsel %vm337, %v300, 0
        %v435 = vsel %vm337, %v301, 0
        %v438 = vsel %vm337, %v302, 0
        %v441 = vsel %vm337, %v303, 0
        %v444 = vsel %vm337, %v304, 0
        %v447 = vsel %vm337, %v305, 0
        %v450 = vsel %vm337, %v306, 0
        %v453 = vsel %vm337, %v307, 0
        %v456 = vsel %vm337, %v308, 0
        %v459 = vsel %vm337, %v309, 0
        %v462 = vsel %vm337, %v310, 0
        %v465 = vsel %vm337, %v311, 0
        %v468 = vsel %vm337, %v312, 0
        %v471 = vsel %vm337, %v313, 0
        %v474 = vsel %vm337, %v314, 0
        %v477 = vsel %vm337, %v315, 0
        %v480 = vsel %vm337, %v316, 0
        %v483 = vsel %vm337, %v317, 0
        %v486 = vsel %vm337, %v318, 0
        %v489 = vsel %vm337, %v319, 0
        %v492 = vsel %vm337, %v320, 0
        %v495 = vsel %vm337, %v321, 0
        %v498 = vsel %vm337, %v322, 0
        %v501 = vsel %vm337, %v323, 0
        %v504 = vsel %vm337, %v324, 0
        %v507 = vsel %vm337, %v325, 0
        %v510 = vsel %vm337, %v326, 0
        %v513 = vsel %vm337, %v327, 0
        %v516 = vsel %vm337, %v328, 0
        %v519 = vsel %vm337, %v329, 0
        %v522 = vsel %vm337, %v330, 0
        %v525 = vsel %vm337, %v331, 0
        %v528 = vsel %vm337, %v332, 0
        %530 = vmatprep.subr.mxu0 %v334
        %531 = vmatpush1.msra.mxu0 %v333
        %532 = vmatprep.subr.mxu0 0.0
        %533 = vmatpush1.msra.mxu0 0.0
        %534 = vmatprep.subr.mxu0 0.0
        %535 = vmatpush1.msra.mxu0 0.0
        %536 = vmatprep.subr.mxu0 0.0
        %537 = vmatpush1.msra.mxu0 0.0
        %538 = vmatprep.subr.mxu0 0.0
        %539 = vmatpush1.msra.mxu0 0.0
        %540 = vmatprep.subr.mxu0 0.0
        %541 = vmatpush1.msra.mxu0 0.0
        %542 = vmatprep.subr.mxu0 0.0
        %543 = vmatpush1.msra.mxu0 0.0
        %544 = vmatprep.subr.mxu0 0.0
        %545 = vmatpush1.msra.mxu0 0.0
        %546 = vmatprep.subr.mxu0 0.0
        %547 = vmatpush1.msra.mxu0 0.0
        %548 = vmatprep.subr.mxu0 0.0
        %549 = vmatpush1.msra.mxu0 0.0
        %550 = vmatprep.subr.mxu0 0.0
        %551 = vmatpush1.msra.mxu0 0.0
        %552 = vmatprep.subr.mxu0 0.0
        %553 = vmatpush1.msra.mxu0 0.0
        %554 = vmatprep.subr.mxu0 0.0
        %555 = vmatpush1.msra.mxu0 0.0
        %556 = vmatprep.subr.mxu0 0.0
        %557 = vmatpush1.msra.mxu0 0.0
        %558 = vmatprep.subr.mxu0 0.0
        %559 = vmatpush1.msra.mxu0 0.0
        %560 = vmatprep.subr.mxu0 0.0
        %561 = vmatpush1.msra.mxu0 0.0
        %562 = vmatprep.subr.mxu0 0.0
        %563 = vmatpush1.msra.mxu0 0.0
        %564 = vmatprep.subr.mxu0 0.0
        %565 = vmatpush1.msra.mxu0 0.0
        %566 = vmatprep.subr.mxu0 0.0
        %567 = vmatpush1.msra.mxu0 0.0
        %568 = vmatprep.subr.mxu0 0.0
        %569 = vmatpush1.msra.mxu0 0.0
        %570 = vmatprep.subr.mxu0 0.0
        %571 = vmatpush1.msra.mxu0 0.0
        %572 = vmatprep.subr.mxu0 0.0
        %573 = vmatpush1.msra.mxu0 0.0
        %574 = vmatprep.subr.mxu0 0.0
        %575 = vmatpush1.msra.mxu0 0.0
        %576 = vmatprep.subr.mxu0 0.0
        %577 = vmatpush1.msra.mxu0 0.0
        %578 = vmatprep.subr.mxu0 0.0
        %579 = vmatpush1.msra.mxu0 0.0
        %580 = vmatprep.subr.mxu0 0.0
        %581 = vmatpush1.msra.mxu0 0.0
        %582 = vmatprep.subr.mxu0 0.0
        %583 = vmatpush1.msra.mxu0 0.0
        %584 = vmatprep.subr.mxu0 0.0
        %585 = vmatpush1.msra.mxu0 0.0
        %586 = vmatprep.subr.mxu0 0.0
        %587 = vmatpush1.msra.mxu0 0.0
        %588 = vmatprep.subr.mxu0 0.0
        %589 = vmatpush1.msra.mxu0 0.0
        %590 = vmatprep.subr.mxu0 0.0
        %591 = vmatpush1.msra.mxu0 0.0
        %592 = vmatprep.subr.mxu0 0.0
        %593 = vmatpush1.msra.mxu0 0.0
        %594 = vmatprep.mubr.f32.mxu0 0.0
        %595 = vmatmul.mubr.f32.gmra.mrb[0].mxu0 %v339
        %v596 = vpop.f32.mrb[0].mxu0
        %v597 = vadd.f32 0.0, %v596
        %v598 = vpop.f32.mrb[0].mxu0
        %v599 = vadd.f32 0.0, %v598
        %600 = vmatprep.mubr.f32.mxu0 0.0
        %601 = vmatmul.mubr.f32.gmra.mrb[0].mxu0 %v342
        %v602 = vpop.f32.mrb[0].mxu0
        %v603 = vadd.f32 0.0, %v602
        %v604 = vpop.f32.mrb[0].mxu0
        %v605 = vadd.f32 0.0, %v604
        %606 = vmatprep.mubr.f32.mxu0 0.0
        %607 = vmatmul.mubr.f32.gmra.mrb[0].mxu0 %v345
        %v608 = vpop.f32.mrb[0].mxu0
        %v609 = vadd.f32 0.0, %v608
        %v610 = vpop.f32.mrb[0].mxu0
        %v611 = vadd.f32 0.0, %v610
        %612 = vmatprep.mubr.f32.mxu0 0.0
        %613 = vmatmul.mubr.f32.gmra.mrb[0].mxu0 %v348
        %v614 = vpop.f32.mrb[0].mxu0
        %v615 = vadd.f32 0.0, %v614
        %v616 = vpop.f32.mrb[0].mxu0
        %v617 = vadd.f32 0.0, %v616
        %618 = vmatprep.mubr.f32.mxu0 0.0
        %619 = vmatmul.mubr.f32.gmra.mrb[0].mxu0 %v351
        %v620 = vpop.f32.mrb[0].mxu0
        %v621 = vadd.f32 0.0, %v620
        %v622 = vpop.f32.mrb[0].mxu0
        %v623 = vadd.f32 0.0, %v622
        %624 = vmatprep.mubr.f32.mxu0 0.0
        %625 = vmatmul.mubr.f32.gmra.mrb[0].mxu0 %v354
        %v626 = vpop.f32.mrb[0].mxu0
        %v627 = vadd.f32 0.0, %v626
        %v628 = vpop.f32.mrb[0].mxu0
        %v629 = vadd.f32 0.0, %v628
        %630 = vmatprep.mubr.f32.mxu0 0.0
        %631 = vmatmul.mubr.f32.gmra.mrb[0].mxu0 %v357
        %v632 = vpop.f32.mrb[0].mxu0
        %v633 = vadd.f32 0.0, %v632
        %v634 = vpop.f32.mrb[0].mxu0
        %v635 = vadd.f32 0.0, %v634
        %636 = vmatprep.mubr.f32.mxu0 0.0
        %637 = vmatmul.mubr.f32.gmra.mrb[0].mxu0 %v360
        %v638 = vpop.f32.mrb[0].mxu0
        %v639 = vadd.f32 0.0, %v638
        %v640 = vpop.f32.mrb[0].mxu0
        %v641 = vadd.f32 0.0, %v640
        %642 = vmatprep.mubr.f32.mxu0 0.0
        %643 = vmatmul.mubr.f32.gmra.mrb[0].mxu0 %v363
        %v644 = vpop.f32.mrb[0].mxu0
        %v645 = vadd.f32 0.0, %v644
        %v646 = vpop.f32.mrb[0].mxu0
        %v647 = vadd.f32 0.0, %v646
        %648 = vmatprep.mubr.f32.mxu0 0.0
        %649 = vmatmul.mubr.f32.gmra.mrb[0].mxu0 %v366
        %v650 = vpop.f32.mrb[0].mxu0
        %v651 = vadd.f32 0.0, %v650
        %v652 = vpop.f32.mrb[0].mxu0
        %v653 = vadd.f32 0.0, %v652
        %654 = vmatprep.mubr.f32.mxu0 0.0
        %655 = vmatmul.mubr.f32.gmra.mrb[0].mxu0 %v369
        %v656 = vpop.f32.mrb[0].mxu0
        %v657 = vadd.f32 0.0, %v656
        %v658 = vpop.f32.mrb[0].mxu0
        %v659 = vadd.f32 0.0, %v658
        %660 = vmatprep.mubr.f32.mxu0 0.0
        %661 = vmatmul.mubr.f32.gmra.mrb[0].mxu0 %v372
        %v662 = vpop.f32.mrb[0].mxu0
        %v663 = vadd.f32 0.0, %v662
        %v664 = vpop.f32.mrb[0].mxu0
        %v665 = vadd.f32 0.0, %v664
        %666 = vmatprep.mubr.f32.mxu0 0.0
        %667 = vmatmul.mubr.f32.gmra.mrb[0].mxu0 %v375
        %v668 = vpop.f32.mrb[0].mxu0
        %v669 = vadd.f32 0.0, %v668
        %v670 = vpop.f32.mrb[0].mxu0
        %v671 = vadd.f32 0.0, %v670
        %672 = vmatprep.mubr.f32.mxu0 0.0
        %673 = vmatmul.mubr.f32.gmra.mrb[0].mxu0 %v378
        %v674 = vpop.f32.mrb[0].mxu0
        %v675 = vadd.f32 0.0, %v674
        %v676 = vpop.f32.mrb[0].mxu0
        %v677 = vadd.f32 0.0, %v676
        %678 = vmatprep.mubr.f32.mxu0 0.0
        %679 = vmatmul.mubr.f32.gmra.mrb[0].mxu0 %v381
        %v680 = vpop.f32.mrb[0].mxu0
        %v681 = vadd.f32 0.0, %v680
        %v682 = vpop.f32.mrb[0].mxu0
        %v683 = vadd.f32 0.0, %v682
        %684 = vmatprep.mubr.f32.mxu0 0.0
        %685 = vmatmul.mubr.f32.gmra.mrb[0].mxu0 %v384
        %v686 = vpop.f32.mrb[0].mxu0
        %v687 = vadd.f32 0.0, %v686
        %v688 = vpop.f32.mrb[0].mxu0
        %v689 = vadd.f32 0.0, %v688
        %690 = vmatprep.mubr.f32.mxu0 0.0
        %691 = vmatmul.mubr.f32.gmra.mrb[0].mxu0 %v387
        %v692 = vpop.f32.mrb[0].mxu0
        %v693 = vadd.f32 0.0, %v692
        %v694 = vpop.f32.mrb[0].mxu0
        %v695 = vadd.f32 0.0, %v694
        %696 = vmatprep.mubr.f32.mxu0 0.0
        %697 = vmatmul.mubr.f32.gmra.mrb[0].mxu0 %v390
        %v698 = vpop.f32.mrb[0].mxu0
        %v699 = vadd.f32 0.0, %v698
        %v700 = vpop.f32.mrb[0].mxu0
        %v701 = vadd.f32 0.0, %v700
        %702 = vmatprep.mubr.f32.mxu0 0.0
        %703 = vmatmul.mubr.f32.gmra.mrb[0].mxu0 %v393
        %v704 = vpop.f32.mrb[0].mxu0
        %v705 = vadd.f32 0.0, %v704
        %v706 = vpop.f32.mrb[0].mxu0
        %v707 = vadd.f32 0.0, %v706
        %708 = vmatprep.mubr.f32.mxu0 0.0
        %709 = vmatmul.mubr.f32.gmra.mrb[0].mxu0 %v396
        %v710 = vpop.f32.mrb[0].mxu0
        %v711 = vadd.f32 0.0, %v710
        %v712 = vpop.f32.mrb[0].mxu0
        %v713 = vadd.f32 0.0, %v712
        %714 = vmatprep.mubr.f32.mxu0 0.0
        %715 = vmatmul.mubr.f32.gmra.mrb[0].mxu0 %v399
        %v716 = vpop.f32.mrb[0].mxu0
        %v717 = vadd.f32 0.0, %v716
        %v718 = vpop.f32.mrb[0].mxu0
        %v719 = vadd.f32 0.0, %v718
        %720 = vmatprep.mubr.f32.mxu0 0.0
        %721 = vmatmul.mubr.f32.gmra.mrb[0].mxu0 %v402
        %v722 = vpop.f32.mrb[0].mxu0
        %v723 = vadd.f32 0.0, %v722
        %v724 = vpop.f32.mrb[0].mxu0
        %v725 = vadd.f32 0.0, %v724
        %726 = vmatprep.mubr.f32.mxu0 0.0
        %727 = vmatmul.mubr.f32.gmra.mrb[0].mxu0 %v405
        %v728 = vpop.f32.mrb[0].mxu0
        %v729 = vadd.f32 0.0, %v728
        %v730 = vpop.f32.mrb[0].mxu0
        %v731 = vadd.f32 0.0, %v730
        %732 = vmatprep.mubr.f32.mxu0 0.0
        %733 = vmatmul.mubr.f32.gmra.mrb[0].mxu0 %v408
        %v734 = vpop.f32.mrb[0].mxu0
        %v735 = vadd.f32 0.0, %v734
        %v736 = vpop.f32.mrb[0].mxu0
        %v737 = vadd.f32 0.0, %v736
        %738 = vmatprep.mubr.f32.mxu0 0.0
        %739 = vmatmul.mubr.f32.gmra.mrb[0].mxu0 %v411
        %v740 = vpop.f32.mrb[0].mxu0
        %v741 = vadd.f32 0.0, %v740
        %v742 = vpop.f32.mrb[0].mxu0
        %v743 = vadd.f32 0.0, %v742
        %744 = vmatprep.mubr.f32.mxu0 0.0
        %745 = vmatmul.mubr.f32.gmra.mrb[0].mxu0 %v414
        %v746 = vpop.f32.mrb[0].mxu0
        %v747 = vadd.f32 0.0, %v746
        %v748 = vpop.f32.mrb[0].mxu0
        %v749 = vadd.f32 0.0, %v748
        %750 = vmatprep.mubr.f32.mxu0 0.0
        %751 = vmatmul.mubr.f32.gmra.mrb[0].mxu0 %v417
        %v752 = vpop.f32.mrb[0].mxu0
        %v753 = vadd.f32 0.0, %v752
        %v754 = vpop.f32.mrb[0].mxu0
        %v755 = vadd.f32 0.0, %v754
        %756 = vmatprep.mubr.f32.mxu0 0.0
        %757 = vmatmul.mubr.f32.gmra.mrb[0].mxu0 %v420
        %v758 = vpop.f32.mrb[0].mxu0
        %v759 = vadd.f32 0.0, %v758
        %v760 = vpop.f32.mrb[0].mxu0
        %v761 = vadd.f32 0.0, %v760
        %762 = vmatprep.mubr.f32.mxu0 0.0
        %763 = vmatmul.mubr.f32.gmra.mrb[0].mxu0 %v423
        %v764 = vpop.f32.mrb[0].mxu0
        %v765 = vadd.f32 0.0, %v764
        %v766 = vpop.f32.mrb[0].mxu0
        %v767 = vadd.f32 0.0, %v766
        %768 = vmatprep.mubr.f32.mxu0 0.0
        %769 = vmatmul.mubr.f32.gmra.mrb[0].mxu0 %v426
        %v770 = vpop.f32.mrb[0].mxu0
        %v771 = vadd.f32 0.0, %v770
        %v772 = vpop.f32.mrb[0].mxu0
        %v773 = vadd.f32 0.0, %v772
        %774 = vmatprep.mubr.f32.mxu0 0.0
        %775 = vmatmul.mubr.f32.gmra.mrb[0].mxu0 %v429
        %v776 = vpop.f32.mrb[0].mxu0
        %v777 = vadd.f32 0.0, %v776
        %v778 = vpop.f32.mrb[0].mxu0
        %v779 = vadd.f32 0.0, %v778
        %780 = vmatprep.mubr.f32.mxu0 0.0
        %781 = vmatmul.mubr.f32.gmra.mrb[0].mxu0 %v432
        %v782 = vpop.f32.mrb[0].mxu0
        %v783 = vadd.f32 0.0, %v782
        %v784 = vpop.f32.mrb[0].mxu0
        %v785 = vadd.f32 0.0, %v784
        %786 = vmatprep.mubr.f32.mxu0 0.0
        %787 = vmatmul.mubr.f32.gmra.mrb[0].mxu0 %v435
        %v788 = vpop.f32.mrb[0].mxu0
        %v789 = vadd.f32 0.0, %v788
        %v790 = vpop.f32.mrb[0].mxu0
        %v791 = vadd.f32 0.0, %v790
        %792 = vmatprep.mubr.f32.mxu0 0.0
        %793 = vmatmul.mubr.f32.gmra.mrb[0].mxu0 %v438
        %v794 = vpop.f32.mrb[0].mxu0
        %v795 = vadd.f32 0.0, %v794
        %v796 = vpop.f32.mrb[0].mxu0
        %v797 = vadd.f32 0.0, %v796
        %798 = vmatprep.mubr.f32.mxu0 0.0
        %799 = vmatmul.mubr.f32.gmra.mrb[0].mxu0 %v441
        %v800 = vpop.f32.mrb[0].mxu0
        %v801 = vadd.f32 0.0, %v800
        %v802 = vpop.f32.mrb[0].mxu0
        %v803 = vadd.f32 0.0, %v802
        %804 = vmatprep.mubr.f32.mxu0 0.0
        %805 = vmatmul.mubr.f32.gmra.mrb[0].mxu0 %v444
        %v806 = vpop.f32.mrb[0].mxu0
        %v807 = vadd.f32 0.0, %v806
        %v808 = vpop.f32.mrb[0].mxu0
        %v809 = vadd.f32 0.0, %v808
        %810 = vmatprep.mubr.f32.mxu0 0.0
        %811 = vmatmul.mubr.f32.gmra.mrb[0].mxu0 %v447
        %v812 = vpop.f32.mrb[0].mxu0
        %v813 = vadd.f32 0.0, %v812
        %v814 = vpop.f32.mrb[0].mxu0
        %v815 = vadd.f32 0.0, %v814
        %816 = vmatprep.mubr.f32.mxu0 0.0
        %817 = vmatmul.mubr.f32.gmra.mrb[0].mxu0 %v450
        %v818 = vpop.f32.mrb[0].mxu0
        %v819 = vadd.f32 0.0, %v818
        %v820 = vpop.f32.mrb[0].mxu0
        %v821 = vadd.f32 0.0, %v820
        %822 = vmatprep.mubr.f32.mxu0 0.0
        %823 = vmatmul.mubr.f32.gmra.mrb[0].mxu0 %v453
        %v824 = vpop.f32.mrb[0].mxu0
        %v825 = vadd.f32 0.0, %v824
        %v826 = vpop.f32.mrb[0].mxu0
        %v827 = vadd.f32 0.0, %v826
        %828 = vmatprep.mubr.f32.mxu0 0.0
        %829 = vmatmul.mubr.f32.gmra.mrb[0].mxu0 %v456
        %v830 = vpop.f32.mrb[0].mxu0
        %v831 = vadd.f32 0.0, %v830
        %v832 = vpop.f32.mrb[0].mxu0
        %v833 = vadd.f32 0.0, %v832
        %834 = vmatprep.mubr.f32.mxu0 0.0
        %835 = vmatmul.mubr.f32.gmra.mrb[0].mxu0 %v459
        %v836 = vpop.f32.mrb[0].mxu0
        %v837 = vadd.f32 0.0, %v836
        %v838 = vpop.f32.mrb[0].mxu0
        %v839 = vadd.f32 0.0, %v838
        %840 = vmatprep.mubr.f32.mxu0 0.0
        %841 = vmatmul.mubr.f32.gmra.mrb[0].mxu0 %v462
        %v842 = vpop.f32.mrb[0].mxu0
        %v843 = vadd.f32 0.0, %v842
        %v844 = vpop.f32.mrb[0].mxu0
        %v845 = vadd.f32 0.0, %v844
        %846 = vmatprep.mubr.f32.mxu0 0.0
        %847 = vmatmul.mubr.f32.gmra.mrb[0].mxu0 %v465
        %v848 = vpop.f32.mrb[0].mxu0
        %v849 = vadd.f32 0.0, %v848
        %v850 = vpop.f32.mrb[0].mxu0
        %v851 = vadd.f32 0.0, %v850
        %852 = vmatprep.mubr.f32.mxu0 0.0
        %853 = vmatmul.mubr.f32.gmra.mrb[0].mxu0 %v468
        %v854 = vpop.f32.mrb[0].mxu0
        %v855 = vadd.f32 0.0, %v854
        %v856 = vpop.f32.mrb[0].mxu0
        %v857 = vadd.f32 0.0, %v856
        %858 = vmatprep.mubr.f32.mxu0 0.0
        %859 = vmatmul.mubr.f32.gmra.mrb[0].mxu0 %v471
        %v860 = vpop.f32.mrb[0].mxu0
        %v861 = vadd.f32 0.0, %v860
        %v862 = vpop.f32.mrb[0].mxu0
        %v863 = vadd.f32 0.0, %v862
        %864 = vmatprep.mubr.f32.mxu0 0.0
        %865 = vmatmul.mubr.f32.gmra.mrb[0].mxu0 %v474
        %v866 = vpop.f32.mrb[0].mxu0
        %v867 = vadd.f32 0.0, %v866
        %v868 = vpop.f32.mrb[0].mxu0
        %v869 = vadd.f32 0.0, %v868
        %870 = vmatprep.mubr.f32.mxu0 0.0
        %871 = vmatmul.mubr.f32.gmra.mrb[0].mxu0 %v477
        %v872 = vpop.f32.mrb[0].mxu0
        %v873 = vadd.f32 0.0, %v872
        %v874 = vpop.f32.mrb[0].mxu0
        %v875 = vadd.f32 0.0, %v874
        %876 = vmatprep.mubr.f32.mxu0 0.0
        %877 = vmatmul.mubr.f32.gmra.mrb[0].mxu0 %v480
        %v878 = vpop.f32.mrb[0].mxu0
        %v879 = vadd.f32 0.0, %v878
        %v880 = vpop.f32.mrb[0].mxu0
        %v881 = vadd.f32 0.0, %v880
        %882 = vmatprep.mubr.f32.mxu0 0.0
        %883 = vmatmul.mubr.f32.gmra.mrb[0].mxu0 %v483
        %v884 = vpop.f32.mrb[0].mxu0
        %v885 = vadd.f32 0.0, %v884
        %v886 = vpop.f32.mrb[0].mxu0
        %v887 = vadd.f32 0.0, %v886
        %888 = vmatprep.mubr.f32.mxu0 0.0
        %889 = vmatmul.mubr.f32.gmra.mrb[0].mxu0 %v486
        %v890 = vpop.f32.mrb[0].mxu0
        %v891 = vadd.f32 0.0, %v890
        %v892 = vpop.f32.mrb[0].mxu0
        %v893 = vadd.f32 0.0, %v892
        %894 = vmatprep.mubr.f32.mxu0 0.0
        %895 = vmatmul.mubr.f32.gmra.mrb[0].mxu0 %v489
        %v896 = vpop.f32.mrb[0].mxu0
        %v897 = vadd.f32 0.0, %v896
        %v898 = vpop.f32.mrb[0].mxu0
        %v899 = vadd.f32 0.0, %v898
        %900 = vmatprep.mubr.f32.mxu0 0.0
        %901 = vmatmul.mubr.f32.gmra.mrb[0].mxu0 %v492
        %v902 = vpop.f32.mrb[0].mxu0
        %v903 = vadd.f32 0.0, %v902
        %v904 = vpop.f32.mrb[0].mxu0
        %v905 = vadd.f32 0.0, %v904
        %906 = vmatprep.mubr.f32.mxu0 0.0
        %907 = vmatmul.mubr.f32.gmra.mrb[0].mxu0 %v495
        %v908 = vpop.f32.mrb[0].mxu0
        %v909 = vadd.f32 0.0, %v908
        %v910 = vpop.f32.mrb[0].mxu0
        %v911 = vadd.f32 0.0, %v910
        %912 = vmatprep.mubr.f32.mxu0 0.0
        %913 = vmatmul.mubr.f32.gmra.mrb[0].mxu0 %v498
        %v914 = vpop.f32.mrb[0].mxu0
        %v915 = vadd.f32 0.0, %v914
        %v916 = vpop.f32.mrb[0].mxu0
        %v917 = vadd.f32 0.0, %v916
        %918 = vmatprep.mubr.f32.mxu0 0.0
        %919 = vmatmul.mubr.f32.gmra.mrb[0].mxu0 %v501
        %v920 = vpop.f32.mrb[0].mxu0
        %v921 = vadd.f32 0.0, %v920
        %v922 = vpop.f32.mrb[0].mxu0
        %v923 = vadd.f32 0.0, %v922
        %924 = vmatprep.mubr.f32.mxu0 0.0
        %925 = vmatmul.mubr.f32.gmra.mrb[0].mxu0 %v504
        %v926 = vpop.f32.mrb[0].mxu0
        %v927 = vadd.f32 0.0, %v926
        %v928 = vpop.f32.mrb[0].mxu0
        %v929 = vadd.f32 0.0, %v928
        %930 = vmatprep.mubr.f32.mxu0 0.0
        %931 = vmatmul.mubr.f32.gmra.mrb[0].mxu0 %v507
        %v932 = vpop.f32.mrb[0].mxu0
        %v933 = vadd.f32 0.0, %v932
        %v934 = vpop.f32.mrb[0].mxu0
        %v935 = vadd.f32 0.0, %v934
        %936 = vmatprep.mubr.f32.mxu0 0.0
        %937 = vmatmul.mubr.f32.gmra.mrb[0].mxu0 %v510
        %v938 = vpop.f32.mrb[0].mxu0
        %v939 = vadd.f32 0.0, %v938
        %v940 = vpop.f32.mrb[0].mxu0
        %v941 = vadd.f32 0.0, %v940
        %942 = vmatprep.mubr.f32.mxu0 0.0
        %943 = vmatmul.mubr.f32.gmra.mrb[0].mxu0 %v513
        %v944 = vpop.f32.mrb[0].mxu0
        %v945 = vadd.f32 0.0, %v944
        %v946 = vpop.f32.mrb[0].mxu0
        %v947 = vadd.f32 0.0, %v946
        %948 = vmatprep.mubr.f32.mxu0 0.0
        %949 = vmatmul.mubr.f32.gmra.mrb[0].mxu0 %v516
        %v950 = vpop.f32.mrb[0].mxu0
        %v951 = vadd.f32 0.0, %v950
        %v952 = vpop.f32.mrb[0].mxu0
        %v953 = vadd.f32 0.0, %v952
        %954 = vmatprep.mubr.f32.mxu0 0.0
        %955 = vmatmul.mubr.f32.gmra.mrb[0].mxu0 %v519
        %v956 = vpop.f32.mrb[0].mxu0
        %v957 = vadd.f32 0.0, %v956
        %v958 = vpop.f32.mrb[0].mxu0
        %v959 = vadd.f32 0.0, %v958
        %960 = vmatprep.mubr.f32.mxu0 0.0
        %961 = vmatmul.mubr.f32.gmra.mrb[0].mxu0 %v522
        %v962 = vpop.f32.mrb[0].mxu0
        %v963 = vadd.f32 0.0, %v962
        %v964 = vpop.f32.mrb[0].mxu0
        %v965 = vadd.f32 0.0, %v964
        %966 = vmatprep.mubr.f32.mxu0 0.0
        %967 = vmatmul.mubr.f32.gmra.mrb[0].mxu0 %v525
        %v968 = vpop.f32.mrb[0].mxu0
        %v969 = vadd.f32 0.0, %v968
        %v970 = vpop.f32.mrb[0].mxu0
        %v971 = vadd.f32 0.0, %v970
        %972 = vmatprep.mubr.f32.mxu0 0.0
        %973 = vmatmul.mubr.f32.gmra.mrb[0].mxu0 %v528
        %v974 = vpop.f32.mrb[0].mxu0
        %v975 = vadd.f32 0.0, %v974
        %v976 = vpop.f32.mrb[0].mxu0
        %v977 = vadd.f32 0.0, %v976
        %978 = vdwg.mxu0
        %979 = vmatprep.subr.mxu0 %v336
        %980 = vmatpush1.msra.mxu0 %v335
        %981 = vmatprep.subr.mxu0 0.0
        %982 = vmatpush1.msra.mxu0 0.0
        %983 = vmatprep.subr.mxu0 0.0
        %984 = vmatpush1.msra.mxu0 0.0
        %985 = vmatprep.subr.mxu0 0.0
        %986 = vmatpush1.msra.mxu0 0.0
        %987 = vmatprep.subr.mxu0 0.0
        %988 = vmatpush1.msra.mxu0 0.0
        %989 = vmatprep.subr.mxu0 0.0
        %990 = vmatpush1.msra.mxu0 0.0
        %991 = vmatprep.subr.mxu0 0.0
        %992 = vmatpush1.msra.mxu0 0.0
        %993 = vmatprep.subr.mxu0 0.0
        %994 = vmatpush1.msra.mxu0 0.0
        %995 = vmatprep.subr.mxu0 0.0
        %996 = vmatpush1.msra.mxu0 0.0
        %997 = vmatprep.subr.mxu0 0.0
        %998 = vmatpush1.msra.mxu0 0.0
        %999 = vmatprep.subr.mxu0 0.0
        %1000 = vmatpush1.msra.mxu0 0.0
        %1001 = vmatprep.subr.mxu0 0.0
        %1002 = vmatpush1.msra.mxu0 0.0
        %1003 = vmatprep.subr.mxu0 0.0
        %1004 = vmatpush1.msra.mxu0 0.0
        %1005 = vmatprep.subr.mxu0 0.0
        %1006 = vmatpush1.msra.mxu0 0.0
        %1007 = vmatprep.subr.mxu0 0.0
        %1008 = vmatpush1.msra.mxu0 0.0
        %1009 = vmatprep.subr.mxu0 0.0
        %1010 = vmatpush1.msra.mxu0 0.0
        %1011 = vmatprep.subr.mxu0 0.0
        %1012 = vmatpush1.msra.mxu0 0.0
        %1013 = vmatprep.subr.mxu0 0.0
        %1014 = vmatpush1.msra.mxu0 0.0
        %1015 = vmatprep.subr.mxu0 0.0
        %1016 = vmatpush1.msra.mxu0 0.0
        %1017 = vmatprep.subr.mxu0 0.0
        %1018 = vmatpush1.msra.mxu0 0.0
        %1019 = vmatprep.subr.mxu0 0.0
        %1020 = vmatpush1.msra.mxu0 0.0
        %1021 = vmatprep.subr.mxu0 0.0
        %1022 = vmatpush1.msra.mxu0 0.0
        %1023 = vmatprep.subr.mxu0 0.0
        %1024 = vmatpush1.msra.mxu0 0.0
        %1025 = vmatprep.subr.mxu0 0.0
        %1026 = vmatpush1.msra.mxu0 0.0
        %1027 = vmatprep.subr.mxu0 0.0
        %1028 = vmatpush1.msra.mxu0 0.0
        %1029 = vmatprep.subr.mxu0 0.0
        %1030 = vmatpush1.msra.mxu0 0.0
        %1031 = vmatprep.subr.mxu0 0.0
        %1032 = vmatpush1.msra.mxu0 0.0
        %1033 = vmatprep.subr.mxu0 0.0
        %1034 = vmatpush1.msra.mxu0 0.0
        %1035 = vmatprep.subr.mxu0 0.0
        %1036 = vmatpush1.msra.mxu0 0.0
        %1037 = vmatprep.subr.mxu0 0.0
        %1038 = vmatpush1.msra.mxu0 0.0
        %1039 = vmatprep.subr.mxu0 0.0
        %1040 = vmatpush1.msra.mxu0 0.0
        %1041 = vmatprep.subr.mxu0 0.0
        %1042 = vmatpush1.msra.mxu0 0.0
        %1043 = vmatprep.mubr.f32.mxu0 0.0
        %1044 = vmatmul.mubr.f32.gmra.mrb[0].mxu0 %v339
        %v1045 = vpop.f32.mrb[0].mxu0
        %v1046 = vadd.f32 0.0, %v1045
        %v1047 = vpop.f32.mrb[0].mxu0
        %v1048 = vadd.f32 0.0, %v1047
        %1049 = vmatprep.mubr.f32.mxu0 0.0
        %1050 = vmatmul.mubr.f32.gmra.mrb[0].mxu0 %v342
        %v1051 = vpop.f32.mrb[0].mxu0
        %v1052 = vadd.f32 0.0, %v1051
        %v1053 = vpop.f32.mrb[0].mxu0
        %v1054 = vadd.f32 0.0, %v1053
        %1055 = vmatprep.mubr.f32.mxu0 0.0
        %1056 = vmatmul.mubr.f32.gmra.mrb[0].mxu0 %v345
        %v1057 = vpop.f32.mrb[0].mxu0
        %v1058 = vadd.f32 0.0, %v1057
        %v1059 = vpop.f32.mrb[0].mxu0
        %v1060 = vadd.f32 0.0, %v1059
        %1061 = vmatprep.mubr.f32.mxu0 0.0
        %1062 = vmatmul.mubr.f32.gmra.mrb[0].mxu0 %v348
        %v1063 = vpop.f32.mrb[0].mxu0
        %v1064 = vadd.f32 0.0, %v1063
        %v1065 = vpop.f32.mrb[0].mxu0
        %v1066 = vadd.f32 0.0, %v1065
        %1067 = vmatprep.mubr.f32.mxu0 0.0
        %1068 = vmatmul.mubr.f32.gmra.mrb[0].mxu0 %v351
        %v1069 = vpop.f32.mrb[0].mxu0
        %v1070 = vadd.f32 0.0, %v1069
        %v1071 = vpop.f32.mrb[0].mxu0
        %v1072 = vadd.f32 0.0, %v1071
        %1073 = vmatprep.mubr.f32.mxu0 0.0
        %1074 = vmatmul.mubr.f32.gmra.mrb[0].mxu0 %v354
        %v1075 = vpop.f32.mrb[0].mxu0
        %v1076 = vadd.f32 0.0, %v1075
        %v1077 = vpop.f32.mrb[0].mxu0
        %v1078 = vadd.f32 0.0, %v1077
        %1079 = vmatprep.mubr.f32.mxu0 0.0
        %1080 = vmatmul.mubr.f32.gmra.mrb[0].mxu0 %v357
        %v1081 = vpop.f32.mrb[0].mxu0
        %v1082 = vadd.f32 0.0, %v1081
        %v1083 = vpop.f32.mrb[0].mxu0
        %v1084 = vadd.f32 0.0, %v1083
        %1085 = vmatprep.mubr.f32.mxu0 0.0
        %1086 = vmatmul.mubr.f32.gmra.mrb[0].mxu0 %v360
        %v1087 = vpop.f32.mrb[0].mxu0
        %v1088 = vadd.f32 0.0, %v1087
        %v1089 = vpop.f32.mrb[0].mxu0
        %v1090 = vadd.f32 0.0, %v1089
        %1091 = vmatprep.mubr.f32.mxu0 0.0
        %1092 = vmatmul.mubr.f32.gmra.mrb[0].mxu0 %v363
        %v1093 = vpop.f32.mrb[0].mxu0
        %v1094 = vadd.f32 0.0, %v1093
        %v1095 = vpop.f32.mrb[0].mxu0
        %v1096 = vadd.f32 0.0, %v1095
        %1097 = vmatprep.mubr.f32.mxu0 0.0
        %1098 = vmatmul.mubr.f32.gmra.mrb[0].mxu0 %v366
        %v1099 = vpop.f32.mrb[0].mxu0
        %v1100 = vadd.f32 0.0, %v1099
        %v1101 = vpop.f32.mrb[0].mxu0
        %v1102 = vadd.f32 0.0, %v1101
        %1103 = vmatprep.mubr.f32.mxu0 0.0
        %1104 = vmatmul.mubr.f32.gmra.mrb[0].mxu0 %v369
        %v1105 = vpop.f32.mrb[0].mxu0
        %v1106 = vadd.f32 0.0, %v1105
        %v1107 = vpop.f32.mrb[0].mxu0
        %v1108 = vadd.f32 0.0, %v1107
        %1109 = vmatprep.mubr.f32.mxu0 0.0
        %1110 = vmatmul.mubr.f32.gmra.mrb[0].mxu0 %v372
        %v1111 = vpop.f32.mrb[0].mxu0
        %v1112 = vadd.f32 0.0, %v1111
        %v1113 = vpop.f32.mrb[0].mxu0
        %v1114 = vadd.f32 0.0, %v1113
        %1115 = vmatprep.mubr.f32.mxu0 0.0
        %1116 = vmatmul.mubr.f32.gmra.mrb[0].mxu0 %v375
        %v1117 = vpop.f32.mrb[0].mxu0
        %v1118 = vadd.f32 0.0, %v1117
        %v1119 = vpop.f32.mrb[0].mxu0
        %v1120 = vadd.f32 0.0, %v1119
        %1121 = vmatprep.mubr.f32.mxu0 0.0
        %1122 = vmatmul.mubr.f32.gmra.mrb[0].mxu0 %v378
        %v1123 = vpop.f32.mrb[0].mxu0
        %v1124 = vadd.f32 0.0, %v1123
        %v1125 = vpop.f32.mrb[0].mxu0
        %v1126 = vadd.f32 0.0, %v1125
        %1127 = vmatprep.mubr.f32.mxu0 0.0
        %1128 = vmatmul.mubr.f32.gmra.mrb[0].mxu0 %v381
        %v1129 = vpop.f32.mrb[0].mxu0
        %v1130 = vadd.f32 0.0, %v1129
        %v1131 = vpop.f32.mrb[0].mxu0
        %v1132 = vadd.f32 0.0, %v1131
        %1133 = vmatprep.mubr.f32.mxu0 0.0
        %1134 = vmatmul.mubr.f32.gmra.mrb[0].mxu0 %v384
        %v1135 = vpop.f32.mrb[0].mxu0
        %v1136 = vadd.f32 0.0, %v1135
        %v1137 = vpop.f32.mrb[0].mxu0
        %v1138 = vadd.f32 0.0, %v1137
        %1139 = vmatprep.mubr.f32.mxu0 0.0
        %1140 = vmatmul.mubr.f32.gmra.mrb[0].mxu0 %v387
        %v1141 = vpop.f32.mrb[0].mxu0
        %v1142 = vadd.f32 0.0, %v1141
        %v1143 = vpop.f32.mrb[0].mxu0
        %v1144 = vadd.f32 0.0, %v1143
        %1145 = vmatprep.mubr.f32.mxu0 0.0
        %1146 = vmatmul.mubr.f32.gmra.mrb[0].mxu0 %v390
        %v1147 = vpop.f32.mrb[0].mxu0
        %v1148 = vadd.f32 0.0, %v1147
        %v1149 = vpop.f32.mrb[0].mxu0
        %v1150 = vadd.f32 0.0, %v1149
        %1151 = vmatprep.mubr.f32.mxu0 0.0
        %1152 = vmatmul.mubr.f32.gmra.mrb[0].mxu0 %v393
        %v1153 = vpop.f32.mrb[0].mxu0
        %v1154 = vadd.f32 0.0, %v1153
        %v1155 = vpop.f32.mrb[0].mxu0
        %v1156 = vadd.f32 0.0, %v1155
        %1157 = vmatprep.mubr.f32.mxu0 0.0
        %1158 = vmatmul.mubr.f32.gmra.mrb[0].mxu0 %v396
        %v1159 = vpop.f32.mrb[0].mxu0
        %v1160 = vadd.f32 0.0, %v1159
        %v1161 = vpop.f32.mrb[0].mxu0
        %v1162 = vadd.f32 0.0, %v1161
        %1163 = vmatprep.mubr.f32.mxu0 0.0
        %1164 = vmatmul.mubr.f32.gmra.mrb[0].mxu0 %v399
        %v1165 = vpop.f32.mrb[0].mxu0
        %v1166 = vadd.f32 0.0, %v1165
        %v1167 = vpop.f32.mrb[0].mxu0
        %v1168 = vadd.f32 0.0, %v1167
        %1169 = vmatprep.mubr.f32.mxu0 0.0
        %1170 = vmatmul.mubr.f32.gmra.mrb[0].mxu0 %v402
        %v1171 = vpop.f32.mrb[0].mxu0
        %v1172 = vadd.f32 0.0, %v1171
        %v1173 = vpop.f32.mrb[0].mxu0
        %v1174 = vadd.f32 0.0, %v1173
        %1175 = vmatprep.mubr.f32.mxu0 0.0
        %1176 = vmatmul.mubr.f32.gmra.mrb[0].mxu0 %v405
        %v1177 = vpop.f32.mrb[0].mxu0
        %v1178 = vadd.f32 0.0, %v1177
        %v1179 = vpop.f32.mrb[0].mxu0
        %v1180 = vadd.f32 0.0, %v1179
        %1181 = vmatprep.mubr.f32.mxu0 0.0
        %1182 = vmatmul.mubr.f32.gmra.mrb[0].mxu0 %v408
        %v1183 = vpop.f32.mrb[0].mxu0
        %v1184 = vadd.f32 0.0, %v1183
        %v1185 = vpop.f32.mrb[0].mxu0
        %v1186 = vadd.f32 0.0, %v1185
        %1187 = vmatprep.mubr.f32.mxu0 0.0
        %1188 = vmatmul.mubr.f32.gmra.mrb[0].mxu0 %v411
        %v1189 = vpop.f32.mrb[0].mxu0
        %v1190 = vadd.f32 0.0, %v1189
        %v1191 = vpop.f32.mrb[0].mxu0
        %v1192 = vadd.f32 0.0, %v1191
        %1193 = vmatprep.mubr.f32.mxu0 0.0
        %1194 = vmatmul.mubr.f32.gmra.mrb[0].mxu0 %v414
        %v1195 = vpop.f32.mrb[0].mxu0
        %v1196 = vadd.f32 0.0, %v1195
        %v1197 = vpop.f32.mrb[0].mxu0
        %v1198 = vadd.f32 0.0, %v1197
        %1199 = vmatprep.mubr.f32.mxu0 0.0
        %1200 = vmatmul.mubr.f32.gmra.mrb[0].mxu0 %v417
        %v1201 = vpop.f32.mrb[0].mxu0
        %v1202 = vadd.f32 0.0, %v1201
        %v1203 = vpop.f32.mrb[0].mxu0
        %v1204 = vadd.f32 0.0, %v1203
        %1205 = vmatprep.mubr.f32.mxu0 0.0
        %1206 = vmatmul.mubr.f32.gmra.mrb[0].mxu0 %v420
        %v1207 = vpop.f32.mrb[0].mxu0
        %v1208 = vadd.f32 0.0, %v1207
        %v1209 = vpop.f32.mrb[0].mxu0
        %v1210 = vadd.f32 0.0, %v1209
        %1211 = vmatprep.mubr.f32.mxu0 0.0
        %1212 = vmatmul.mubr.f32.gmra.mrb[0].mxu0 %v423
        %v1213 = vpop.f32.mrb[0].mxu0
        %v1214 = vadd.f32 0.0, %v1213
        %v1215 = vpop.f32.mrb[0].mxu0
        %v1216 = vadd.f32 0.0, %v1215
        %1217 = vmatprep.mubr.f32.mxu0 0.0
        %1218 = vmatmul.mubr.f32.gmra.mrb[0].mxu0 %v426
        %v1219 = vpop.f32.mrb[0].mxu0
        %v1220 = vadd.f32 0.0, %v1219
        %v1221 = vpop.f32.mrb[0].mxu0
        %v1222 = vadd.f32 0.0, %v1221
        %1223 = vmatprep.mubr.f32.mxu0 0.0
        %1224 = vmatmul.mubr.f32.gmra.mrb[0].mxu0 %v429
        %v1225 = vpop.f32.mrb[0].mxu0
        %v1226 = vadd.f32 0.0, %v1225
        %v1227 = vpop.f32.mrb[0].mxu0
        %v1228 = vadd.f32 0.0, %v1227
        %1229 = vmatprep.mubr.f32.mxu0 0.0
        %1230 = vmatmul.mubr.f32.gmra.mrb[0].mxu0 %v432
        %v1231 = vpop.f32.mrb[0].mxu0
        %v1232 = vadd.f32 0.0, %v1231
        %v1233 = vpop.f32.mrb[0].mxu0
        %v1234 = vadd.f32 0.0, %v1233
        %1235 = vmatprep.mubr.f32.mxu0 0.0
        %1236 = vmatmul.mubr.f32.gmra.mrb[0].mxu0 %v435
        %v1237 = vpop.f32.mrb[0].mxu0
        %v1238 = vadd.f32 0.0, %v1237
        %v1239 = vpop.f32.mrb[0].mxu0
        %v1240 = vadd.f32 0.0, %v1239
        %1241 = vmatprep.mubr.f32.mxu0 0.0
        %1242 = vmatmul.mubr.f32.gmra.mrb[0].mxu0 %v438
        %v1243 = vpop.f32.mrb[0].mxu0
        %v1244 = vadd.f32 0.0, %v1243
        %v1245 = vpop.f32.mrb[0].mxu0
        %v1246 = vadd.f32 0.0, %v1245
        %1247 = vmatprep.mubr.f32.mxu0 0.0
        %1248 = vmatmul.mubr.f32.gmra.mrb[0].mxu0 %v441
        %v1249 = vpop.f32.mrb[0].mxu0
        %v1250 = vadd.f32 0.0, %v1249
        %v1251 = vpop.f32.mrb[0].mxu0
        %v1252 = vadd.f32 0.0, %v1251
        %1253 = vmatprep.mubr.f32.mxu0 0.0
        %1254 = vmatmul.mubr.f32.gmra.mrb[0].mxu0 %v444
        %v1255 = vpop.f32.mrb[0].mxu0
        %v1256 = vadd.f32 0.0, %v1255
        %v1257 = vpop.f32.mrb[0].mxu0
        %v1258 = vadd.f32 0.0, %v1257
        %1259 = vmatprep.mubr.f32.mxu0 0.0
        %1260 = vmatmul.mubr.f32.gmra.mrb[0].mxu0 %v447
        %v1261 = vpop.f32.mrb[0].mxu0
        %v1262 = vadd.f32 0.0, %v1261
        %v1263 = vpop.f32.mrb[0].mxu0
        %v1264 = vadd.f32 0.0, %v1263
        %1265 = vmatprep.mubr.f32.mxu0 0.0
        %1266 = vmatmul.mubr.f32.gmra.mrb[0].mxu0 %v450
        %v1267 = vpop.f32.mrb[0].mxu0
        %v1268 = vadd.f32 0.0, %v1267
        %v1269 = vpop.f32.mrb[0].mxu0
        %v1270 = vadd.f32 0.0, %v1269
        %1271 = vmatprep.mubr.f32.mxu0 0.0
        %1272 = vmatmul.mubr.f32.gmra.mrb[0].mxu0 %v453
        %v1273 = vpop.f32.mrb[0].mxu0
        %v1274 = vadd.f32 0.0, %v1273
        %v1275 = vpop.f32.mrb[0].mxu0
        %v1276 = vadd.f32 0.0, %v1275
        %1277 = vmatprep.mubr.f32.mxu0 0.0
        %1278 = vmatmul.mubr.f32.gmra.mrb[0].mxu0 %v456
        %v1279 = vpop.f32.mrb[0].mxu0
        %v1280 = vadd.f32 0.0, %v1279
        %v1281 = vpop.f32.mrb[0].mxu0
        %v1282 = vadd.f32 0.0, %v1281
        %1283 = vmatprep.mubr.f32.mxu0 0.0
        %1284 = vmatmul.mubr.f32.gmra.mrb[0].mxu0 %v459
        %v1285 = vpop.f32.mrb[0].mxu0
        %v1286 = vadd.f32 0.0, %v1285
        %v1287 = vpop.f32.mrb[0].mxu0
        %v1288 = vadd.f32 0.0, %v1287
        %1289 = vmatprep.mubr.f32.mxu0 0.0
        %1290 = vmatmul.mubr.f32.gmra.mrb[0].mxu0 %v462
        %v1291 = vpop.f32.mrb[0].mxu0
        %v1292 = vadd.f32 0.0, %v1291
        %v1293 = vpop.f32.mrb[0].mxu0
        %v1294 = vadd.f32 0.0, %v1293
        %1295 = vmatprep.mubr.f32.mxu0 0.0
        %1296 = vmatmul.mubr.f32.gmra.mrb[0].mxu0 %v465
        %v1297 = vpop.f32.mrb[0].mxu0
        %v1298 = vadd.f32 0.0, %v1297
        %v1299 = vpop.f32.mrb[0].mxu0
        %v1300 = vadd.f32 0.0, %v1299
        %1301 = vmatprep.mubr.f32.mxu0 0.0
        %1302 = vmatmul.mubr.f32.gmra.mrb[0].mxu0 %v468
        %v1303 = vpop.f32.mrb[0].mxu0
        %v1304 = vadd.f32 0.0, %v1303
        %v1305 = vpop.f32.mrb[0].mxu0
        %v1306 = vadd.f32 0.0, %v1305
        %1307 = vmatprep.mubr.f32.mxu0 0.0
        %1308 = vmatmul.mubr.f32.gmra.mrb[0].mxu0 %v471
        %v1309 = vpop.f32.mrb[0].mxu0
        %v1310 = vadd.f32 0.0, %v1309
        %v1311 = vpop.f32.mrb[0].mxu0
        %v1312 = vadd.f32 0.0, %v1311
        %1313 = vmatprep.mubr.f32.mxu0 0.0
        %1314 = vmatmul.mubr.f32.gmra.mrb[0].mxu0 %v474
        %v1315 = vpop.f32.mrb[0].mxu0
        %v1316 = vadd.f32 0.0, %v1315
        %v1317 = vpop.f32.mrb[0].mxu0
        %v1318 = vadd.f32 0.0, %v1317
        %1319 = vmatprep.mubr.f32.mxu0 0.0
        %1320 = vmatmul.mubr.f32.gmra.mrb[0].mxu0 %v477
        %v1321 = vpop.f32.mrb[0].mxu0
        %v1322 = vadd.f32 0.0, %v1321
        %v1323 = vpop.f32.mrb[0].mxu0
        %v1324 = vadd.f32 0.0, %v1323
        %1325 = vmatprep.mubr.f32.mxu0 0.0
        %1326 = vmatmul.mubr.f32.gmra.mrb[0].mxu0 %v480
        %v1327 = vpop.f32.mrb[0].mxu0
        %v1328 = vadd.f32 0.0, %v1327
        %v1329 = vpop.f32.mrb[0].mxu0
        %v1330 = vadd.f32 0.0, %v1329
        %1331 = vmatprep.mubr.f32.mxu0 0.0
        %1332 = vmatmul.mubr.f32.gmra.mrb[0].mxu0 %v483
        %v1333 = vpop.f32.mrb[0].mxu0
        %v1334 = vadd.f32 0.0, %v1333
        %v1335 = vpop.f32.mrb[0].mxu0
        %v1336 = vadd.f32 0.0, %v1335
        %1337 = vmatprep.mubr.f32.mxu0 0.0
        %1338 = vmatmul.mubr.f32.gmra.mrb[0].mxu0 %v486
        %v1339 = vpop.f32.mrb[0].mxu0
        %v1340 = vadd.f32 0.0, %v1339
        %v1341 = vpop.f32.mrb[0].mxu0
        %v1342 = vadd.f32 0.0, %v1341
        %1343 = vmatprep.mubr.f32.mxu0 0.0
        %1344 = vmatmul.mubr.f32.gmra.mrb[0].mxu0 %v489
        %v1345 = vpop.f32.mrb[0].mxu0
        %v1346 = vadd.f32 0.0, %v1345
        %v1347 = vpop.f32.mrb[0].mxu0
        %v1348 = vadd.f32 0.0, %v1347
        %1349 = vmatprep.mubr.f32.mxu0 0.0
        %1350 = vmatmul.mubr.f32.gmra.mrb[0].mxu0 %v492
        %v1351 = vpop.f32.mrb[0].mxu0
        %v1352 = vadd.f32 0.0, %v1351
        %v1353 = vpop.f32.mrb[0].mxu0
        %v1354 = vadd.f32 0.0, %v1353
        %1355 = vmatprep.mubr.f32.mxu0 0.0
        %1356 = vmatmul.mubr.f32.gmra.mrb[0].mxu0 %v495
        %v1357 = vpop.f32.mrb[0].mxu0
        %v1358 = vadd.f32 0.0, %v1357
        %v1359 = vpop.f32.mrb[0].mxu0
        %v1360 = vadd.f32 0.0, %v1359
        %1361 = vmatprep.mubr.f32.mxu0 0.0
        %1362 = vmatmul.mubr.f32.gmra.mrb[0].mxu0 %v498
        %v1363 = vpop.f32.mrb[0].mxu0
        %v1364 = vadd.f32 0.0, %v1363
        %v1365 = vpop.f32.mrb[0].mxu0
        %v1366 = vadd.f32 0.0, %v1365
        %1367 = vmatprep.mubr.f32.mxu0 0.0
        %1368 = vmatmul.mubr.f32.gmra.mrb[0].mxu0 %v501
        %v1369 = vpop.f32.mrb[0].mxu0
        %v1370 = vadd.f32 0.0, %v1369
        %v1371 = vpop.f32.mrb[0].mxu0
        %v1372 = vadd.f32 0.0, %v1371
        %1373 = vmatprep.mubr.f32.mxu0 0.0
        %1374 = vmatmul.mubr.f32.gmra.mrb[0].mxu0 %v504
        %v1375 = vpop.f32.mrb[0].mxu0
        %v1376 = vadd.f32 0.0, %v1375
        %v1377 = vpop.f32.mrb[0].mxu0
        %v1378 = vadd.f32 0.0, %v1377
        %1379 = vmatprep.mubr.f32.mxu0 0.0
        %1380 = vmatmul.mubr.f32.gmra.mrb[0].mxu0 %v507
        %v1381 = vpop.f32.mrb[0].mxu0
        %v1382 = vadd.f32 0.0, %v1381
        %v1383 = vpop.f32.mrb[0].mxu0
        %v1384 = vadd.f32 0.0, %v1383
        %1385 = vmatprep.mubr.f32.mxu0 0.0
        %1386 = vmatmul.mubr.f32.gmra.mrb[0].mxu0 %v510
        %v1387 = vpop.f32.mrb[0].mxu0
        %v1388 = vadd.f32 0.0, %v1387
        %v1389 = vpop.f32.mrb[0].mxu0
        %v1390 = vadd.f32 0.0, %v1389
        %1391 = vmatprep.mubr.f32.mxu0 0.0
        %1392 = vmatmul.mubr.f32.gmra.mrb[0].mxu0 %v513
        %v1393 = vpop.f32.mrb[0].mxu0
        %v1394 = vadd.f32 0.0, %v1393
        %v1395 = vpop.f32.mrb[0].mxu0
        %v1396 = vadd.f32 0.0, %v1395
        %1397 = vmatprep.mubr.f32.mxu0 0.0
        %1398 = vmatmul.mubr.f32.gmra.mrb[0].mxu0 %v516
        %v1399 = vpop.f32.mrb[0].mxu0
        %v1400 = vadd.f32 0.0, %v1399
        %v1401 = vpop.f32.mrb[0].mxu0
        %v1402 = vadd.f32 0.0, %v1401
        %1403 = vmatprep.mubr.f32.mxu0 0.0
        %1404 = vmatmul.mubr.f32.gmra.mrb[0].mxu0 %v519
        %v1405 = vpop.f32.mrb[0].mxu0
        %v1406 = vadd.f32 0.0, %v1405
        %v1407 = vpop.f32.mrb[0].mxu0
        %v1408 = vadd.f32 0.0, %v1407
        %1409 = vmatprep.mubr.f32.mxu0 0.0
        %1410 = vmatmul.mubr.f32.gmra.mrb[0].mxu0 %v522
        %v1411 = vpop.f32.mrb[0].mxu0
        %v1412 = vadd.f32 0.0, %v1411
        %v1413 = vpop.f32.mrb[0].mxu0
        %v1414 = vadd.f32 0.0, %v1413
        %1415 = vmatprep.mubr.f32.mxu0 0.0
        %1416 = vmatmul.mubr.f32.gmra.mrb[0].mxu0 %v525
        %v1417 = vpop.f32.mrb[0].mxu0
        %v1418 = vadd.f32 0.0, %v1417
        %v1419 = vpop.f32.mrb[0].mxu0
        %v1420 = vadd.f32 0.0, %v1419
        %1421 = vmatprep.mubr.f32.mxu0 0.0
        %1422 = vmatmul.mubr.f32.gmra.mrb[0].mxu0 %v528
        %v1423 = vpop.f32.mrb[0].mxu0
        %v1424 = vadd.f32 0.0, %v1423
        %v1425 = vpop.f32.mrb[0].mxu0
        %v1426 = vadd.f32 0.0, %v1425
        %1427 = vdwg.mxu0
        %1428 = vst [vmem:[#allocation3] sm:$0xff] %v1046
        %1429 = vst [vmem:[#allocation3 + $0x8] sm:$0xff] %v1048
        %1430 = vst [vmem:[#allocation3 + $0x10] sm:$0xff] %v1052
        %1431 = vst [vmem:[#allocation3 + $0x18] sm:$0xff] %v1054
        %1432 = vst [vmem:[#allocation3 + $0x20] sm:$0xff] %v1058
        %1433 = vst [vmem:[#allocation3 + $0x28] sm:$0xff] %v1060
        %1434 = vst [vmem:[#allocation3 + $0x30] sm:$0xff] %v1064
        %1435 = vst [vmem:[#allocation3 + $0x38] sm:$0xff] %v1066
        %1436 = vst [vmem:[#allocation3 + $0x40] sm:$0xff] %v1070
        %1437 = vst [vmem:[#allocation3 + $0x48] sm:$0xff] %v1072
        %1438 = vst [vmem:[#allocation3 + $0x50] sm:$0xff] %v1076
        %1439 = vst [vmem:[#allocation3 + $0x58] sm:$0xff] %v1078
        %1440 = vst [vmem:[#allocation3 + $0x60] sm:$0xff] %v1082
        %1441 = vst [vmem:[#allocation3 + $0x68] sm:$0xff] %v1084
        %1442 = vst [vmem:[#allocation3 + $0x70] sm:$0xff] %v1088
        %1443 = vst [vmem:[#allocation3 + $0x78] sm:$0xff] %v1090
        %1444 = vst [vmem:[#allocation3 + $0x80] sm:$0xff] %v1094
        %1445 = vst [vmem:[#allocation3 + $0x88] sm:$0xff] %v1096
        %1446 = vst [vmem:[#allocation3 + $0x90] sm:$0xff] %v1100
        %1447 = vst [vmem:[#allocation3 + $0x98] sm:$0xff] %v1102
        %1448 = vst [vmem:[#allocation3 + $0xa0] sm:$0xff] %v1106
        %1449 = vst [vmem:[#allocation3 + $0xa8] sm:$0xff] %v1108
        %1450 = vst [vmem:[#allocation3 + $0xb0] sm:$0xff] %v1112
        %1451 = vst [vmem:[#allocation3 + $0xb8] sm:$0xff] %v1114
        %1452 = vst [vmem:[#allocation3 + $0xc0] sm:$0xff] %v1118
        %1453 = vst [vmem:[#allocation3 + $0xc8] sm:$0xff] %v1120
        %1454 = vst [vmem:[#allocation3 + $0xd0] sm:$0xff] %v1124
        %1455 = vst [vmem:[#allocation3 + $0xd8] sm:$0xff] %v1126
        %1456 = vst [vmem:[#allocation3 + $0xe0] sm:$0xff] %v1130
        %1457 = vst [vmem:[#allocation3 + $0xe8] sm:$0xff] %v1132
        %1458 = vst [vmem:[#allocation3 + $0xf0] sm:$0xff] %v1136
        %1459 = vst [vmem:[#allocation3 + $0xf8] sm:$0xff] %v1138
        %1460 = vst [vmem:[#allocation3 + $0x100] sm:$0xff] %v1142
        %1461 = vst [vmem:[#allocation3 + $0x108] sm:$0xff] %v1144
        %1462 = vst [vmem:[#allocation3 + $0x110] sm:$0xff] %v1148
        %1463 = vst [vmem:[#allocation3 + $0x118] sm:$0xff] %v1150
        %1464 = vst [vmem:[#allocation3 + $0x120] sm:$0xff] %v1154
        %1465 = vst [vmem:[#allocation3 + $0x128] sm:$0xff] %v1156
        %1466 = vst [vmem:[#allocation3 + $0x130] sm:$0xff] %v1160
        %1467 = vst [vmem:[#allocation3 + $0x138] sm:$0xff] %v1162
        %1468 = vst [vmem:[#allocation3 + $0x140] sm:$0xff] %v1166
        %1469 = vst [vmem:[#allocation3 + $0x148] sm:$0xff] %v1168
        %1470 = vst [vmem:[#allocation3 + $0x150] sm:$0xff] %v1172
        %1471 = vst [vmem:[#allocation3 + $0x158] sm:$0xff] %v1174
        %1472 = vst [vmem:[#allocation3 + $0x160] sm:$0xff] %v1178
        %1473 = vst [vmem:[#allocation3 + $0x168] sm:$0xff] %v1180
        %1474 = vst [vmem:[#allocation3 + $0x170] sm:$0xff] %v1184
        %1475 = vst [vmem:[#allocation3 + $0x178] sm:$0xff] %v1186
        %1476 = vst [vmem:[#allocation3 + $0x180] sm:$0xff] %v1190
        %1477 = vst [vmem:[#allocation3 + $0x188] sm:$0xff] %v1192
        %1478 = vst [vmem:[#allocation3 + $0x190] sm:$0xff] %v1196
        %1479 = vst [vmem:[#allocation3 + $0x198] sm:$0xff] %v1198
        %1480 = vst [vmem:[#allocation3 + $0x1a0] sm:$0xff] %v1202
        %1481 = vst [vmem:[#allocation3 + $0x1a8] sm:$0xff] %v1204
        %1482 = vst [vmem:[#allocation3 + $0x1b0] sm:$0xff] %v1208
        %1483 = vst [vmem:[#allocation3 + $0x1b8] sm:$0xff] %v1210
        %1484 = vst [vmem:[#allocation3 + $0x1c0] sm:$0xff] %v1214
        %1485 = vst [vmem:[#allocation3 + $0x1c8] sm:$0xff] %v1216
        %1486 = vst [vmem:[#allocation3 + $0x1d0] sm:$0xff] %v1220
        %1487 = vst [vmem:[#allocation3 + $0x1d8] sm:$0xff] %v1222
        %1488 = vst [vmem:[#allocation3 + $0x1e0] sm:$0xff] %v1226
        %1489 = vst [vmem:[#allocation3 + $0x1e8] sm:$0xff] %v1228
        %1490 = vst [vmem:[#allocation3 + $0x1f0] sm:$0xff] %v1232
        %1491 = vst [vmem:[#allocation3 + $0x1f8] sm:$0xff] %v1234
        %1492 = vst [vmem:[#allocation3 + $0x200] sm:$0xff] %v1238
        %1493 = vst [vmem:[#allocation3 + $0x208] sm:$0xff] %v1240
        %1494 = vst [vmem:[#allocation3 + $0x210] sm:$0xff] %v1244
        %1495 = vst [vmem:[#allocation3 + $0x218] sm:$0xff] %v1246
        %1496 = vst [vmem:[#allocation3 + $0x220] sm:$0xff] %v1250
        %1497 = vst [vmem:[#allocation3 + $0x228] sm:$0xff] %v1252
        %1498 = vst [vmem:[#allocation3 + $0x230] sm:$0xff] %v1256
        %1499 = vst [vmem:[#allocation3 + $0x238] sm:$0xff] %v1258
        %1500 = vst [vmem:[#allocation3 + $0x240] sm:$0xff] %v1262
        %1501 = vst [vmem:[#allocation3 + $0x248] sm:$0xff] %v1264
        %1502 = vst [vmem:[#allocation3 + $0x250] sm:$0xff] %v1268
        %1503 = vst [vmem:[#allocation3 + $0x258] sm:$0xff] %v1270
        %1504 = vst [vmem:[#allocation3 + $0x260] sm:$0xff] %v1274
        %1505 = vst [vmem:[#allocation3 + $0x268] sm:$0xff] %v1276
        %1506 = vst [vmem:[#allocation3 + $0x270] sm:$0xff] %v1280
        %1507 = vst [vmem:[#allocation3 + $0x278] sm:$0xff] %v1282
        %1508 = vst [vmem:[#allocation3 + $0x280] sm:$0xff] %v1286
        %1509 = vst [vmem:[#allocation3 + $0x288] sm:$0xff] %v1288
        %1510 = vst [vmem:[#allocation3 + $0x290] sm:$0xff] %v1292
        %1511 = vst [vmem:[#allocation3 + $0x298] sm:$0xff] %v1294
        %1512 = vst [vmem:[#allocation3 + $0x2a0] sm:$0xff] %v1298
        %1513 = vst [vmem:[#allocation3 + $0x2a8] sm:$0xff] %v1300
        %1514 = vst [vmem:[#allocation3 + $0x2b0] sm:$0xff] %v1304
        %1515 = vst [vmem:[#allocation3 + $0x2b8] sm:$0xff] %v1306
        %1516 = vst [vmem:[#allocation3 + $0x2c0] sm:$0xff] %v1310
        %1517 = vst [vmem:[#allocation3 + $0x2c8] sm:$0xff] %v1312
        %1518 = vst [vmem:[#allocation3 + $0x2d0] sm:$0xff] %v1316
        %1519 = vst [vmem:[#allocation3 + $0x2d8] sm:$0xff] %v1318
        %1520 = vst [vmem:[#allocation3 + $0x2e0] sm:$0xff] %v1322
        %1521 = vst [vmem:[#allocation3 + $0x2e8] sm:$0xff] %v1324
        %1522 = vst [vmem:[#allocation3 + $0x2f0] sm:$0xff] %v1328
        %1523 = vst [vmem:[#allocation3 + $0x2f8] sm:$0xff] %v1330
        %1524 = vst [vmem:[#allocation3 + $0x300] sm:$0xff] %v1334
        %1525 = vst [vmem:[#allocation3 + $0x308] sm:$0xff] %v1336
        %1526 = vst [vmem:[#allocation3 + $0x310] sm:$0xff] %v1340
        %1527 = vst [vmem:[#allocation3 + $0x318] sm:$0xff] %v1342
        %1528 = vst [vmem:[#allocation3 + $0x320] sm:$0xff] %v1346
        %1529 = vst [vmem:[#allocation3 + $0x328] sm:$0xff] %v1348
        %1530 = vst [vmem:[#allocation3 + $0x330] sm:$0xff] %v1352
        %1531 = vst [vmem:[#allocation3 + $0x338] sm:$0xff] %v1354
        %1532 = vst [vmem:[#allocation3 + $0x340] sm:$0xff] %v1358
        %1533 = vst [vmem:[#allocation3 + $0x348] sm:$0xff] %v1360
        %1534 = vst [vmem:[#allocation3 + $0x350] sm:$0xff] %v1364
        %1535 = vst [vmem:[#allocation3 + $0x358] sm:$0xff] %v1366
        %1536 = vst [vmem:[#allocation3 + $0x360] sm:$0xff] %v1370
        %1537 = vst [vmem:[#allocation3 + $0x368] sm:$0xff] %v1372
        %1538 = vst [vmem:[#allocation3 + $0x370] sm:$0xff] %v1376
        %1539 = vst [vmem:[#allocation3 + $0x378] sm:$0xff] %v1378
        %1540 = vst [vmem:[#allocation3 + $0x380] sm:$0xff] %v1382
        %1541 = vst [vmem:[#allocation3 + $0x388] sm:$0xff] %v1384
        %1542 = vst [vmem:[#allocation3 + $0x390] sm:$0xff] %v1388
        %1543 = vst [vmem:[#allocation3 + $0x398] sm:$0xff] %v1390
        %1544 = vst [vmem:[#allocation3 + $0x3a0] sm:$0xff] %v1394
        %1545 = vst [vmem:[#allocation3 + $0x3a8] sm:$0xff] %v1396
        %1546 = vst [vmem:[#allocation3 + $0x3b0] sm:$0xff] %v1400
        %1547 = vst [vmem:[#allocation3 + $0x3b8] sm:$0xff] %v1402
        %1548 = vst [vmem:[#allocation3 + $0x3c0] sm:$0xff] %v1406
        %1549 = vst [vmem:[#allocation3 + $0x3c8] sm:$0xff] %v1408
        %1550 = vst [vmem:[#allocation3 + $0x3d0] sm:$0xff] %v1412
        %1551 = vst [vmem:[#allocation3 + $0x3d8] sm:$0xff] %v1414
        %1552 = vst [vmem:[#allocation3 + $0x3e0] sm:$0xff] %v1418
        %1553 = vst [vmem:[#allocation3 + $0x3e8] sm:$0xff] %v1420
        %1554 = vst [vmem:[#allocation3 + $0x3f0] sm:$0xff] %v1424
        %1555 = vst [vmem:[#allocation3 + $0x3f8] sm:$0xff] %v1426
        %v1556 = vpack.c.bf16 %v603, %v597
        %v1557 = vpack.c.bf16 %v605, %v599
        %v1558 = vpack.c.bf16 %v615, %v609
        %v1559 = vpack.c.bf16 %v617, %v611
        %v1560 = vpack.c.bf16 %v627, %v621
        %v1561 = vpack.c.bf16 %v629, %v623
        %v1562 = vpack.c.bf16 %v639, %v633
        %v1563 = vpack.c.bf16 %v641, %v635
        %v1564 = vpack.c.bf16 %v651, %v645
        %v1565 = vpack.c.bf16 %v653, %v647
        %v1566 = vpack.c.bf16 %v663, %v657
        %v1567 = vpack.c.bf16 %v665, %v659
        %v1568 = vpack.c.bf16 %v675, %v669
        %v1569 = vpack.c.bf16 %v677, %v671
        %v1570 = vpack.c.bf16 %v687, %v681
        %v1571 = vpack.c.bf16 %v689, %v683
        %v1572 = vpack.c.bf16 %v699, %v693
        %v1573 = vpack.c.bf16 %v701, %v695
        %v1574 = vpack.c.bf16 %v711, %v705
        %v1575 = vpack.c.bf16 %v713, %v707
        %v1576 = vpack.c.bf16 %v723, %v717
        %v1577 = vpack.c.bf16 %v725, %v719
        %v1578 = vpack.c.bf16 %v735, %v729
        %v1579 = vpack.c.bf16 %v737, %v731
        %v1580 = vpack.c.bf16 %v747, %v741
        %v1581 = vpack.c.bf16 %v749, %v743
        %v1582 = vpack.c.bf16 %v759, %v753
        %v1583 = vpack.c.bf16 %v761, %v755
        %v1584 = vpack.c.bf16 %v771, %v765
        %v1585 = vpack.c.bf16 %v773, %v767
        %v1586 = vpack.c.bf16 %v783, %v777
        %v1587 = vpack.c.bf16 %v785, %v779
        %v1588 = vpack.c.bf16 %v795, %v789
        %v1589 = vpack.c.bf16 %v797, %v791
        %v1590 = vpack.c.bf16 %v807, %v801
        %v1591 = vpack.c.bf16 %v809, %v803
        %v1592 = vpack.c.bf16 %v819, %v813
        %v1593 = vpack.c.bf16 %v821, %v815
        %v1594 = vpack.c.bf16 %v831, %v825
        %v1595 = vpack.c.bf16 %v833, %v827
        %v1596 = vpack.c.bf16 %v843, %v837
        %v1597 = vpack.c.bf16 %v845, %v839
        %v1598 = vpack.c.bf16 %v855, %v849
        %v1599 = vpack.c.bf16 %v857, %v851
        %v1600 = vpack.c.bf16 %v867, %v861
        %v1601 = vpack.c.bf16 %v869, %v863
        %v1602 = vpack.c.bf16 %v879, %v873
        %v1603 = vpack.c.bf16 %v881, %v875
        %v1604 = vpack.c.bf16 %v891, %v885
        %v1605 = vpack.c.bf16 %v893, %v887
        %v1606 = vpack.c.bf16 %v903, %v897
        %v1607 = vpack.c.bf16 %v905, %v899
        %v1608 = vpack.c.bf16 %v915, %v909
        %v1609 = vpack.c.bf16 %v917, %v911
        %v1610 = vpack.c.bf16 %v927, %v921
        %v1611 = vpack.c.bf16 %v929, %v923
        %v1612 = vpack.c.bf16 %v939, %v933
        %v1613 = vpack.c.bf16 %v941, %v935
        %v1614 = vpack.c.bf16 %v951, %v945
        %v1615 = vpack.c.bf16 %v953, %v947
        %v1616 = vpack.c.bf16 %v963, %v957
        %v1617 = vpack.c.bf16 %v965, %v959
        %v1618 = vpack.c.bf16 %v975, %v969
        %v1619 = vpack.c.bf16 %v977, %v971
        %v1620 = vld [vmem:[%s3] sm:$0x3]
        %v1622 = vlaneseq
        %v1623 = vshrl.u32 %v1622, 7
        %v1624 = vsub.s32 0, %v1623
        %v1625 = vrot.slane %v1620, %v1624
        %v1626 = vlaneseq
        %v1627 = vshrl.u32 %v1626, 7
        %v1628 = vsub.s32 1, %v1627
        %v1629 = vrot.slane %v1620, %v1628
        %v1632 = vpack.c.bf16 %v1625, %v1625
        %v1633 = vpack.c.bf16 %v1629, %v1629
        %v1635 = vpack.i.b16 %v1632, %v1632
        %v1637 = vlaneseq
        %v1638 = vshrl.u32 %v1637, 7
        %v1639 = vsub.s32 0, %v1638
        %v1640 = vrot.slane %v1635, %v1639
        %v1642 = vpack.i.b16 %v1633, %v1633
        %v1644 = vlaneseq
        %v1645 = vshrl.u32 %v1644, 7
        %v1646 = vsub.s32 0, %v1645
        %v1647 = vrot.slane %v1642, %v1646
        %v1648 = vadd.bf16 %v1556, %v1640
        %v1649 = vadd.bf16 %v1557, %v1647
        %v1650 = vadd.bf16 %v1558, %v1640
        %v1651 = vadd.bf16 %v1559, %v1647
        %v1652 = vadd.bf16 %v1560, %v1640
        %v1653 = vadd.bf16 %v1561, %v1647
        %v1654 = vadd.bf16 %v1562, %v1640
        %v1655 = vadd.bf16 %v1563, %v1647
        %v1656 = vadd.bf16 %v1564, %v1640
        %v1657 = vadd.bf16 %v1565, %v1647
        %v1658 = vadd.bf16 %v1566, %v1640
        %v1659 = vadd.bf16 %v1567, %v1647
        %v1660 = vadd.bf16 %v1568, %v1640
        %v1661 = vadd.bf16 %v1569, %v1647
        %v1662 = vadd.bf16 %v1570, %v1640
        %v1663 = vadd.bf16 %v1571, %v1647
        %v1664 = vadd.bf16 %v1572, %v1640
        %v1665 = vadd.bf16 %v1573, %v1647
        %v1666 = vadd.bf16 %v1574, %v1640
        %v1667 = vadd.bf16 %v1575, %v1647
        %v1668 = vadd.bf16 %v1576, %v1640
        %v1669 = vadd.bf16 %v1577, %v1647
        %v1670 = vadd.bf16 %v1578, %v1640
        %v1671 = vadd.bf16 %v1579, %v1647
        %v1672 = vadd.bf16 %v1580, %v1640
        %v1673 = vadd.bf16 %v1581, %v1647
        %v1674 = vadd.bf16 %v1582, %v1640
        %v1675 = vadd.bf16 %v1583, %v1647
        %v1676 = vadd.bf16 %v1584, %v1640
        %v1677 = vadd.bf16 %v1585, %v1647
        %v1678 = vadd.bf16 %v1586, %v1640
        %v1679 = vadd.bf16 %v1587, %v1647
        %v1680 = vadd.bf16 %v1588, %v1640
        %v1681 = vadd.bf16 %v1589, %v1647
        %v1682 = vadd.bf16 %v1590, %v1640
        %v1683 = vadd.bf16 %v1591, %v1647
        %v1684 = vadd.bf16 %v1592, %v1640
        %v1685 = vadd.bf16 %v1593, %v1647
        %v1686 = vadd.bf16 %v1594, %v1640
        %v1687 = vadd.bf16 %v1595, %v1647
        %v1688 = vadd.bf16 %v1596, %v1640
        %v1689 = vadd.bf16 %v1597, %v1647
        %v1690 = vadd.bf16 %v1598, %v1640
        %v1691 = vadd.bf16 %v1599, %v1647
        %v1692 = vadd.bf16 %v1600, %v1640
        %v1693 = vadd.bf16 %v1601, %v1647
        %v1694 = vadd.bf16 %v1602, %v1640
        %v1695 = vadd.bf16 %v1603, %v1647
        %v1696 = vadd.bf16 %v1604, %v1640
        %v1697 = vadd.bf16 %v1605, %v1647
        %v1698 = vadd.bf16 %v1606, %v1640
        %v1699 = vadd.bf16 %v1607, %v1647
        %v1700 = vadd.bf16 %v1608, %v1640
        %v1701 = vadd.bf16 %v1609, %v1647
        %v1702 = vadd.bf16 %v1610, %v1640
        %v1703 = vadd.bf16 %v1611, %v1647
        %v1704 = vadd.bf16 %v1612, %v1640
        %v1705 = vadd.bf16 %v1613, %v1647
        %v1706 = vadd.bf16 %v1614, %v1640
        %v1707 = vadd.bf16 %v1615, %v1647
        %v1708 = vadd.bf16 %v1616, %v1640
        %v1709 = vadd.bf16 %v1617, %v1647
        %v1710 = vadd.bf16 %v1618, %v1640
        %v1711 = vadd.bf16 %v1619, %v1647
        %v1712 = vmax.bf16 %v1648, 0
        %v1713 = vmax.bf16 %v1649, 0
        %v1714 = vmax.bf16 %v1650, 0
        %v1715 = vmax.bf16 %v1651, 0
        %v1716 = vmax.bf16 %v1652, 0
        %v1717 = vmax.bf16 %v1653, 0
        %v1718 = vmax.bf16 %v1654, 0
        %v1719 = vmax.bf16 %v1655, 0
        %v1720 = vmax.bf16 %v1656, 0
        %v1721 = vmax.bf16 %v1657, 0
        %v1722 = vmax.bf16 %v1658, 0
        %v1723 = vmax.bf16 %v1659, 0
        %v1724 = vmax.bf16 %v1660, 0
        %v1725 = vmax.bf16 %v1661, 0
        %v1726 = vmax.bf16 %v1662, 0
        %v1727 = vmax.bf16 %v1663, 0
        %v1728 = vmax.bf16 %v1664, 0
        %v1729 = vmax.bf16 %v1665, 0
        %v1730 = vmax.bf16 %v1666, 0
        %v1731 = vmax.bf16 %v1667, 0
        %v1732 = vmax.bf16 %v1668, 0
        %v1733 = vmax.bf16 %v1669, 0
        %v1734 = vmax.bf16 %v1670, 0
        %v1735 = vmax.bf16 %v1671, 0
        %v1736 = vmax.bf16 %v1672, 0
        %v1737 = vmax.bf16 %v1673, 0
        %v1738 = vmax.bf16 %v1674, 0
        %v1739 = vmax.bf16 %v1675, 0
        %v1740 = vmax.bf16 %v1676, 0
        %v1741 = vmax.bf16 %v1677, 0
        %v1742 = vmax.bf16 %v1678, 0
        %v1743 = vmax.bf16 %v1679, 0
        %v1744 = vmax.bf16 %v1680, 0
        %v1745 = vmax.bf16 %v1681, 0
        %v1746 = vmax.bf16 %v1682, 0
        %v1747 = vmax.bf16 %v1683, 0
        %v1748 = vmax.bf16 %v1684, 0
        %v1749 = vmax.bf16 %v1685, 0
        %v1750 = vmax.bf16 %v1686, 0
        %v1751 = vmax.bf16 %v1687, 0
        %v1752 = vmax.bf16 %v1688, 0
        %v1753 = vmax.bf16 %v1689, 0
        %v1754 = vmax.bf16 %v1690, 0
        %v1755 = vmax.bf16 %v1691, 0
        %v1756 = vmax.bf16 %v1692, 0
        %v1757 = vmax.bf16 %v1693, 0
        %v1758 = vmax.bf16 %v1694, 0
        %v1759 = vmax.bf16 %v1695, 0
        %v1760 = vmax.bf16 %v1696, 0
        %v1761 = vmax.bf16 %v1697, 0
        %v1762 = vmax.bf16 %v1698, 0
        %v1763 = vmax.bf16 %v1699, 0
        %v1764 = vmax.bf16 %v1700, 0
        %v1765 = vmax.bf16 %v1701, 0
        %v1766 = vmax.bf16 %v1702, 0
        %v1767 = vmax.bf16 %v1703, 0
        %v1768 = vmax.bf16 %v1704, 0
        %v1769 = vmax.bf16 %v1705, 0
        %v1770 = vmax.bf16 %v1706, 0
        %v1771 = vmax.bf16 %v1707, 0
        %v1772 = vmax.bf16 %v1708, 0
        %v1773 = vmax.bf16 %v1709, 0
        %v1774 = vmax.bf16 %v1710, 0
        %v1775 = vmax.bf16 %v1711, 0
        %1776 = vst [vmem:[#allocation2] sm:$0xff] %v1712
        %1777 = vst [vmem:[#allocation2 + $0x8] sm:$0xff] %v1713
        %1778 = vst [vmem:[#allocation2 + $0x10] sm:$0xff] %v1714
        %1779 = vst [vmem:[#allocation2 + $0x18] sm:$0xff] %v1715
        %1780 = vst [vmem:[#allocation2 + $0x20] sm:$0xff] %v1716
        %1781 = vst [vmem:[#allocation2 + $0x28] sm:$0xff] %v1717
        %1782 = vst [vmem:[#allocation2 + $0x30] sm:$0xff] %v1718
        %1783 = vst [vmem:[#allocation2 + $0x38] sm:$0xff] %v1719
        %1784 = vst [vmem:[#allocation2 + $0x40] sm:$0xff] %v1720
        %1785 = vst [vmem:[#allocation2 + $0x48] sm:$0xff] %v1721
        %1786 = vst [vmem:[#allocation2 + $0x50] sm:$0xff] %v1722
        %1787 = vst [vmem:[#allocation2 + $0x58] sm:$0xff] %v1723
        %1788 = vst [vmem:[#allocation2 + $0x60] sm:$0xff] %v1724
        %1789 = vst [vmem:[#allocation2 + $0x68] sm:$0xff] %v1725
        %1790 = vst [vmem:[#allocation2 + $0x70] sm:$0xff] %v1726
        %1791 = vst [vmem:[#allocation2 + $0x78] sm:$0xff] %v1727
        %1792 = vst [vmem:[#allocation2 + $0x80] sm:$0xff] %v1728
        %1793 = vst [vmem:[#allocation2 + $0x88] sm:$0xff] %v1729
        %1794 = vst [vmem:[#allocation2 + $0x90] sm:$0xff] %v1730
        %1795 = vst [vmem:[#allocation2 + $0x98] sm:$0xff] %v1731
        %1796 = vst [vmem:[#allocation2 + $0xa0] sm:$0xff] %v1732
        %1797 = vst [vmem:[#allocation2 + $0xa8] sm:$0xff] %v1733
        %1798 = vst [vmem:[#allocation2 + $0xb0] sm:$0xff] %v1734
        %1799 = vst [vmem:[#allocation2 + $0xb8] sm:$0xff] %v1735
        %1800 = vst [vmem:[#allocation2 + $0xc0] sm:$0xff] %v1736
        %1801 = vst [vmem:[#allocation2 + $0xc8] sm:$0xff] %v1737
        %1802 = vst [vmem:[#allocation2 + $0xd0] sm:$0xff] %v1738
        %1803 = vst [vmem:[#allocation2 + $0xd8] sm:$0xff] %v1739
        %1804 = vst [vmem:[#allocation2 + $0xe0] sm:$0xff] %v1740
        %1805 = vst [vmem:[#allocation2 + $0xe8] sm:$0xff] %v1741
        %1806 = vst [vmem:[#allocation2 + $0xf0] sm:$0xff] %v1742
        %1807 = vst [vmem:[#allocation2 + $0xf8] sm:$0xff] %v1743
        %1808 = vst [vmem:[#allocation2 + $0x100] sm:$0xff] %v1744
        %1809 = vst [vmem:[#allocation2 + $0x108] sm:$0xff] %v1745
        %1810 = vst [vmem:[#allocation2 + $0x110] sm:$0xff] %v1746
        %1811 = vst [vmem:[#allocation2 + $0x118] sm:$0xff] %v1747
        %1812 = vst [vmem:[#allocation2 + $0x120] sm:$0xff] %v1748
        %1813 = vst [vmem:[#allocation2 + $0x128] sm:$0xff] %v1749
        %1814 = vst [vmem:[#allocation2 + $0x130] sm:$0xff] %v1750
        %1815 = vst [vmem:[#allocation2 + $0x138] sm:$0xff] %v1751
        %1816 = vst [vmem:[#allocation2 + $0x140] sm:$0xff] %v1752
        %1817 = vst [vmem:[#allocation2 + $0x148] sm:$0xff] %v1753
        %1818 = vst [vmem:[#allocation2 + $0x150] sm:$0xff] %v1754
        %1819 = vst [vmem:[#allocation2 + $0x158] sm:$0xff] %v1755
        %1820 = vst [vmem:[#allocation2 + $0x160] sm:$0xff] %v1756
        %1821 = vst [vmem:[#allocation2 + $0x168] sm:$0xff] %v1757
        %1822 = vst [vmem:[#allocation2 + $0x170] sm:$0xff] %v1758
        %1823 = vst [vmem:[#allocation2 + $0x178] sm:$0xff] %v1759
        %1824 = vst [vmem:[#allocation2 + $0x180] sm:$0xff] %v1760
        %1825 = vst [vmem:[#allocation2 + $0x188] sm:$0xff] %v1761
        %1826 = vst [vmem:[#allocation2 + $0x190] sm:$0xff] %v1762
        %1827 = vst [vmem:[#allocation2 + $0x198] sm:$0xff] %v1763
        %1828 = vst [vmem:[#allocation2 + $0x1a0] sm:$0xff] %v1764
        %1829 = vst [vmem:[#allocation2 + $0x1a8] sm:$0xff] %v1765
        %1830 = vst [vmem:[#allocation2 + $0x1b0] sm:$0xff] %v1766
        %1831 = vst [vmem:[#allocation2 + $0x1b8] sm:$0xff] %v1767
        %1832 = vst [vmem:[#allocation2 + $0x1c0] sm:$0xff] %v1768
        %1833 = vst [vmem:[#allocation2 + $0x1c8] sm:$0xff] %v1769
        %1834 = vst [vmem:[#allocation2 + $0x1d0] sm:$0xff] %v1770
        %1835 = vst [vmem:[#allocation2 + $0x1d8] sm:$0xff] %v1771
        %1836 = vst [vmem:[#allocation2 + $0x1e0] sm:$0xff] %v1772
        %1837 = vst [vmem:[#allocation2 + $0x1e8] sm:$0xff] %v1773
        %1838 = vst [vmem:[#allocation2 + $0x1f0] sm:$0xff] %v1774
        %1839 = vst [vmem:[#allocation2 + $0x1f8] sm:$0xff] %v1775
        %v1840 = vld [vmem:[#allocation2] sm:$0xff]
        %v1841 = vld [vmem:[#allocation2 + $0x8] sm:$0xff]
        %v1842 = vld [vmem:[#allocation2 + $0x10] sm:$0xff]
        %v1843 = vld [vmem:[#allocation2 + $0x18] sm:$0xff]
        %v1844 = vld [vmem:[#allocation2 + $0x20] sm:$0xff]
        %v1845 = vld [vmem:[#allocation2 + $0x28] sm:$0xff]
        %v1846 = vld [vmem:[#allocation2 + $0x30] sm:$0xff]
        %v1847 = vld [vmem:[#allocation2 + $0x38] sm:$0xff]
        %v1848 = vld [vmem:[#allocation2 + $0x40] sm:$0xff]
        %v1849 = vld [vmem:[#allocation2 + $0x48] sm:$0xff]
        %v1850 = vld [vmem:[#allocation2 + $0x50] sm:$0xff]
        %v1851 = vld [vmem:[#allocation2 + $0x58] sm:$0xff]
        %v1852 = vld [vmem:[#allocation2 + $0x60] sm:$0xff]
        %v1853 = vld [vmem:[#allocation2 + $0x68] sm:$0xff]
        %v1854 = vld [vmem:[#allocation2 + $0x70] sm:$0xff]
        %v1855 = vld [vmem:[#allocation2 + $0x78] sm:$0xff]
        %v1856 = vld [vmem:[#allocation2 + $0x80] sm:$0xff]
        %v1857 = vld [vmem:[#allocation2 + $0x88] sm:$0xff]
        %v1858 = vld [vmem:[#allocation2 + $0x90] sm:$0xff]
        %v1859 = vld [vmem:[#allocation2 + $0x98] sm:$0xff]
        %v1860 = vld [vmem:[#allocation2 + $0xa0] sm:$0xff]
        %v1861 = vld [vmem:[#allocation2 + $0xa8] sm:$0xff]
        %v1862 = vld [vmem:[#allocation2 + $0xb0] sm:$0xff]
        %v1863 = vld [vmem:[#allocation2 + $0xb8] sm:$0xff]
        %v1864 = vld [vmem:[#allocation2 + $0xc0] sm:$0xff]
        %v1865 = vld [vmem:[#allocation2 + $0xc8] sm:$0xff]
        %v1866 = vld [vmem:[#allocation2 + $0xd0] sm:$0xff]
        %v1867 = vld [vmem:[#allocation2 + $0xd8] sm:$0xff]
        %v1868 = vld [vmem:[#allocation2 + $0xe0] sm:$0xff]
        %v1869 = vld [vmem:[#allocation2 + $0xe8] sm:$0xff]
        %v1870 = vld [vmem:[#allocation2 + $0xf0] sm:$0xff]
        %v1871 = vld [vmem:[#allocation2 + $0xf8] sm:$0xff]
        %v1872 = vld [vmem:[#allocation2 + $0x100] sm:$0xff]
        %v1873 = vld [vmem:[#allocation2 + $0x108] sm:$0xff]
        %v1874 = vld [vmem:[#allocation2 + $0x110] sm:$0xff]
        %v1875 = vld [vmem:[#allocation2 + $0x118] sm:$0xff]
        %v1876 = vld [vmem:[#allocation2 + $0x120] sm:$0xff]
        %v1877 = vld [vmem:[#allocation2 + $0x128] sm:$0xff]
        %v1878 = vld [vmem:[#allocation2 + $0x130] sm:$0xff]
        %v1879 = vld [vmem:[#allocation2 + $0x138] sm:$0xff]
        %v1880 = vld [vmem:[#allocation2 + $0x140] sm:$0xff]
        %v1881 = vld [vmem:[#allocation2 + $0x148] sm:$0xff]
        %v1882 = vld [vmem:[#allocation2 + $0x150] sm:$0xff]
        %v1883 = vld [vmem:[#allocation2 + $0x158] sm:$0xff]
        %v1884 = vld [vmem:[#allocation2 + $0x160] sm:$0xff]
        %v1885 = vld [vmem:[#allocation2 + $0x168] sm:$0xff]
        %v1886 = vld [vmem:[#allocation2 + $0x170] sm:$0xff]
        %v1887 = vld [vmem:[#allocation2 + $0x178] sm:$0xff]
        %v1888 = vld [vmem:[#allocation2 + $0x180] sm:$0xff]
        %v1889 = vld [vmem:[#allocation2 + $0x188] sm:$0xff]
        %v1890 = vld [vmem:[#allocation2 + $0x190] sm:$0xff]
        %v1891 = vld [vmem:[#allocation2 + $0x198] sm:$0xff]
        %v1892 = vld [vmem:[#allocation2 + $0x1a0] sm:$0xff]
        %v1893 = vld [vmem:[#allocation2 + $0x1a8] sm:$0xff]
        %v1894 = vld [vmem:[#allocation2 + $0x1b0] sm:$0xff]
        %v1895 = vld [vmem:[#allocation2 + $0x1b8] sm:$0xff]
        %v1896 = vld [vmem:[#allocation2 + $0x1c0] sm:$0xff]
        %v1897 = vld [vmem:[#allocation2 + $0x1c8] sm:$0xff]
        %v1898 = vld [vmem:[#allocation2 + $0x1d0] sm:$0xff]
        %v1899 = vld [vmem:[#allocation2 + $0x1d8] sm:$0xff]
        %v1900 = vld [vmem:[#allocation2 + $0x1e0] sm:$0xff]
        %v1901 = vld [vmem:[#allocation2 + $0x1e8] sm:$0xff]
        %v1902 = vld [vmem:[#allocation2 + $0x1f0] sm:$0xff]
        %v1903 = vld [vmem:[#allocation2 + $0x1f8] sm:$0xff]
        %v1904 = vld [vmem:[#allocation4] sm:$0xff]
        %v1905 = vld [vmem:[#allocation4 + $0x8] sm:$0xff]
        %v1906 = vld [vmem:[#allocation4 + $0x10] sm:$0xff]
        %v1907 = vld [vmem:[#allocation4 + $0x18] sm:$0xff]
        %v1908 = vld [vmem:[#allocation4 + $0x20] sm:$0xff]
        %v1909 = vld [vmem:[#allocation4 + $0x28] sm:$0xff]
        %v1910 = vld [vmem:[#allocation4 + $0x30] sm:$0xff]
        %v1911 = vld [vmem:[#allocation4 + $0x38] sm:$0xff]
        %v1912 = vld [vmem:[#allocation4 + $0x40] sm:$0xff]
        %v1913 = vld [vmem:[#allocation4 + $0x48] sm:$0xff]
        %v1914 = vld [vmem:[#allocation4 + $0x50] sm:$0xff]
        %v1915 = vld [vmem:[#allocation4 + $0x58] sm:$0xff]
        %v1916 = vld [vmem:[#allocation4 + $0x60] sm:$0xff]
        %v1917 = vld [vmem:[#allocation4 + $0x68] sm:$0xff]
        %v1918 = vld [vmem:[#allocation4 + $0x70] sm:$0xff]
        %v1919 = vld [vmem:[#allocation4 + $0x78] sm:$0xff]
        %v1920 = vld [vmem:[#allocation4 + $0x80] sm:$0xff]
        %v1921 = vld [vmem:[#allocation4 + $0x88] sm:$0xff]
        %v1922 = vld [vmem:[#allocation4 + $0x90] sm:$0xff]
        %v1923 = vld [vmem:[#allocation4 + $0x98] sm:$0xff]
        %v1924 = vld [vmem:[#allocation4 + $0xa0] sm:$0xff]
        %v1925 = vld [vmem:[#allocation4 + $0xa8] sm:$0xff]
        %v1926 = vld [vmem:[#allocation4 + $0xb0] sm:$0xff]
        %v1927 = vld [vmem:[#allocation4 + $0xb8] sm:$0xff]
        %v1928 = vld [vmem:[#allocation4 + $0xc0] sm:$0xff]
        %v1929 = vld [vmem:[#allocation4 + $0xc8] sm:$0xff]
        %v1930 = vld [vmem:[#allocation4 + $0xd0] sm:$0xff]
        %v1931 = vld [vmem:[#allocation4 + $0xd8] sm:$0xff]
        %v1932 = vld [vmem:[#allocation4 + $0xe0] sm:$0xff]
        %v1933 = vld [vmem:[#allocation4 + $0xe8] sm:$0xff]
        %v1934 = vld [vmem:[#allocation4 + $0xf0] sm:$0xff]
        %v1935 = vld [vmem:[#allocation4 + $0xf8] sm:$0xff]
        %v1968 = vunpack.c.l.b16 %v1904
        %v1969 = vunpack.c.h.b16 %v1904
        %v1970 = vunpack.c.l.b16 %v1905
        %v1971 = vunpack.c.h.b16 %v1905
        %v1972 = vunpack.c.l.b16 %v1906
        %v1973 = vunpack.c.h.b16 %v1906
        %v1974 = vunpack.c.l.b16 %v1907
        %v1975 = vunpack.c.h.b16 %v1907
        %v1976 = vunpack.c.l.b16 %v1908
        %v1977 = vunpack.c.h.b16 %v1908
        %v1978 = vunpack.c.l.b16 %v1909
        %v1979 = vunpack.c.h.b16 %v1909
        %v1980 = vunpack.c.l.b16 %v1910
        %v1981 = vunpack.c.h.b16 %v1910
        %v1982 = vunpack.c.l.b16 %v1911
        %v1983 = vunpack.c.h.b16 %v1911
        %v1984 = vunpack.c.l.b16 %v1912
        %v1985 = vunpack.c.h.b16 %v1912
        %v1986 = vunpack.c.l.b16 %v1913
        %v1987 = vunpack.c.h.b16 %v1913
        %v1988 = vunpack.c.l.b16 %v1914
        %v1989 = vunpack.c.h.b16 %v1914
        %v1990 = vunpack.c.l.b16 %v1915
        %v1991 = vunpack.c.h.b16 %v1915
        %v1992 = vunpack.c.l.b16 %v1916
        %v1993 = vunpack.c.h.b16 %v1916
        %v1994 = vunpack.c.l.b16 %v1917
        %v1995 = vunpack.c.h.b16 %v1917
        %v1996 = vunpack.c.l.b16 %v1918
        %v1997 = vunpack.c.h.b16 %v1918
        %v1998 = vunpack.c.l.b16 %v1919
        %v1999 = vunpack.c.h.b16 %v1919
        %v2000 = vunpack.c.l.b16 %v1920
        %v2001 = vunpack.c.h.b16 %v1920
        %v2002 = vunpack.c.l.b16 %v1921
        %v2003 = vunpack.c.h.b16 %v1921
        %v2004 = vunpack.c.l.b16 %v1922
        %v2005 = vunpack.c.h.b16 %v1922
        %v2006 = vunpack.c.l.b16 %v1923
        %v2007 = vunpack.c.h.b16 %v1923
        %v2008 = vunpack.c.l.b16 %v1924
        %v2009 = vunpack.c.h.b16 %v1924
        %v2010 = vunpack.c.l.b16 %v1925
        %v2011 = vunpack.c.h.b16 %v1925
        %v2012 = vunpack.c.l.b16 %v1926
        %v2013 = vunpack.c.h.b16 %v1926
        %v2014 = vunpack.c.l.b16 %v1927
        %v2015 = vunpack.c.h.b16 %v1927
        %v2016 = vunpack.c.l.b16 %v1928
        %v2017 = vunpack.c.h.b16 %v1928
        %v2018 = vunpack.c.l.b16 %v1929
        %v2019 = vunpack.c.h.b16 %v1929
        %v2020 = vunpack.c.l.b16 %v1930
        %v2021 = vunpack.c.h.b16 %v1930
        %v2022 = vunpack.c.l.b16 %v1931
        %v2023 = vunpack.c.h.b16 %v1931
        %v2024 = vunpack.c.l.b16 %v1932
        %v2025 = vunpack.c.h.b16 %v1932
        %v2026 = vunpack.c.l.b16 %v1933
        %v2027 = vunpack.c.h.b16 %v1933
        %v2028 = vunpack.c.l.b16 %v1934
        %v2029 = vunpack.c.h.b16 %v1934
        %v2030 = vunpack.c.l.b16 %v1935
        %v2031 = vunpack.c.h.b16 %v1935
        %v2032 = vpack.c.b16 %v1970, %v1968
        %v2033 = vpack.c.b16 %v1971, %v1969
        %v2034 = vpack.c.b16 %v1974, %v1972
        %v2035 = vpack.c.b16 %v1975, %v1973
        %v2036 = vpack.c.b16 %v1978, %v1976
        %v2037 = vpack.c.b16 %v1979, %v1977
        %v2038 = vpack.c.b16 %v1982, %v1980
        %v2039 = vpack.c.b16 %v1983, %v1981
        %v2040 = vpack.c.b16 %v1986, %v1984
        %v2041 = vpack.c.b16 %v1987, %v1985
        %v2042 = vpack.c.b16 %v1990, %v1988
        %v2043 = vpack.c.b16 %v1991, %v1989
        %v2044 = vpack.c.b16 %v1994, %v1992
        %v2045 = vpack.c.b16 %v1995, %v1993
        %v2046 = vpack.c.b16 %v1998, %v1996
        %v2047 = vpack.c.b16 %v1999, %v1997
        %v2048 = vpack.c.b16 %v2002, %v2000
        %v2049 = vpack.c.b16 %v2003, %v2001
        %v2050 = vpack.c.b16 %v2006, %v2004
        %v2051 = vpack.c.b16 %v2007, %v2005
        %v2052 = vpack.c.b16 %v2010, %v2008
        %v2053 = vpack.c.b16 %v2011, %v2009
        %v2054 = vpack.c.b16 %v2014, %v2012
        %v2055 = vpack.c.b16 %v2015, %v2013
        %v2056 = vpack.c.b16 %v2018, %v2016
        %v2057 = vpack.c.b16 %v2019, %v2017
        %v2058 = vpack.c.b16 %v2022, %v2020
        %v2059 = vpack.c.b16 %v2023, %v2021
        %v2060 = vpack.c.b16 %v2026, %v2024
        %v2061 = vpack.c.b16 %v2027, %v2025
        %v2062 = vpack.c.b16 %v2030, %v2028
        %v2063 = vpack.c.b16 %v2031, %v2029
        %2096 = vmatprep.subr.bf16.mxu0 %v2033
        %2097 = vmatpush1.bf16.msra.mxu0 %v2032
        %2098 = vmatprep.subr.bf16.mxu0 %v2035
        %2099 = vmatpush1.bf16.msra.mxu0 %v2034
        %2100 = vmatprep.subr.bf16.mxu0 %v2037
        %2101 = vmatpush1.bf16.msra.mxu0 %v2036
        %2102 = vmatprep.subr.bf16.mxu0 %v2039
        %2103 = vmatpush1.bf16.msra.mxu0 %v2038
        %2104 = vmatprep.subr.bf16.mxu0 %v2041
        %2105 = vmatpush1.bf16.msra.mxu0 %v2040
        %2106 = vmatprep.subr.bf16.mxu0 %v2043
        %2107 = vmatpush1.bf16.msra.mxu0 %v2042
        %2108 = vmatprep.subr.bf16.mxu0 %v2045
        %2109 = vmatpush1.bf16.msra.mxu0 %v2044
        %2110 = vmatprep.subr.bf16.mxu0 %v2047
        %2111 = vmatpush1.bf16.msra.mxu0 %v2046
        %2112 = vmatprep.subr.bf16.mxu0 %v2049
        %2113 = vmatpush1.bf16.msra.mxu0 %v2048
        %2114 = vmatprep.subr.bf16.mxu0 %v2051
        %2115 = vmatpush1.bf16.msra.mxu0 %v2050
        %2116 = vmatprep.subr.bf16.mxu0 %v2053
        %2117 = vmatpush1.bf16.msra.mxu0 %v2052
        %2118 = vmatprep.subr.bf16.mxu0 %v2055
        %2119 = vmatpush1.bf16.msra.mxu0 %v2054
        %2120 = vmatprep.subr.bf16.mxu0 %v2057
        %2121 = vmatpush1.bf16.msra.mxu0 %v2056
        %2122 = vmatprep.subr.bf16.mxu0 %v2059
        %2123 = vmatpush1.bf16.msra.mxu0 %v2058
        %2124 = vmatprep.subr.bf16.mxu0 %v2061
        %2125 = vmatpush1.bf16.msra.mxu0 %v2060
        %2126 = vmatprep.subr.bf16.mxu0 %v2063
        %2127 = vmatpush1.bf16.msra.mxu0 %v2062
        %2128 = vmatprep.mubr.bf16.mxu0 %v1841
        %2129 = vmatmul.mubr.bf16.gmra.mrb[0].mxu0 %v1840
        %v2130 = vpop.f32.mrb[0].mxu0
        %v2131 = vadd.f32 0.0, %v2130
        %v2132 = vpop.f32.mrb[0].mxu0
        %v2133 = vadd.f32 0.0, %v2132
        %v2134 = vpop.f32.mrb[0].mxu0
        %v2135 = vadd.f32 0.0, %v2134
        %v2136 = vpop.f32.mrb[0].mxu0
        %v2137 = vadd.f32 0.0, %v2136
        %2138 = vmatprep.mubr.bf16.mxu0 %v1843
        %2139 = vmatmul.mubr.bf16.gmra.mrb[0].mxu0 %v1842
        %v2140 = vpop.f32.mrb[0].mxu0
        %v2141 = vadd.f32 0.0, %v2140
        %v2142 = vpop.f32.mrb[0].mxu0
        %v2143 = vadd.f32 0.0, %v2142
        %v2144 = vpop.f32.mrb[0].mxu0
        %v2145 = vadd.f32 0.0, %v2144
        %v2146 = vpop.f32.mrb[0].mxu0
        %v2147 = vadd.f32 0.0, %v2146
        %2148 = vmatprep.mubr.bf16.mxu0 %v1845
        %2149 = vmatmul.mubr.bf16.gmra.mrb[0].mxu0 %v1844
        %v2150 = vpop.f32.mrb[0].mxu0
        %v2151 = vadd.f32 0.0, %v2150
        %v2152 = vpop.f32.mrb[0].mxu0
        %v2153 = vadd.f32 0.0, %v2152
        %v2154 = vpop.f32.mrb[0].mxu0
        %v2155 = vadd.f32 0.0, %v2154
        %v2156 = vpop.f32.mrb[0].mxu0
        %v2157 = vadd.f32 0.0, %v2156
        %2158 = vmatprep.mubr.bf16.mxu0 %v1847
        %2159 = vmatmul.mubr.bf16.gmra.mrb[0].mxu0 %v1846
        %v2160 = vpop.f32.mrb[0].mxu0
        %v2161 = vadd.f32 0.0, %v2160
        %v2162 = vpop.f32.mrb[0].mxu0
        %v2163 = vadd.f32 0.0, %v2162
        %v2164 = vpop.f32.mrb[0].mxu0
        %v2165 = vadd.f32 0.0, %v2164
        %v2166 = vpop.f32.mrb[0].mxu0
        %v2167 = vadd.f32 0.0, %v2166
        %2168 = vmatprep.mubr.bf16.mxu0 %v1849
        %2169 = vmatmul.mubr.bf16.gmra.mrb[0].mxu0 %v1848
        %v2170 = vpop.f32.mrb[0].mxu0
        %v2171 = vadd.f32 0.0, %v2170
        %v2172 = vpop.f32.mrb[0].mxu0
        %v2173 = vadd.f32 0.0, %v2172
        %v2174 = vpop.f32.mrb[0].mxu0
        %v2175 = vadd.f32 0.0, %v2174
        %v2176 = vpop.f32.mrb[0].mxu0
        %v2177 = vadd.f32 0.0, %v2176
        %2178 = vmatprep.mubr.bf16.mxu0 %v1851
        %2179 = vmatmul.mubr.bf16.gmra.mrb[0].mxu0 %v1850
        %v2180 = vpop.f32.mrb[0].mxu0
        %v2181 = vadd.f32 0.0, %v2180
        %v2182 = vpop.f32.mrb[0].mxu0
        %v2183 = vadd.f32 0.0, %v2182
        %v2184 = vpop.f32.mrb[0].mxu0
        %v2185 = vadd.f32 0.0, %v2184
        %v2186 = vpop.f32.mrb[0].mxu0
        %v2187 = vadd.f32 0.0, %v2186
        %2188 = vmatprep.mubr.bf16.mxu0 %v1853
        %2189 = vmatmul.mubr.bf16.gmra.mrb[0].mxu0 %v1852
        %v2190 = vpop.f32.mrb[0].mxu0
        %v2191 = vadd.f32 0.0, %v2190
        %v2192 = vpop.f32.mrb[0].mxu0
        %v2193 = vadd.f32 0.0, %v2192
        %v2194 = vpop.f32.mrb[0].mxu0
        %v2195 = vadd.f32 0.0, %v2194
        %v2196 = vpop.f32.mrb[0].mxu0
        %v2197 = vadd.f32 0.0, %v2196
        %2198 = vmatprep.mubr.bf16.mxu0 %v1855
        %2199 = vmatmul.mubr.bf16.gmra.mrb[0].mxu0 %v1854
        %v2200 = vpop.f32.mrb[0].mxu0
        %v2201 = vadd.f32 0.0, %v2200
        %v2202 = vpop.f32.mrb[0].mxu0
        %v2203 = vadd.f32 0.0, %v2202
        %v2204 = vpop.f32.mrb[0].mxu0
        %v2205 = vadd.f32 0.0, %v2204
        %v2206 = vpop.f32.mrb[0].mxu0
        %v2207 = vadd.f32 0.0, %v2206
        %2208 = vmatprep.mubr.bf16.mxu0 %v1857
        %2209 = vmatmul.mubr.bf16.gmra.mrb[0].mxu0 %v1856
        %v2210 = vpop.f32.mrb[0].mxu0
        %v2211 = vadd.f32 0.0, %v2210
        %v2212 = vpop.f32.mrb[0].mxu0
        %v2213 = vadd.f32 0.0, %v2212
        %v2214 = vpop.f32.mrb[0].mxu0
        %v2215 = vadd.f32 0.0, %v2214
        %v2216 = vpop.f32.mrb[0].mxu0
        %v2217 = vadd.f32 0.0, %v2216
        %2218 = vmatprep.mubr.bf16.mxu0 %v1859
        %2219 = vmatmul.mubr.bf16.gmra.mrb[0].mxu0 %v1858
        %v2220 = vpop.f32.mrb[0].mxu0
        %v2221 = vadd.f32 0.0, %v2220
        %v2222 = vpop.f32.mrb[0].mxu0
        %v2223 = vadd.f32 0.0, %v2222
        %v2224 = vpop.f32.mrb[0].mxu0
        %v2225 = vadd.f32 0.0, %v2224
        %v2226 = vpop.f32.mrb[0].mxu0
        %v2227 = vadd.f32 0.0, %v2226
        %2228 = vmatprep.mubr.bf16.mxu0 %v1861
        %2229 = vmatmul.mubr.bf16.gmra.mrb[0].mxu0 %v1860
        %v2230 = vpop.f32.mrb[0].mxu0
        %v2231 = vadd.f32 0.0, %v2230
        %v2232 = vpop.f32.mrb[0].mxu0
        %v2233 = vadd.f32 0.0, %v2232
        %v2234 = vpop.f32.mrb[0].mxu0
        %v2235 = vadd.f32 0.0, %v2234
        %v2236 = vpop.f32.mrb[0].mxu0
        %v2237 = vadd.f32 0.0, %v2236
        %2238 = vmatprep.mubr.bf16.mxu0 %v1863
        %2239 = vmatmul.mubr.bf16.gmra.mrb[0].mxu0 %v1862
        %v2240 = vpop.f32.mrb[0].mxu0
        %v2241 = vadd.f32 0.0, %v2240
        %v2242 = vpop.f32.mrb[0].mxu0
        %v2243 = vadd.f32 0.0, %v2242
        %v2244 = vpop.f32.mrb[0].mxu0
        %v2245 = vadd.f32 0.0, %v2244
        %v2246 = vpop.f32.mrb[0].mxu0
        %v2247 = vadd.f32 0.0, %v2246
        %2248 = vmatprep.mubr.bf16.mxu0 %v1865
        %2249 = vmatmul.mubr.bf16.gmra.mrb[0].mxu0 %v1864
        %v2250 = vpop.f32.mrb[0].mxu0
        %v2251 = vadd.f32 0.0, %v2250
        %v2252 = vpop.f32.mrb[0].mxu0
        %v2253 = vadd.f32 0.0, %v2252
        %v2254 = vpop.f32.mrb[0].mxu0
        %v2255 = vadd.f32 0.0, %v2254
        %v2256 = vpop.f32.mrb[0].mxu0
        %v2257 = vadd.f32 0.0, %v2256
        %2258 = vmatprep.mubr.bf16.mxu0 %v1867
        %2259 = vmatmul.mubr.bf16.gmra.mrb[0].mxu0 %v1866
        %v2260 = vpop.f32.mrb[0].mxu0
        %v2261 = vadd.f32 0.0, %v2260
        %v2262 = vpop.f32.mrb[0].mxu0
        %v2263 = vadd.f32 0.0, %v2262
        %v2264 = vpop.f32.mrb[0].mxu0
        %v2265 = vadd.f32 0.0, %v2264
        %v2266 = vpop.f32.mrb[0].mxu0
        %v2267 = vadd.f32 0.0, %v2266
        %2268 = vmatprep.mubr.bf16.mxu0 %v1869
        %2269 = vmatmul.mubr.bf16.gmra.mrb[0].mxu0 %v1868
        %v2270 = vpop.f32.mrb[0].mxu0
        %v2271 = vadd.f32 0.0, %v2270
        %v2272 = vpop.f32.mrb[0].mxu0
        %v2273 = vadd.f32 0.0, %v2272
        %v2274 = vpop.f32.mrb[0].mxu0
        %v2275 = vadd.f32 0.0, %v2274
        %v2276 = vpop.f32.mrb[0].mxu0
        %v2277 = vadd.f32 0.0, %v2276
        %2278 = vmatprep.mubr.bf16.mxu0 %v1871
        %2279 = vmatmul.mubr.bf16.gmra.mrb[0].mxu0 %v1870
        %v2280 = vpop.f32.mrb[0].mxu0
        %v2281 = vadd.f32 0.0, %v2280
        %v2282 = vpop.f32.mrb[0].mxu0
        %v2283 = vadd.f32 0.0, %v2282
        %v2284 = vpop.f32.mrb[0].mxu0
        %v2285 = vadd.f32 0.0, %v2284
        %v2286 = vpop.f32.mrb[0].mxu0
        %v2287 = vadd.f32 0.0, %v2286
        %2288 = vmatprep.mubr.bf16.mxu0 %v1873
        %2289 = vmatmul.mubr.bf16.gmra.mrb[0].mxu0 %v1872
        %v2290 = vpop.f32.mrb[0].mxu0
        %v2291 = vadd.f32 0.0, %v2290
        %v2292 = vpop.f32.mrb[0].mxu0
        %v2293 = vadd.f32 0.0, %v2292
        %v2294 = vpop.f32.mrb[0].mxu0
        %v2295 = vadd.f32 0.0, %v2294
        %v2296 = vpop.f32.mrb[0].mxu0
        %v2297 = vadd.f32 0.0, %v2296
        %2298 = vmatprep.mubr.bf16.mxu0 %v1875
        %2299 = vmatmul.mubr.bf16.gmra.mrb[0].mxu0 %v1874
        %v2300 = vpop.f32.mrb[0].mxu0
        %v2301 = vadd.f32 0.0, %v2300
        %v2302 = vpop.f32.mrb[0].mxu0
        %v2303 = vadd.f32 0.0, %v2302
        %v2304 = vpop.f32.mrb[0].mxu0
        %v2305 = vadd.f32 0.0, %v2304
        %v2306 = vpop.f32.mrb[0].mxu0
        %v2307 = vadd.f32 0.0, %v2306
        %2308 = vmatprep.mubr.bf16.mxu0 %v1877
        %2309 = vmatmul.mubr.bf16.gmra.mrb[0].mxu0 %v1876
        %v2310 = vpop.f32.mrb[0].mxu0
        %v2311 = vadd.f32 0.0, %v2310
        %v2312 = vpop.f32.mrb[0].mxu0
        %v2313 = vadd.f32 0.0, %v2312
        %v2314 = vpop.f32.mrb[0].mxu0
        %v2315 = vadd.f32 0.0, %v2314
        %v2316 = vpop.f32.mrb[0].mxu0
        %v2317 = vadd.f32 0.0, %v2316
        %2318 = vmatprep.mubr.bf16.mxu0 %v1879
        %2319 = vmatmul.mubr.bf16.gmra.mrb[0].mxu0 %v1878
        %v2320 = vpop.f32.mrb[0].mxu0
        %v2321 = vadd.f32 0.0, %v2320
        %v2322 = vpop.f32.mrb[0].mxu0
        %v2323 = vadd.f32 0.0, %v2322
        %v2324 = vpop.f32.mrb[0].mxu0
        %v2325 = vadd.f32 0.0, %v2324
        %v2326 = vpop.f32.mrb[0].mxu0
        %v2327 = vadd.f32 0.0, %v2326
        %2328 = vmatprep.mubr.bf16.mxu0 %v1881
        %2329 = vmatmul.mubr.bf16.gmra.mrb[0].mxu0 %v1880
        %v2330 = vpop.f32.mrb[0].mxu0
        %v2331 = vadd.f32 0.0, %v2330
        %v2332 = vpop.f32.mrb[0].mxu0
        %v2333 = vadd.f32 0.0, %v2332
        %v2334 = vpop.f32.mrb[0].mxu0
        %v2335 = vadd.f32 0.0, %v2334
        %v2336 = vpop.f32.mrb[0].mxu0
        %v2337 = vadd.f32 0.0, %v2336
        %2338 = vmatprep.mubr.bf16.mxu0 %v1883
        %2339 = vmatmul.mubr.bf16.gmra.mrb[0].mxu0 %v1882
        %v2340 = vpop.f32.mrb[0].mxu0
        %v2341 = vadd.f32 0.0, %v2340
        %v2342 = vpop.f32.mrb[0].mxu0
        %v2343 = vadd.f32 0.0, %v2342
        %v2344 = vpop.f32.mrb[0].mxu0
        %v2345 = vadd.f32 0.0, %v2344
        %v2346 = vpop.f32.mrb[0].mxu0
        %v2347 = vadd.f32 0.0, %v2346
        %2348 = vmatprep.mubr.bf16.mxu0 %v1885
        %2349 = vmatmul.mubr.bf16.gmra.mrb[0].mxu0 %v1884
        %v2350 = vpop.f32.mrb[0].mxu0
        %v2351 = vadd.f32 0.0, %v2350
        %v2352 = vpop.f32.mrb[0].mxu0
        %v2353 = vadd.f32 0.0, %v2352
        %v2354 = vpop.f32.mrb[0].mxu0
        %v2355 = vadd.f32 0.0, %v2354
        %v2356 = vpop.f32.mrb[0].mxu0
        %v2357 = vadd.f32 0.0, %v2356
        %2358 = vmatprep.mubr.bf16.mxu0 %v1887
        %2359 = vmatmul.mubr.bf16.gmra.mrb[0].mxu0 %v1886
        %v2360 = vpop.f32.mrb[0].mxu0
        %v2361 = vadd.f32 0.0, %v2360
        %v2362 = vpop.f32.mrb[0].mxu0
        %v2363 = vadd.f32 0.0, %v2362
        %v2364 = vpop.f32.mrb[0].mxu0
        %v2365 = vadd.f32 0.0, %v2364
        %v2366 = vpop.f32.mrb[0].mxu0
        %v2367 = vadd.f32 0.0, %v2366
        %2368 = vmatprep.mubr.bf16.mxu0 %v1889
        %2369 = vmatmul.mubr.bf16.gmra.mrb[0].mxu0 %v1888
        %v2370 = vpop.f32.mrb[0].mxu0
        %v2371 = vadd.f32 0.0, %v2370
        %v2372 = vpop.f32.mrb[0].mxu0
        %v2373 = vadd.f32 0.0, %v2372
        %v2374 = vpop.f32.mrb[0].mxu0
        %v2375 = vadd.f32 0.0, %v2374
        %v2376 = vpop.f32.mrb[0].mxu0
        %v2377 = vadd.f32 0.0, %v2376
        %2378 = vmatprep.mubr.bf16.mxu0 %v1891
        %2379 = vmatmul.mubr.bf16.gmra.mrb[0].mxu0 %v1890
        %v2380 = vpop.f32.mrb[0].mxu0
        %v2381 = vadd.f32 0.0, %v2380
        %v2382 = vpop.f32.mrb[0].mxu0
        %v2383 = vadd.f32 0.0, %v2382
        %v2384 = vpop.f32.mrb[0].mxu0
        %v2385 = vadd.f32 0.0, %v2384
        %v2386 = vpop.f32.mrb[0].mxu0
        %v2387 = vadd.f32 0.0, %v2386
        %2388 = vmatprep.mubr.bf16.mxu0 %v1893
        %2389 = vmatmul.mubr.bf16.gmra.mrb[0].mxu0 %v1892
        %v2390 = vpop.f32.mrb[0].mxu0
        %v2391 = vadd.f32 0.0, %v2390
        %v2392 = vpop.f32.mrb[0].mxu0
        %v2393 = vadd.f32 0.0, %v2392
        %v2394 = vpop.f32.mrb[0].mxu0
        %v2395 = vadd.f32 0.0, %v2394
        %v2396 = vpop.f32.mrb[0].mxu0
        %v2397 = vadd.f32 0.0, %v2396
        %2398 = vmatprep.mubr.bf16.mxu0 %v1895
        %2399 = vmatmul.mubr.bf16.gmra.mrb[0].mxu0 %v1894
        %v2400 = vpop.f32.mrb[0].mxu0
        %v2401 = vadd.f32 0.0, %v2400
        %v2402 = vpop.f32.mrb[0].mxu0
        %v2403 = vadd.f32 0.0, %v2402
        %v2404 = vpop.f32.mrb[0].mxu0
        %v2405 = vadd.f32 0.0, %v2404
        %v2406 = vpop.f32.mrb[0].mxu0
        %v2407 = vadd.f32 0.0, %v2406
        %2408 = vmatprep.mubr.bf16.mxu0 %v1897
        %2409 = vmatmul.mubr.bf16.gmra.mrb[0].mxu0 %v1896
        %v2410 = vpop.f32.mrb[0].mxu0
        %v2411 = vadd.f32 0.0, %v2410
        %v2412 = vpop.f32.mrb[0].mxu0
        %v2413 = vadd.f32 0.0, %v2412
        %v2414 = vpop.f32.mrb[0].mxu0
        %v2415 = vadd.f32 0.0, %v2414
        %v2416 = vpop.f32.mrb[0].mxu0
        %v2417 = vadd.f32 0.0, %v2416
        %2418 = vmatprep.mubr.bf16.mxu0 %v1899
        %2419 = vmatmul.mubr.bf16.gmra.mrb[0].mxu0 %v1898
        %v2420 = vpop.f32.mrb[0].mxu0
        %v2421 = vadd.f32 0.0, %v2420
        %v2422 = vpop.f32.mrb[0].mxu0
        %v2423 = vadd.f32 0.0, %v2422
        %v2424 = vpop.f32.mrb[0].mxu0
        %v2425 = vadd.f32 0.0, %v2424
        %v2426 = vpop.f32.mrb[0].mxu0
        %v2427 = vadd.f32 0.0, %v2426
        %2428 = vmatprep.mubr.bf16.mxu0 %v1901
        %2429 = vmatmul.mubr.bf16.gmra.mrb[0].mxu0 %v1900
        %v2430 = vpop.f32.mrb[0].mxu0
        %v2431 = vadd.f32 0.0, %v2430
        %v2432 = vpop.f32.mrb[0].mxu0
        %v2433 = vadd.f32 0.0, %v2432
        %v2434 = vpop.f32.mrb[0].mxu0
        %v2435 = vadd.f32 0.0, %v2434
        %v2436 = vpop.f32.mrb[0].mxu0
        %v2437 = vadd.f32 0.0, %v2436
        %2438 = vmatprep.mubr.bf16.mxu0 %v1903
        %2439 = vmatmul.mubr.bf16.gmra.mrb[0].mxu0 %v1902
        %v2440 = vpop.f32.mrb[0].mxu0
        %v2441 = vadd.f32 0.0, %v2440
        %v2442 = vpop.f32.mrb[0].mxu0
        %v2443 = vadd.f32 0.0, %v2442
        %v2444 = vpop.f32.mrb[0].mxu0
        %v2445 = vadd.f32 0.0, %v2444
        %v2446 = vpop.f32.mrb[0].mxu0
        %v2447 = vadd.f32 0.0, %v2446
        %2448 = vdwg.mxu0
        %v2449 = vpack.c.bf16 %v2135, %v2131
        %v2450 = vpack.c.bf16 %v2137, %v2133
        %v2451 = vpack.c.bf16 %v2145, %v2141
        %v2452 = vpack.c.bf16 %v2147, %v2143
        %v2453 = vpack.c.bf16 %v2155, %v2151
        %v2454 = vpack.c.bf16 %v2157, %v2153
        %v2455 = vpack.c.bf16 %v2165, %v2161
        %v2456 = vpack.c.bf16 %v2167, %v2163
        %v2457 = vpack.c.bf16 %v2175, %v2171
        %v2458 = vpack.c.bf16 %v2177, %v2173
        %v2459 = vpack.c.bf16 %v2185, %v2181
        %v2460 = vpack.c.bf16 %v2187, %v2183
        %v2461 = vpack.c.bf16 %v2195, %v2191
        %v2462 = vpack.c.bf16 %v2197, %v2193
        %v2463 = vpack.c.bf16 %v2205, %v2201
        %v2464 = vpack.c.bf16 %v2207, %v2203
        %v2465 = vpack.c.bf16 %v2215, %v2211
        %v2466 = vpack.c.bf16 %v2217, %v2213
        %v2467 = vpack.c.bf16 %v2225, %v2221
        %v2468 = vpack.c.bf16 %v2227, %v2223
        %v2469 = vpack.c.bf16 %v2235, %v2231
        %v2470 = vpack.c.bf16 %v2237, %v2233
        %v2471 = vpack.c.bf16 %v2245, %v2241
        %v2472 = vpack.c.bf16 %v2247, %v2243
        %v2473 = vpack.c.bf16 %v2255, %v2251
        %v2474 = vpack.c.bf16 %v2257, %v2253
        %v2475 = vpack.c.bf16 %v2265, %v2261
        %v2476 = vpack.c.bf16 %v2267, %v2263
        %v2477 = vpack.c.bf16 %v2275, %v2271
        %v2478 = vpack.c.bf16 %v2277, %v2273
        %v2479 = vpack.c.bf16 %v2285, %v2281
        %v2480 = vpack.c.bf16 %v2287, %v2283
        %v2481 = vpack.c.bf16 %v2295, %v2291
        %v2482 = vpack.c.bf16 %v2297, %v2293
        %v2483 = vpack.c.bf16 %v2305, %v2301
        %v2484 = vpack.c.bf16 %v2307, %v2303
        %v2485 = vpack.c.bf16 %v2315, %v2311
        %v2486 = vpack.c.bf16 %v2317, %v2313
        %v2487 = vpack.c.bf16 %v2325, %v2321
        %v2488 = vpack.c.bf16 %v2327, %v2323
        %v2489 = vpack.c.bf16 %v2335, %v2331
        %v2490 = vpack.c.bf16 %v2337, %v2333
        %v2491 = vpack.c.bf16 %v2345, %v2341
        %v2492 = vpack.c.bf16 %v2347, %v2343
        %v2493 = vpack.c.bf16 %v2355, %v2351
        %v2494 = vpack.c.bf16 %v2357, %v2353
        %v2495 = vpack.c.bf16 %v2365, %v2361
        %v2496 = vpack.c.bf16 %v2367, %v2363
        %v2497 = vpack.c.bf16 %v2375, %v2371
        %v2498 = vpack.c.bf16 %v2377, %v2373
        %v2499 = vpack.c.bf16 %v2385, %v2381
        %v2500 = vpack.c.bf16 %v2387, %v2383
        %v2501 = vpack.c.bf16 %v2395, %v2391
        %v2502 = vpack.c.bf16 %v2397, %v2393
        %v2503 = vpack.c.bf16 %v2405, %v2401
        %v2504 = vpack.c.bf16 %v2407, %v2403
        %v2505 = vpack.c.bf16 %v2415, %v2411
        %v2506 = vpack.c.bf16 %v2417, %v2413
        %v2507 = vpack.c.bf16 %v2425, %v2421
        %v2508 = vpack.c.bf16 %v2427, %v2423
        %v2509 = vpack.c.bf16 %v2435, %v2431
        %v2510 = vpack.c.bf16 %v2437, %v2433
        %v2511 = vpack.c.bf16 %v2445, %v2441
        %v2512 = vpack.c.bf16 %v2447, %v2443
        %s2513 = scalar_lea.vmem %s3, 2
        %v2514 = vld [vmem:[%s2513] sm:$0x3]
        %v2516 = vlaneseq
        %v2517 = vshrl.u32 %v2516, 7
        %v2518 = vsub.s32 0, %v2517
        %v2519 = vrot.slane %v2514, %v2518
        %v2520 = vlaneseq
        %v2521 = vshrl.u32 %v2520, 7
        %v2522 = vsub.s32 1, %v2521
        %v2523 = vrot.slane %v2514, %v2522
        %v2526 = vpack.c.bf16 %v2519, %v2519
        %v2527 = vpack.c.bf16 %v2523, %v2523
        %v2529 = vpack.i.b16 %v2526, %v2526
        %v2531 = vlaneseq
        %v2532 = vshrl.u32 %v2531, 7
        %v2533 = vsub.s32 0, %v2532
        %v2534 = vrot.slane %v2529, %v2533
        %v2536 = vpack.i.b16 %v2527, %v2527
        %v2538 = vlaneseq
        %v2539 = vshrl.u32 %v2538, 7
        %v2540 = vsub.s32 0, %v2539
        %v2541 = vrot.slane %v2536, %v2540
        %v2542 = vadd.bf16 %v2449, %v2534
        %v2543 = vadd.bf16 %v2450, %v2541
        %v2544 = vadd.bf16 %v2451, %v2534
        %v2545 = vadd.bf16 %v2452, %v2541
        %v2546 = vadd.bf16 %v2453, %v2534
        %v2547 = vadd.bf16 %v2454, %v2541
        %v2548 = vadd.bf16 %v2455, %v2534
        %v2549 = vadd.bf16 %v2456, %v2541
        %v2550 = vadd.bf16 %v2457, %v2534
        %v2551 = vadd.bf16 %v2458, %v2541
        %v2552 = vadd.bf16 %v2459, %v2534
        %v2553 = vadd.bf16 %v2460, %v2541
        %v2554 = vadd.bf16 %v2461, %v2534
        %v2555 = vadd.bf16 %v2462, %v2541
        %v2556 = vadd.bf16 %v2463, %v2534
        %v2557 = vadd.bf16 %v2464, %v2541
        %v2558 = vadd.bf16 %v2465, %v2534
        %v2559 = vadd.bf16 %v2466, %v2541
        %v2560 = vadd.bf16 %v2467, %v2534
        %v2561 = vadd.bf16 %v2468, %v2541
        %v2562 = vadd.bf16 %v2469, %v2534
        %v2563 = vadd.bf16 %v2470, %v2541
        %v2564 = vadd.bf16 %v2471, %v2534
        %v2565 = vadd.bf16 %v2472, %v2541
        %v2566 = vadd.bf16 %v2473, %v2534
        %v2567 = vadd.bf16 %v2474, %v2541
        %v2568 = vadd.bf16 %v2475, %v2534
        %v2569 = vadd.bf16 %v2476, %v2541
        %v2570 = vadd.bf16 %v2477, %v2534
        %v2571 = vadd.bf16 %v2478, %v2541
        %v2572 = vadd.bf16 %v2479, %v2534
        %v2573 = vadd.bf16 %v2480, %v2541
        %v2574 = vadd.bf16 %v2481, %v2534
        %v2575 = vadd.bf16 %v2482, %v2541
        %v2576 = vadd.bf16 %v2483, %v2534
        %v2577 = vadd.bf16 %v2484, %v2541
        %v2578 = vadd.bf16 %v2485, %v2534
        %v2579 = vadd.bf16 %v2486, %v2541
        %v2580 = vadd.bf16 %v2487, %v2534
        %v2581 = vadd.bf16 %v2488, %v2541
        %v2582 = vadd.bf16 %v2489, %v2534
        %v2583 = vadd.bf16 %v2490, %v2541
        %v2584 = vadd.bf16 %v2491, %v2534
        %v2585 = vadd.bf16 %v2492, %v2541
        %v2586 = vadd.bf16 %v2493, %v2534
        %v2587 = vadd.bf16 %v2494, %v2541
        %v2588 = vadd.bf16 %v2495, %v2534
        %v2589 = vadd.bf16 %v2496, %v2541
        %v2590 = vadd.bf16 %v2497, %v2534
        %v2591 = vadd.bf16 %v2498, %v2541
        %v2592 = vadd.bf16 %v2499, %v2534
        %v2593 = vadd.bf16 %v2500, %v2541
        %v2594 = vadd.bf16 %v2501, %v2534
        %v2595 = vadd.bf16 %v2502, %v2541
        %v2596 = vadd.bf16 %v2503, %v2534
        %v2597 = vadd.bf16 %v2504, %v2541
        %v2598 = vadd.bf16 %v2505, %v2534
        %v2599 = vadd.bf16 %v2506, %v2541
        %v2600 = vadd.bf16 %v2507, %v2534
        %v2601 = vadd.bf16 %v2508, %v2541
        %v2602 = vadd.bf16 %v2509, %v2534
        %v2603 = vadd.bf16 %v2510, %v2541
        %v2604 = vadd.bf16 %v2511, %v2534
        %v2605 = vadd.bf16 %v2512, %v2541
        %v2606 = vmax.bf16 %v2542, 0
        %v2607 = vmax.bf16 %v2543, 0
        %v2608 = vmax.bf16 %v2544, 0
        %v2609 = vmax.bf16 %v2545, 0
        %v2610 = vmax.bf16 %v2546, 0
        %v2611 = vmax.bf16 %v2547, 0
        %v2612 = vmax.bf16 %v2548, 0
        %v2613 = vmax.bf16 %v2549, 0
        %v2614 = vmax.bf16 %v2550, 0
        %v2615 = vmax.bf16 %v2551, 0
        %v2616 = vmax.bf16 %v2552, 0
        %v2617 = vmax.bf16 %v2553, 0
        %v2618 = vmax.bf16 %v2554, 0
        %v2619 = vmax.bf16 %v2555, 0
        %v2620 = vmax.bf16 %v2556, 0
        %v2621 = vmax.bf16 %v2557, 0
        %v2622 = vmax.bf16 %v2558, 0
        %v2623 = vmax.bf16 %v2559, 0
        %v2624 = vmax.bf16 %v2560, 0
        %v2625 = vmax.bf16 %v2561, 0
        %v2626 = vmax.bf16 %v2562, 0
        %v2627 = vmax.bf16 %v2563, 0
        %v2628 = vmax.bf16 %v2564, 0
        %v2629 = vmax.bf16 %v2565, 0
        %v2630 = vmax.bf16 %v2566, 0
        %v2631 = vmax.bf16 %v2567, 0
        %v2632 = vmax.bf16 %v2568, 0
        %v2633 = vmax.bf16 %v2569, 0
        %v2634 = vmax.bf16 %v2570, 0
        %v2635 = vmax.bf16 %v2571, 0
        %v2636 = vmax.bf16 %v2572, 0
        %v2637 = vmax.bf16 %v2573, 0
        %v2638 = vmax.bf16 %v2574, 0
        %v2639 = vmax.bf16 %v2575, 0
        %v2640 = vmax.bf16 %v2576, 0
        %v2641 = vmax.bf16 %v2577, 0
        %v2642 = vmax.bf16 %v2578, 0
        %v2643 = vmax.bf16 %v2579, 0
        %v2644 = vmax.bf16 %v2580, 0
        %v2645 = vmax.bf16 %v2581, 0
        %v2646 = vmax.bf16 %v2582, 0
        %v2647 = vmax.bf16 %v2583, 0
        %v2648 = vmax.bf16 %v2584, 0
        %v2649 = vmax.bf16 %v2585, 0
        %v2650 = vmax.bf16 %v2586, 0
        %v2651 = vmax.bf16 %v2587, 0
        %v2652 = vmax.bf16 %v2588, 0
        %v2653 = vmax.bf16 %v2589, 0
        %v2654 = vmax.bf16 %v2590, 0
        %v2655 = vmax.bf16 %v2591, 0
        %v2656 = vmax.bf16 %v2592, 0
        %v2657 = vmax.bf16 %v2593, 0
        %v2658 = vmax.bf16 %v2594, 0
        %v2659 = vmax.bf16 %v2595, 0
        %v2660 = vmax.bf16 %v2596, 0
        %v2661 = vmax.bf16 %v2597, 0
        %v2662 = vmax.bf16 %v2598, 0
        %v2663 = vmax.bf16 %v2599, 0
        %v2664 = vmax.bf16 %v2600, 0
        %v2665 = vmax.bf16 %v2601, 0
        %v2666 = vmax.bf16 %v2602, 0
        %v2667 = vmax.bf16 %v2603, 0
        %v2668 = vmax.bf16 %v2604, 0
        %v2669 = vmax.bf16 %v2605, 0
        %2670 = vst [vmem:[#allocation2] sm:$0xff] %v2606
        %2671 = vst [vmem:[#allocation2 + $0x8] sm:$0xff] %v2607
        %2672 = vst [vmem:[#allocation2 + $0x10] sm:$0xff] %v2608
        %2673 = vst [vmem:[#allocation2 + $0x18] sm:$0xff] %v2609
        %2674 = vst [vmem:[#allocation2 + $0x20] sm:$0xff] %v2610
        %2675 = vst [vmem:[#allocation2 + $0x28] sm:$0xff] %v2611
        %2676 = vst [vmem:[#allocation2 + $0x30] sm:$0xff] %v2612
        %2677 = vst [vmem:[#allocation2 + $0x38] sm:$0xff] %v2613
        %2678 = vst [vmem:[#allocation2 + $0x40] sm:$0xff] %v2614
        %2679 = vst [vmem:[#allocation2 + $0x48] sm:$0xff] %v2615
        %2680 = vst [vmem:[#allocation2 + $0x50] sm:$0xff] %v2616
        %2681 = vst [vmem:[#allocation2 + $0x58] sm:$0xff] %v2617
        %2682 = vst [vmem:[#allocation2 + $0x60] sm:$0xff] %v2618
        %2683 = vst [vmem:[#allocation2 + $0x68] sm:$0xff] %v2619
        %2684 = vst [vmem:[#allocation2 + $0x70] sm:$0xff] %v2620
        %2685 = vst [vmem:[#allocation2 + $0x78] sm:$0xff] %v2621
        %2686 = vst [vmem:[#allocation2 + $0x80] sm:$0xff] %v2622
        %2687 = vst [vmem:[#allocation2 + $0x88] sm:$0xff] %v2623
        %2688 = vst [vmem:[#allocation2 + $0x90] sm:$0xff] %v2624
        %2689 = vst [vmem:[#allocation2 + $0x98] sm:$0xff] %v2625
        %2690 = vst [vmem:[#allocation2 + $0xa0] sm:$0xff] %v2626
        %2691 = vst [vmem:[#allocation2 + $0xa8] sm:$0xff] %v2627
        %2692 = vst [vmem:[#allocation2 + $0xb0] sm:$0xff] %v2628
        %2693 = vst [vmem:[#allocation2 + $0xb8] sm:$0xff] %v2629
        %2694 = vst [vmem:[#allocation2 + $0xc0] sm:$0xff] %v2630
        %2695 = vst [vmem:[#allocation2 + $0xc8] sm:$0xff] %v2631
        %2696 = vst [vmem:[#allocation2 + $0xd0] sm:$0xff] %v2632
        %2697 = vst [vmem:[#allocation2 + $0xd8] sm:$0xff] %v2633
        %2698 = vst [vmem:[#allocation2 + $0xe0] sm:$0xff] %v2634
        %2699 = vst [vmem:[#allocation2 + $0xe8] sm:$0xff] %v2635
        %2700 = vst [vmem:[#allocation2 + $0xf0] sm:$0xff] %v2636
        %2701 = vst [vmem:[#allocation2 + $0xf8] sm:$0xff] %v2637
        %2702 = vst [vmem:[#allocation2 + $0x100] sm:$0xff] %v2638
        %2703 = vst [vmem:[#allocation2 + $0x108] sm:$0xff] %v2639
        %2704 = vst [vmem:[#allocation2 + $0x110] sm:$0xff] %v2640
        %2705 = vst [vmem:[#allocation2 + $0x118] sm:$0xff] %v2641
        %2706 = vst [vmem:[#allocation2 + $0x120] sm:$0xff] %v2642
        %2707 = vst [vmem:[#allocation2 + $0x128] sm:$0xff] %v2643
        %2708 = vst [vmem:[#allocation2 + $0x130] sm:$0xff] %v2644
        %2709 = vst [vmem:[#allocation2 + $0x138] sm:$0xff] %v2645
        %2710 = vst [vmem:[#allocation2 + $0x140] sm:$0xff] %v2646
        %2711 = vst [vmem:[#allocation2 + $0x148] sm:$0xff] %v2647
        %2712 = vst [vmem:[#allocation2 + $0x150] sm:$0xff] %v2648
        %2713 = vst [vmem:[#allocation2 + $0x158] sm:$0xff] %v2649
        %2714 = vst [vmem:[#allocation2 + $0x160] sm:$0xff] %v2650
        %2715 = vst [vmem:[#allocation2 + $0x168] sm:$0xff] %v2651
        %2716 = vst [vmem:[#allocation2 + $0x170] sm:$0xff] %v2652
        %2717 = vst [vmem:[#allocation2 + $0x178] sm:$0xff] %v2653
        %2718 = vst [vmem:[#allocation2 + $0x180] sm:$0xff] %v2654
        %2719 = vst [vmem:[#allocation2 + $0x188] sm:$0xff] %v2655
        %2720 = vst [vmem:[#allocation2 + $0x190] sm:$0xff] %v2656
        %2721 = vst [vmem:[#allocation2 + $0x198] sm:$0xff] %v2657
        %2722 = vst [vmem:[#allocation2 + $0x1a0] sm:$0xff] %v2658
        %2723 = vst [vmem:[#allocation2 + $0x1a8] sm:$0xff] %v2659
        %2724 = vst [vmem:[#allocation2 + $0x1b0] sm:$0xff] %v2660
        %2725 = vst [vmem:[#allocation2 + $0x1b8] sm:$0xff] %v2661
        %2726 = vst [vmem:[#allocation2 + $0x1c0] sm:$0xff] %v2662
        %2727 = vst [vmem:[#allocation2 + $0x1c8] sm:$0xff] %v2663
        %2728 = vst [vmem:[#allocation2 + $0x1d0] sm:$0xff] %v2664
        %2729 = vst [vmem:[#allocation2 + $0x1d8] sm:$0xff] %v2665
        %2730 = vst [vmem:[#allocation2 + $0x1e0] sm:$0xff] %v2666
        %2731 = vst [vmem:[#allocation2 + $0x1e8] sm:$0xff] %v2667
        %2732 = vst [vmem:[#allocation2 + $0x1f0] sm:$0xff] %v2668
        %2733 = vst [vmem:[#allocation2 + $0x1f8] sm:$0xff] %v2669
        %v2734 = vld [vmem:[#allocation2] sm:$0xff]
        %v2735 = vld [vmem:[#allocation2 + $0x8] sm:$0xff]
        %v2736 = vld [vmem:[#allocation2 + $0x10] sm:$0xff]
        %v2737 = vld [vmem:[#allocation2 + $0x18] sm:$0xff]
        %v2738 = vld [vmem:[#allocation2 + $0x20] sm:$0xff]
        %v2739 = vld [vmem:[#allocation2 + $0x28] sm:$0xff]
        %v2740 = vld [vmem:[#allocation2 + $0x30] sm:$0xff]
        %v2741 = vld [vmem:[#allocation2 + $0x38] sm:$0xff]
        %v2742 = vld [vmem:[#allocation2 + $0x40] sm:$0xff]
        %v2743 = vld [vmem:[#allocation2 + $0x48] sm:$0xff]
        %v2744 = vld [vmem:[#allocation2 + $0x50] sm:$0xff]
        %v2745 = vld [vmem:[#allocation2 + $0x58] sm:$0xff]
        %v2746 = vld [vmem:[#allocation2 + $0x60] sm:$0xff]
        %v2747 = vld [vmem:[#allocation2 + $0x68] sm:$0xff]
        %v2748 = vld [vmem:[#allocation2 + $0x70] sm:$0xff]
        %v2749 = vld [vmem:[#allocation2 + $0x78] sm:$0xff]
        %v2750 = vld [vmem:[#allocation2 + $0x80] sm:$0xff]
        %v2751 = vld [vmem:[#allocation2 + $0x88] sm:$0xff]
        %v2752 = vld [vmem:[#allocation2 + $0x90] sm:$0xff]
        %v2753 = vld [vmem:[#allocation2 + $0x98] sm:$0xff]
        %v2754 = vld [vmem:[#allocation2 + $0xa0] sm:$0xff]
        %v2755 = vld [vmem:[#allocation2 + $0xa8] sm:$0xff]
        %v2756 = vld [vmem:[#allocation2 + $0xb0] sm:$0xff]
        %v2757 = vld [vmem:[#allocation2 + $0xb8] sm:$0xff]
        %v2758 = vld [vmem:[#allocation2 + $0xc0] sm:$0xff]
        %v2759 = vld [vmem:[#allocation2 + $0xc8] sm:$0xff]
        %v2760 = vld [vmem:[#allocation2 + $0xd0] sm:$0xff]
        %v2761 = vld [vmem:[#allocation2 + $0xd8] sm:$0xff]
        %v2762 = vld [vmem:[#allocation2 + $0xe0] sm:$0xff]
        %v2763 = vld [vmem:[#allocation2 + $0xe8] sm:$0xff]
        %v2764 = vld [vmem:[#allocation2 + $0xf0] sm:$0xff]
        %v2765 = vld [vmem:[#allocation2 + $0xf8] sm:$0xff]
        %v2766 = vld [vmem:[#allocation2 + $0x100] sm:$0xff]
        %v2767 = vld [vmem:[#allocation2 + $0x108] sm:$0xff]
        %v2768 = vld [vmem:[#allocation2 + $0x110] sm:$0xff]
        %v2769 = vld [vmem:[#allocation2 + $0x118] sm:$0xff]
        %v2770 = vld [vmem:[#allocation2 + $0x120] sm:$0xff]
        %v2771 = vld [vmem:[#allocation2 + $0x128] sm:$0xff]
        %v2772 = vld [vmem:[#allocation2 + $0x130] sm:$0xff]
        %v2773 = vld [vmem:[#allocation2 + $0x138] sm:$0xff]
        %v2774 = vld [vmem:[#allocation2 + $0x140] sm:$0xff]
        %v2775 = vld [vmem:[#allocation2 + $0x148] sm:$0xff]
        %v2776 = vld [vmem:[#allocation2 + $0x150] sm:$0xff]
        %v2777 = vld [vmem:[#allocation2 + $0x158] sm:$0xff]
        %v2778 = vld [vmem:[#allocation2 + $0x160] sm:$0xff]
        %v2779 = vld [vmem:[#allocation2 + $0x168] sm:$0xff]
        %v2780 = vld [vmem:[#allocation2 + $0x170] sm:$0xff]
        %v2781 = vld [vmem:[#allocation2 + $0x178] sm:$0xff]
        %v2782 = vld [vmem:[#allocation2 + $0x180] sm:$0xff]
        %v2783 = vld [vmem:[#allocation2 + $0x188] sm:$0xff]
        %v2784 = vld [vmem:[#allocation2 + $0x190] sm:$0xff]
        %v2785 = vld [vmem:[#allocation2 + $0x198] sm:$0xff]
        %v2786 = vld [vmem:[#allocation2 + $0x1a0] sm:$0xff]
        %v2787 = vld [vmem:[#allocation2 + $0x1a8] sm:$0xff]
        %v2788 = vld [vmem:[#allocation2 + $0x1b0] sm:$0xff]
        %v2789 = vld [vmem:[#allocation2 + $0x1b8] sm:$0xff]
        %v2790 = vld [vmem:[#allocation2 + $0x1c0] sm:$0xff]
        %v2791 = vld [vmem:[#allocation2 + $0x1c8] sm:$0xff]
        %v2792 = vld [vmem:[#allocation2 + $0x1d0] sm:$0xff]
        %v2793 = vld [vmem:[#allocation2 + $0x1d8] sm:$0xff]
        %v2794 = vld [vmem:[#allocation2 + $0x1e0] sm:$0xff]
        %v2795 = vld [vmem:[#allocation2 + $0x1e8] sm:$0xff]
        %v2796 = vld [vmem:[#allocation2 + $0x1f0] sm:$0xff]
        %v2797 = vld [vmem:[#allocation2 + $0x1f8] sm:$0xff]
        %s2798 = scalar_lea.vmem [#allocation4], 256
        %v2799 = vld [vmem:[%s2798] sm:$0xff]
        %v2800 = vld [vmem:[%s2798 + $0x8] sm:$0xff]
        %v2801 = vld [vmem:[%s2798 + $0x10] sm:$0xff]
        %v2802 = vld [vmem:[%s2798 + $0x18] sm:$0xff]
        %v2803 = vld [vmem:[%s2798 + $0x20] sm:$0xff]
        %v2804 = vld [vmem:[%s2798 + $0x28] sm:$0xff]
        %v2805 = vld [vmem:[%s2798 + $0x30] sm:$0xff]
        %v2806 = vld [vmem:[%s2798 + $0x38] sm:$0xff]
        %v2807 = vld [vmem:[%s2798 + $0x40] sm:$0xff]
        %v2808 = vld [vmem:[%s2798 + $0x48] sm:$0xff]
        %v2809 = vld [vmem:[%s2798 + $0x50] sm:$0xff]
        %v2810 = vld [vmem:[%s2798 + $0x58] sm:$0xff]
        %v2811 = vld [vmem:[%s2798 + $0x60] sm:$0xff]
        %v2812 = vld [vmem:[%s2798 + $0x68] sm:$0xff]
        %v2813 = vld [vmem:[%s2798 + $0x70] sm:$0xff]
        %v2814 = vld [vmem:[%s2798 + $0x78] sm:$0xff]
        %v2815 = vld [vmem:[%s2798 + $0x80] sm:$0xff]
        %v2816 = vld [vmem:[%s2798 + $0x88] sm:$0xff]
        %v2817 = vld [vmem:[%s2798 + $0x90] sm:$0xff]
        %v2818 = vld [vmem:[%s2798 + $0x98] sm:$0xff]
        %v2819 = vld [vmem:[%s2798 + $0xa0] sm:$0xff]
        %v2820 = vld [vmem:[%s2798 + $0xa8] sm:$0xff]
        %v2821 = vld [vmem:[%s2798 + $0xb0] sm:$0xff]
        %v2822 = vld [vmem:[%s2798 + $0xb8] sm:$0xff]
        %v2823 = vld [vmem:[%s2798 + $0xc0] sm:$0xff]
        %v2824 = vld [vmem:[%s2798 + $0xc8] sm:$0xff]
        %v2825 = vld [vmem:[%s2798 + $0xd0] sm:$0xff]
        %v2826 = vld [vmem:[%s2798 + $0xd8] sm:$0xff]
        %v2827 = vld [vmem:[%s2798 + $0xe0] sm:$0xff]
        %v2828 = vld [vmem:[%s2798 + $0xe8] sm:$0xff]
        %v2829 = vld [vmem:[%s2798 + $0xf0] sm:$0xff]
        %v2830 = vld [vmem:[%s2798 + $0xf8] sm:$0xff]
        %v2863 = vunpack.c.l.b16 %v2799
        %v2864 = vunpack.c.h.b16 %v2799
        %v2865 = vunpack.c.l.b16 %v2800
        %v2866 = vunpack.c.h.b16 %v2800
        %v2867 = vunpack.c.l.b16 %v2801
        %v2868 = vunpack.c.h.b16 %v2801
        %v2869 = vunpack.c.l.b16 %v2802
        %v2870 = vunpack.c.h.b16 %v2802
        %v2871 = vunpack.c.l.b16 %v2803
        %v2872 = vunpack.c.h.b16 %v2803
        %v2873 = vunpack.c.l.b16 %v2804
        %v2874 = vunpack.c.h.b16 %v2804
        %v2875 = vunpack.c.l.b16 %v2805
        %v2876 = vunpack.c.h.b16 %v2805
        %v2877 = vunpack.c.l.b16 %v2806
        %v2878 = vunpack.c.h.b16 %v2806
        %v2879 = vunpack.c.l.b16 %v2807
        %v2880 = vunpack.c.h.b16 %v2807
        %v2881 = vunpack.c.l.b16 %v2808
        %v2882 = vunpack.c.h.b16 %v2808
        %v2883 = vunpack.c.l.b16 %v2809
        %v2884 = vunpack.c.h.b16 %v2809
        %v2885 = vunpack.c.l.b16 %v2810
        %v2886 = vunpack.c.h.b16 %v2810
        %v2887 = vunpack.c.l.b16 %v2811
        %v2888 = vunpack.c.h.b16 %v2811
        %v2889 = vunpack.c.l.b16 %v2812
        %v2890 = vunpack.c.h.b16 %v2812
        %v2891 = vunpack.c.l.b16 %v2813
        %v2892 = vunpack.c.h.b16 %v2813
        %v2893 = vunpack.c.l.b16 %v2814
        %v2894 = vunpack.c.h.b16 %v2814
        %v2895 = vunpack.c.l.b16 %v2815
        %v2896 = vunpack.c.h.b16 %v2815
        %v2897 = vunpack.c.l.b16 %v2816
        %v2898 = vunpack.c.h.b16 %v2816
        %v2899 = vunpack.c.l.b16 %v2817
        %v2900 = vunpack.c.h.b16 %v2817
        %v2901 = vunpack.c.l.b16 %v2818
        %v2902 = vunpack.c.h.b16 %v2818
        %v2903 = vunpack.c.l.b16 %v2819
        %v2904 = vunpack.c.h.b16 %v2819
        %v2905 = vunpack.c.l.b16 %v2820
        %v2906 = vunpack.c.h.b16 %v2820
        %v2907 = vunpack.c.l.b16 %v2821
        %v2908 = vunpack.c.h.b16 %v2821
        %v2909 = vunpack.c.l.b16 %v2822
        %v2910 = vunpack.c.h.b16 %v2822
        %v2911 = vunpack.c.l.b16 %v2823
        %v2912 = vunpack.c.h.b16 %v2823
        %v2913 = vunpack.c.l.b16 %v2824
        %v2914 = vunpack.c.h.b16 %v2824
        %v2915 = vunpack.c.l.b16 %v2825
        %v2916 = vunpack.c.h.b16 %v2825
        %v2917 = vunpack.c.l.b16 %v2826
        %v2918 = vunpack.c.h.b16 %v2826
        %v2919 = vunpack.c.l.b16 %v2827
        %v2920 = vunpack.c.h.b16 %v2827
        %v2921 = vunpack.c.l.b16 %v2828
        %v2922 = vunpack.c.h.b16 %v2828
        %v2923 = vunpack.c.l.b16 %v2829
        %v2924 = vunpack.c.h.b16 %v2829
        %v2925 = vunpack.c.l.b16 %v2830
        %v2926 = vunpack.c.h.b16 %v2830
        %v2927 = vpack.c.b16 %v2865, %v2863
        %v2928 = vpack.c.b16 %v2866, %v2864
        %v2929 = vpack.c.b16 %v2869, %v2867
        %v2930 = vpack.c.b16 %v2870, %v2868
        %v2931 = vpack.c.b16 %v2873, %v2871
        %v2932 = vpack.c.b16 %v2874, %v2872
        %v2933 = vpack.c.b16 %v2877, %v2875
        %v2934 = vpack.c.b16 %v2878, %v2876
        %v2935 = vpack.c.b16 %v2881, %v2879
        %v2936 = vpack.c.b16 %v2882, %v2880
        %v2937 = vpack.c.b16 %v2885, %v2883
        %v2938 = vpack.c.b16 %v2886, %v2884
        %v2939 = vpack.c.b16 %v2889, %v2887
        %v2940 = vpack.c.b16 %v2890, %v2888
        %v2941 = vpack.c.b16 %v2893, %v2891
        %v2942 = vpack.c.b16 %v2894, %v2892
        %v2943 = vpack.c.b16 %v2897, %v2895
        %v2944 = vpack.c.b16 %v2898, %v2896
        %v2945 = vpack.c.b16 %v2901, %v2899
        %v2946 = vpack.c.b16 %v2902, %v2900
        %v2947 = vpack.c.b16 %v2905, %v2903
        %v2948 = vpack.c.b16 %v2906, %v2904
        %v2949 = vpack.c.b16 %v2909, %v2907
        %v2950 = vpack.c.b16 %v2910, %v2908
        %v2951 = vpack.c.b16 %v2913, %v2911
        %v2952 = vpack.c.b16 %v2914, %v2912
        %v2953 = vpack.c.b16 %v2917, %v2915
        %v2954 = vpack.c.b16 %v2918, %v2916
        %v2955 = vpack.c.b16 %v2921, %v2919
        %v2956 = vpack.c.b16 %v2922, %v2920
        %v2957 = vpack.c.b16 %v2925, %v2923
        %v2958 = vpack.c.b16 %v2926, %v2924
        %2991 = vmatprep.subr.bf16.mxu0 %v2928
        %2992 = vmatpush1.bf16.msra.mxu0 %v2927
        %2993 = vmatprep.subr.bf16.mxu0 %v2930
        %2994 = vmatpush1.bf16.msra.mxu0 %v2929
        %2995 = vmatprep.subr.bf16.mxu0 %v2932
        %2996 = vmatpush1.bf16.msra.mxu0 %v2931
        %2997 = vmatprep.subr.bf16.mxu0 %v2934
        %2998 = vmatpush1.bf16.msra.mxu0 %v2933
        %2999 = vmatprep.subr.bf16.mxu0 %v2936
        %3000 = vmatpush1.bf16.msra.mxu0 %v2935
        %3001 = vmatprep.subr.bf16.mxu0 %v2938
        %3002 = vmatpush1.bf16.msra.mxu0 %v2937
        %3003 = vmatprep.subr.bf16.mxu0 %v2940
        %3004 = vmatpush1.bf16.msra.mxu0 %v2939
        %3005 = vmatprep.subr.bf16.mxu0 %v2942
        %3006 = vmatpush1.bf16.msra.mxu0 %v2941
        %3007 = vmatprep.subr.bf16.mxu0 %v2944
        %3008 = vmatpush1.bf16.msra.mxu0 %v2943
        %3009 = vmatprep.subr.bf16.mxu0 %v2946
        %3010 = vmatpush1.bf16.msra.mxu0 %v2945
        %3011 = vmatprep.subr.bf16.mxu0 %v2948
        %3012 = vmatpush1.bf16.msra.mxu0 %v2947
        %3013 = vmatprep.subr.bf16.mxu0 %v2950
        %3014 = vmatpush1.bf16.msra.mxu0 %v2949
        %3015 = vmatprep.subr.bf16.mxu0 %v2952
        %3016 = vmatpush1.bf16.msra.mxu0 %v2951
        %3017 = vmatprep.subr.bf16.mxu0 %v2954
        %3018 = vmatpush1.bf16.msra.mxu0 %v2953
        %3019 = vmatprep.subr.bf16.mxu0 %v2956
        %3020 = vmatpush1.bf16.msra.mxu0 %v2955
        %3021 = vmatprep.subr.bf16.mxu0 %v2958
        %3022 = vmatpush1.bf16.msra.mxu0 %v2957
        %3023 = vmatprep.mubr.bf16.mxu0 %v2735
        %3024 = vmatmul.mubr.bf16.gmra.mrb[0].mxu0 %v2734
        %v3025 = vpop.f32.mrb[0].mxu0
        %v3026 = vadd.f32 0.0, %v3025
        %v3027 = vpop.f32.mrb[0].mxu0
        %v3028 = vadd.f32 0.0, %v3027
        %v3029 = vpop.f32.mrb[0].mxu0
        %v3030 = vadd.f32 0.0, %v3029
        %v3031 = vpop.f32.mrb[0].mxu0
        %v3032 = vadd.f32 0.0, %v3031
        %3033 = vmatprep.mubr.bf16.mxu0 %v2737
        %3034 = vmatmul.mubr.bf16.gmra.mrb[0].mxu0 %v2736
        %v3035 = vpop.f32.mrb[0].mxu0
        %v3036 = vadd.f32 0.0, %v3035
        %v3037 = vpop.f32.mrb[0].mxu0
        %v3038 = vadd.f32 0.0, %v3037
        %v3039 = vpop.f32.mrb[0].mxu0
        %v3040 = vadd.f32 0.0, %v3039
        %v3041 = vpop.f32.mrb[0].mxu0
        %v3042 = vadd.f32 0.0, %v3041
        %3043 = vmatprep.mubr.bf16.mxu0 %v2739
        %3044 = vmatmul.mubr.bf16.gmra.mrb[0].mxu0 %v2738
        %v3045 = vpop.f32.mrb[0].mxu0
        %v3046 = vadd.f32 0.0, %v3045
        %v3047 = vpop.f32.mrb[0].mxu0
        %v3048 = vadd.f32 0.0, %v3047
        %v3049 = vpop.f32.mrb[0].mxu0
        %v3050 = vadd.f32 0.0, %v3049
        %v3051 = vpop.f32.mrb[0].mxu0
        %v3052 = vadd.f32 0.0, %v3051
        %3053 = vmatprep.mubr.bf16.mxu0 %v2741
        %3054 = vmatmul.mubr.bf16.gmra.mrb[0].mxu0 %v2740
        %v3055 = vpop.f32.mrb[0].mxu0
        %v3056 = vadd.f32 0.0, %v3055
        %v3057 = vpop.f32.mrb[0].mxu0
        %v3058 = vadd.f32 0.0, %v3057
        %v3059 = vpop.f32.mrb[0].mxu0
        %v3060 = vadd.f32 0.0, %v3059
        %v3061 = vpop.f32.mrb[0].mxu0
        %v3062 = vadd.f32 0.0, %v3061
        %3063 = vmatprep.mubr.bf16.mxu0 %v2743
        %3064 = vmatmul.mubr.bf16.gmra.mrb[0].mxu0 %v2742
        %v3065 = vpop.f32.mrb[0].mxu0
        %v3066 = vadd.f32 0.0, %v3065
        %v3067 = vpop.f32.mrb[0].mxu0
        %v3068 = vadd.f32 0.0, %v3067
        %v3069 = vpop.f32.mrb[0].mxu0
        %v3070 = vadd.f32 0.0, %v3069
        %v3071 = vpop.f32.mrb[0].mxu0
        %v3072 = vadd.f32 0.0, %v3071
        %3073 = vmatprep.mubr.bf16.mxu0 %v2745
        %3074 = vmatmul.mubr.bf16.gmra.mrb[0].mxu0 %v2744
        %v3075 = vpop.f32.mrb[0].mxu0
        %v3076 = vadd.f32 0.0, %v3075
        %v3077 = vpop.f32.mrb[0].mxu0
        %v3078 = vadd.f32 0.0, %v3077
        %v3079 = vpop.f32.mrb[0].mxu0
        %v3080 = vadd.f32 0.0, %v3079
        %v3081 = vpop.f32.mrb[0].mxu0
        %v3082 = vadd.f32 0.0, %v3081
        %3083 = vmatprep.mubr.bf16.mxu0 %v2747
        %3084 = vmatmul.mubr.bf16.gmra.mrb[0].mxu0 %v2746
        %v3085 = vpop.f32.mrb[0].mxu0
        %v3086 = vadd.f32 0.0, %v3085
        %v3087 = vpop.f32.mrb[0].mxu0
        %v3088 = vadd.f32 0.0, %v3087
        %v3089 = vpop.f32.mrb[0].mxu0
        %v3090 = vadd.f32 0.0, %v3089
        %v3091 = vpop.f32.mrb[0].mxu0
        %v3092 = vadd.f32 0.0, %v3091
        %3093 = vmatprep.mubr.bf16.mxu0 %v2749
        %3094 = vmatmul.mubr.bf16.gmra.mrb[0].mxu0 %v2748
        %v3095 = vpop.f32.mrb[0].mxu0
        %v3096 = vadd.f32 0.0, %v3095
        %v3097 = vpop.f32.mrb[0].mxu0
        %v3098 = vadd.f32 0.0, %v3097
        %v3099 = vpop.f32.mrb[0].mxu0
        %v3100 = vadd.f32 0.0, %v3099
        %v3101 = vpop.f32.mrb[0].mxu0
        %v3102 = vadd.f32 0.0, %v3101
        %3103 = vmatprep.mubr.bf16.mxu0 %v2751
        %3104 = vmatmul.mubr.bf16.gmra.mrb[0].mxu0 %v2750
        %v3105 = vpop.f32.mrb[0].mxu0
        %v3106 = vadd.f32 0.0, %v3105
        %v3107 = vpop.f32.mrb[0].mxu0
        %v3108 = vadd.f32 0.0, %v3107
        %v3109 = vpop.f32.mrb[0].mxu0
        %v3110 = vadd.f32 0.0, %v3109
        %v3111 = vpop.f32.mrb[0].mxu0
        %v3112 = vadd.f32 0.0, %v3111
        %3113 = vmatprep.mubr.bf16.mxu0 %v2753
        %3114 = vmatmul.mubr.bf16.gmra.mrb[0].mxu0 %v2752
        %v3115 = vpop.f32.mrb[0].mxu0
        %v3116 = vadd.f32 0.0, %v3115
        %v3117 = vpop.f32.mrb[0].mxu0
        %v3118 = vadd.f32 0.0, %v3117
        %v3119 = vpop.f32.mrb[0].mxu0
        %v3120 = vadd.f32 0.0, %v3119
        %v3121 = vpop.f32.mrb[0].mxu0
        %v3122 = vadd.f32 0.0, %v3121
        %3123 = vmatprep.mubr.bf16.mxu0 %v2755
        %3124 = vmatmul.mubr.bf16.gmra.mrb[0].mxu0 %v2754
        %v3125 = vpop.f32.mrb[0].mxu0
        %v3126 = vadd.f32 0.0, %v3125
        %v3127 = vpop.f32.mrb[0].mxu0
        %v3128 = vadd.f32 0.0, %v3127
        %v3129 = vpop.f32.mrb[0].mxu0
        %v3130 = vadd.f32 0.0, %v3129
        %v3131 = vpop.f32.mrb[0].mxu0
        %v3132 = vadd.f32 0.0, %v3131
        %3133 = vmatprep.mubr.bf16.mxu0 %v2757
        %3134 = vmatmul.mubr.bf16.gmra.mrb[0].mxu0 %v2756
        %v3135 = vpop.f32.mrb[0].mxu0
        %v3136 = vadd.f32 0.0, %v3135
        %v3137 = vpop.f32.mrb[0].mxu0
        %v3138 = vadd.f32 0.0, %v3137
        %v3139 = vpop.f32.mrb[0].mxu0
        %v3140 = vadd.f32 0.0, %v3139
        %v3141 = vpop.f32.mrb[0].mxu0
        %v3142 = vadd.f32 0.0, %v3141
        %3143 = vmatprep.mubr.bf16.mxu0 %v2759
        %3144 = vmatmul.mubr.bf16.gmra.mrb[0].mxu0 %v2758
        %v3145 = vpop.f32.mrb[0].mxu0
        %v3146 = vadd.f32 0.0, %v3145
        %v3147 = vpop.f32.mrb[0].mxu0
        %v3148 = vadd.f32 0.0, %v3147
        %v3149 = vpop.f32.mrb[0].mxu0
        %v3150 = vadd.f32 0.0, %v3149
        %v3151 = vpop.f32.mrb[0].mxu0
        %v3152 = vadd.f32 0.0, %v3151
        %3153 = vmatprep.mubr.bf16.mxu0 %v2761
        %3154 = vmatmul.mubr.bf16.gmra.mrb[0].mxu0 %v2760
        %v3155 = vpop.f32.mrb[0].mxu0
        %v3156 = vadd.f32 0.0, %v3155
        %v3157 = vpop.f32.mrb[0].mxu0
        %v3158 = vadd.f32 0.0, %v3157
        %v3159 = vpop.f32.mrb[0].mxu0
        %v3160 = vadd.f32 0.0, %v3159
        %v3161 = vpop.f32.mrb[0].mxu0
        %v3162 = vadd.f32 0.0, %v3161
        %3163 = vmatprep.mubr.bf16.mxu0 %v2763
        %3164 = vmatmul.mubr.bf16.gmra.mrb[0].mxu0 %v2762
        %v3165 = vpop.f32.mrb[0].mxu0
        %v3166 = vadd.f32 0.0, %v3165
        %v3167 = vpop.f32.mrb[0].mxu0
        %v3168 = vadd.f32 0.0, %v3167
        %v3169 = vpop.f32.mrb[0].mxu0
        %v3170 = vadd.f32 0.0, %v3169
        %v3171 = vpop.f32.mrb[0].mxu0
        %v3172 = vadd.f32 0.0, %v3171
        %3173 = vmatprep.mubr.bf16.mxu0 %v2765
        %3174 = vmatmul.mubr.bf16.gmra.mrb[0].mxu0 %v2764
        %v3175 = vpop.f32.mrb[0].mxu0
        %v3176 = vadd.f32 0.0, %v3175
        %v3177 = vpop.f32.mrb[0].mxu0
        %v3178 = vadd.f32 0.0, %v3177
        %v3179 = vpop.f32.mrb[0].mxu0
        %v3180 = vadd.f32 0.0, %v3179
        %v3181 = vpop.f32.mrb[0].mxu0
        %v3182 = vadd.f32 0.0, %v3181
        %3183 = vmatprep.mubr.bf16.mxu0 %v2767
        %3184 = vmatmul.mubr.bf16.gmra.mrb[0].mxu0 %v2766
        %v3185 = vpop.f32.mrb[0].mxu0
        %v3186 = vadd.f32 0.0, %v3185
        %v3187 = vpop.f32.mrb[0].mxu0
        %v3188 = vadd.f32 0.0, %v3187
        %v3189 = vpop.f32.mrb[0].mxu0
        %v3190 = vadd.f32 0.0, %v3189
        %v3191 = vpop.f32.mrb[0].mxu0
        %v3192 = vadd.f32 0.0, %v3191
        %3193 = vmatprep.mubr.bf16.mxu0 %v2769
        %3194 = vmatmul.mubr.bf16.gmra.mrb[0].mxu0 %v2768
        %v3195 = vpop.f32.mrb[0].mxu0
        %v3196 = vadd.f32 0.0, %v3195
        %v3197 = vpop.f32.mrb[0].mxu0
        %v3198 = vadd.f32 0.0, %v3197
        %v3199 = vpop.f32.mrb[0].mxu0
        %v3200 = vadd.f32 0.0, %v3199
        %v3201 = vpop.f32.mrb[0].mxu0
        %v3202 = vadd.f32 0.0, %v3201
        %3203 = vmatprep.mubr.bf16.mxu0 %v2771
        %3204 = vmatmul.mubr.bf16.gmra.mrb[0].mxu0 %v2770
        %v3205 = vpop.f32.mrb[0].mxu0
        %v3206 = vadd.f32 0.0, %v3205
        %v3207 = vpop.f32.mrb[0].mxu0
        %v3208 = vadd.f32 0.0, %v3207
        %v3209 = vpop.f32.mrb[0].mxu0
        %v3210 = vadd.f32 0.0, %v3209
        %v3211 = vpop.f32.mrb[0].mxu0
        %v3212 = vadd.f32 0.0, %v3211
        %3213 = vmatprep.mubr.bf16.mxu0 %v2773
        %3214 = vmatmul.mubr.bf16.gmra.mrb[0].mxu0 %v2772
        %v3215 = vpop.f32.mrb[0].mxu0
        %v3216 = vadd.f32 0.0, %v3215
        %v3217 = vpop.f32.mrb[0].mxu0
        %v3218 = vadd.f32 0.0, %v3217
        %v3219 = vpop.f32.mrb[0].mxu0
        %v3220 = vadd.f32 0.0, %v3219
        %v3221 = vpop.f32.mrb[0].mxu0
        %v3222 = vadd.f32 0.0, %v3221
        %3223 = vmatprep.mubr.bf16.mxu0 %v2775
        %3224 = vmatmul.mubr.bf16.gmra.mrb[0].mxu0 %v2774
        %v3225 = vpop.f32.mrb[0].mxu0
        %v3226 = vadd.f32 0.0, %v3225
        %v3227 = vpop.f32.mrb[0].mxu0
        %v3228 = vadd.f32 0.0, %v3227
        %v3229 = vpop.f32.mrb[0].mxu0
        %v3230 = vadd.f32 0.0, %v3229
        %v3231 = vpop.f32.mrb[0].mxu0
        %v3232 = vadd.f32 0.0, %v3231
        %3233 = vmatprep.mubr.bf16.mxu0 %v2777
        %3234 = vmatmul.mubr.bf16.gmra.mrb[0].mxu0 %v2776
        %v3235 = vpop.f32.mrb[0].mxu0
        %v3236 = vadd.f32 0.0, %v3235
        %v3237 = vpop.f32.mrb[0].mxu0
        %v3238 = vadd.f32 0.0, %v3237
        %v3239 = vpop.f32.mrb[0].mxu0
        %v3240 = vadd.f32 0.0, %v3239
        %v3241 = vpop.f32.mrb[0].mxu0
        %v3242 = vadd.f32 0.0, %v3241
        %3243 = vmatprep.mubr.bf16.mxu0 %v2779
        %3244 = vmatmul.mubr.bf16.gmra.mrb[0].mxu0 %v2778
        %v3245 = vpop.f32.mrb[0].mxu0
        %v3246 = vadd.f32 0.0, %v3245
        %v3247 = vpop.f32.mrb[0].mxu0
        %v3248 = vadd.f32 0.0, %v3247
        %v3249 = vpop.f32.mrb[0].mxu0
        %v3250 = vadd.f32 0.0, %v3249
        %v3251 = vpop.f32.mrb[0].mxu0
        %v3252 = vadd.f32 0.0, %v3251
        %3253 = vmatprep.mubr.bf16.mxu0 %v2781
        %3254 = vmatmul.mubr.bf16.gmra.mrb[0].mxu0 %v2780
        %v3255 = vpop.f32.mrb[0].mxu0
        %v3256 = vadd.f32 0.0, %v3255
        %v3257 = vpop.f32.mrb[0].mxu0
        %v3258 = vadd.f32 0.0, %v3257
        %v3259 = vpop.f32.mrb[0].mxu0
        %v3260 = vadd.f32 0.0, %v3259
        %v3261 = vpop.f32.mrb[0].mxu0
        %v3262 = vadd.f32 0.0, %v3261
        %3263 = vmatprep.mubr.bf16.mxu0 %v2783
        %3264 = vmatmul.mubr.bf16.gmra.mrb[0].mxu0 %v2782
        %v3265 = vpop.f32.mrb[0].mxu0
        %v3266 = vadd.f32 0.0, %v3265
        %v3267 = vpop.f32.mrb[0].mxu0
        %v3268 = vadd.f32 0.0, %v3267
        %v3269 = vpop.f32.mrb[0].mxu0
        %v3270 = vadd.f32 0.0, %v3269
        %v3271 = vpop.f32.mrb[0].mxu0
        %v3272 = vadd.f32 0.0, %v3271
        %3273 = vmatprep.mubr.bf16.mxu0 %v2785
        %3274 = vmatmul.mubr.bf16.gmra.mrb[0].mxu0 %v2784
        %v3275 = vpop.f32.mrb[0].mxu0
        %v3276 = vadd.f32 0.0, %v3275
        %v3277 = vpop.f32.mrb[0].mxu0
        %v3278 = vadd.f32 0.0, %v3277
        %v3279 = vpop.f32.mrb[0].mxu0
        %v3280 = vadd.f32 0.0, %v3279
        %v3281 = vpop.f32.mrb[0].mxu0
        %v3282 = vadd.f32 0.0, %v3281
        %3283 = vmatprep.mubr.bf16.mxu0 %v2787
        %3284 = vmatmul.mubr.bf16.gmra.mrb[0].mxu0 %v2786
        %v3285 = vpop.f32.mrb[0].mxu0
        %v3286 = vadd.f32 0.0, %v3285
        %v3287 = vpop.f32.mrb[0].mxu0
        %v3288 = vadd.f32 0.0, %v3287
        %v3289 = vpop.f32.mrb[0].mxu0
        %v3290 = vadd.f32 0.0, %v3289
        %v3291 = vpop.f32.mrb[0].mxu0
        %v3292 = vadd.f32 0.0, %v3291
        %3293 = vmatprep.mubr.bf16.mxu0 %v2789
        %3294 = vmatmul.mubr.bf16.gmra.mrb[0].mxu0 %v2788
        %v3295 = vpop.f32.mrb[0].mxu0
        %v3296 = vadd.f32 0.0, %v3295
        %v3297 = vpop.f32.mrb[0].mxu0
        %v3298 = vadd.f32 0.0, %v3297
        %v3299 = vpop.f32.mrb[0].mxu0
        %v3300 = vadd.f32 0.0, %v3299
        %v3301 = vpop.f32.mrb[0].mxu0
        %v3302 = vadd.f32 0.0, %v3301
        %3303 = vmatprep.mubr.bf16.mxu0 %v2791
        %3304 = vmatmul.mubr.bf16.gmra.mrb[0].mxu0 %v2790
        %v3305 = vpop.f32.mrb[0].mxu0
        %v3306 = vadd.f32 0.0, %v3305
        %v3307 = vpop.f32.mrb[0].mxu0
        %v3308 = vadd.f32 0.0, %v3307
        %v3309 = vpop.f32.mrb[0].mxu0
        %v3310 = vadd.f32 0.0, %v3309
        %v3311 = vpop.f32.mrb[0].mxu0
        %v3312 = vadd.f32 0.0, %v3311
        %3313 = vmatprep.mubr.bf16.mxu0 %v2793
        %3314 = vmatmul.mubr.bf16.gmra.mrb[0].mxu0 %v2792
        %v3315 = vpop.f32.mrb[0].mxu0
        %v3316 = vadd.f32 0.0, %v3315
        %v3317 = vpop.f32.mrb[0].mxu0
        %v3318 = vadd.f32 0.0, %v3317
        %v3319 = vpop.f32.mrb[0].mxu0
        %v3320 = vadd.f32 0.0, %v3319
        %v3321 = vpop.f32.mrb[0].mxu0
        %v3322 = vadd.f32 0.0, %v3321
        %3323 = vmatprep.mubr.bf16.mxu0 %v2795
        %3324 = vmatmul.mubr.bf16.gmra.mrb[0].mxu0 %v2794
        %v3325 = vpop.f32.mrb[0].mxu0
        %v3326 = vadd.f32 0.0, %v3325
        %v3327 = vpop.f32.mrb[0].mxu0
        %v3328 = vadd.f32 0.0, %v3327
        %v3329 = vpop.f32.mrb[0].mxu0
        %v3330 = vadd.f32 0.0, %v3329
        %v3331 = vpop.f32.mrb[0].mxu0
        %v3332 = vadd.f32 0.0, %v3331
        %3333 = vmatprep.mubr.bf16.mxu0 %v2797
        %3334 = vmatmul.mubr.bf16.gmra.mrb[0].mxu0 %v2796
        %v3335 = vpop.f32.mrb[0].mxu0
        %v3336 = vadd.f32 0.0, %v3335
        %v3337 = vpop.f32.mrb[0].mxu0
        %v3338 = vadd.f32 0.0, %v3337
        %v3339 = vpop.f32.mrb[0].mxu0
        %v3340 = vadd.f32 0.0, %v3339
        %v3341 = vpop.f32.mrb[0].mxu0
        %v3342 = vadd.f32 0.0, %v3341
        %3343 = vdwg.mxu0
        %v3344 = vpack.c.bf16 %v3030, %v3026
        %v3345 = vpack.c.bf16 %v3032, %v3028
        %v3346 = vpack.c.bf16 %v3040, %v3036
        %v3347 = vpack.c.bf16 %v3042, %v3038
        %v3348 = vpack.c.bf16 %v3050, %v3046
        %v3349 = vpack.c.bf16 %v3052, %v3048
        %v3350 = vpack.c.bf16 %v3060, %v3056
        %v3351 = vpack.c.bf16 %v3062, %v3058
        %v3352 = vpack.c.bf16 %v3070, %v3066
        %v3353 = vpack.c.bf16 %v3072, %v3068
        %v3354 = vpack.c.bf16 %v3080, %v3076
        %v3355 = vpack.c.bf16 %v3082, %v3078
        %v3356 = vpack.c.bf16 %v3090, %v3086
        %v3357 = vpack.c.bf16 %v3092, %v3088
        %v3358 = vpack.c.bf16 %v3100, %v3096
        %v3359 = vpack.c.bf16 %v3102, %v3098
        %v3360 = vpack.c.bf16 %v3110, %v3106
        %v3361 = vpack.c.bf16 %v3112, %v3108
        %v3362 = vpack.c.bf16 %v3120, %v3116
        %v3363 = vpack.c.bf16 %v3122, %v3118
        %v3364 = vpack.c.bf16 %v3130, %v3126
        %v3365 = vpack.c.bf16 %v3132, %v3128
        %v3366 = vpack.c.bf16 %v3140, %v3136
        %v3367 = vpack.c.bf16 %v3142, %v3138
        %v3368 = vpack.c.bf16 %v3150, %v3146
        %v3369 = vpack.c.bf16 %v3152, %v3148
        %v3370 = vpack.c.bf16 %v3160, %v3156
        %v3371 = vpack.c.bf16 %v3162, %v3158
        %v3372 = vpack.c.bf16 %v3170, %v3166
        %v3373 = vpack.c.bf16 %v3172, %v3168
        %v3374 = vpack.c.bf16 %v3180, %v3176
        %v3375 = vpack.c.bf16 %v3182, %v3178
        %v3376 = vpack.c.bf16 %v3190, %v3186
        %v3377 = vpack.c.bf16 %v3192, %v3188
        %v3378 = vpack.c.bf16 %v3200, %v3196
        %v3379 = vpack.c.bf16 %v3202, %v3198
        %v3380 = vpack.c.bf16 %v3210, %v3206
        %v3381 = vpack.c.bf16 %v3212, %v3208
        %v3382 = vpack.c.bf16 %v3220, %v3216
        %v3383 = vpack.c.bf16 %v3222, %v3218
        %v3384 = vpack.c.bf16 %v3230, %v3226
        %v3385 = vpack.c.bf16 %v3232, %v3228
        %v3386 = vpack.c.bf16 %v3240, %v3236
        %v3387 = vpack.c.bf16 %v3242, %v3238
        %v3388 = vpack.c.bf16 %v3250, %v3246
        %v3389 = vpack.c.bf16 %v3252, %v3248
        %v3390 = vpack.c.bf16 %v3260, %v3256
        %v3391 = vpack.c.bf16 %v3262, %v3258
        %v3392 = vpack.c.bf16 %v3270, %v3266
        %v3393 = vpack.c.bf16 %v3272, %v3268
        %v3394 = vpack.c.bf16 %v3280, %v3276
        %v3395 = vpack.c.bf16 %v3282, %v3278
        %v3396 = vpack.c.bf16 %v3290, %v3286
        %v3397 = vpack.c.bf16 %v3292, %v3288
        %v3398 = vpack.c.bf16 %v3300, %v3296
        %v3399 = vpack.c.bf16 %v3302, %v3298
        %v3400 = vpack.c.bf16 %v3310, %v3306
        %v3401 = vpack.c.bf16 %v3312, %v3308
        %v3402 = vpack.c.bf16 %v3320, %v3316
        %v3403 = vpack.c.bf16 %v3322, %v3318
        %v3404 = vpack.c.bf16 %v3330, %v3326
        %v3405 = vpack.c.bf16 %v3332, %v3328
        %v3406 = vpack.c.bf16 %v3340, %v3336
        %v3407 = vpack.c.bf16 %v3342, %v3338
        %s3408 = scalar_lea.vmem %s3, 4
        %v3409 = vld [vmem:[%s3408] sm:$0x3]
        %v3411 = vlaneseq
        %v3412 = vshrl.u32 %v3411, 7
        %v3413 = vsub.s32 0, %v3412
        %v3414 = vrot.slane %v3409, %v3413
        %v3415 = vlaneseq
        %v3416 = vshrl.u32 %v3415, 7
        %v3417 = vsub.s32 1, %v3416
        %v3418 = vrot.slane %v3409, %v3417
        %v3421 = vpack.c.bf16 %v3414, %v3414
        %v3422 = vpack.c.bf16 %v3418, %v3418
        %v3424 = vpack.i.b16 %v3421, %v3421
        %v3426 = vlaneseq
        %v3427 = vshrl.u32 %v3426, 7
        %v3428 = vsub.s32 0, %v3427
        %v3429 = vrot.slane %v3424, %v3428
        %v3431 = vpack.i.b16 %v3422, %v3422
        %v3433 = vlaneseq
        %v3434 = vshrl.u32 %v3433, 7
        %v3435 = vsub.s32 0, %v3434
        %v3436 = vrot.slane %v3431, %v3435
        %v3437 = vadd.bf16 %v3344, %v3429
        %v3438 = vadd.bf16 %v3345, %v3436
        %v3439 = vadd.bf16 %v3346, %v3429
        %v3440 = vadd.bf16 %v3347, %v3436
        %v3441 = vadd.bf16 %v3348, %v3429
        %v3442 = vadd.bf16 %v3349, %v3436
        %v3443 = vadd.bf16 %v3350, %v3429
        %v3444 = vadd.bf16 %v3351, %v3436
        %v3445 = vadd.bf16 %v3352, %v3429
        %v3446 = vadd.bf16 %v3353, %v3436
        %v3447 = vadd.bf16 %v3354, %v3429
        %v3448 = vadd.bf16 %v3355, %v3436
        %v3449 = vadd.bf16 %v3356, %v3429
        %v3450 = vadd.bf16 %v3357, %v3436
        %v3451 = vadd.bf16 %v3358, %v3429
        %v3452 = vadd.bf16 %v3359, %v3436
        %v3453 = vadd.bf16 %v3360, %v3429
        %v3454 = vadd.bf16 %v3361, %v3436
        %v3455 = vadd.bf16 %v3362, %v3429
        %v3456 = vadd.bf16 %v3363, %v3436
        %v3457 = vadd.bf16 %v3364, %v3429
        %v3458 = vadd.bf16 %v3365, %v3436
        %v3459 = vadd.bf16 %v3366, %v3429
        %v3460 = vadd.bf16 %v3367, %v3436
        %v3461 = vadd.bf16 %v3368, %v3429
        %v3462 = vadd.bf16 %v3369, %v3436
        %v3463 = vadd.bf16 %v3370, %v3429
        %v3464 = vadd.bf16 %v3371, %v3436
        %v3465 = vadd.bf16 %v3372, %v3429
        %v3466 = vadd.bf16 %v3373, %v3436
        %v3467 = vadd.bf16 %v3374, %v3429
        %v3468 = vadd.bf16 %v3375, %v3436
        %v3469 = vadd.bf16 %v3376, %v3429
        %v3470 = vadd.bf16 %v3377, %v3436
        %v3471 = vadd.bf16 %v3378, %v3429
        %v3472 = vadd.bf16 %v3379, %v3436
        %v3473 = vadd.bf16 %v3380, %v3429
        %v3474 = vadd.bf16 %v3381, %v3436
        %v3475 = vadd.bf16 %v3382, %v3429
        %v3476 = vadd.bf16 %v3383, %v3436
        %v3477 = vadd.bf16 %v3384, %v3429
        %v3478 = vadd.bf16 %v3385, %v3436
        %v3479 = vadd.bf16 %v3386, %v3429
        %v3480 = vadd.bf16 %v3387, %v3436
        %v3481 = vadd.bf16 %v3388, %v3429
        %v3482 = vadd.bf16 %v3389, %v3436
        %v3483 = vadd.bf16 %v3390, %v3429
        %v3484 = vadd.bf16 %v3391, %v3436
        %v3485 = vadd.bf16 %v3392, %v3429
        %v3486 = vadd.bf16 %v3393, %v3436
        %v3487 = vadd.bf16 %v3394, %v3429
        %v3488 = vadd.bf16 %v3395, %v3436
        %v3489 = vadd.bf16 %v3396, %v3429
        %v3490 = vadd.bf16 %v3397, %v3436
        %v3491 = vadd.bf16 %v3398, %v3429
        %v3492 = vadd.bf16 %v3399, %v3436
        %v3493 = vadd.bf16 %v3400, %v3429
        %v3494 = vadd.bf16 %v3401, %v3436
        %v3495 = vadd.bf16 %v3402, %v3429
        %v3496 = vadd.bf16 %v3403, %v3436
        %v3497 = vadd.bf16 %v3404, %v3429
        %v3498 = vadd.bf16 %v3405, %v3436
        %v3499 = vadd.bf16 %v3406, %v3429
        %v3500 = vadd.bf16 %v3407, %v3436
        %v3501 = vmax.bf16 %v3437, 0
        %v3502 = vmax.bf16 %v3438, 0
        %v3503 = vmax.bf16 %v3439, 0
        %v3504 = vmax.bf16 %v3440, 0
        %v3505 = vmax.bf16 %v3441, 0
        %v3506 = vmax.bf16 %v3442, 0
        %v3507 = vmax.bf16 %v3443, 0
        %v3508 = vmax.bf16 %v3444, 0
        %v3509 = vmax.bf16 %v3445, 0
        %v3510 = vmax.bf16 %v3446, 0
        %v3511 = vmax.bf16 %v3447, 0
        %v3512 = vmax.bf16 %v3448, 0
        %v3513 = vmax.bf16 %v3449, 0
        %v3514 = vmax.bf16 %v3450, 0
        %v3515 = vmax.bf16 %v3451, 0
        %v3516 = vmax.bf16 %v3452, 0
        %v3517 = vmax.bf16 %v3453, 0
        %v3518 = vmax.bf16 %v3454, 0
        %v3519 = vmax.bf16 %v3455, 0
        %v3520 = vmax.bf16 %v3456, 0
        %v3521 = vmax.bf16 %v3457, 0
        %v3522 = vmax.bf16 %v3458, 0
        %v3523 = vmax.bf16 %v3459, 0
        %v3524 = vmax.bf16 %v3460, 0
        %v3525 = vmax.bf16 %v3461, 0
        %v3526 = vmax.bf16 %v3462, 0
        %v3527 = vmax.bf16 %v3463, 0
        %v3528 = vmax.bf16 %v3464, 0
        %v3529 = vmax.bf16 %v3465, 0
        %v3530 = vmax.bf16 %v3466, 0
        %v3531 = vmax.bf16 %v3467, 0
        %v3532 = vmax.bf16 %v3468, 0
        %v3533 = vmax.bf16 %v3469, 0
        %v3534 = vmax.bf16 %v3470, 0
        %v3535 = vmax.bf16 %v3471, 0
        %v3536 = vmax.bf16 %v3472, 0
        %v3537 = vmax.bf16 %v3473, 0
        %v3538 = vmax.bf16 %v3474, 0
        %v3539 = vmax.bf16 %v3475, 0
        %v3540 = vmax.bf16 %v3476, 0
        %v3541 = vmax.bf16 %v3477, 0
        %v3542 = vmax.bf16 %v3478, 0
        %v3543 = vmax.bf16 %v3479, 0
        %v3544 = vmax.bf16 %v3480, 0
        %v3545 = vmax.bf16 %v3481, 0
        %v3546 = vmax.bf16 %v3482, 0
        %v3547 = vmax.bf16 %v3483, 0
        %v3548 = vmax.bf16 %v3484, 0
        %v3549 = vmax.bf16 %v3485, 0
        %v3550 = vmax.bf16 %v3486, 0
        %v3551 = vmax.bf16 %v3487, 0
        %v3552 = vmax.bf16 %v3488, 0
        %v3553 = vmax.bf16 %v3489, 0
        %v3554 = vmax.bf16 %v3490, 0
        %v3555 = vmax.bf16 %v3491, 0
        %v3556 = vmax.bf16 %v3492, 0
        %v3557 = vmax.bf16 %v3493, 0
        %v3558 = vmax.bf16 %v3494, 0
        %v3559 = vmax.bf16 %v3495, 0
        %v3560 = vmax.bf16 %v3496, 0
        %v3561 = vmax.bf16 %v3497, 0
        %v3562 = vmax.bf16 %v3498, 0
        %v3563 = vmax.bf16 %v3499, 0
        %v3564 = vmax.bf16 %v3500, 0
        %3565 = vst [vmem:[#allocation2] sm:$0xff] %v3501
        %3566 = vst [vmem:[#allocation2 + $0x8] sm:$0xff] %v3502
        %3567 = vst [vmem:[#allocation2 + $0x10] sm:$0xff] %v3503
        %3568 = vst [vmem:[#allocation2 + $0x18] sm:$0xff] %v3504
        %3569 = vst [vmem:[#allocation2 + $0x20] sm:$0xff] %v3505
        %3570 = vst [vmem:[#allocation2 + $0x28] sm:$0xff] %v3506
        %3571 = vst [vmem:[#allocation2 + $0x30] sm:$0xff] %v3507
        %3572 = vst [vmem:[#allocation2 + $0x38] sm:$0xff] %v3508
        %3573 = vst [vmem:[#allocation2 + $0x40] sm:$0xff] %v3509
        %3574 = vst [vmem:[#allocation2 + $0x48] sm:$0xff] %v3510
        %3575 = vst [vmem:[#allocation2 + $0x50] sm:$0xff] %v3511
        %3576 = vst [vmem:[#allocation2 + $0x58] sm:$0xff] %v3512
        %3577 = vst [vmem:[#allocation2 + $0x60] sm:$0xff] %v3513
        %3578 = vst [vmem:[#allocation2 + $0x68] sm:$0xff] %v3514
        %3579 = vst [vmem:[#allocation2 + $0x70] sm:$0xff] %v3515
        %3580 = vst [vmem:[#allocation2 + $0x78] sm:$0xff] %v3516
        %3581 = vst [vmem:[#allocation2 + $0x80] sm:$0xff] %v3517
        %3582 = vst [vmem:[#allocation2 + $0x88] sm:$0xff] %v3518
        %3583 = vst [vmem:[#allocation2 + $0x90] sm:$0xff] %v3519
        %3584 = vst [vmem:[#allocation2 + $0x98] sm:$0xff] %v3520
        %3585 = vst [vmem:[#allocation2 + $0xa0] sm:$0xff] %v3521
        %3586 = vst [vmem:[#allocation2 + $0xa8] sm:$0xff] %v3522
        %3587 = vst [vmem:[#allocation2 + $0xb0] sm:$0xff] %v3523
        %3588 = vst [vmem:[#allocation2 + $0xb8] sm:$0xff] %v3524
        %3589 = vst [vmem:[#allocation2 + $0xc0] sm:$0xff] %v3525
        %3590 = vst [vmem:[#allocation2 + $0xc8] sm:$0xff] %v3526
        %3591 = vst [vmem:[#allocation2 + $0xd0] sm:$0xff] %v3527
        %3592 = vst [vmem:[#allocation2 + $0xd8] sm:$0xff] %v3528
        %3593 = vst [vmem:[#allocation2 + $0xe0] sm:$0xff] %v3529
        %3594 = vst [vmem:[#allocation2 + $0xe8] sm:$0xff] %v3530
        %3595 = vst [vmem:[#allocation2 + $0xf0] sm:$0xff] %v3531
        %3596 = vst [vmem:[#allocation2 + $0xf8] sm:$0xff] %v3532
        %3597 = vst [vmem:[#allocation2 + $0x100] sm:$0xff] %v3533
        %3598 = vst [vmem:[#allocation2 + $0x108] sm:$0xff] %v3534
        %3599 = vst [vmem:[#allocation2 + $0x110] sm:$0xff] %v3535
        %3600 = vst [vmem:[#allocation2 + $0x118] sm:$0xff] %v3536
        %3601 = vst [vmem:[#allocation2 + $0x120] sm:$0xff] %v3537
        %3602 = vst [vmem:[#allocation2 + $0x128] sm:$0xff] %v3538
        %3603 = vst [vmem:[#allocation2 + $0x130] sm:$0xff] %v3539
        %3604 = vst [vmem:[#allocation2 + $0x138] sm:$0xff] %v3540
        %3605 = vst [vmem:[#allocation2 + $0x140] sm:$0xff] %v3541
        %3606 = vst [vmem:[#allocation2 + $0x148] sm:$0xff] %v3542
        %3607 = vst [vmem:[#allocation2 + $0x150] sm:$0xff] %v3543
        %3608 = vst [vmem:[#allocation2 + $0x158] sm:$0xff] %v3544
        %3609 = vst [vmem:[#allocation2 + $0x160] sm:$0xff] %v3545
        %3610 = vst [vmem:[#allocation2 + $0x168] sm:$0xff] %v3546
        %3611 = vst [vmem:[#allocation2 + $0x170] sm:$0xff] %v3547
        %3612 = vst [vmem:[#allocation2 + $0x178] sm:$0xff] %v3548
        %3613 = vst [vmem:[#allocation2 + $0x180] sm:$0xff] %v3549
        %3614 = vst [vmem:[#allocation2 + $0x188] sm:$0xff] %v3550
        %3615 = vst [vmem:[#allocation2 + $0x190] sm:$0xff] %v3551
        %3616 = vst [vmem:[#allocation2 + $0x198] sm:$0xff] %v3552
        %3617 = vst [vmem:[#allocation2 + $0x1a0] sm:$0xff] %v3553
        %3618 = vst [vmem:[#allocation2 + $0x1a8] sm:$0xff] %v3554
        %3619 = vst [vmem:[#allocation2 + $0x1b0] sm:$0xff] %v3555
        %3620 = vst [vmem:[#allocation2 + $0x1b8] sm:$0xff] %v3556
        %3621 = vst [vmem:[#allocation2 + $0x1c0] sm:$0xff] %v3557
        %3622 = vst [vmem:[#allocation2 + $0x1c8] sm:$0xff] %v3558
        %3623 = vst [vmem:[#allocation2 + $0x1d0] sm:$0xff] %v3559
        %3624 = vst [vmem:[#allocation2 + $0x1d8] sm:$0xff] %v3560
        %3625 = vst [vmem:[#allocation2 + $0x1e0] sm:$0xff] %v3561
        %3626 = vst [vmem:[#allocation2 + $0x1e8] sm:$0xff] %v3562
        %3627 = vst [vmem:[#allocation2 + $0x1f0] sm:$0xff] %v3563
        %3628 = vst [vmem:[#allocation2 + $0x1f8] sm:$0xff] %v3564
        %v3629 = vld [vmem:[#allocation2] sm:$0xff]
        %v3630 = vld [vmem:[#allocation2 + $0x8] sm:$0xff]
        %v3631 = vld [vmem:[#allocation2 + $0x10] sm:$0xff]
        %v3632 = vld [vmem:[#allocation2 + $0x18] sm:$0xff]
        %v3633 = vld [vmem:[#allocation2 + $0x20] sm:$0xff]
        %v3634 = vld [vmem:[#allocation2 + $0x28] sm:$0xff]
        %v3635 = vld [vmem:[#allocation2 + $0x30] sm:$0xff]
        %v3636 = vld [vmem:[#allocation2 + $0x38] sm:$0xff]
        %v3637 = vld [vmem:[#allocation2 + $0x40] sm:$0xff]
        %v3638 = vld [vmem:[#allocation2 + $0x48] sm:$0xff]
        %v3639 = vld [vmem:[#allocation2 + $0x50] sm:$0xff]
        %v3640 = vld [vmem:[#allocation2 + $0x58] sm:$0xff]
        %v3641 = vld [vmem:[#allocation2 + $0x60] sm:$0xff]
        %v3642 = vld [vmem:[#allocation2 + $0x68] sm:$0xff]
        %v3643 = vld [vmem:[#allocation2 + $0x70] sm:$0xff]
        %v3644 = vld [vmem:[#allocation2 + $0x78] sm:$0xff]
        %v3645 = vld [vmem:[#allocation2 + $0x80] sm:$0xff]
        %v3646 = vld [vmem:[#allocation2 + $0x88] sm:$0xff]
        %v3647 = vld [vmem:[#allocation2 + $0x90] sm:$0xff]
        %v3648 = vld [vmem:[#allocation2 + $0x98] sm:$0xff]
        %v3649 = vld [vmem:[#allocation2 + $0xa0] sm:$0xff]
        %v3650 = vld [vmem:[#allocation2 + $0xa8] sm:$0xff]
        %v3651 = vld [vmem:[#allocation2 + $0xb0] sm:$0xff]
        %v3652 = vld [vmem:[#allocation2 + $0xb8] sm:$0xff]
        %v3653 = vld [vmem:[#allocation2 + $0xc0] sm:$0xff]
        %v3654 = vld [vmem:[#allocation2 + $0xc8] sm:$0xff]
        %v3655 = vld [vmem:[#allocation2 + $0xd0] sm:$0xff]
        %v3656 = vld [vmem:[#allocation2 + $0xd8] sm:$0xff]
        %v3657 = vld [vmem:[#allocation2 + $0xe0] sm:$0xff]
        %v3658 = vld [vmem:[#allocation2 + $0xe8] sm:$0xff]
        %v3659 = vld [vmem:[#allocation2 + $0xf0] sm:$0xff]
        %v3660 = vld [vmem:[#allocation2 + $0xf8] sm:$0xff]
        %v3661 = vld [vmem:[#allocation2 + $0x100] sm:$0xff]
        %v3662 = vld [vmem:[#allocation2 + $0x108] sm:$0xff]
        %v3663 = vld [vmem:[#allocation2 + $0x110] sm:$0xff]
        %v3664 = vld [vmem:[#allocation2 + $0x118] sm:$0xff]
        %v3665 = vld [vmem:[#allocation2 + $0x120] sm:$0xff]
        %v3666 = vld [vmem:[#allocation2 + $0x128] sm:$0xff]
        %v3667 = vld [vmem:[#allocation2 + $0x130] sm:$0xff]
        %v3668 = vld [vmem:[#allocation2 + $0x138] sm:$0xff]
        %v3669 = vld [vmem:[#allocation2 + $0x140] sm:$0xff]
        %v3670 = vld [vmem:[#allocation2 + $0x148] sm:$0xff]
        %v3671 = vld [vmem:[#allocation2 + $0x150] sm:$0xff]
        %v3672 = vld [vmem:[#allocation2 + $0x158] sm:$0xff]
        %v3673 = vld [vmem:[#allocation2 + $0x160] sm:$0xff]
        %v3674 = vld [vmem:[#allocation2 + $0x168] sm:$0xff]
        %v3675 = vld [vmem:[#allocation2 + $0x170] sm:$0xff]
        %v3676 = vld [vmem:[#allocation2 + $0x178] sm:$0xff]
        %v3677 = vld [vmem:[#allocation2 + $0x180] sm:$0xff]
        %v3678 = vld [vmem:[#allocation2 + $0x188] sm:$0xff]
        %v3679 = vld [vmem:[#allocation2 + $0x190] sm:$0xff]
        %v3680 = vld [vmem:[#allocation2 + $0x198] sm:$0xff]
        %v3681 = vld [vmem:[#allocation2 + $0x1a0] sm:$0xff]
        %v3682 = vld [vmem:[#allocation2 + $0x1a8] sm:$0xff]
        %v3683 = vld [vmem:[#allocation2 + $0x1b0] sm:$0xff]
        %v3684 = vld [vmem:[#allocation2 + $0x1b8] sm:$0xff]
        %v3685 = vld [vmem:[#allocation2 + $0x1c0] sm:$0xff]
        %v3686 = vld [vmem:[#allocation2 + $0x1c8] sm:$0xff]
        %v3687 = vld [vmem:[#allocation2 + $0x1d0] sm:$0xff]
        %v3688 = vld [vmem:[#allocation2 + $0x1d8] sm:$0xff]
        %v3689 = vld [vmem:[#allocation2 + $0x1e0] sm:$0xff]
        %v3690 = vld [vmem:[#allocation2 + $0x1e8] sm:$0xff]
        %v3691 = vld [vmem:[#allocation2 + $0x1f0] sm:$0xff]
        %v3692 = vld [vmem:[#allocation2 + $0x1f8] sm:$0xff]
        %s3693 = scalar_lea.vmem [#allocation4], 512
        %v3694 = vld [vmem:[%s3693] sm:$0xff]
        %v3695 = vld [vmem:[%s3693 + $0x8] sm:$0xff]
        %v3696 = vld [vmem:[%s3693 + $0x10] sm:$0xff]
        %v3697 = vld [vmem:[%s3693 + $0x18] sm:$0xff]
        %v3698 = vld [vmem:[%s3693 + $0x20] sm:$0xff]
        %v3699 = vld [vmem:[%s3693 + $0x28] sm:$0xff]
        %v3700 = vld [vmem:[%s3693 + $0x30] sm:$0xff]
        %v3701 = vld [vmem:[%s3693 + $0x38] sm:$0xff]
        %v3702 = vld [vmem:[%s3693 + $0x40] sm:$0xff]
        %v3703 = vld [vmem:[%s3693 + $0x48] sm:$0xff]
        %v3704 = vld [vmem:[%s3693 + $0x50] sm:$0xff]
        %v3705 = vld [vmem:[%s3693 + $0x58] sm:$0xff]
        %v3706 = vld [vmem:[%s3693 + $0x60] sm:$0xff]
        %v3707 = vld [vmem:[%s3693 + $0x68] sm:$0xff]
        %v3708 = vld [vmem:[%s3693 + $0x70] sm:$0xff]
        %v3709 = vld [vmem:[%s3693 + $0x78] sm:$0xff]
        %v3710 = vld [vmem:[%s3693 + $0x80] sm:$0xff]
        %v3711 = vld [vmem:[%s3693 + $0x88] sm:$0xff]
        %v3712 = vld [vmem:[%s3693 + $0x90] sm:$0xff]
        %v3713 = vld [vmem:[%s3693 + $0x98] sm:$0xff]
        %v3714 = vld [vmem:[%s3693 + $0xa0] sm:$0xff]
        %v3715 = vld [vmem:[%s3693 + $0xa8] sm:$0xff]
        %v3716 = vld [vmem:[%s3693 + $0xb0] sm:$0xff]
        %v3717 = vld [vmem:[%s3693 + $0xb8] sm:$0xff]
        %v3718 = vld [vmem:[%s3693 + $0xc0] sm:$0xff]
        %v3719 = vld [vmem:[%s3693 + $0xc8] sm:$0xff]
        %v3720 = vld [vmem:[%s3693 + $0xd0] sm:$0xff]
        %v3721 = vld [vmem:[%s3693 + $0xd8] sm:$0xff]
        %v3722 = vld [vmem:[%s3693 + $0xe0] sm:$0xff]
        %v3723 = vld [vmem:[%s3693 + $0xe8] sm:$0xff]
        %v3724 = vld [vmem:[%s3693 + $0xf0] sm:$0xff]
        %v3725 = vld [vmem:[%s3693 + $0xf8] sm:$0xff]
        %v3758 = vunpack.c.l.b16 %v3694
        %v3759 = vunpack.c.h.b16 %v3694
        %v3760 = vunpack.c.l.b16 %v3695
        %v3761 = vunpack.c.h.b16 %v3695
        %v3762 = vunpack.c.l.b16 %v3696
        %v3763 = vunpack.c.h.b16 %v3696
        %v3764 = vunpack.c.l.b16 %v3697
        %v3765 = vunpack.c.h.b16 %v3697
        %v3766 = vunpack.c.l.b16 %v3698
        %v3767 = vunpack.c.h.b16 %v3698
        %v3768 = vunpack.c.l.b16 %v3699
        %v3769 = vunpack.c.h.b16 %v3699
        %v3770 = vunpack.c.l.b16 %v3700
        %v3771 = vunpack.c.h.b16 %v3700
        %v3772 = vunpack.c.l.b16 %v3701
        %v3773 = vunpack.c.h.b16 %v3701
        %v3774 = vunpack.c.l.b16 %v3702
        %v3775 = vunpack.c.h.b16 %v3702
        %v3776 = vunpack.c.l.b16 %v3703
        %v3777 = vunpack.c.h.b16 %v3703
        %v3778 = vunpack.c.l.b16 %v3704
        %v3779 = vunpack.c.h.b16 %v3704
        %v3780 = vunpack.c.l.b16 %v3705
        %v3781 = vunpack.c.h.b16 %v3705
        %v3782 = vunpack.c.l.b16 %v3706
        %v3783 = vunpack.c.h.b16 %v3706
        %v3784 = vunpack.c.l.b16 %v3707
        %v3785 = vunpack.c.h.b16 %v3707
        %v3786 = vunpack.c.l.b16 %v3708
        %v3787 = vunpack.c.h.b16 %v3708
        %v3788 = vunpack.c.l.b16 %v3709
        %v3789 = vunpack.c.h.b16 %v3709
        %v3790 = vunpack.c.l.b16 %v3710
        %v3791 = vunpack.c.h.b16 %v3710
        %v3792 = vunpack.c.l.b16 %v3711
        %v3793 = vunpack.c.h.b16 %v3711
        %v3794 = vunpack.c.l.b16 %v3712
        %v3795 = vunpack.c.h.b16 %v3712
        %v3796 = vunpack.c.l.b16 %v3713
        %v3797 = vunpack.c.h.b16 %v3713
        %v3798 = vunpack.c.l.b16 %v3714
        %v3799 = vunpack.c.h.b16 %v3714
        %v3800 = vunpack.c.l.b16 %v3715
        %v3801 = vunpack.c.h.b16 %v3715
        %v3802 = vunpack.c.l.b16 %v3716
        %v3803 = vunpack.c.h.b16 %v3716
        %v3804 = vunpack.c.l.b16 %v3717
        %v3805 = vunpack.c.h.b16 %v3717
        %v3806 = vunpack.c.l.b16 %v3718
        %v3807 = vunpack.c.h.b16 %v3718
        %v3808 = vunpack.c.l.b16 %v3719
        %v3809 = vunpack.c.h.b16 %v3719
        %v3810 = vunpack.c.l.b16 %v3720
        %v3811 = vunpack.c.h.b16 %v3720
        %v3812 = vunpack.c.l.b16 %v3721
        %v3813 = vunpack.c.h.b16 %v3721
        %v3814 = vunpack.c.l.b16 %v3722
        %v3815 = vunpack.c.h.b16 %v3722
        %v3816 = vunpack.c.l.b16 %v3723
        %v3817 = vunpack.c.h.b16 %v3723
        %v3818 = vunpack.c.l.b16 %v3724
        %v3819 = vunpack.c.h.b16 %v3724
        %v3820 = vunpack.c.l.b16 %v3725
        %v3821 = vunpack.c.h.b16 %v3725
        %v3822 = vpack.c.b16 %v3760, %v3758
        %v3823 = vpack.c.b16 %v3761, %v3759
        %v3824 = vpack.c.b16 %v3764, %v3762
        %v3825 = vpack.c.b16 %v3765, %v3763
        %v3826 = vpack.c.b16 %v3768, %v3766
        %v3827 = vpack.c.b16 %v3769, %v3767
        %v3828 = vpack.c.b16 %v3772, %v3770
        %v3829 = vpack.c.b16 %v3773, %v3771
        %v3830 = vpack.c.b16 %v3776, %v3774
        %v3831 = vpack.c.b16 %v3777, %v3775
        %v3832 = vpack.c.b16 %v3780, %v3778
        %v3833 = vpack.c.b16 %v3781, %v3779
        %v3834 = vpack.c.b16 %v3784, %v3782
        %v3835 = vpack.c.b16 %v3785, %v3783
        %v3836 = vpack.c.b16 %v3788, %v3786
        %v3837 = vpack.c.b16 %v3789, %v3787
        %v3838 = vpack.c.b16 %v3792, %v3790
        %v3839 = vpack.c.b16 %v3793, %v3791
        %v3840 = vpack.c.b16 %v3796, %v3794
        %v3841 = vpack.c.b16 %v3797, %v3795
        %v3842 = vpack.c.b16 %v3800, %v3798
        %v3843 = vpack.c.b16 %v3801, %v3799
        %v3844 = vpack.c.b16 %v3804, %v3802
        %v3845 = vpack.c.b16 %v3805, %v3803
        %v3846 = vpack.c.b16 %v3808, %v3806
        %v3847 = vpack.c.b16 %v3809, %v3807
        %v3848 = vpack.c.b16 %v3812, %v3810
        %v3849 = vpack.c.b16 %v3813, %v3811
        %v3850 = vpack.c.b16 %v3816, %v3814
        %v3851 = vpack.c.b16 %v3817, %v3815
        %v3852 = vpack.c.b16 %v3820, %v3818
        %v3853 = vpack.c.b16 %v3821, %v3819
        %3886 = vmatprep.subr.bf16.mxu0 %v3823
        %3887 = vmatpush1.bf16.msra.mxu0 %v3822
        %3888 = vmatprep.subr.bf16.mxu0 %v3825
        %3889 = vmatpush1.bf16.msra.mxu0 %v3824
        %3890 = vmatprep.subr.bf16.mxu0 %v3827
        %3891 = vmatpush1.bf16.msra.mxu0 %v3826
        %3892 = vmatprep.subr.bf16.mxu0 %v3829
        %3893 = vmatpush1.bf16.msra.mxu0 %v3828
        %3894 = vmatprep.subr.bf16.mxu0 %v3831
        %3895 = vmatpush1.bf16.msra.mxu0 %v3830
        %3896 = vmatprep.subr.bf16.mxu0 %v3833
        %3897 = vmatpush1.bf16.msra.mxu0 %v3832
        %3898 = vmatprep.subr.bf16.mxu0 %v3835
        %3899 = vmatpush1.bf16.msra.mxu0 %v3834
        %3900 = vmatprep.subr.bf16.mxu0 %v3837
        %3901 = vmatpush1.bf16.msra.mxu0 %v3836
        %3902 = vmatprep.subr.bf16.mxu0 %v3839
        %3903 = vmatpush1.bf16.msra.mxu0 %v3838
        %3904 = vmatprep.subr.bf16.mxu0 %v3841
        %3905 = vmatpush1.bf16.msra.mxu0 %v3840
        %3906 = vmatprep.subr.bf16.mxu0 %v3843
        %3907 = vmatpush1.bf16.msra.mxu0 %v3842
        %3908 = vmatprep.subr.bf16.mxu0 %v3845
        %3909 = vmatpush1.bf16.msra.mxu0 %v3844
        %3910 = vmatprep.subr.bf16.mxu0 %v3847
        %3911 = vmatpush1.bf16.msra.mxu0 %v3846
        %3912 = vmatprep.subr.bf16.mxu0 %v3849
        %3913 = vmatpush1.bf16.msra.mxu0 %v3848
        %3914 = vmatprep.subr.bf16.mxu0 %v3851
        %3915 = vmatpush1.bf16.msra.mxu0 %v3850
        %3916 = vmatprep.subr.bf16.mxu0 %v3853
        %3917 = vmatpush1.bf16.msra.mxu0 %v3852
        %3918 = vmatprep.mubr.bf16.mxu0 %v3630
        %3919 = vmatmul.mubr.bf16.gmra.mrb[0].mxu0 %v3629
        %v3920 = vpop.f32.mrb[0].mxu0
        %v3921 = vadd.f32 0.0, %v3920
        %v3922 = vpop.f32.mrb[0].mxu0
        %v3923 = vadd.f32 0.0, %v3922
        %v3924 = vpop.f32.mrb[0].mxu0
        %v3925 = vadd.f32 0.0, %v3924
        %v3926 = vpop.f32.mrb[0].mxu0
        %v3927 = vadd.f32 0.0, %v3926
        %3928 = vmatprep.mubr.bf16.mxu0 %v3632
        %3929 = vmatmul.mubr.bf16.gmra.mrb[0].mxu0 %v3631
        %v3930 = vpop.f32.mrb[0].mxu0
        %v3931 = vadd.f32 0.0, %v3930
        %v3932 = vpop.f32.mrb[0].mxu0
        %v3933 = vadd.f32 0.0, %v3932
        %v3934 = vpop.f32.mrb[0].mxu0
        %v3935 = vadd.f32 0.0, %v3934
        %v3936 = vpop.f32.mrb[0].mxu0
        %v3937 = vadd.f32 0.0, %v3936
        %3938 = vmatprep.mubr.bf16.mxu0 %v3634
        %3939 = vmatmul.mubr.bf16.gmra.mrb[0].mxu0 %v3633
        %v3940 = vpop.f32.mrb[0].mxu0
        %v3941 = vadd.f32 0.0, %v3940
        %v3942 = vpop.f32.mrb[0].mxu0
        %v3943 = vadd.f32 0.0, %v3942
        %v3944 = vpop.f32.mrb[0].mxu0
        %v3945 = vadd.f32 0.0, %v3944
        %v3946 = vpop.f32.mrb[0].mxu0
        %v3947 = vadd.f32 0.0, %v3946
        %3948 = vmatprep.mubr.bf16.mxu0 %v3636
        %3949 = vmatmul.mubr.bf16.gmra.mrb[0].mxu0 %v3635
        %v3950 = vpop.f32.mrb[0].mxu0
        %v3951 = vadd.f32 0.0, %v3950
        %v3952 = vpop.f32.mrb[0].mxu0
        %v3953 = vadd.f32 0.0, %v3952
        %v3954 = vpop.f32.mrb[0].mxu0
        %v3955 = vadd.f32 0.0, %v3954
        %v3956 = vpop.f32.mrb[0].mxu0
        %v3957 = vadd.f32 0.0, %v3956
        %3958 = vmatprep.mubr.bf16.mxu0 %v3638
        %3959 = vmatmul.mubr.bf16.gmra.mrb[0].mxu0 %v3637
        %v3960 = vpop.f32.mrb[0].mxu0
        %v3961 = vadd.f32 0.0, %v3960
        %v3962 = vpop.f32.mrb[0].mxu0
        %v3963 = vadd.f32 0.0, %v3962
        %v3964 = vpop.f32.mrb[0].mxu0
        %v3965 = vadd.f32 0.0, %v3964
        %v3966 = vpop.f32.mrb[0].mxu0
        %v3967 = vadd.f32 0.0, %v3966
        %3968 = vmatprep.mubr.bf16.mxu0 %v3640
        %3969 = vmatmul.mubr.bf16.gmra.mrb[0].mxu0 %v3639
        %v3970 = vpop.f32.mrb[0].mxu0
        %v3971 = vadd.f32 0.0, %v3970
        %v3972 = vpop.f32.mrb[0].mxu0
        %v3973 = vadd.f32 0.0, %v3972
        %v3974 = vpop.f32.mrb[0].mxu0
        %v3975 = vadd.f32 0.0, %v3974
        %v3976 = vpop.f32.mrb[0].mxu0
        %v3977 = vadd.f32 0.0, %v3976
        %3978 = vmatprep.mubr.bf16.mxu0 %v3642
        %3979 = vmatmul.mubr.bf16.gmra.mrb[0].mxu0 %v3641
        %v3980 = vpop.f32.mrb[0].mxu0
        %v3981 = vadd.f32 0.0, %v3980
        %v3982 = vpop.f32.mrb[0].mxu0
        %v3983 = vadd.f32 0.0, %v3982
        %v3984 = vpop.f32.mrb[0].mxu0
        %v3985 = vadd.f32 0.0, %v3984
        %v3986 = vpop.f32.mrb[0].mxu0
        %v3987 = vadd.f32 0.0, %v3986
        %3988 = vmatprep.mubr.bf16.mxu0 %v3644
        %3989 = vmatmul.mubr.bf16.gmra.mrb[0].mxu0 %v3643
        %v3990 = vpop.f32.mrb[0].mxu0
        %v3991 = vadd.f32 0.0, %v3990
        %v3992 = vpop.f32.mrb[0].mxu0
        %v3993 = vadd.f32 0.0, %v3992
        %v3994 = vpop.f32.mrb[0].mxu0
        %v3995 = vadd.f32 0.0, %v3994
        %v3996 = vpop.f32.mrb[0].mxu0
        %v3997 = vadd.f32 0.0, %v3996
        %3998 = vmatprep.mubr.bf16.mxu0 %v3646
        %3999 = vmatmul.mubr.bf16.gmra.mrb[0].mxu0 %v3645
        %v4000 = vpop.f32.mrb[0].mxu0
        %v4001 = vadd.f32 0.0, %v4000
        %v4002 = vpop.f32.mrb[0].mxu0
        %v4003 = vadd.f32 0.0, %v4002
        %v4004 = vpop.f32.mrb[0].mxu0
        %v4005 = vadd.f32 0.0, %v4004
        %v4006 = vpop.f32.mrb[0].mxu0
        %v4007 = vadd.f32 0.0, %v4006
        %4008 = vmatprep.mubr.bf16.mxu0 %v3648
        %4009 = vmatmul.mubr.bf16.gmra.mrb[0].mxu0 %v3647
        %v4010 = vpop.f32.mrb[0].mxu0
        %v4011 = vadd.f32 0.0, %v4010
        %v4012 = vpop.f32.mrb[0].mxu0
        %v4013 = vadd.f32 0.0, %v4012
        %v4014 = vpop.f32.mrb[0].mxu0
        %v4015 = vadd.f32 0.0, %v4014
        %v4016 = vpop.f32.mrb[0].mxu0
        %v4017 = vadd.f32 0.0, %v4016
        %4018 = vmatprep.mubr.bf16.mxu0 %v3650
        %4019 = vmatmul.mubr.bf16.gmra.mrb[0].mxu0 %v3649
        %v4020 = vpop.f32.mrb[0].mxu0
        %v4021 = vadd.f32 0.0, %v4020
        %v4022 = vpop.f32.mrb[0].mxu0
        %v4023 = vadd.f32 0.0, %v4022
        %v4024 = vpop.f32.mrb[0].mxu0
        %v4025 = vadd.f32 0.0, %v4024
        %v4026 = vpop.f32.mrb[0].mxu0
        %v4027 = vadd.f32 0.0, %v4026
        %4028 = vmatprep.mubr.bf16.mxu0 %v3652
        %4029 = vmatmul.mubr.bf16.gmra.mrb[0].mxu0 %v3651
        %v4030 = vpop.f32.mrb[0].mxu0
        %v4031 = vadd.f32 0.0, %v4030
        %v4032 = vpop.f32.mrb[0].mxu0
        %v4033 = vadd.f32 0.0, %v4032
        %v4034 = vpop.f32.mrb[0].mxu0
        %v4035 = vadd.f32 0.0, %v4034
        %v4036 = vpop.f32.mrb[0].mxu0
        %v4037 = vadd.f32 0.0, %v4036
        %4038 = vmatprep.mubr.bf16.mxu0 %v3654
        %4039 = vmatmul.mubr.bf16.gmra.mrb[0].mxu0 %v3653
        %v4040 = vpop.f32.mrb[0].mxu0
        %v4041 = vadd.f32 0.0, %v4040
        %v4042 = vpop.f32.mrb[0].mxu0
        %v4043 = vadd.f32 0.0, %v4042
        %v4044 = vpop.f32.mrb[0].mxu0
        %v4045 = vadd.f32 0.0, %v4044
        %v4046 = vpop.f32.mrb[0].mxu0
        %v4047 = vadd.f32 0.0, %v4046
        %4048 = vmatprep.mubr.bf16.mxu0 %v3656
        %4049 = vmatmul.mubr.bf16.gmra.mrb[0].mxu0 %v3655
        %v4050 = vpop.f32.mrb[0].mxu0
        %v4051 = vadd.f32 0.0, %v4050
        %v4052 = vpop.f32.mrb[0].mxu0
        %v4053 = vadd.f32 0.0, %v4052
        %v4054 = vpop.f32.mrb[0].mxu0
        %v4055 = vadd.f32 0.0, %v4054
        %v4056 = vpop.f32.mrb[0].mxu0
        %v4057 = vadd.f32 0.0, %v4056
        %4058 = vmatprep.mubr.bf16.mxu0 %v3658
        %4059 = vmatmul.mubr.bf16.gmra.mrb[0].mxu0 %v3657
        %v4060 = vpop.f32.mrb[0].mxu0
        %v4061 = vadd.f32 0.0, %v4060
        %v4062 = vpop.f32.mrb[0].mxu0
        %v4063 = vadd.f32 0.0, %v4062
        %v4064 = vpop.f32.mrb[0].mxu0
        %v4065 = vadd.f32 0.0, %v4064
        %v4066 = vpop.f32.mrb[0].mxu0
        %v4067 = vadd.f32 0.0, %v4066
        %4068 = vmatprep.mubr.bf16.mxu0 %v3660
        %4069 = vmatmul.mubr.bf16.gmra.mrb[0].mxu0 %v3659
        %v4070 = vpop.f32.mrb[0].mxu0
        %v4071 = vadd.f32 0.0, %v4070
        %v4072 = vpop.f32.mrb[0].mxu0
        %v4073 = vadd.f32 0.0, %v4072
        %v4074 = vpop.f32.mrb[0].mxu0
        %v4075 = vadd.f32 0.0, %v4074
        %v4076 = vpop.f32.mrb[0].mxu0
        %v4077 = vadd.f32 0.0, %v4076
        %4078 = vmatprep.mubr.bf16.mxu0 %v3662
        %4079 = vmatmul.mubr.bf16.gmra.mrb[0].mxu0 %v3661
        %v4080 = vpop.f32.mrb[0].mxu0
        %v4081 = vadd.f32 0.0, %v4080
        %v4082 = vpop.f32.mrb[0].mxu0
        %v4083 = vadd.f32 0.0, %v4082
        %v4084 = vpop.f32.mrb[0].mxu0
        %v4085 = vadd.f32 0.0, %v4084
        %v4086 = vpop.f32.mrb[0].mxu0
        %v4087 = vadd.f32 0.0, %v4086
        %4088 = vmatprep.mubr.bf16.mxu0 %v3664
        %4089 = vmatmul.mubr.bf16.gmra.mrb[0].mxu0 %v3663
        %v4090 = vpop.f32.mrb[0].mxu0
        %v4091 = vadd.f32 0.0, %v4090
        %v4092 = vpop.f32.mrb[0].mxu0
        %v4093 = vadd.f32 0.0, %v4092
        %v4094 = vpop.f32.mrb[0].mxu0
        %v4095 = vadd.f32 0.0, %v4094
        %v4096 = vpop.f32.mrb[0].mxu0
        %v4097 = vadd.f32 0.0, %v4096
        %4098 = vmatprep.mubr.bf16.mxu0 %v3666
        %4099 = vmatmul.mubr.bf16.gmra.mrb[0].mxu0 %v3665
        %v4100 = vpop.f32.mrb[0].mxu0
        %v4101 = vadd.f32 0.0, %v4100
        %v4102 = vpop.f32.mrb[0].mxu0
        %v4103 = vadd.f32 0.0, %v4102
        %v4104 = vpop.f32.mrb[0].mxu0
        %v4105 = vadd.f32 0.0, %v4104
        %v4106 = vpop.f32.mrb[0].mxu0
        %v4107 = vadd.f32 0.0, %v4106
        %4108 = vmatprep.mubr.bf16.mxu0 %v3668
        %4109 = vmatmul.mubr.bf16.gmra.mrb[0].mxu0 %v3667
        %v4110 = vpop.f32.mrb[0].mxu0
        %v4111 = vadd.f32 0.0, %v4110
        %v4112 = vpop.f32.mrb[0].mxu0
        %v4113 = vadd.f32 0.0, %v4112
        %v4114 = vpop.f32.mrb[0].mxu0
        %v4115 = vadd.f32 0.0, %v4114
        %v4116 = vpop.f32.mrb[0].mxu0
        %v4117 = vadd.f32 0.0, %v4116
        %4118 = vmatprep.mubr.bf16.mxu0 %v3670
        %4119 = vmatmul.mubr.bf16.gmra.mrb[0].mxu0 %v3669
        %v4120 = vpop.f32.mrb[0].mxu0
        %v4121 = vadd.f32 0.0, %v4120
        %v4122 = vpop.f32.mrb[0].mxu0
        %v4123 = vadd.f32 0.0, %v4122
        %v4124 = vpop.f32.mrb[0].mxu0
        %v4125 = vadd.f32 0.0, %v4124
        %v4126 = vpop.f32.mrb[0].mxu0
        %v4127 = vadd.f32 0.0, %v4126
        %4128 = vmatprep.mubr.bf16.mxu0 %v3672
        %4129 = vmatmul.mubr.bf16.gmra.mrb[0].mxu0 %v3671
        %v4130 = vpop.f32.mrb[0].mxu0
        %v4131 = vadd.f32 0.0, %v4130
        %v4132 = vpop.f32.mrb[0].mxu0
        %v4133 = vadd.f32 0.0, %v4132
        %v4134 = vpop.f32.mrb[0].mxu0
        %v4135 = vadd.f32 0.0, %v4134
        %v4136 = vpop.f32.mrb[0].mxu0
        %v4137 = vadd.f32 0.0, %v4136
        %4138 = vmatprep.mubr.bf16.mxu0 %v3674
        %4139 = vmatmul.mubr.bf16.gmra.mrb[0].mxu0 %v3673
        %v4140 = vpop.f32.mrb[0].mxu0
        %v4141 = vadd.f32 0.0, %v4140
        %v4142 = vpop.f32.mrb[0].mxu0
        %v4143 = vadd.f32 0.0, %v4142
        %v4144 = vpop.f32.mrb[0].mxu0
        %v4145 = vadd.f32 0.0, %v4144
        %v4146 = vpop.f32.mrb[0].mxu0
        %v4147 = vadd.f32 0.0, %v4146
        %4148 = vmatprep.mubr.bf16.mxu0 %v3676
        %4149 = vmatmul.mubr.bf16.gmra.mrb[0].mxu0 %v3675
        %v4150 = vpop.f32.mrb[0].mxu0
        %v4151 = vadd.f32 0.0, %v4150
        %v4152 = vpop.f32.mrb[0].mxu0
        %v4153 = vadd.f32 0.0, %v4152
        %v4154 = vpop.f32.mrb[0].mxu0
        %v4155 = vadd.f32 0.0, %v4154
        %v4156 = vpop.f32.mrb[0].mxu0
        %v4157 = vadd.f32 0.0, %v4156
        %4158 = vmatprep.mubr.bf16.mxu0 %v3678
        %4159 = vmatmul.mubr.bf16.gmra.mrb[0].mxu0 %v3677
        %v4160 = vpop.f32.mrb[0].mxu0
        %v4161 = vadd.f32 0.0, %v4160
        %v4162 = vpop.f32.mrb[0].mxu0
        %v4163 = vadd.f32 0.0, %v4162
        %v4164 = vpop.f32.mrb[0].mxu0
        %v4165 = vadd.f32 0.0, %v4164
        %v4166 = vpop.f32.mrb[0].mxu0
        %v4167 = vadd.f32 0.0, %v4166
        %4168 = vmatprep.mubr.bf16.mxu0 %v3680
        %4169 = vmatmul.mubr.bf16.gmra.mrb[0].mxu0 %v3679
        %v4170 = vpop.f32.mrb[0].mxu0
        %v4171 = vadd.f32 0.0, %v4170
        %v4172 = vpop.f32.mrb[0].mxu0
        %v4173 = vadd.f32 0.0, %v4172
        %v4174 = vpop.f32.mrb[0].mxu0
        %v4175 = vadd.f32 0.0, %v4174
        %v4176 = vpop.f32.mrb[0].mxu0
        %v4177 = vadd.f32 0.0, %v4176
        %4178 = vmatprep.mubr.bf16.mxu0 %v3682
        %4179 = vmatmul.mubr.bf16.gmra.mrb[0].mxu0 %v3681
        %v4180 = vpop.f32.mrb[0].mxu0
        %v4181 = vadd.f32 0.0, %v4180
        %v4182 = vpop.f32.mrb[0].mxu0
        %v4183 = vadd.f32 0.0, %v4182
        %v4184 = vpop.f32.mrb[0].mxu0
        %v4185 = vadd.f32 0.0, %v4184
        %v4186 = vpop.f32.mrb[0].mxu0
        %v4187 = vadd.f32 0.0, %v4186
        %4188 = vmatprep.mubr.bf16.mxu0 %v3684
        %4189 = vmatmul.mubr.bf16.gmra.mrb[0].mxu0 %v3683
        %v4190 = vpop.f32.mrb[0].mxu0
        %v4191 = vadd.f32 0.0, %v4190
        %v4192 = vpop.f32.mrb[0].mxu0
        %v4193 = vadd.f32 0.0, %v4192
        %v4194 = vpop.f32.mrb[0].mxu0
        %v4195 = vadd.f32 0.0, %v4194
        %v4196 = vpop.f32.mrb[0].mxu0
        %v4197 = vadd.f32 0.0, %v4196
        %4198 = vmatprep.mubr.bf16.mxu0 %v3686
        %4199 = vmatmul.mubr.bf16.gmra.mrb[0].mxu0 %v3685
        %v4200 = vpop.f32.mrb[0].mxu0
        %v4201 = vadd.f32 0.0, %v4200
        %v4202 = vpop.f32.mrb[0].mxu0
        %v4203 = vadd.f32 0.0, %v4202
        %v4204 = vpop.f32.mrb[0].mxu0
        %v4205 = vadd.f32 0.0, %v4204
        %v4206 = vpop.f32.mrb[0].mxu0
        %v4207 = vadd.f32 0.0, %v4206
        %4208 = vmatprep.mubr.bf16.mxu0 %v3688
        %4209 = vmatmul.mubr.bf16.gmra.mrb[0].mxu0 %v3687
        %v4210 = vpop.f32.mrb[0].mxu0
        %v4211 = vadd.f32 0.0, %v4210
        %v4212 = vpop.f32.mrb[0].mxu0
        %v4213 = vadd.f32 0.0, %v4212
        %v4214 = vpop.f32.mrb[0].mxu0
        %v4215 = vadd.f32 0.0, %v4214
        %v4216 = vpop.f32.mrb[0].mxu0
        %v4217 = vadd.f32 0.0, %v4216
        %4218 = vmatprep.mubr.bf16.mxu0 %v3690
        %4219 = vmatmul.mubr.bf16.gmra.mrb[0].mxu0 %v3689
        %v4220 = vpop.f32.mrb[0].mxu0
        %v4221 = vadd.f32 0.0, %v4220
        %v4222 = vpop.f32.mrb[0].mxu0
        %v4223 = vadd.f32 0.0, %v4222
        %v4224 = vpop.f32.mrb[0].mxu0
        %v4225 = vadd.f32 0.0, %v4224
        %v4226 = vpop.f32.mrb[0].mxu0
        %v4227 = vadd.f32 0.0, %v4226
        %4228 = vmatprep.mubr.bf16.mxu0 %v3692
        %4229 = vmatmul.mubr.bf16.gmra.mrb[0].mxu0 %v3691
        %v4230 = vpop.f32.mrb[0].mxu0
        %v4231 = vadd.f32 0.0, %v4230
        %v4232 = vpop.f32.mrb[0].mxu0
        %v4233 = vadd.f32 0.0, %v4232
        %v4234 = vpop.f32.mrb[0].mxu0
        %v4235 = vadd.f32 0.0, %v4234
        %v4236 = vpop.f32.mrb[0].mxu0
        %v4237 = vadd.f32 0.0, %v4236
        %4238 = vdwg.mxu0
        %v4239 = vpack.c.bf16 %v3925, %v3921
        %v4240 = vpack.c.bf16 %v3927, %v3923
        %v4241 = vpack.c.bf16 %v3935, %v3931
        %v4242 = vpack.c.bf16 %v3937, %v3933
        %v4243 = vpack.c.bf16 %v3945, %v3941
        %v4244 = vpack.c.bf16 %v3947, %v3943
        %v4245 = vpack.c.bf16 %v3955, %v3951
        %v4246 = vpack.c.bf16 %v3957, %v3953
        %v4247 = vpack.c.bf16 %v3965, %v3961
        %v4248 = vpack.c.bf16 %v3967, %v3963
        %v4249 = vpack.c.bf16 %v3975, %v3971
        %v4250 = vpack.c.bf16 %v3977, %v3973
        %v4251 = vpack.c.bf16 %v3985, %v3981
        %v4252 = vpack.c.bf16 %v3987, %v3983
        %v4253 = vpack.c.bf16 %v3995, %v3991
        %v4254 = vpack.c.bf16 %v3997, %v3993
        %v4255 = vpack.c.bf16 %v4005, %v4001
        %v4256 = vpack.c.bf16 %v4007, %v4003
        %v4257 = vpack.c.bf16 %v4015, %v4011
        %v4258 = vpack.c.bf16 %v4017, %v4013
        %v4259 = vpack.c.bf16 %v4025, %v4021
        %v4260 = vpack.c.bf16 %v4027, %v4023
        %v4261 = vpack.c.bf16 %v4035, %v4031
        %v4262 = vpack.c.bf16 %v4037, %v4033
        %v4263 = vpack.c.bf16 %v4045, %v4041
        %v4264 = vpack.c.bf16 %v4047, %v4043
        %v4265 = vpack.c.bf16 %v4055, %v4051
        %v4266 = vpack.c.bf16 %v4057, %v4053
        %v4267 = vpack.c.bf16 %v4065, %v4061
        %v4268 = vpack.c.bf16 %v4067, %v4063
        %v4269 = vpack.c.bf16 %v4075, %v4071
        %v4270 = vpack.c.bf16 %v4077, %v4073
        %v4271 = vpack.c.bf16 %v4085, %v4081
        %v4272 = vpack.c.bf16 %v4087, %v4083
        %v4273 = vpack.c.bf16 %v4095, %v4091
        %v4274 = vpack.c.bf16 %v4097, %v4093
        %v4275 = vpack.c.bf16 %v4105, %v4101
        %v4276 = vpack.c.bf16 %v4107, %v4103
        %v4277 = vpack.c.bf16 %v4115, %v4111
        %v4278 = vpack.c.bf16 %v4117, %v4113
        %v4279 = vpack.c.bf16 %v4125, %v4121
        %v4280 = vpack.c.bf16 %v4127, %v4123
        %v4281 = vpack.c.bf16 %v4135, %v4131
        %v4282 = vpack.c.bf16 %v4137, %v4133
        %v4283 = vpack.c.bf16 %v4145, %v4141
        %v4284 = vpack.c.bf16 %v4147, %v4143
        %v4285 = vpack.c.bf16 %v4155, %v4151
        %v4286 = vpack.c.bf16 %v4157, %v4153
        %v4287 = vpack.c.bf16 %v4165, %v4161
        %v4288 = vpack.c.bf16 %v4167, %v4163
        %v4289 = vpack.c.bf16 %v4175, %v4171
        %v4290 = vpack.c.bf16 %v4177, %v4173
        %v4291 = vpack.c.bf16 %v4185, %v4181
        %v4292 = vpack.c.bf16 %v4187, %v4183
        %v4293 = vpack.c.bf16 %v4195, %v4191
        %v4294 = vpack.c.bf16 %v4197, %v4193
        %v4295 = vpack.c.bf16 %v4205, %v4201
        %v4296 = vpack.c.bf16 %v4207, %v4203
        %v4297 = vpack.c.bf16 %v4215, %v4211
        %v4298 = vpack.c.bf16 %v4217, %v4213
        %v4299 = vpack.c.bf16 %v4225, %v4221
        %v4300 = vpack.c.bf16 %v4227, %v4223
        %v4301 = vpack.c.bf16 %v4235, %v4231
        %v4302 = vpack.c.bf16 %v4237, %v4233
        %s4303 = scalar_lea.vmem %s3, 6
        %v4304 = vld [vmem:[%s4303] sm:$0x3]
        %v4306 = vlaneseq
        %v4307 = vshrl.u32 %v4306, 7
        %v4308 = vsub.s32 0, %v4307
        %v4309 = vrot.slane %v4304, %v4308
        %v4310 = vlaneseq
        %v4311 = vshrl.u32 %v4310, 7
        %v4312 = vsub.s32 1, %v4311
        %v4313 = vrot.slane %v4304, %v4312
        %v4316 = vpack.c.bf16 %v4309, %v4309
        %v4317 = vpack.c.bf16 %v4313, %v4313
        %v4319 = vpack.i.b16 %v4316, %v4316
        %v4321 = vlaneseq
        %v4322 = vshrl.u32 %v4321, 7
        %v4323 = vsub.s32 0, %v4322
        %v4324 = vrot.slane %v4319, %v4323
        %v4326 = vpack.i.b16 %v4317, %v4317
        %v4328 = vlaneseq
        %v4329 = vshrl.u32 %v4328, 7
        %v4330 = vsub.s32 0, %v4329
        %v4331 = vrot.slane %v4326, %v4330
        %v4332 = vadd.bf16 %v4239, %v4324
        %v4333 = vadd.bf16 %v4240, %v4331
        %v4334 = vadd.bf16 %v4241, %v4324
        %v4335 = vadd.bf16 %v4242, %v4331
        %v4336 = vadd.bf16 %v4243, %v4324
        %v4337 = vadd.bf16 %v4244, %v4331
        %v4338 = vadd.bf16 %v4245, %v4324
        %v4339 = vadd.bf16 %v4246, %v4331
        %v4340 = vadd.bf16 %v4247, %v4324
        %v4341 = vadd.bf16 %v4248, %v4331
        %v4342 = vadd.bf16 %v4249, %v4324
        %v4343 = vadd.bf16 %v4250, %v4331
        %v4344 = vadd.bf16 %v4251, %v4324
        %v4345 = vadd.bf16 %v4252, %v4331
        %v4346 = vadd.bf16 %v4253, %v4324
        %v4347 = vadd.bf16 %v4254, %v4331
        %v4348 = vadd.bf16 %v4255, %v4324
        %v4349 = vadd.bf16 %v4256, %v4331
        %v4350 = vadd.bf16 %v4257, %v4324
        %v4351 = vadd.bf16 %v4258, %v4331
        %v4352 = vadd.bf16 %v4259, %v4324
        %v4353 = vadd.bf16 %v4260, %v4331
        %v4354 = vadd.bf16 %v4261, %v4324
        %v4355 = vadd.bf16 %v4262, %v4331
        %v4356 = vadd.bf16 %v4263, %v4324
        %v4357 = vadd.bf16 %v4264, %v4331
        %v4358 = vadd.bf16 %v4265, %v4324
        %v4359 = vadd.bf16 %v4266, %v4331
        %v4360 = vadd.bf16 %v4267, %v4324
        %v4361 = vadd.bf16 %v4268, %v4331
        %v4362 = vadd.bf16 %v4269, %v4324
        %v4363 = vadd.bf16 %v4270, %v4331
        %v4364 = vadd.bf16 %v4271, %v4324
        %v4365 = vadd.bf16 %v4272, %v4331
        %v4366 = vadd.bf16 %v4273, %v4324
        %v4367 = vadd.bf16 %v4274, %v4331
        %v4368 = vadd.bf16 %v4275, %v4324
        %v4369 = vadd.bf16 %v4276, %v4331
        %v4370 = vadd.bf16 %v4277, %v4324
        %v4371 = vadd.bf16 %v4278, %v4331
        %v4372 = vadd.bf16 %v4279, %v4324
        %v4373 = vadd.bf16 %v4280, %v4331
        %v4374 = vadd.bf16 %v4281, %v4324
        %v4375 = vadd.bf16 %v4282, %v4331
        %v4376 = vadd.bf16 %v4283, %v4324
        %v4377 = vadd.bf16 %v4284, %v4331
        %v4378 = vadd.bf16 %v4285, %v4324
        %v4379 = vadd.bf16 %v4286, %v4331
        %v4380 = vadd.bf16 %v4287, %v4324
        %v4381 = vadd.bf16 %v4288, %v4331
        %v4382 = vadd.bf16 %v4289, %v4324
        %v4383 = vadd.bf16 %v4290, %v4331
        %v4384 = vadd.bf16 %v4291, %v4324
        %v4385 = vadd.bf16 %v4292, %v4331
        %v4386 = vadd.bf16 %v4293, %v4324
        %v4387 = vadd.bf16 %v4294, %v4331
        %v4388 = vadd.bf16 %v4295, %v4324
        %v4389 = vadd.bf16 %v4296, %v4331
        %v4390 = vadd.bf16 %v4297, %v4324
        %v4391 = vadd.bf16 %v4298, %v4331
        %v4392 = vadd.bf16 %v4299, %v4324
        %v4393 = vadd.bf16 %v4300, %v4331
        %v4394 = vadd.bf16 %v4301, %v4324
        %v4395 = vadd.bf16 %v4302, %v4331
        %v4396 = vmax.bf16 %v4332, 0
        %v4397 = vmax.bf16 %v4333, 0
        %v4398 = vmax.bf16 %v4334, 0
        %v4399 = vmax.bf16 %v4335, 0
        %v4400 = vmax.bf16 %v4336, 0
        %v4401 = vmax.bf16 %v4337, 0
        %v4402 = vmax.bf16 %v4338, 0
        %v4403 = vmax.bf16 %v4339, 0
        %v4404 = vmax.bf16 %v4340, 0
        %v4405 = vmax.bf16 %v4341, 0
        %v4406 = vmax.bf16 %v4342, 0
        %v4407 = vmax.bf16 %v4343, 0
        %v4408 = vmax.bf16 %v4344, 0
        %v4409 = vmax.bf16 %v4345, 0
        %v4410 = vmax.bf16 %v4346, 0
        %v4411 = vmax.bf16 %v4347, 0
        %v4412 = vmax.bf16 %v4348, 0
        %v4413 = vmax.bf16 %v4349, 0
        %v4414 = vmax.bf16 %v4350, 0
        %v4415 = vmax.bf16 %v4351, 0
        %v4416 = vmax.bf16 %v4352, 0
        %v4417 = vmax.bf16 %v4353, 0
        %v4418 = vmax.bf16 %v4354, 0
        %v4419 = vmax.bf16 %v4355, 0
        %v4420 = vmax.bf16 %v4356, 0
        %v4421 = vmax.bf16 %v4357, 0
        %v4422 = vmax.bf16 %v4358, 0
        %v4423 = vmax.bf16 %v4359, 0
        %v4424 = vmax.bf16 %v4360, 0
        %v4425 = vmax.bf16 %v4361, 0
        %v4426 = vmax.bf16 %v4362, 0
        %v4427 = vmax.bf16 %v4363, 0
        %v4428 = vmax.bf16 %v4364, 0
        %v4429 = vmax.bf16 %v4365, 0
        %v4430 = vmax.bf16 %v4366, 0
        %v4431 = vmax.bf16 %v4367, 0
        %v4432 = vmax.bf16 %v4368, 0
        %v4433 = vmax.bf16 %v4369, 0
        %v4434 = vmax.bf16 %v4370, 0
        %v4435 = vmax.bf16 %v4371, 0
        %v4436 = vmax.bf16 %v4372, 0
        %v4437 = vmax.bf16 %v4373, 0
        %v4438 = vmax.bf16 %v4374, 0
        %v4439 = vmax.bf16 %v4375, 0
        %v4440 = vmax.bf16 %v4376, 0
        %v4441 = vmax.bf16 %v4377, 0
        %v4442 = vmax.bf16 %v4378, 0
        %v4443 = vmax.bf16 %v4379, 0
        %v4444 = vmax.bf16 %v4380, 0
        %v4445 = vmax.bf16 %v4381, 0
        %v4446 = vmax.bf16 %v4382, 0
        %v4447 = vmax.bf16 %v4383, 0
        %v4448 = vmax.bf16 %v4384, 0
        %v4449 = vmax.bf16 %v4385, 0
        %v4450 = vmax.bf16 %v4386, 0
        %v4451 = vmax.bf16 %v4387, 0
        %v4452 = vmax.bf16 %v4388, 0
        %v4453 = vmax.bf16 %v4389, 0
        %v4454 = vmax.bf16 %v4390, 0
        %v4455 = vmax.bf16 %v4391, 0
        %v4456 = vmax.bf16 %v4392, 0
        %v4457 = vmax.bf16 %v4393, 0
        %v4458 = vmax.bf16 %v4394, 0
        %v4459 = vmax.bf16 %v4395, 0
        %4460 = vst [vmem:[#allocation2] sm:$0xff] %v4396
        %4461 = vst [vmem:[#allocation2 + $0x8] sm:$0xff] %v4397
        %4462 = vst [vmem:[#allocation2 + $0x10] sm:$0xff] %v4398
        %4463 = vst [vmem:[#allocation2 + $0x18] sm:$0xff] %v4399
        %4464 = vst [vmem:[#allocation2 + $0x20] sm:$0xff] %v4400
        %4465 = vst [vmem:[#allocation2 + $0x28] sm:$0xff] %v4401
        %4466 = vst [vmem:[#allocation2 + $0x30] sm:$0xff] %v4402
        %4467 = vst [vmem:[#allocation2 + $0x38] sm:$0xff] %v4403
        %4468 = vst [vmem:[#allocation2 + $0x40] sm:$0xff] %v4404
        %4469 = vst [vmem:[#allocation2 + $0x48] sm:$0xff] %v4405
        %4470 = vst [vmem:[#allocation2 + $0x50] sm:$0xff] %v4406
        %4471 = vst [vmem:[#allocation2 + $0x58] sm:$0xff] %v4407
        %4472 = vst [vmem:[#allocation2 + $0x60] sm:$0xff] %v4408
        %4473 = vst [vmem:[#allocation2 + $0x68] sm:$0xff] %v4409
        %4474 = vst [vmem:[#allocation2 + $0x70] sm:$0xff] %v4410
        %4475 = vst [vmem:[#allocation2 + $0x78] sm:$0xff] %v4411
        %4476 = vst [vmem:[#allocation2 + $0x80] sm:$0xff] %v4412
        %4477 = vst [vmem:[#allocation2 + $0x88] sm:$0xff] %v4413
        %4478 = vst [vmem:[#allocation2 + $0x90] sm:$0xff] %v4414
        %4479 = vst [vmem:[#allocation2 + $0x98] sm:$0xff] %v4415
        %4480 = vst [vmem:[#allocation2 + $0xa0] sm:$0xff] %v4416
        %4481 = vst [vmem:[#allocation2 + $0xa8] sm:$0xff] %v4417
        %4482 = vst [vmem:[#allocation2 + $0xb0] sm:$0xff] %v4418
        %4483 = vst [vmem:[#allocation2 + $0xb8] sm:$0xff] %v4419
        %4484 = vst [vmem:[#allocation2 + $0xc0] sm:$0xff] %v4420
        %4485 = vst [vmem:[#allocation2 + $0xc8] sm:$0xff] %v4421
        %4486 = vst [vmem:[#allocation2 + $0xd0] sm:$0xff] %v4422
        %4487 = vst [vmem:[#allocation2 + $0xd8] sm:$0xff] %v4423
        %4488 = vst [vmem:[#allocation2 + $0xe0] sm:$0xff] %v4424
        %4489 = vst [vmem:[#allocation2 + $0xe8] sm:$0xff] %v4425
        %4490 = vst [vmem:[#allocation2 + $0xf0] sm:$0xff] %v4426
        %4491 = vst [vmem:[#allocation2 + $0xf8] sm:$0xff] %v4427
        %4492 = vst [vmem:[#allocation2 + $0x100] sm:$0xff] %v4428
        %4493 = vst [vmem:[#allocation2 + $0x108] sm:$0xff] %v4429
        %4494 = vst [vmem:[#allocation2 + $0x110] sm:$0xff] %v4430
        %4495 = vst [vmem:[#allocation2 + $0x118] sm:$0xff] %v4431
        %4496 = vst [vmem:[#allocation2 + $0x120] sm:$0xff] %v4432
        %4497 = vst [vmem:[#allocation2 + $0x128] sm:$0xff] %v4433
        %4498 = vst [vmem:[#allocation2 + $0x130] sm:$0xff] %v4434
        %4499 = vst [vmem:[#allocation2 + $0x138] sm:$0xff] %v4435
        %4500 = vst [vmem:[#allocation2 + $0x140] sm:$0xff] %v4436
        %4501 = vst [vmem:[#allocation2 + $0x148] sm:$0xff] %v4437
        %4502 = vst [vmem:[#allocation2 + $0x150] sm:$0xff] %v4438
        %4503 = vst [vmem:[#allocation2 + $0x158] sm:$0xff] %v4439
        %4504 = vst [vmem:[#allocation2 + $0x160] sm:$0xff] %v4440
        %4505 = vst [vmem:[#allocation2 + $0x168] sm:$0xff] %v4441
        %4506 = vst [vmem:[#allocation2 + $0x170] sm:$0xff] %v4442
        %4507 = vst [vmem:[#allocation2 + $0x178] sm:$0xff] %v4443
        %4508 = vst [vmem:[#allocation2 + $0x180] sm:$0xff] %v4444
        %4509 = vst [vmem:[#allocation2 + $0x188] sm:$0xff] %v4445
        %4510 = vst [vmem:[#allocation2 + $0x190] sm:$0xff] %v4446
        %4511 = vst [vmem:[#allocation2 + $0x198] sm:$0xff] %v4447
        %4512 = vst [vmem:[#allocation2 + $0x1a0] sm:$0xff] %v4448
        %4513 = vst [vmem:[#allocation2 + $0x1a8] sm:$0xff] %v4449
        %4514 = vst [vmem:[#allocation2 + $0x1b0] sm:$0xff] %v4450
        %4515 = vst [vmem:[#allocation2 + $0x1b8] sm:$0xff] %v4451
        %4516 = vst [vmem:[#allocation2 + $0x1c0] sm:$0xff] %v4452
        %4517 = vst [vmem:[#allocation2 + $0x1c8] sm:$0xff] %v4453
        %4518 = vst [vmem:[#allocation2 + $0x1d0] sm:$0xff] %v4454
        %4519 = vst [vmem:[#allocation2 + $0x1d8] sm:$0xff] %v4455
        %4520 = vst [vmem:[#allocation2 + $0x1e0] sm:$0xff] %v4456
        %4521 = vst [vmem:[#allocation2 + $0x1e8] sm:$0xff] %v4457
        %4522 = vst [vmem:[#allocation2 + $0x1f0] sm:$0xff] %v4458
        %4523 = vst [vmem:[#allocation2 + $0x1f8] sm:$0xff] %v4459
        %v4524 = vld [vmem:[#allocation2] sm:$0xff]
        %v4525 = vld [vmem:[#allocation2 + $0x8] sm:$0xff]
        %v4526 = vld [vmem:[#allocation2 + $0x10] sm:$0xff]
        %v4527 = vld [vmem:[#allocation2 + $0x18] sm:$0xff]
        %v4528 = vld [vmem:[#allocation2 + $0x20] sm:$0xff]
        %v4529 = vld [vmem:[#allocation2 + $0x28] sm:$0xff]
        %v4530 = vld [vmem:[#allocation2 + $0x30] sm:$0xff]
        %v4531 = vld [vmem:[#allocation2 + $0x38] sm:$0xff]
        %v4532 = vld [vmem:[#allocation2 + $0x40] sm:$0xff]
        %v4533 = vld [vmem:[#allocation2 + $0x48] sm:$0xff]
        %v4534 = vld [vmem:[#allocation2 + $0x50] sm:$0xff]
        %v4535 = vld [vmem:[#allocation2 + $0x58] sm:$0xff]
        %v4536 = vld [vmem:[#allocation2 + $0x60] sm:$0xff]
        %v4537 = vld [vmem:[#allocation2 + $0x68] sm:$0xff]
        %v4538 = vld [vmem:[#allocation2 + $0x70] sm:$0xff]
        %v4539 = vld [vmem:[#allocation2 + $0x78] sm:$0xff]
        %v4540 = vld [vmem:[#allocation2 + $0x80] sm:$0xff]
        %v4541 = vld [vmem:[#allocation2 + $0x88] sm:$0xff]
        %v4542 = vld [vmem:[#allocation2 + $0x90] sm:$0xff]
        %v4543 = vld [vmem:[#allocation2 + $0x98] sm:$0xff]
        %v4544 = vld [vmem:[#allocation2 + $0xa0] sm:$0xff]
        %v4545 = vld [vmem:[#allocation2 + $0xa8] sm:$0xff]
        %v4546 = vld [vmem:[#allocation2 + $0xb0] sm:$0xff]
        %v4547 = vld [vmem:[#allocation2 + $0xb8] sm:$0xff]
        %v4548 = vld [vmem:[#allocation2 + $0xc0] sm:$0xff]
        %v4549 = vld [vmem:[#allocation2 + $0xc8] sm:$0xff]
        %v4550 = vld [vmem:[#allocation2 + $0xd0] sm:$0xff]
        %v4551 = vld [vmem:[#allocation2 + $0xd8] sm:$0xff]
        %v4552 = vld [vmem:[#allocation2 + $0xe0] sm:$0xff]
        %v4553 = vld [vmem:[#allocation2 + $0xe8] sm:$0xff]
        %v4554 = vld [vmem:[#allocation2 + $0xf0] sm:$0xff]
        %v4555 = vld [vmem:[#allocation2 + $0xf8] sm:$0xff]
        %v4556 = vld [vmem:[#allocation2 + $0x100] sm:$0xff]
        %v4557 = vld [vmem:[#allocation2 + $0x108] sm:$0xff]
        %v4558 = vld [vmem:[#allocation2 + $0x110] sm:$0xff]
        %v4559 = vld [vmem:[#allocation2 + $0x118] sm:$0xff]
        %v4560 = vld [vmem:[#allocation2 + $0x120] sm:$0xff]
        %v4561 = vld [vmem:[#allocation2 + $0x128] sm:$0xff]
        %v4562 = vld [vmem:[#allocation2 + $0x130] sm:$0xff]
        %v4563 = vld [vmem:[#allocation2 + $0x138] sm:$0xff]
        %v4564 = vld [vmem:[#allocation2 + $0x140] sm:$0xff]
        %v4565 = vld [vmem:[#allocation2 + $0x148] sm:$0xff]
        %v4566 = vld [vmem:[#allocation2 + $0x150] sm:$0xff]
        %v4567 = vld [vmem:[#allocation2 + $0x158] sm:$0xff]
        %v4568 = vld [vmem:[#allocation2 + $0x160] sm:$0xff]
        %v4569 = vld [vmem:[#allocation2 + $0x168] sm:$0xff]
        %v4570 = vld [vmem:[#allocation2 + $0x170] sm:$0xff]
        %v4571 = vld [vmem:[#allocation2 + $0x178] sm:$0xff]
        %v4572 = vld [vmem:[#allocation2 + $0x180] sm:$0xff]
        %v4573 = vld [vmem:[#allocation2 + $0x188] sm:$0xff]
        %v4574 = vld [vmem:[#allocation2 + $0x190] sm:$0xff]
        %v4575 = vld [vmem:[#allocation2 + $0x198] sm:$0xff]
        %v4576 = vld [vmem:[#allocation2 + $0x1a0] sm:$0xff]
        %v4577 = vld [vmem:[#allocation2 + $0x1a8] sm:$0xff]
        %v4578 = vld [vmem:[#allocation2 + $0x1b0] sm:$0xff]
        %v4579 = vld [vmem:[#allocation2 + $0x1b8] sm:$0xff]
        %v4580 = vld [vmem:[#allocation2 + $0x1c0] sm:$0xff]
        %v4581 = vld [vmem:[#allocation2 + $0x1c8] sm:$0xff]
        %v4582 = vld [vmem:[#allocation2 + $0x1d0] sm:$0xff]
        %v4583 = vld [vmem:[#allocation2 + $0x1d8] sm:$0xff]
        %v4584 = vld [vmem:[#allocation2 + $0x1e0] sm:$0xff]
        %v4585 = vld [vmem:[#allocation2 + $0x1e8] sm:$0xff]
        %v4586 = vld [vmem:[#allocation2 + $0x1f0] sm:$0xff]
        %v4587 = vld [vmem:[#allocation2 + $0x1f8] sm:$0xff]
        %s4588 = scalar_lea.vmem [#allocation4], 768
        %v4589 = vld [vmem:[%s4588] sm:$0xff]
        %v4590 = vld [vmem:[%s4588 + $0x8] sm:$0xff]
        %v4591 = vld [vmem:[%s4588 + $0x10] sm:$0xff]
        %v4592 = vld [vmem:[%s4588 + $0x18] sm:$0xff]
        %v4593 = vld [vmem:[%s4588 + $0x20] sm:$0xff]
        %v4594 = vld [vmem:[%s4588 + $0x28] sm:$0xff]
        %v4595 = vld [vmem:[%s4588 + $0x30] sm:$0xff]
        %v4596 = vld [vmem:[%s4588 + $0x38] sm:$0xff]
        %v4597 = vld [vmem:[%s4588 + $0x40] sm:$0xff]
        %v4598 = vld [vmem:[%s4588 + $0x48] sm:$0xff]
        %v4599 = vld [vmem:[%s4588 + $0x50] sm:$0xff]
        %v4600 = vld [vmem:[%s4588 + $0x58] sm:$0xff]
        %v4601 = vld [vmem:[%s4588 + $0x60] sm:$0xff]
        %v4602 = vld [vmem:[%s4588 + $0x68] sm:$0xff]
        %v4603 = vld [vmem:[%s4588 + $0x70] sm:$0xff]
        %v4604 = vld [vmem:[%s4588 + $0x78] sm:$0xff]
        %v4605 = vld [vmem:[%s4588 + $0x80] sm:$0xff]
        %v4606 = vld [vmem:[%s4588 + $0x88] sm:$0xff]
        %v4607 = vld [vmem:[%s4588 + $0x90] sm:$0xff]
        %v4608 = vld [vmem:[%s4588 + $0x98] sm:$0xff]
        %v4609 = vld [vmem:[%s4588 + $0xa0] sm:$0xff]
        %v4610 = vld [vmem:[%s4588 + $0xa8] sm:$0xff]
        %v4611 = vld [vmem:[%s4588 + $0xb0] sm:$0xff]
        %v4612 = vld [vmem:[%s4588 + $0xb8] sm:$0xff]
        %v4613 = vld [vmem:[%s4588 + $0xc0] sm:$0xff]
        %v4614 = vld [vmem:[%s4588 + $0xc8] sm:$0xff]
        %v4615 = vld [vmem:[%s4588 + $0xd0] sm:$0xff]
        %v4616 = vld [vmem:[%s4588 + $0xd8] sm:$0xff]
        %v4617 = vld [vmem:[%s4588 + $0xe0] sm:$0xff]
        %v4618 = vld [vmem:[%s4588 + $0xe8] sm:$0xff]
        %v4619 = vld [vmem:[%s4588 + $0xf0] sm:$0xff]
        %v4620 = vld [vmem:[%s4588 + $0xf8] sm:$0xff]
        %v4653 = vunpack.c.l.b16 %v4589
        %v4654 = vunpack.c.h.b16 %v4589
        %v4655 = vunpack.c.l.b16 %v4590
        %v4656 = vunpack.c.h.b16 %v4590
        %v4657 = vunpack.c.l.b16 %v4591
        %v4658 = vunpack.c.h.b16 %v4591
        %v4659 = vunpack.c.l.b16 %v4592
        %v4660 = vunpack.c.h.b16 %v4592
        %v4661 = vunpack.c.l.b16 %v4593
        %v4662 = vunpack.c.h.b16 %v4593
        %v4663 = vunpack.c.l.b16 %v4594
        %v4664 = vunpack.c.h.b16 %v4594
        %v4665 = vunpack.c.l.b16 %v4595
        %v4666 = vunpack.c.h.b16 %v4595
        %v4667 = vunpack.c.l.b16 %v4596
        %v4668 = vunpack.c.h.b16 %v4596
        %v4669 = vunpack.c.l.b16 %v4597
        %v4670 = vunpack.c.h.b16 %v4597
        %v4671 = vunpack.c.l.b16 %v4598
        %v4672 = vunpack.c.h.b16 %v4598
        %v4673 = vunpack.c.l.b16 %v4599
        %v4674 = vunpack.c.h.b16 %v4599
        %v4675 = vunpack.c.l.b16 %v4600
        %v4676 = vunpack.c.h.b16 %v4600
        %v4677 = vunpack.c.l.b16 %v4601
        %v4678 = vunpack.c.h.b16 %v4601
        %v4679 = vunpack.c.l.b16 %v4602
        %v4680 = vunpack.c.h.b16 %v4602
        %v4681 = vunpack.c.l.b16 %v4603
        %v4682 = vunpack.c.h.b16 %v4603
        %v4683 = vunpack.c.l.b16 %v4604
        %v4684 = vunpack.c.h.b16 %v4604
        %v4685 = vunpack.c.l.b16 %v4605
        %v4686 = vunpack.c.h.b16 %v4605
        %v4687 = vunpack.c.l.b16 %v4606
        %v4688 = vunpack.c.h.b16 %v4606
        %v4689 = vunpack.c.l.b16 %v4607
        %v4690 = vunpack.c.h.b16 %v4607
        %v4691 = vunpack.c.l.b16 %v4608
        %v4692 = vunpack.c.h.b16 %v4608
        %v4693 = vunpack.c.l.b16 %v4609
        %v4694 = vunpack.c.h.b16 %v4609
        %v4695 = vunpack.c.l.b16 %v4610
        %v4696 = vunpack.c.h.b16 %v4610
        %v4697 = vunpack.c.l.b16 %v4611
        %v4698 = vunpack.c.h.b16 %v4611
        %v4699 = vunpack.c.l.b16 %v4612
        %v4700 = vunpack.c.h.b16 %v4612
        %v4701 = vunpack.c.l.b16 %v4613
        %v4702 = vunpack.c.h.b16 %v4613
        %v4703 = vunpack.c.l.b16 %v4614
        %v4704 = vunpack.c.h.b16 %v4614
        %v4705 = vunpack.c.l.b16 %v4615
        %v4706 = vunpack.c.h.b16 %v4615
        %v4707 = vunpack.c.l.b16 %v4616
        %v4708 = vunpack.c.h.b16 %v4616
        %v4709 = vunpack.c.l.b16 %v4617
        %v4710 = vunpack.c.h.b16 %v4617
        %v4711 = vunpack.c.l.b16 %v4618
        %v4712 = vunpack.c.h.b16 %v4618
        %v4713 = vunpack.c.l.b16 %v4619
        %v4714 = vunpack.c.h.b16 %v4619
        %v4715 = vunpack.c.l.b16 %v4620
        %v4716 = vunpack.c.h.b16 %v4620
        %v4717 = vpack.c.b16 %v4655, %v4653
        %v4718 = vpack.c.b16 %v4656, %v4654
        %v4719 = vpack.c.b16 %v4659, %v4657
        %v4720 = vpack.c.b16 %v4660, %v4658
        %v4721 = vpack.c.b16 %v4663, %v4661
        %v4722 = vpack.c.b16 %v4664, %v4662
        %v4723 = vpack.c.b16 %v4667, %v4665
        %v4724 = vpack.c.b16 %v4668, %v4666
        %v4725 = vpack.c.b16 %v4671, %v4669
        %v4726 = vpack.c.b16 %v4672, %v4670
        %v4727 = vpack.c.b16 %v4675, %v4673
        %v4728 = vpack.c.b16 %v4676, %v4674
        %v4729 = vpack.c.b16 %v4679, %v4677
        %v4730 = vpack.c.b16 %v4680, %v4678
        %v4731 = vpack.c.b16 %v4683, %v4681
        %v4732 = vpack.c.b16 %v4684, %v4682
        %v4733 = vpack.c.b16 %v4687, %v4685
        %v4734 = vpack.c.b16 %v4688, %v4686
        %v4735 = vpack.c.b16 %v4691, %v4689
        %v4736 = vpack.c.b16 %v4692, %v4690
        %v4737 = vpack.c.b16 %v4695, %v4693
        %v4738 = vpack.c.b16 %v4696, %v4694
        %v4739 = vpack.c.b16 %v4699, %v4697
        %v4740 = vpack.c.b16 %v4700, %v4698
        %v4741 = vpack.c.b16 %v4703, %v4701
        %v4742 = vpack.c.b16 %v4704, %v4702
        %v4743 = vpack.c.b16 %v4707, %v4705
        %v4744 = vpack.c.b16 %v4708, %v4706
        %v4745 = vpack.c.b16 %v4711, %v4709
        %v4746 = vpack.c.b16 %v4712, %v4710
        %v4747 = vpack.c.b16 %v4715, %v4713
        %v4748 = vpack.c.b16 %v4716, %v4714
        %4781 = vmatprep.subr.bf16.mxu0 %v4718
        %4782 = vmatpush1.bf16.msra.mxu0 %v4717
        %4783 = vmatprep.subr.bf16.mxu0 %v4720
        %4784 = vmatpush1.bf16.msra.mxu0 %v4719
        %4785 = vmatprep.subr.bf16.mxu0 %v4722
        %4786 = vmatpush1.bf16.msra.mxu0 %v4721
        %4787 = vmatprep.subr.bf16.mxu0 %v4724
        %4788 = vmatpush1.bf16.msra.mxu0 %v4723
        %4789 = vmatprep.subr.bf16.mxu0 %v4726
        %4790 = vmatpush1.bf16.msra.mxu0 %v4725
        %4791 = vmatprep.subr.bf16.mxu0 %v4728
        %4792 = vmatpush1.bf16.msra.mxu0 %v4727
        %4793 = vmatprep.subr.bf16.mxu0 %v4730
        %4794 = vmatpush1.bf16.msra.mxu0 %v4729
        %4795 = vmatprep.subr.bf16.mxu0 %v4732
        %4796 = vmatpush1.bf16.msra.mxu0 %v4731
        %4797 = vmatprep.subr.bf16.mxu0 %v4734
        %4798 = vmatpush1.bf16.msra.mxu0 %v4733
        %4799 = vmatprep.subr.bf16.mxu0 %v4736
        %4800 = vmatpush1.bf16.msra.mxu0 %v4735
        %4801 = vmatprep.subr.bf16.mxu0 %v4738
        %4802 = vmatpush1.bf16.msra.mxu0 %v4737
        %4803 = vmatprep.subr.bf16.mxu0 %v4740
        %4804 = vmatpush1.bf16.msra.mxu0 %v4739
        %4805 = vmatprep.subr.bf16.mxu0 %v4742
        %4806 = vmatpush1.bf16.msra.mxu0 %v4741
        %4807 = vmatprep.subr.bf16.mxu0 %v4744
        %4808 = vmatpush1.bf16.msra.mxu0 %v4743
        %4809 = vmatprep.subr.bf16.mxu0 %v4746
        %4810 = vmatpush1.bf16.msra.mxu0 %v4745
        %4811 = vmatprep.subr.bf16.mxu0 %v4748
        %4812 = vmatpush1.bf16.msra.mxu0 %v4747
        %4813 = vmatprep.mubr.bf16.mxu0 %v4525
        %4814 = vmatmul.mubr.bf16.gmra.mrb[0].mxu0 %v4524
        %v4815 = vpop.f32.mrb[0].mxu0
        %v4816 = vadd.f32 0.0, %v4815
        %v4817 = vpop.f32.mrb[0].mxu0
        %v4818 = vadd.f32 0.0, %v4817
        %v4819 = vpop.f32.mrb[0].mxu0
        %v4820 = vadd.f32 0.0, %v4819
        %v4821 = vpop.f32.mrb[0].mxu0
        %v4822 = vadd.f32 0.0, %v4821
        %4823 = vmatprep.mubr.bf16.mxu0 %v4527
        %4824 = vmatmul.mubr.bf16.gmra.mrb[0].mxu0 %v4526
        %v4825 = vpop.f32.mrb[0].mxu0
        %v4826 = vadd.f32 0.0, %v4825
        %v4827 = vpop.f32.mrb[0].mxu0
        %v4828 = vadd.f32 0.0, %v4827
        %v4829 = vpop.f32.mrb[0].mxu0
        %v4830 = vadd.f32 0.0, %v4829
        %v4831 = vpop.f32.mrb[0].mxu0
        %v4832 = vadd.f32 0.0, %v4831
        %4833 = vmatprep.mubr.bf16.mxu0 %v4529
        %4834 = vmatmul.mubr.bf16.gmra.mrb[0].mxu0 %v4528
        %v4835 = vpop.f32.mrb[0].mxu0
        %v4836 = vadd.f32 0.0, %v4835
        %v4837 = vpop.f32.mrb[0].mxu0
        %v4838 = vadd.f32 0.0, %v4837
        %v4839 = vpop.f32.mrb[0].mxu0
        %v4840 = vadd.f32 0.0, %v4839
        %v4841 = vpop.f32.mrb[0].mxu0
        %v4842 = vadd.f32 0.0, %v4841
        %4843 = vmatprep.mubr.bf16.mxu0 %v4531
        %4844 = vmatmul.mubr.bf16.gmra.mrb[0].mxu0 %v4530
        %v4845 = vpop.f32.mrb[0].mxu0
        %v4846 = vadd.f32 0.0, %v4845
        %v4847 = vpop.f32.mrb[0].mxu0
        %v4848 = vadd.f32 0.0, %v4847
        %v4849 = vpop.f32.mrb[0].mxu0
        %v4850 = vadd.f32 0.0, %v4849
        %v4851 = vpop.f32.mrb[0].mxu0
        %v4852 = vadd.f32 0.0, %v4851
        %4853 = vmatprep.mubr.bf16.mxu0 %v4533
        %4854 = vmatmul.mubr.bf16.gmra.mrb[0].mxu0 %v4532
        %v4855 = vpop.f32.mrb[0].mxu0
        %v4856 = vadd.f32 0.0, %v4855
        %v4857 = vpop.f32.mrb[0].mxu0
        %v4858 = vadd.f32 0.0, %v4857
        %v4859 = vpop.f32.mrb[0].mxu0
        %v4860 = vadd.f32 0.0, %v4859
        %v4861 = vpop.f32.mrb[0].mxu0
        %v4862 = vadd.f32 0.0, %v4861
        %4863 = vmatprep.mubr.bf16.mxu0 %v4535
        %4864 = vmatmul.mubr.bf16.gmra.mrb[0].mxu0 %v4534
        %v4865 = vpop.f32.mrb[0].mxu0
        %v4866 = vadd.f32 0.0, %v4865
        %v4867 = vpop.f32.mrb[0].mxu0
        %v4868 = vadd.f32 0.0, %v4867
        %v4869 = vpop.f32.mrb[0].mxu0
        %v4870 = vadd.f32 0.0, %v4869
        %v4871 = vpop.f32.mrb[0].mxu0
        %v4872 = vadd.f32 0.0, %v4871
        %4873 = vmatprep.mubr.bf16.mxu0 %v4537
        %4874 = vmatmul.mubr.bf16.gmra.mrb[0].mxu0 %v4536
        %v4875 = vpop.f32.mrb[0].mxu0
        %v4876 = vadd.f32 0.0, %v4875
        %v4877 = vpop.f32.mrb[0].mxu0
        %v4878 = vadd.f32 0.0, %v4877
        %v4879 = vpop.f32.mrb[0].mxu0
        %v4880 = vadd.f32 0.0, %v4879
        %v4881 = vpop.f32.mrb[0].mxu0
        %v4882 = vadd.f32 0.0, %v4881
        %4883 = vmatprep.mubr.bf16.mxu0 %v4539
        %4884 = vmatmul.mubr.bf16.gmra.mrb[0].mxu0 %v4538
        %v4885 = vpop.f32.mrb[0].mxu0
        %v4886 = vadd.f32 0.0, %v4885
        %v4887 = vpop.f32.mrb[0].mxu0
        %v4888 = vadd.f32 0.0, %v4887
        %v4889 = vpop.f32.mrb[0].mxu0
        %v4890 = vadd.f32 0.0, %v4889
        %v4891 = vpop.f32.mrb[0].mxu0
        %v4892 = vadd.f32 0.0, %v4891
        %4893 = vmatprep.mubr.bf16.mxu0 %v4541
        %4894 = vmatmul.mubr.bf16.gmra.mrb[0].mxu0 %v4540
        %v4895 = vpop.f32.mrb[0].mxu0
        %v4896 = vadd.f32 0.0, %v4895
        %v4897 = vpop.f32.mrb[0].mxu0
        %v4898 = vadd.f32 0.0, %v4897
        %v4899 = vpop.f32.mrb[0].mxu0
        %v4900 = vadd.f32 0.0, %v4899
        %v4901 = vpop.f32.mrb[0].mxu0
        %v4902 = vadd.f32 0.0, %v4901
        %4903 = vmatprep.mubr.bf16.mxu0 %v4543
        %4904 = vmatmul.mubr.bf16.gmra.mrb[0].mxu0 %v4542
        %v4905 = vpop.f32.mrb[0].mxu0
        %v4906 = vadd.f32 0.0, %v4905
        %v4907 = vpop.f32.mrb[0].mxu0
        %v4908 = vadd.f32 0.0, %v4907
        %v4909 = vpop.f32.mrb[0].mxu0
        %v4910 = vadd.f32 0.0, %v4909
        %v4911 = vpop.f32.mrb[0].mxu0
        %v4912 = vadd.f32 0.0, %v4911
        %4913 = vmatprep.mubr.bf16.mxu0 %v4545
        %4914 = vmatmul.mubr.bf16.gmra.mrb[0].mxu0 %v4544
        %v4915 = vpop.f32.mrb[0].mxu0
        %v4916 = vadd.f32 0.0, %v4915
        %v4917 = vpop.f32.mrb[0].mxu0
        %v4918 = vadd.f32 0.0, %v4917
        %v4919 = vpop.f32.mrb[0].mxu0
        %v4920 = vadd.f32 0.0, %v4919
        %v4921 = vpop.f32.mrb[0].mxu0
        %v4922 = vadd.f32 0.0, %v4921
        %4923 = vmatprep.mubr.bf16.mxu0 %v4547
        %4924 = vmatmul.mubr.bf16.gmra.mrb[0].mxu0 %v4546
        %v4925 = vpop.f32.mrb[0].mxu0
        %v4926 = vadd.f32 0.0, %v4925
        %v4927 = vpop.f32.mrb[0].mxu0
        %v4928 = vadd.f32 0.0, %v4927
        %v4929 = vpop.f32.mrb[0].mxu0
        %v4930 = vadd.f32 0.0, %v4929
        %v4931 = vpop.f32.mrb[0].mxu0
        %v4932 = vadd.f32 0.0, %v4931
        %4933 = vmatprep.mubr.bf16.mxu0 %v4549
        %4934 = vmatmul.mubr.bf16.gmra.mrb[0].mxu0 %v4548
        %v4935 = vpop.f32.mrb[0].mxu0
        %v4936 = vadd.f32 0.0, %v4935
        %v4937 = vpop.f32.mrb[0].mxu0
        %v4938 = vadd.f32 0.0, %v4937
        %v4939 = vpop.f32.mrb[0].mxu0
        %v4940 = vadd.f32 0.0, %v4939
        %v4941 = vpop.f32.mrb[0].mxu0
        %v4942 = vadd.f32 0.0, %v4941
        %4943 = vmatprep.mubr.bf16.mxu0 %v4551
        %4944 = vmatmul.mubr.bf16.gmra.mrb[0].mxu0 %v4550
        %v4945 = vpop.f32.mrb[0].mxu0
        %v4946 = vadd.f32 0.0, %v4945
        %v4947 = vpop.f32.mrb[0].mxu0
        %v4948 = vadd.f32 0.0, %v4947
        %v4949 = vpop.f32.mrb[0].mxu0
        %v4950 = vadd.f32 0.0, %v4949
        %v4951 = vpop.f32.mrb[0].mxu0
        %v4952 = vadd.f32 0.0, %v4951
        %4953 = vmatprep.mubr.bf16.mxu0 %v4553
        %4954 = vmatmul.mubr.bf16.gmra.mrb[0].mxu0 %v4552
        %v4955 = vpop.f32.mrb[0].mxu0
        %v4956 = vadd.f32 0.0, %v4955
        %v4957 = vpop.f32.mrb[0].mxu0
        %v4958 = vadd.f32 0.0, %v4957
        %v4959 = vpop.f32.mrb[0].mxu0
        %v4960 = vadd.f32 0.0, %v4959
        %v4961 = vpop.f32.mrb[0].mxu0
        %v4962 = vadd.f32 0.0, %v4961
        %4963 = vmatprep.mubr.bf16.mxu0 %v4555
        %4964 = vmatmul.mubr.bf16.gmra.mrb[0].mxu0 %v4554
        %v4965 = vpop.f32.mrb[0].mxu0
        %v4966 = vadd.f32 0.0, %v4965
        %v4967 = vpop.f32.mrb[0].mxu0
        %v4968 = vadd.f32 0.0, %v4967
        %v4969 = vpop.f32.mrb[0].mxu0
        %v4970 = vadd.f32 0.0, %v4969
        %v4971 = vpop.f32.mrb[0].mxu0
        %v4972 = vadd.f32 0.0, %v4971
        %4973 = vmatprep.mubr.bf16.mxu0 %v4557
        %4974 = vmatmul.mubr.bf16.gmra.mrb[0].mxu0 %v4556
        %v4975 = vpop.f32.mrb[0].mxu0
        %v4976 = vadd.f32 0.0, %v4975
        %v4977 = vpop.f32.mrb[0].mxu0
        %v4978 = vadd.f32 0.0, %v4977
        %v4979 = vpop.f32.mrb[0].mxu0
        %v4980 = vadd.f32 0.0, %v4979
        %v4981 = vpop.f32.mrb[0].mxu0
        %v4982 = vadd.f32 0.0, %v4981
        %4983 = vmatprep.mubr.bf16.mxu0 %v4559
        %4984 = vmatmul.mubr.bf16.gmra.mrb[0].mxu0 %v4558
        %v4985 = vpop.f32.mrb[0].mxu0
        %v4986 = vadd.f32 0.0, %v4985
        %v4987 = vpop.f32.mrb[0].mxu0
        %v4988 = vadd.f32 0.0, %v4987
        %v4989 = vpop.f32.mrb[0].mxu0
        %v4990 = vadd.f32 0.0, %v4989
        %v4991 = vpop.f32.mrb[0].mxu0
        %v4992 = vadd.f32 0.0, %v4991
        %4993 = vmatprep.mubr.bf16.mxu0 %v4561
        %4994 = vmatmul.mubr.bf16.gmra.mrb[0].mxu0 %v4560
        %v4995 = vpop.f32.mrb[0].mxu0
        %v4996 = vadd.f32 0.0, %v4995
        %v4997 = vpop.f32.mrb[0].mxu0
        %v4998 = vadd.f32 0.0, %v4997
        %v4999 = vpop.f32.mrb[0].mxu0
        %v5000 = vadd.f32 0.0, %v4999
        %v5001 = vpop.f32.mrb[0].mxu0
        %v5002 = vadd.f32 0.0, %v5001
        %5003 = vmatprep.mubr.bf16.mxu0 %v4563
        %5004 = vmatmul.mubr.bf16.gmra.mrb[0].mxu0 %v4562
        %v5005 = vpop.f32.mrb[0].mxu0
        %v5006 = vadd.f32 0.0, %v5005
        %v5007 = vpop.f32.mrb[0].mxu0
        %v5008 = vadd.f32 0.0, %v5007
        %v5009 = vpop.f32.mrb[0].mxu0
        %v5010 = vadd.f32 0.0, %v5009
        %v5011 = vpop.f32.mrb[0].mxu0
        %v5012 = vadd.f32 0.0, %v5011
        %5013 = vmatprep.mubr.bf16.mxu0 %v4565
        %5014 = vmatmul.mubr.bf16.gmra.mrb[0].mxu0 %v4564
        %v5015 = vpop.f32.mrb[0].mxu0
        %v5016 = vadd.f32 0.0, %v5015
        %v5017 = vpop.f32.mrb[0].mxu0
        %v5018 = vadd.f32 0.0, %v5017
        %v5019 = vpop.f32.mrb[0].mxu0
        %v5020 = vadd.f32 0.0, %v5019
        %v5021 = vpop.f32.mrb[0].mxu0
        %v5022 = vadd.f32 0.0, %v5021
        %5023 = vmatprep.mubr.bf16.mxu0 %v4567
        %5024 = vmatmul.mubr.bf16.gmra.mrb[0].mxu0 %v4566
        %v5025 = vpop.f32.mrb[0].mxu0
        %v5026 = vadd.f32 0.0, %v5025
        %v5027 = vpop.f32.mrb[0].mxu0
        %v5028 = vadd.f32 0.0, %v5027
        %v5029 = vpop.f32.mrb[0].mxu0
        %v5030 = vadd.f32 0.0, %v5029
        %v5031 = vpop.f32.mrb[0].mxu0
        %v5032 = vadd.f32 0.0, %v5031
        %5033 = vmatprep.mubr.bf16.mxu0 %v4569
        %5034 = vmatmul.mubr.bf16.gmra.mrb[0].mxu0 %v4568
        %v5035 = vpop.f32.mrb[0].mxu0
        %v5036 = vadd.f32 0.0, %v5035
        %v5037 = vpop.f32.mrb[0].mxu0
        %v5038 = vadd.f32 0.0, %v5037
        %v5039 = vpop.f32.mrb[0].mxu0
        %v5040 = vadd.f32 0.0, %v5039
        %v5041 = vpop.f32.mrb[0].mxu0
        %v5042 = vadd.f32 0.0, %v5041
        %5043 = vmatprep.mubr.bf16.mxu0 %v4571
        %5044 = vmatmul.mubr.bf16.gmra.mrb[0].mxu0 %v4570
        %v5045 = vpop.f32.mrb[0].mxu0
        %v5046 = vadd.f32 0.0, %v5045
        %v5047 = vpop.f32.mrb[0].mxu0
        %v5048 = vadd.f32 0.0, %v5047
        %v5049 = vpop.f32.mrb[0].mxu0
        %v5050 = vadd.f32 0.0, %v5049
        %v5051 = vpop.f32.mrb[0].mxu0
        %v5052 = vadd.f32 0.0, %v5051
        %5053 = vmatprep.mubr.bf16.mxu0 %v4573
        %5054 = vmatmul.mubr.bf16.gmra.mrb[0].mxu0 %v4572
        %v5055 = vpop.f32.mrb[0].mxu0
        %v5056 = vadd.f32 0.0, %v5055
        %v5057 = vpop.f32.mrb[0].mxu0
        %v5058 = vadd.f32 0.0, %v5057
        %v5059 = vpop.f32.mrb[0].mxu0
        %v5060 = vadd.f32 0.0, %v5059
        %v5061 = vpop.f32.mrb[0].mxu0
        %v5062 = vadd.f32 0.0, %v5061
        %5063 = vmatprep.mubr.bf16.mxu0 %v4575
        %5064 = vmatmul.mubr.bf16.gmra.mrb[0].mxu0 %v4574
        %v5065 = vpop.f32.mrb[0].mxu0
        %v5066 = vadd.f32 0.0, %v5065
        %v5067 = vpop.f32.mrb[0].mxu0
        %v5068 = vadd.f32 0.0, %v5067
        %v5069 = vpop.f32.mrb[0].mxu0
        %v5070 = vadd.f32 0.0, %v5069
        %v5071 = vpop.f32.mrb[0].mxu0
        %v5072 = vadd.f32 0.0, %v5071
        %5073 = vmatprep.mubr.bf16.mxu0 %v4577
        %5074 = vmatmul.mubr.bf16.gmra.mrb[0].mxu0 %v4576
        %v5075 = vpop.f32.mrb[0].mxu0
        %v5076 = vadd.f32 0.0, %v5075
        %v5077 = vpop.f32.mrb[0].mxu0
        %v5078 = vadd.f32 0.0, %v5077
        %v5079 = vpop.f32.mrb[0].mxu0
        %v5080 = vadd.f32 0.0, %v5079
        %v5081 = vpop.f32.mrb[0].mxu0
        %v5082 = vadd.f32 0.0, %v5081
        %5083 = vmatprep.mubr.bf16.mxu0 %v4579
        %5084 = vmatmul.mubr.bf16.gmra.mrb[0].mxu0 %v4578
        %v5085 = vpop.f32.mrb[0].mxu0
        %v5086 = vadd.f32 0.0, %v5085
        %v5087 = vpop.f32.mrb[0].mxu0
        %v5088 = vadd.f32 0.0, %v5087
        %v5089 = vpop.f32.mrb[0].mxu0
        %v5090 = vadd.f32 0.0, %v5089
        %v5091 = vpop.f32.mrb[0].mxu0
        %v5092 = vadd.f32 0.0, %v5091
        %5093 = vmatprep.mubr.bf16.mxu0 %v4581
        %5094 = vmatmul.mubr.bf16.gmra.mrb[0].mxu0 %v4580
        %v5095 = vpop.f32.mrb[0].mxu0
        %v5096 = vadd.f32 0.0, %v5095
        %v5097 = vpop.f32.mrb[0].mxu0
        %v5098 = vadd.f32 0.0, %v5097
        %v5099 = vpop.f32.mrb[0].mxu0
        %v5100 = vadd.f32 0.0, %v5099
        %v5101 = vpop.f32.mrb[0].mxu0
        %v5102 = vadd.f32 0.0, %v5101
        %5103 = vmatprep.mubr.bf16.mxu0 %v4583
        %5104 = vmatmul.mubr.bf16.gmra.mrb[0].mxu0 %v4582
        %v5105 = vpop.f32.mrb[0].mxu0
        %v5106 = vadd.f32 0.0, %v5105
        %v5107 = vpop.f32.mrb[0].mxu0
        %v5108 = vadd.f32 0.0, %v5107
        %v5109 = vpop.f32.mrb[0].mxu0
        %v5110 = vadd.f32 0.0, %v5109
        %v5111 = vpop.f32.mrb[0].mxu0
        %v5112 = vadd.f32 0.0, %v5111
        %5113 = vmatprep.mubr.bf16.mxu0 %v4585
        %5114 = vmatmul.mubr.bf16.gmra.mrb[0].mxu0 %v4584
        %v5115 = vpop.f32.mrb[0].mxu0
        %v5116 = vadd.f32 0.0, %v5115
        %v5117 = vpop.f32.mrb[0].mxu0
        %v5118 = vadd.f32 0.0, %v5117
        %v5119 = vpop.f32.mrb[0].mxu0
        %v5120 = vadd.f32 0.0, %v5119
        %v5121 = vpop.f32.mrb[0].mxu0
        %v5122 = vadd.f32 0.0, %v5121
        %5123 = vmatprep.mubr.bf16.mxu0 %v4587
        %5124 = vmatmul.mubr.bf16.gmra.mrb[0].mxu0 %v4586
        %v5125 = vpop.f32.mrb[0].mxu0
        %v5126 = vadd.f32 0.0, %v5125
        %v5127 = vpop.f32.mrb[0].mxu0
        %v5128 = vadd.f32 0.0, %v5127
        %v5129 = vpop.f32.mrb[0].mxu0
        %v5130 = vadd.f32 0.0, %v5129
        %v5131 = vpop.f32.mrb[0].mxu0
        %v5132 = vadd.f32 0.0, %v5131
        %5133 = vdwg.mxu0
        %v5134 = vpack.c.bf16 %v4820, %v4816
        %v5135 = vpack.c.bf16 %v4822, %v4818
        %v5136 = vpack.c.bf16 %v4830, %v4826
        %v5137 = vpack.c.bf16 %v4832, %v4828
        %v5138 = vpack.c.bf16 %v4840, %v4836
        %v5139 = vpack.c.bf16 %v4842, %v4838
        %v5140 = vpack.c.bf16 %v4850, %v4846
        %v5141 = vpack.c.bf16 %v4852, %v4848
        %v5142 = vpack.c.bf16 %v4860, %v4856
        %v5143 = vpack.c.bf16 %v4862, %v4858
        %v5144 = vpack.c.bf16 %v4870, %v4866
        %v5145 = vpack.c.bf16 %v4872, %v4868
        %v5146 = vpack.c.bf16 %v4880, %v4876
        %v5147 = vpack.c.bf16 %v4882, %v4878
        %v5148 = vpack.c.bf16 %v4890, %v4886
        %v5149 = vpack.c.bf16 %v4892, %v4888
        %v5150 = vpack.c.bf16 %v4900, %v4896
        %v5151 = vpack.c.bf16 %v4902, %v4898
        %v5152 = vpack.c.bf16 %v4910, %v4906
        %v5153 = vpack.c.bf16 %v4912, %v4908
        %v5154 = vpack.c.bf16 %v4920, %v4916
        %v5155 = vpack.c.bf16 %v4922, %v4918
        %v5156 = vpack.c.bf16 %v4930, %v4926
        %v5157 = vpack.c.bf16 %v4932, %v4928
        %v5158 = vpack.c.bf16 %v4940, %v4936
        %v5159 = vpack.c.bf16 %v4942, %v4938
        %v5160 = vpack.c.bf16 %v4950, %v4946
        %v5161 = vpack.c.bf16 %v4952, %v4948
        %v5162 = vpack.c.bf16 %v4960, %v4956
        %v5163 = vpack.c.bf16 %v4962, %v4958
        %v5164 = vpack.c.bf16 %v4970, %v4966
        %v5165 = vpack.c.bf16 %v4972, %v4968
        %v5166 = vpack.c.bf16 %v4980, %v4976
        %v5167 = vpack.c.bf16 %v4982, %v4978
        %v5168 = vpack.c.bf16 %v4990, %v4986
        %v5169 = vpack.c.bf16 %v4992, %v4988
        %v5170 = vpack.c.bf16 %v5000, %v4996
        %v5171 = vpack.c.bf16 %v5002, %v4998
        %v5172 = vpack.c.bf16 %v5010, %v5006
        %v5173 = vpack.c.bf16 %v5012, %v5008
        %v5174 = vpack.c.bf16 %v5020, %v5016
        %v5175 = vpack.c.bf16 %v5022, %v5018
        %v5176 = vpack.c.bf16 %v5030, %v5026
        %v5177 = vpack.c.bf16 %v5032, %v5028
        %v5178 = vpack.c.bf16 %v5040, %v5036
        %v5179 = vpack.c.bf16 %v5042, %v5038
        %v5180 = vpack.c.bf16 %v5050, %v5046
        %v5181 = vpack.c.bf16 %v5052, %v5048
        %v5182 = vpack.c.bf16 %v5060, %v5056
        %v5183 = vpack.c.bf16 %v5062, %v5058
        %v5184 = vpack.c.bf16 %v5070, %v5066
        %v5185 = vpack.c.bf16 %v5072, %v5068
        %v5186 = vpack.c.bf16 %v5080, %v5076
        %v5187 = vpack.c.bf16 %v5082, %v5078
        %v5188 = vpack.c.bf16 %v5090, %v5086
        %v5189 = vpack.c.bf16 %v5092, %v5088
        %v5190 = vpack.c.bf16 %v5100, %v5096
        %v5191 = vpack.c.bf16 %v5102, %v5098
        %v5192 = vpack.c.bf16 %v5110, %v5106
        %v5193 = vpack.c.bf16 %v5112, %v5108
        %v5194 = vpack.c.bf16 %v5120, %v5116
        %v5195 = vpack.c.bf16 %v5122, %v5118
        %v5196 = vpack.c.bf16 %v5130, %v5126
        %v5197 = vpack.c.bf16 %v5132, %v5128
        %s5198 = scalar_lea.vmem %s3, 8
        %v5199 = vld [vmem:[%s5198] sm:$0x3]
        %v5201 = vlaneseq
        %v5202 = vshrl.u32 %v5201, 7
        %v5203 = vsub.s32 0, %v5202
        %v5204 = vrot.slane %v5199, %v5203
        %v5205 = vlaneseq
        %v5206 = vshrl.u32 %v5205, 7
        %v5207 = vsub.s32 1, %v5206
        %v5208 = vrot.slane %v5199, %v5207
        %v5211 = vpack.c.bf16 %v5204, %v5204
        %v5212 = vpack.c.bf16 %v5208, %v5208
        %v5214 = vpack.i.b16 %v5211, %v5211
        %v5216 = vlaneseq
        %v5217 = vshrl.u32 %v5216, 7
        %v5218 = vsub.s32 0, %v5217
        %v5219 = vrot.slane %v5214, %v5218
        %v5221 = vpack.i.b16 %v5212, %v5212
        %v5223 = vlaneseq
        %v5224 = vshrl.u32 %v5223, 7
        %v5225 = vsub.s32 0, %v5224
        %v5226 = vrot.slane %v5221, %v5225
        %v5227 = vadd.bf16 %v5134, %v5219
        %v5228 = vadd.bf16 %v5135, %v5226
        %v5229 = vadd.bf16 %v5136, %v5219
        %v5230 = vadd.bf16 %v5137, %v5226
        %v5231 = vadd.bf16 %v5138, %v5219
        %v5232 = vadd.bf16 %v5139, %v5226
        %v5233 = vadd.bf16 %v5140, %v5219
        %v5234 = vadd.bf16 %v5141, %v5226
        %v5235 = vadd.bf16 %v5142, %v5219
        %v5236 = vadd.bf16 %v5143, %v5226
        %v5237 = vadd.bf16 %v5144, %v5219
        %v5238 = vadd.bf16 %v5145, %v5226
        %v5239 = vadd.bf16 %v5146, %v5219
        %v5240 = vadd.bf16 %v5147, %v5226
        %v5241 = vadd.bf16 %v5148, %v5219
        %v5242 = vadd.bf16 %v5149, %v5226
        %v5243 = vadd.bf16 %v5150, %v5219
        %v5244 = vadd.bf16 %v5151, %v5226
        %v5245 = vadd.bf16 %v5152, %v5219
        %v5246 = vadd.bf16 %v5153, %v5226
        %v5247 = vadd.bf16 %v5154, %v5219
        %v5248 = vadd.bf16 %v5155, %v5226
        %v5249 = vadd.bf16 %v5156, %v5219
        %v5250 = vadd.bf16 %v5157, %v5226
        %v5251 = vadd.bf16 %v5158, %v5219
        %v5252 = vadd.bf16 %v5159, %v5226
        %v5253 = vadd.bf16 %v5160, %v5219
        %v5254 = vadd.bf16 %v5161, %v5226
        %v5255 = vadd.bf16 %v5162, %v5219
        %v5256 = vadd.bf16 %v5163, %v5226
        %v5257 = vadd.bf16 %v5164, %v5219
        %v5258 = vadd.bf16 %v5165, %v5226
        %v5259 = vadd.bf16 %v5166, %v5219
        %v5260 = vadd.bf16 %v5167, %v5226
        %v5261 = vadd.bf16 %v5168, %v5219
        %v5262 = vadd.bf16 %v5169, %v5226
        %v5263 = vadd.bf16 %v5170, %v5219
        %v5264 = vadd.bf16 %v5171, %v5226
        %v5265 = vadd.bf16 %v5172, %v5219
        %v5266 = vadd.bf16 %v5173, %v5226
        %v5267 = vadd.bf16 %v5174, %v5219
        %v5268 = vadd.bf16 %v5175, %v5226
        %v5269 = vadd.bf16 %v5176, %v5219
        %v5270 = vadd.bf16 %v5177, %v5226
        %v5271 = vadd.bf16 %v5178, %v5219
        %v5272 = vadd.bf16 %v5179, %v5226
        %v5273 = vadd.bf16 %v5180, %v5219
        %v5274 = vadd.bf16 %v5181, %v5226
        %v5275 = vadd.bf16 %v5182, %v5219
        %v5276 = vadd.bf16 %v5183, %v5226
        %v5277 = vadd.bf16 %v5184, %v5219
        %v5278 = vadd.bf16 %v5185, %v5226
        %v5279 = vadd.bf16 %v5186, %v5219
        %v5280 = vadd.bf16 %v5187, %v5226
        %v5281 = vadd.bf16 %v5188, %v5219
        %v5282 = vadd.bf16 %v5189, %v5226
        %v5283 = vadd.bf16 %v5190, %v5219
        %v5284 = vadd.bf16 %v5191, %v5226
        %v5285 = vadd.bf16 %v5192, %v5219
        %v5286 = vadd.bf16 %v5193, %v5226
        %v5287 = vadd.bf16 %v5194, %v5219
        %v5288 = vadd.bf16 %v5195, %v5226
        %v5289 = vadd.bf16 %v5196, %v5219
        %v5290 = vadd.bf16 %v5197, %v5226
        %v5291 = vmax.bf16 %v5227, 0
        %v5292 = vmax.bf16 %v5228, 0
        %v5293 = vmax.bf16 %v5229, 0
        %v5294 = vmax.bf16 %v5230, 0
        %v5295 = vmax.bf16 %v5231, 0
        %v5296 = vmax.bf16 %v5232, 0
        %v5297 = vmax.bf16 %v5233, 0
        %v5298 = vmax.bf16 %v5234, 0
        %v5299 = vmax.bf16 %v5235, 0
        %v5300 = vmax.bf16 %v5236, 0
        %v5301 = vmax.bf16 %v5237, 0
        %v5302 = vmax.bf16 %v5238, 0
        %v5303 = vmax.bf16 %v5239, 0
        %v5304 = vmax.bf16 %v5240, 0
        %v5305 = vmax.bf16 %v5241, 0
        %v5306 = vmax.bf16 %v5242, 0
        %v5307 = vmax.bf16 %v5243, 0
        %v5308 = vmax.bf16 %v5244, 0
        %v5309 = vmax.bf16 %v5245, 0
        %v5310 = vmax.bf16 %v5246, 0
        %v5311 = vmax.bf16 %v5247, 0
        %v5312 = vmax.bf16 %v5248, 0
        %v5313 = vmax.bf16 %v5249, 0
        %v5314 = vmax.bf16 %v5250, 0
        %v5315 = vmax.bf16 %v5251, 0
        %v5316 = vmax.bf16 %v5252, 0
        %v5317 = vmax.bf16 %v5253, 0
        %v5318 = vmax.bf16 %v5254, 0
        %v5319 = vmax.bf16 %v5255, 0
        %v5320 = vmax.bf16 %v5256, 0
        %v5321 = vmax.bf16 %v5257, 0
        %v5322 = vmax.bf16 %v5258, 0
        %v5323 = vmax.bf16 %v5259, 0
        %v5324 = vmax.bf16 %v5260, 0
        %v5325 = vmax.bf16 %v5261, 0
        %v5326 = vmax.bf16 %v5262, 0
        %v5327 = vmax.bf16 %v5263, 0
        %v5328 = vmax.bf16 %v5264, 0
        %v5329 = vmax.bf16 %v5265, 0
        %v5330 = vmax.bf16 %v5266, 0
        %v5331 = vmax.bf16 %v5267, 0
        %v5332 = vmax.bf16 %v5268, 0
        %v5333 = vmax.bf16 %v5269, 0
        %v5334 = vmax.bf16 %v5270, 0
        %v5335 = vmax.bf16 %v5271, 0
        %v5336 = vmax.bf16 %v5272, 0
        %v5337 = vmax.bf16 %v5273, 0
        %v5338 = vmax.bf16 %v5274, 0
        %v5339 = vmax.bf16 %v5275, 0
        %v5340 = vmax.bf16 %v5276, 0
        %v5341 = vmax.bf16 %v5277, 0
        %v5342 = vmax.bf16 %v5278, 0
        %v5343 = vmax.bf16 %v5279, 0
        %v5344 = vmax.bf16 %v5280, 0
        %v5345 = vmax.bf16 %v5281, 0
        %v5346 = vmax.bf16 %v5282, 0
        %v5347 = vmax.bf16 %v5283, 0
        %v5348 = vmax.bf16 %v5284, 0
        %v5349 = vmax.bf16 %v5285, 0
        %v5350 = vmax.bf16 %v5286, 0
        %v5351 = vmax.bf16 %v5287, 0
        %v5352 = vmax.bf16 %v5288, 0
        %v5353 = vmax.bf16 %v5289, 0
        %v5354 = vmax.bf16 %v5290, 0
        %5355 = vst [vmem:[#allocation2] sm:$0xff] %v5291
        %5356 = vst [vmem:[#allocation2 + $0x8] sm:$0xff] %v5292
        %5357 = vst [vmem:[#allocation2 + $0x10] sm:$0xff] %v5293
        %5358 = vst [vmem:[#allocation2 + $0x18] sm:$0xff] %v5294
        %5359 = vst [vmem:[#allocation2 + $0x20] sm:$0xff] %v5295
        %5360 = vst [vmem:[#allocation2 + $0x28] sm:$0xff] %v5296
        %5361 = vst [vmem:[#allocation2 + $0x30] sm:$0xff] %v5297
        %5362 = vst [vmem:[#allocation2 + $0x38] sm:$0xff] %v5298
        %5363 = vst [vmem:[#allocation2 + $0x40] sm:$0xff] %v5299
        %5364 = vst [vmem:[#allocation2 + $0x48] sm:$0xff] %v5300
        %5365 = vst [vmem:[#allocation2 + $0x50] sm:$0xff] %v5301
        %5366 = vst [vmem:[#allocation2 + $0x58] sm:$0xff] %v5302
        %5367 = vst [vmem:[#allocation2 + $0x60] sm:$0xff] %v5303
        %5368 = vst [vmem:[#allocation2 + $0x68] sm:$0xff] %v5304
        %5369 = vst [vmem:[#allocation2 + $0x70] sm:$0xff] %v5305
        %5370 = vst [vmem:[#allocation2 + $0x78] sm:$0xff] %v5306
        %5371 = vst [vmem:[#allocation2 + $0x80] sm:$0xff] %v5307
        %5372 = vst [vmem:[#allocation2 + $0x88] sm:$0xff] %v5308
        %5373 = vst [vmem:[#allocation2 + $0x90] sm:$0xff] %v5309
        %5374 = vst [vmem:[#allocation2 + $0x98] sm:$0xff] %v5310
        %5375 = vst [vmem:[#allocation2 + $0xa0] sm:$0xff] %v5311
        %5376 = vst [vmem:[#allocation2 + $0xa8] sm:$0xff] %v5312
        %5377 = vst [vmem:[#allocation2 + $0xb0] sm:$0xff] %v5313
        %5378 = vst [vmem:[#allocation2 + $0xb8] sm:$0xff] %v5314
        %5379 = vst [vmem:[#allocation2 + $0xc0] sm:$0xff] %v5315
        %5380 = vst [vmem:[#allocation2 + $0xc8] sm:$0xff] %v5316
        %5381 = vst [vmem:[#allocation2 + $0xd0] sm:$0xff] %v5317
        %5382 = vst [vmem:[#allocation2 + $0xd8] sm:$0xff] %v5318
        %5383 = vst [vmem:[#allocation2 + $0xe0] sm:$0xff] %v5319
        %5384 = vst [vmem:[#allocation2 + $0xe8] sm:$0xff] %v5320
        %5385 = vst [vmem:[#allocation2 + $0xf0] sm:$0xff] %v5321
        %5386 = vst [vmem:[#allocation2 + $0xf8] sm:$0xff] %v5322
        %5387 = vst [vmem:[#allocation2 + $0x100] sm:$0xff] %v5323
        %5388 = vst [vmem:[#allocation2 + $0x108] sm:$0xff] %v5324
        %5389 = vst [vmem:[#allocation2 + $0x110] sm:$0xff] %v5325
        %5390 = vst [vmem:[#allocation2 + $0x118] sm:$0xff] %v5326
        %5391 = vst [vmem:[#allocation2 + $0x120] sm:$0xff] %v5327
        %5392 = vst [vmem:[#allocation2 + $0x128] sm:$0xff] %v5328
        %5393 = vst [vmem:[#allocation2 + $0x130] sm:$0xff] %v5329
        %5394 = vst [vmem:[#allocation2 + $0x138] sm:$0xff] %v5330
        %5395 = vst [vmem:[#allocation2 + $0x140] sm:$0xff] %v5331
        %5396 = vst [vmem:[#allocation2 + $0x148] sm:$0xff] %v5332
        %5397 = vst [vmem:[#allocation2 + $0x150] sm:$0xff] %v5333
        %5398 = vst [vmem:[#allocation2 + $0x158] sm:$0xff] %v5334
        %5399 = vst [vmem:[#allocation2 + $0x160] sm:$0xff] %v5335
        %5400 = vst [vmem:[#allocation2 + $0x168] sm:$0xff] %v5336
        %5401 = vst [vmem:[#allocation2 + $0x170] sm:$0xff] %v5337
        %5402 = vst [vmem:[#allocation2 + $0x178] sm:$0xff] %v5338
        %5403 = vst [vmem:[#allocation2 + $0x180] sm:$0xff] %v5339
        %5404 = vst [vmem:[#allocation2 + $0x188] sm:$0xff] %v5340
        %5405 = vst [vmem:[#allocation2 + $0x190] sm:$0xff] %v5341
        %5406 = vst [vmem:[#allocation2 + $0x198] sm:$0xff] %v5342
        %5407 = vst [vmem:[#allocation2 + $0x1a0] sm:$0xff] %v5343
        %5408 = vst [vmem:[#allocation2 + $0x1a8] sm:$0xff] %v5344
        %5409 = vst [vmem:[#allocation2 + $0x1b0] sm:$0xff] %v5345
        %5410 = vst [vmem:[#allocation2 + $0x1b8] sm:$0xff] %v5346
        %5411 = vst [vmem:[#allocation2 + $0x1c0] sm:$0xff] %v5347
        %5412 = vst [vmem:[#allocation2 + $0x1c8] sm:$0xff] %v5348
        %5413 = vst [vmem:[#allocation2 + $0x1d0] sm:$0xff] %v5349
        %5414 = vst [vmem:[#allocation2 + $0x1d8] sm:$0xff] %v5350
        %5415 = vst [vmem:[#allocation2 + $0x1e0] sm:$0xff] %v5351
        %5416 = vst [vmem:[#allocation2 + $0x1e8] sm:$0xff] %v5352
        %5417 = vst [vmem:[#allocation2 + $0x1f0] sm:$0xff] %v5353
        %5418 = vst [vmem:[#allocation2 + $0x1f8] sm:$0xff] %v5354
        %v5419 = vld [vmem:[#allocation2] sm:$0xff]
        %v5420 = vld [vmem:[#allocation2 + $0x8] sm:$0xff]
        %v5421 = vld [vmem:[#allocation2 + $0x10] sm:$0xff]
        %v5422 = vld [vmem:[#allocation2 + $0x18] sm:$0xff]
        %v5423 = vld [vmem:[#allocation2 + $0x20] sm:$0xff]
        %v5424 = vld [vmem:[#allocation2 + $0x28] sm:$0xff]
        %v5425 = vld [vmem:[#allocation2 + $0x30] sm:$0xff]
        %v5426 = vld [vmem:[#allocation2 + $0x38] sm:$0xff]
        %v5427 = vld [vmem:[#allocation2 + $0x40] sm:$0xff]
        %v5428 = vld [vmem:[#allocation2 + $0x48] sm:$0xff]
        %v5429 = vld [vmem:[#allocation2 + $0x50] sm:$0xff]
        %v5430 = vld [vmem:[#allocation2 + $0x58] sm:$0xff]
        %v5431 = vld [vmem:[#allocation2 + $0x60] sm:$0xff]
        %v5432 = vld [vmem:[#allocation2 + $0x68] sm:$0xff]
        %v5433 = vld [vmem:[#allocation2 + $0x70] sm:$0xff]
        %v5434 = vld [vmem:[#allocation2 + $0x78] sm:$0xff]
        %v5435 = vld [vmem:[#allocation2 + $0x80] sm:$0xff]
        %v5436 = vld [vmem:[#allocation2 + $0x88] sm:$0xff]
        %v5437 = vld [vmem:[#allocation2 + $0x90] sm:$0xff]
        %v5438 = vld [vmem:[#allocation2 + $0x98] sm:$0xff]
        %v5439 = vld [vmem:[#allocation2 + $0xa0] sm:$0xff]
        %v5440 = vld [vmem:[#allocation2 + $0xa8] sm:$0xff]
        %v5441 = vld [vmem:[#allocation2 + $0xb0] sm:$0xff]
        %v5442 = vld [vmem:[#allocation2 + $0xb8] sm:$0xff]
        %v5443 = vld [vmem:[#allocation2 + $0xc0] sm:$0xff]
        %v5444 = vld [vmem:[#allocation2 + $0xc8] sm:$0xff]
        %v5445 = vld [vmem:[#allocation2 + $0xd0] sm:$0xff]
        %v5446 = vld [vmem:[#allocation2 + $0xd8] sm:$0xff]
        %v5447 = vld [vmem:[#allocation2 + $0xe0] sm:$0xff]
        %v5448 = vld [vmem:[#allocation2 + $0xe8] sm:$0xff]
        %v5449 = vld [vmem:[#allocation2 + $0xf0] sm:$0xff]
        %v5450 = vld [vmem:[#allocation2 + $0xf8] sm:$0xff]
        %v5451 = vld [vmem:[#allocation2 + $0x100] sm:$0xff]
        %v5452 = vld [vmem:[#allocation2 + $0x108] sm:$0xff]
        %v5453 = vld [vmem:[#allocation2 + $0x110] sm:$0xff]
        %v5454 = vld [vmem:[#allocation2 + $0x118] sm:$0xff]
        %v5455 = vld [vmem:[#allocation2 + $0x120] sm:$0xff]
        %v5456 = vld [vmem:[#allocation2 + $0x128] sm:$0xff]
        %v5457 = vld [vmem:[#allocation2 + $0x130] sm:$0xff]
        %v5458 = vld [vmem:[#allocation2 + $0x138] sm:$0xff]
        %v5459 = vld [vmem:[#allocation2 + $0x140] sm:$0xff]
        %v5460 = vld [vmem:[#allocation2 + $0x148] sm:$0xff]
        %v5461 = vld [vmem:[#allocation2 + $0x150] sm:$0xff]
        %v5462 = vld [vmem:[#allocation2 + $0x158] sm:$0xff]
        %v5463 = vld [vmem:[#allocation2 + $0x160] sm:$0xff]
        %v5464 = vld [vmem:[#allocation2 + $0x168] sm:$0xff]
        %v5465 = vld [vmem:[#allocation2 + $0x170] sm:$0xff]
        %v5466 = vld [vmem:[#allocation2 + $0x178] sm:$0xff]
        %v5467 = vld [vmem:[#allocation2 + $0x180] sm:$0xff]
        %v5468 = vld [vmem:[#allocation2 + $0x188] sm:$0xff]
        %v5469 = vld [vmem:[#allocation2 + $0x190] sm:$0xff]
        %v5470 = vld [vmem:[#allocation2 + $0x198] sm:$0xff]
        %v5471 = vld [vmem:[#allocation2 + $0x1a0] sm:$0xff]
        %v5472 = vld [vmem:[#allocation2 + $0x1a8] sm:$0xff]
        %v5473 = vld [vmem:[#allocation2 + $0x1b0] sm:$0xff]
        %v5474 = vld [vmem:[#allocation2 + $0x1b8] sm:$0xff]
        %v5475 = vld [vmem:[#allocation2 + $0x1c0] sm:$0xff]
        %v5476 = vld [vmem:[#allocation2 + $0x1c8] sm:$0xff]
        %v5477 = vld [vmem:[#allocation2 + $0x1d0] sm:$0xff]
        %v5478 = vld [vmem:[#allocation2 + $0x1d8] sm:$0xff]
        %v5479 = vld [vmem:[#allocation2 + $0x1e0] sm:$0xff]
        %v5480 = vld [vmem:[#allocation2 + $0x1e8] sm:$0xff]
        %v5481 = vld [vmem:[#allocation2 + $0x1f0] sm:$0xff]
        %v5482 = vld [vmem:[#allocation2 + $0x1f8] sm:$0xff]
        %s5483 = scalar_lea.vmem [#allocation4], 1024
        %v5484 = vld [vmem:[%s5483] sm:$0xff]
        %v5485 = vld [vmem:[%s5483 + $0x8] sm:$0xff]
        %v5486 = vld [vmem:[%s5483 + $0x10] sm:$0xff]
        %v5487 = vld [vmem:[%s5483 + $0x18] sm:$0xff]
        %v5488 = vld [vmem:[%s5483 + $0x20] sm:$0xff]
        %v5489 = vld [vmem:[%s5483 + $0x28] sm:$0xff]
        %v5490 = vld [vmem:[%s5483 + $0x30] sm:$0xff]
        %v5491 = vld [vmem:[%s5483 + $0x38] sm:$0xff]
        %v5492 = vld [vmem:[%s5483 + $0x40] sm:$0xff]
        %v5493 = vld [vmem:[%s5483 + $0x48] sm:$0xff]
        %v5494 = vld [vmem:[%s5483 + $0x50] sm:$0xff]
        %v5495 = vld [vmem:[%s5483 + $0x58] sm:$0xff]
        %v5496 = vld [vmem:[%s5483 + $0x60] sm:$0xff]
        %v5497 = vld [vmem:[%s5483 + $0x68] sm:$0xff]
        %v5498 = vld [vmem:[%s5483 + $0x70] sm:$0xff]
        %v5499 = vld [vmem:[%s5483 + $0x78] sm:$0xff]
        %v5500 = vld [vmem:[%s5483 + $0x80] sm:$0xff]
        %v5501 = vld [vmem:[%s5483 + $0x88] sm:$0xff]
        %v5502 = vld [vmem:[%s5483 + $0x90] sm:$0xff]
        %v5503 = vld [vmem:[%s5483 + $0x98] sm:$0xff]
        %v5504 = vld [vmem:[%s5483 + $0xa0] sm:$0xff]
        %v5505 = vld [vmem:[%s5483 + $0xa8] sm:$0xff]
        %v5506 = vld [vmem:[%s5483 + $0xb0] sm:$0xff]
        %v5507 = vld [vmem:[%s5483 + $0xb8] sm:$0xff]
        %v5508 = vld [vmem:[%s5483 + $0xc0] sm:$0xff]
        %v5509 = vld [vmem:[%s5483 + $0xc8] sm:$0xff]
        %v5510 = vld [vmem:[%s5483 + $0xd0] sm:$0xff]
        %v5511 = vld [vmem:[%s5483 + $0xd8] sm:$0xff]
        %v5512 = vld [vmem:[%s5483 + $0xe0] sm:$0xff]
        %v5513 = vld [vmem:[%s5483 + $0xe8] sm:$0xff]
        %v5514 = vld [vmem:[%s5483 + $0xf0] sm:$0xff]
        %v5515 = vld [vmem:[%s5483 + $0xf8] sm:$0xff]
        %v5516 = vld [vmem:[#allocation3] sm:$0xff]
        %v5517 = vld [vmem:[#allocation3 + $0x8] sm:$0xff]
        %v5518 = vld [vmem:[#allocation3 + $0x10] sm:$0xff]
        %v5519 = vld [vmem:[#allocation3 + $0x18] sm:$0xff]
        %v5520 = vld [vmem:[#allocation3 + $0x20] sm:$0xff]
        %v5521 = vld [vmem:[#allocation3 + $0x28] sm:$0xff]
        %v5522 = vld [vmem:[#allocation3 + $0x30] sm:$0xff]
        %v5523 = vld [vmem:[#allocation3 + $0x38] sm:$0xff]
        %v5524 = vld [vmem:[#allocation3 + $0x40] sm:$0xff]
        %v5525 = vld [vmem:[#allocation3 + $0x48] sm:$0xff]
        %v5526 = vld [vmem:[#allocation3 + $0x50] sm:$0xff]
        %v5527 = vld [vmem:[#allocation3 + $0x58] sm:$0xff]
        %v5528 = vld [vmem:[#allocation3 + $0x60] sm:$0xff]
        %v5529 = vld [vmem:[#allocation3 + $0x68] sm:$0xff]
        %v5530 = vld [vmem:[#allocation3 + $0x70] sm:$0xff]
        %v5531 = vld [vmem:[#allocation3 + $0x78] sm:$0xff]
        %v5532 = vld [vmem:[#allocation3 + $0x80] sm:$0xff]
        %v5533 = vld [vmem:[#allocation3 + $0x88] sm:$0xff]
        %v5534 = vld [vmem:[#allocation3 + $0x90] sm:$0xff]
        %v5535 = vld [vmem:[#allocation3 + $0x98] sm:$0xff]
        %v5536 = vld [vmem:[#allocation3 + $0xa0] sm:$0xff]
        %v5537 = vld [vmem:[#allocation3 + $0xa8] sm:$0xff]
        %v5538 = vld [vmem:[#allocation3 + $0xb0] sm:$0xff]
        %v5539 = vld [vmem:[#allocation3 + $0xb8] sm:$0xff]
        %v5540 = vld [vmem:[#allocation3 + $0xc0] sm:$0xff]
        %v5541 = vld [vmem:[#allocation3 + $0xc8] sm:$0xff]
        %v5542 = vld [vmem:[#allocation3 + $0xd0] sm:$0xff]
        %v5543 = vld [vmem:[#allocation3 + $0xd8] sm:$0xff]
        %v5544 = vld [vmem:[#allocation3 + $0xe0] sm:$0xff]
        %v5545 = vld [vmem:[#allocation3 + $0xe8] sm:$0xff]
        %v5546 = vld [vmem:[#allocation3 + $0xf0] sm:$0xff]
        %v5547 = vld [vmem:[#allocation3 + $0xf8] sm:$0xff]
        %v5548 = vld [vmem:[#allocation3 + $0x100] sm:$0xff]
        %v5549 = vld [vmem:[#allocation3 + $0x108] sm:$0xff]
        %v5550 = vld [vmem:[#allocation3 + $0x110] sm:$0xff]
        %v5551 = vld [vmem:[#allocation3 + $0x118] sm:$0xff]
        %v5552 = vld [vmem:[#allocation3 + $0x120] sm:$0xff]
        %v5553 = vld [vmem:[#allocation3 + $0x128] sm:$0xff]
        %v5554 = vld [vmem:[#allocation3 + $0x130] sm:$0xff]
        %v5555 = vld [vmem:[#allocation3 + $0x138] sm:$0xff]
        %v5556 = vld [vmem:[#allocation3 + $0x140] sm:$0xff]
        %v5557 = vld [vmem:[#allocation3 + $0x148] sm:$0xff]
        %v5558 = vld [vmem:[#allocation3 + $0x150] sm:$0xff]
        %v5559 = vld [vmem:[#allocation3 + $0x158] sm:$0xff]
        %v5560 = vld [vmem:[#allocation3 + $0x160] sm:$0xff]
        %v5561 = vld [vmem:[#allocation3 + $0x168] sm:$0xff]
        %v5562 = vld [vmem:[#allocation3 + $0x170] sm:$0xff]
        %v5563 = vld [vmem:[#allocation3 + $0x178] sm:$0xff]
        %v5564 = vld [vmem:[#allocation3 + $0x180] sm:$0xff]
        %v5565 = vld [vmem:[#allocation3 + $0x188] sm:$0xff]
        %v5566 = vld [vmem:[#allocation3 + $0x190] sm:$0xff]
        %v5567 = vld [vmem:[#allocation3 + $0x198] sm:$0xff]
        %v5568 = vld [vmem:[#allocation3 + $0x1a0] sm:$0xff]
        %v5569 = vld [vmem:[#allocation3 + $0x1a8] sm:$0xff]
        %v5570 = vld [vmem:[#allocation3 + $0x1b0] sm:$0xff]
        %v5571 = vld [vmem:[#allocation3 + $0x1b8] sm:$0xff]
        %v5572 = vld [vmem:[#allocation3 + $0x1c0] sm:$0xff]
        %v5573 = vld [vmem:[#allocation3 + $0x1c8] sm:$0xff]
        %v5574 = vld [vmem:[#allocation3 + $0x1d0] sm:$0xff]
        %v5575 = vld [vmem:[#allocation3 + $0x1d8] sm:$0xff]
        %v5576 = vld [vmem:[#allocation3 + $0x1e0] sm:$0xff]
        %v5577 = vld [vmem:[#allocation3 + $0x1e8] sm:$0xff]
        %v5578 = vld [vmem:[#allocation3 + $0x1f0] sm:$0xff]
        %v5579 = vld [vmem:[#allocation3 + $0x1f8] sm:$0xff]
        %v5580 = vld [vmem:[#allocation3 + $0x200] sm:$0xff]
        %v5581 = vld [vmem:[#allocation3 + $0x208] sm:$0xff]
        %v5582 = vld [vmem:[#allocation3 + $0x210] sm:$0xff]
        %v5583 = vld [vmem:[#allocation3 + $0x218] sm:$0xff]
        %v5584 = vld [vmem:[#allocation3 + $0x220] sm:$0xff]
        %v5585 = vld [vmem:[#allocation3 + $0x228] sm:$0xff]
        %v5586 = vld [vmem:[#allocation3 + $0x230] sm:$0xff]
        %v5587 = vld [vmem:[#allocation3 + $0x238] sm:$0xff]
        %v5588 = vld [vmem:[#allocation3 + $0x240] sm:$0xff]
        %v5589 = vld [vmem:[#allocation3 + $0x248] sm:$0xff]
        %v5590 = vld [vmem:[#allocation3 + $0x250] sm:$0xff]
        %v5591 = vld [vmem:[#allocation3 + $0x258] sm:$0xff]
        %v5592 = vld [vmem:[#allocation3 + $0x260] sm:$0xff]
        %v5593 = vld [vmem:[#allocation3 + $0x268] sm:$0xff]
        %v5594 = vld [vmem:[#allocation3 + $0x270] sm:$0xff]
        %v5595 = vld [vmem:[#allocation3 + $0x278] sm:$0xff]
        %v5596 = vld [vmem:[#allocation3 + $0x280] sm:$0xff]
        %v5597 = vld [vmem:[#allocation3 + $0x288] sm:$0xff]
        %v5598 = vld [vmem:[#allocation3 + $0x290] sm:$0xff]
        %v5599 = vld [vmem:[#allocation3 + $0x298] sm:$0xff]
        %v5600 = vld [vmem:[#allocation3 + $0x2a0] sm:$0xff]
        %v5601 = vld [vmem:[#allocation3 + $0x2a8] sm:$0xff]
        %v5602 = vld [vmem:[#allocation3 + $0x2b0] sm:$0xff]
        %v5603 = vld [vmem:[#allocation3 + $0x2b8] sm:$0xff]
        %v5604 = vld [vmem:[#allocation3 + $0x2c0] sm:$0xff]
        %v5605 = vld [vmem:[#allocation3 + $0x2c8] sm:$0xff]
        %v5606 = vld [vmem:[#allocation3 + $0x2d0] sm:$0xff]
        %v5607 = vld [vmem:[#allocation3 + $0x2d8] sm:$0xff]
        %v5608 = vld [vmem:[#allocation3 + $0x2e0] sm:$0xff]
        %v5609 = vld [vmem:[#allocation3 + $0x2e8] sm:$0xff]
        %v5610 = vld [vmem:[#allocation3 + $0x2f0] sm:$0xff]
        %v5611 = vld [vmem:[#allocation3 + $0x2f8] sm:$0xff]
        %v5612 = vld [vmem:[#allocation3 + $0x300] sm:$0xff]
        %v5613 = vld [vmem:[#allocation3 + $0x308] sm:$0xff]
        %v5614 = vld [vmem:[#allocation3 + $0x310] sm:$0xff]
        %v5615 = vld [vmem:[#allocation3 + $0x318] sm:$0xff]
        %v5616 = vld [vmem:[#allocation3 + $0x320] sm:$0xff]
        %v5617 = vld [vmem:[#allocation3 + $0x328] sm:$0xff]
        %v5618 = vld [vmem:[#allocation3 + $0x330] sm:$0xff]
        %v5619 = vld [vmem:[#allocation3 + $0x338] sm:$0xff]
        %v5620 = vld [vmem:[#allocation3 + $0x340] sm:$0xff]
        %v5621 = vld [vmem:[#allocation3 + $0x348] sm:$0xff]
        %v5622 = vld [vmem:[#allocation3 + $0x350] sm:$0xff]
        %v5623 = vld [vmem:[#allocation3 + $0x358] sm:$0xff]
        %v5624 = vld [vmem:[#allocation3 + $0x360] sm:$0xff]
        %v5625 = vld [vmem:[#allocation3 + $0x368] sm:$0xff]
        %v5626 = vld [vmem:[#allocation3 + $0x370] sm:$0xff]
        %v5627 = vld [vmem:[#allocation3 + $0x378] sm:$0xff]
        %v5628 = vld [vmem:[#allocation3 + $0x380] sm:$0xff]
        %v5629 = vld [vmem:[#allocation3 + $0x388] sm:$0xff]
        %v5630 = vld [vmem:[#allocation3 + $0x390] sm:$0xff]
        %v5631 = vld [vmem:[#allocation3 + $0x398] sm:$0xff]
        %v5632 = vld [vmem:[#allocation3 + $0x3a0] sm:$0xff]
        %v5633 = vld [vmem:[#allocation3 + $0x3a8] sm:$0xff]
        %v5634 = vld [vmem:[#allocation3 + $0x3b0] sm:$0xff]
        %v5635 = vld [vmem:[#allocation3 + $0x3b8] sm:$0xff]
        %v5636 = vld [vmem:[#allocation3 + $0x3c0] sm:$0xff]
        %v5637 = vld [vmem:[#allocation3 + $0x3c8] sm:$0xff]
        %v5638 = vld [vmem:[#allocation3 + $0x3d0] sm:$0xff]
        %v5639 = vld [vmem:[#allocation3 + $0x3d8] sm:$0xff]
        %v5640 = vld [vmem:[#allocation3 + $0x3e0] sm:$0xff]
        %v5641 = vld [vmem:[#allocation3 + $0x3e8] sm:$0xff]
        %v5642 = vld [vmem:[#allocation3 + $0x3f0] sm:$0xff]
        %v5643 = vld [vmem:[#allocation3 + $0x3f8] sm:$0xff]
        %v5676 = vunpack.c.l.b16 %v5484
        %v5677 = vunpack.c.h.b16 %v5484
        %v5678 = vunpack.c.l.b16 %v5485
        %v5679 = vunpack.c.h.b16 %v5485
        %v5680 = vunpack.c.l.b16 %v5486
        %v5681 = vunpack.c.h.b16 %v5486
        %v5682 = vunpack.c.l.b16 %v5487
        %v5683 = vunpack.c.h.b16 %v5487
        %v5684 = vunpack.c.l.b16 %v5488
        %v5685 = vunpack.c.h.b16 %v5488
        %v5686 = vunpack.c.l.b16 %v5489
        %v5687 = vunpack.c.h.b16 %v5489
        %v5688 = vunpack.c.l.b16 %v5490
        %v5689 = vunpack.c.h.b16 %v5490
        %v5690 = vunpack.c.l.b16 %v5491
        %v5691 = vunpack.c.h.b16 %v5491
        %v5692 = vunpack.c.l.b16 %v5492
        %v5693 = vunpack.c.h.b16 %v5492
        %v5694 = vunpack.c.l.b16 %v5493
        %v5695 = vunpack.c.h.b16 %v5493
        %v5696 = vunpack.c.l.b16 %v5494
        %v5697 = vunpack.c.h.b16 %v5494
        %v5698 = vunpack.c.l.b16 %v5495
        %v5699 = vunpack.c.h.b16 %v5495
        %v5700 = vunpack.c.l.b16 %v5496
        %v5701 = vunpack.c.h.b16 %v5496
        %v5702 = vunpack.c.l.b16 %v5497
        %v5703 = vunpack.c.h.b16 %v5497
        %v5704 = vunpack.c.l.b16 %v5498
        %v5705 = vunpack.c.h.b16 %v5498
        %v5706 = vunpack.c.l.b16 %v5499
        %v5707 = vunpack.c.h.b16 %v5499
        %v5708 = vunpack.c.l.b16 %v5500
        %v5709 = vunpack.c.h.b16 %v5500
        %v5710 = vunpack.c.l.b16 %v5501
        %v5711 = vunpack.c.h.b16 %v5501
        %v5712 = vunpack.c.l.b16 %v5502
        %v5713 = vunpack.c.h.b16 %v5502
        %v5714 = vunpack.c.l.b16 %v5503
        %v5715 = vunpack.c.h.b16 %v5503
        %v5716 = vunpack.c.l.b16 %v5504
        %v5717 = vunpack.c.h.b16 %v5504
        %v5718 = vunpack.c.l.b16 %v5505
        %v5719 = vunpack.c.h.b16 %v5505
        %v5720 = vunpack.c.l.b16 %v5506
        %v5721 = vunpack.c.h.b16 %v5506
        %v5722 = vunpack.c.l.b16 %v5507
        %v5723 = vunpack.c.h.b16 %v5507
        %v5724 = vunpack.c.l.b16 %v5508
        %v5725 = vunpack.c.h.b16 %v5508
        %v5726 = vunpack.c.l.b16 %v5509
        %v5727 = vunpack.c.h.b16 %v5509
        %v5728 = vunpack.c.l.b16 %v5510
        %v5729 = vunpack.c.h.b16 %v5510
        %v5730 = vunpack.c.l.b16 %v5511
        %v5731 = vunpack.c.h.b16 %v5511
        %v5732 = vunpack.c.l.b16 %v5512
        %v5733 = vunpack.c.h.b16 %v5512
        %v5734 = vunpack.c.l.b16 %v5513
        %v5735 = vunpack.c.h.b16 %v5513
        %v5736 = vunpack.c.l.b16 %v5514
        %v5737 = vunpack.c.h.b16 %v5514
        %v5738 = vunpack.c.l.b16 %v5515
        %v5739 = vunpack.c.h.b16 %v5515
        %v5740 = vpack.c.b16 %v5678, %v5676
        %v5741 = vpack.c.b16 %v5679, %v5677
        %v5742 = vpack.c.b16 %v5682, %v5680
        %v5743 = vpack.c.b16 %v5683, %v5681
        %v5744 = vpack.c.b16 %v5686, %v5684
        %v5745 = vpack.c.b16 %v5687, %v5685
        %v5746 = vpack.c.b16 %v5690, %v5688
        %v5747 = vpack.c.b16 %v5691, %v5689
        %v5748 = vpack.c.b16 %v5694, %v5692
        %v5749 = vpack.c.b16 %v5695, %v5693
        %v5750 = vpack.c.b16 %v5698, %v5696
        %v5751 = vpack.c.b16 %v5699, %v5697
        %v5752 = vpack.c.b16 %v5702, %v5700
        %v5753 = vpack.c.b16 %v5703, %v5701
        %v5754 = vpack.c.b16 %v5706, %v5704
        %v5755 = vpack.c.b16 %v5707, %v5705
        %v5756 = vpack.c.b16 %v5710, %v5708
        %v5757 = vpack.c.b16 %v5711, %v5709
        %v5758 = vpack.c.b16 %v5714, %v5712
        %v5759 = vpack.c.b16 %v5715, %v5713
        %v5760 = vpack.c.b16 %v5718, %v5716
        %v5761 = vpack.c.b16 %v5719, %v5717
        %v5762 = vpack.c.b16 %v5722, %v5720
        %v5763 = vpack.c.b16 %v5723, %v5721
        %v5764 = vpack.c.b16 %v5726, %v5724
        %v5765 = vpack.c.b16 %v5727, %v5725
        %v5766 = vpack.c.b16 %v5730, %v5728
        %v5767 = vpack.c.b16 %v5731, %v5729
        %v5768 = vpack.c.b16 %v5734, %v5732
        %v5769 = vpack.c.b16 %v5735, %v5733
        %v5770 = vpack.c.b16 %v5738, %v5736
        %v5771 = vpack.c.b16 %v5739, %v5737
        %5804 = vmatprep.subr.bf16.mxu0 %v5741
        %5805 = vmatpush1.bf16.msra.mxu0 %v5740
        %5806 = vmatprep.subr.bf16.mxu0 %v5743
        %5807 = vmatpush1.bf16.msra.mxu0 %v5742
        %5808 = vmatprep.subr.bf16.mxu0 %v5745
        %5809 = vmatpush1.bf16.msra.mxu0 %v5744
        %5810 = vmatprep.subr.bf16.mxu0 %v5747
        %5811 = vmatpush1.bf16.msra.mxu0 %v5746
        %5812 = vmatprep.subr.bf16.mxu0 %v5749
        %5813 = vmatpush1.bf16.msra.mxu0 %v5748
        %5814 = vmatprep.subr.bf16.mxu0 %v5751
        %5815 = vmatpush1.bf16.msra.mxu0 %v5750
        %5816 = vmatprep.subr.bf16.mxu0 %v5753
        %5817 = vmatpush1.bf16.msra.mxu0 %v5752
        %5818 = vmatprep.subr.bf16.mxu0 %v5755
        %5819 = vmatpush1.bf16.msra.mxu0 %v5754
        %5820 = vmatprep.subr.bf16.mxu0 %v5757
        %5821 = vmatpush1.bf16.msra.mxu0 %v5756
        %5822 = vmatprep.subr.bf16.mxu0 %v5759
        %5823 = vmatpush1.bf16.msra.mxu0 %v5758
        %5824 = vmatprep.subr.bf16.mxu0 %v5761
        %5825 = vmatpush1.bf16.msra.mxu0 %v5760
        %5826 = vmatprep.subr.bf16.mxu0 %v5763
        %5827 = vmatpush1.bf16.msra.mxu0 %v5762
        %5828 = vmatprep.subr.bf16.mxu0 %v5765
        %5829 = vmatpush1.bf16.msra.mxu0 %v5764
        %5830 = vmatprep.subr.bf16.mxu0 %v5767
        %5831 = vmatpush1.bf16.msra.mxu0 %v5766
        %5832 = vmatprep.subr.bf16.mxu0 %v5769
        %5833 = vmatpush1.bf16.msra.mxu0 %v5768
        %5834 = vmatprep.subr.bf16.mxu0 %v5771
        %5835 = vmatpush1.bf16.msra.mxu0 %v5770
        %5836 = vmatprep.mubr.bf16.mxu0 %v5420
        %5837 = vmatmul.mubr.bf16.gmra.mrb[0].mxu0 %v5419
        %v5838 = vpop.f32.mrb[0].mxu0
        %v5839 = vadd.f32 %v5516, %v5838
        %v5840 = vpop.f32.mrb[0].mxu0
        %v5841 = vadd.f32 %v5517, %v5840
        %v5842 = vpop.f32.mrb[0].mxu0
        %v5843 = vadd.f32 %v5518, %v5842
        %v5844 = vpop.f32.mrb[0].mxu0
        %v5845 = vadd.f32 %v5519, %v5844
        %5846 = vmatprep.mubr.bf16.mxu0 %v5422
        %5847 = vmatmul.mubr.bf16.gmra.mrb[0].mxu0 %v5421
        %v5848 = vpop.f32.mrb[0].mxu0
        %v5849 = vadd.f32 %v5520, %v5848
        %v5850 = vpop.f32.mrb[0].mxu0
        %v5851 = vadd.f32 %v5521, %v5850
        %v5852 = vpop.f32.mrb[0].mxu0
        %v5853 = vadd.f32 %v5522, %v5852
        %v5854 = vpop.f32.mrb[0].mxu0
        %v5855 = vadd.f32 %v5523, %v5854
        %5856 = vmatprep.mubr.bf16.mxu0 %v5424
        %5857 = vmatmul.mubr.bf16.gmra.mrb[0].mxu0 %v5423
        %v5858 = vpop.f32.mrb[0].mxu0
        %v5859 = vadd.f32 %v5524, %v5858
        %v5860 = vpop.f32.mrb[0].mxu0
        %v5861 = vadd.f32 %v5525, %v5860
        %v5862 = vpop.f32.mrb[0].mxu0
        %v5863 = vadd.f32 %v5526, %v5862
        %v5864 = vpop.f32.mrb[0].mxu0
        %v5865 = vadd.f32 %v5527, %v5864
        %5866 = vmatprep.mubr.bf16.mxu0 %v5426
        %5867 = vmatmul.mubr.bf16.gmra.mrb[0].mxu0 %v5425
        %v5868 = vpop.f32.mrb[0].mxu0
        %v5869 = vadd.f32 %v5528, %v5868
        %v5870 = vpop.f32.mrb[0].mxu0
        %v5871 = vadd.f32 %v5529, %v5870
        %v5872 = vpop.f32.mrb[0].mxu0
        %v5873 = vadd.f32 %v5530, %v5872
        %v5874 = vpop.f32.mrb[0].mxu0
        %v5875 = vadd.f32 %v5531, %v5874
        %5876 = vmatprep.mubr.bf16.mxu0 %v5428
        %5877 = vmatmul.mubr.bf16.gmra.mrb[0].mxu0 %v5427
        %v5878 = vpop.f32.mrb[0].mxu0
        %v5879 = vadd.f32 %v5532, %v5878
        %v5880 = vpop.f32.mrb[0].mxu0
        %v5881 = vadd.f32 %v5533, %v5880
        %v5882 = vpop.f32.mrb[0].mxu0
        %v5883 = vadd.f32 %v5534, %v5882
        %v5884 = vpop.f32.mrb[0].mxu0
        %v5885 = vadd.f32 %v5535, %v5884
        %5886 = vmatprep.mubr.bf16.mxu0 %v5430
        %5887 = vmatmul.mubr.bf16.gmra.mrb[0].mxu0 %v5429
        %v5888 = vpop.f32.mrb[0].mxu0
        %v5889 = vadd.f32 %v5536, %v5888
        %v5890 = vpop.f32.mrb[0].mxu0
        %v5891 = vadd.f32 %v5537, %v5890
        %v5892 = vpop.f32.mrb[0].mxu0
        %v5893 = vadd.f32 %v5538, %v5892
        %v5894 = vpop.f32.mrb[0].mxu0
        %v5895 = vadd.f32 %v5539, %v5894
        %5896 = vmatprep.mubr.bf16.mxu0 %v5432
        %5897 = vmatmul.mubr.bf16.gmra.mrb[0].mxu0 %v5431
        %v5898 = vpop.f32.mrb[0].mxu0
        %v5899 = vadd.f32 %v5540, %v5898
        %v5900 = vpop.f32.mrb[0].mxu0
        %v5901 = vadd.f32 %v5541, %v5900
        %v5902 = vpop.f32.mrb[0].mxu0
        %v5903 = vadd.f32 %v5542, %v5902
        %v5904 = vpop.f32.mrb[0].mxu0
        %v5905 = vadd.f32 %v5543, %v5904
        %5906 = vmatprep.mubr.bf16.mxu0 %v5434
        %5907 = vmatmul.mubr.bf16.gmra.mrb[0].mxu0 %v5433
        %v5908 = vpop.f32.mrb[0].mxu0
        %v5909 = vadd.f32 %v5544, %v5908
        %v5910 = vpop.f32.mrb[0].mxu0
        %v5911 = vadd.f32 %v5545, %v5910
        %v5912 = vpop.f32.mrb[0].mxu0
        %v5913 = vadd.f32 %v5546, %v5912
        %v5914 = vpop.f32.mrb[0].mxu0
        %v5915 = vadd.f32 %v5547, %v5914
        %5916 = vmatprep.mubr.bf16.mxu0 %v5436
        %5917 = vmatmul.mubr.bf16.gmra.mrb[0].mxu0 %v5435
        %v5918 = vpop.f32.mrb[0].mxu0
        %v5919 = vadd.f32 %v5548, %v5918
        %v5920 = vpop.f32.mrb[0].mxu0
        %v5921 = vadd.f32 %v5549, %v5920
        %v5922 = vpop.f32.mrb[0].mxu0
        %v5923 = vadd.f32 %v5550, %v5922
        %v5924 = vpop.f32.mrb[0].mxu0
        %v5925 = vadd.f32 %v5551, %v5924
        %5926 = vmatprep.mubr.bf16.mxu0 %v5438
        %5927 = vmatmul.mubr.bf16.gmra.mrb[0].mxu0 %v5437
        %v5928 = vpop.f32.mrb[0].mxu0
        %v5929 = vadd.f32 %v5552, %v5928
        %v5930 = vpop.f32.mrb[0].mxu0
        %v5931 = vadd.f32 %v5553, %v5930
        %v5932 = vpop.f32.mrb[0].mxu0
        %v5933 = vadd.f32 %v5554, %v5932
        %v5934 = vpop.f32.mrb[0].mxu0
        %v5935 = vadd.f32 %v5555, %v5934
        %5936 = vmatprep.mubr.bf16.mxu0 %v5440
        %5937 = vmatmul.mubr.bf16.gmra.mrb[0].mxu0 %v5439
        %v5938 = vpop.f32.mrb[0].mxu0
        %v5939 = vadd.f32 %v5556, %v5938
        %v5940 = vpop.f32.mrb[0].mxu0
        %v5941 = vadd.f32 %v5557, %v5940
        %v5942 = vpop.f32.mrb[0].mxu0
        %v5943 = vadd.f32 %v5558, %v5942
        %v5944 = vpop.f32.mrb[0].mxu0
        %v5945 = vadd.f32 %v5559, %v5944
        %5946 = vmatprep.mubr.bf16.mxu0 %v5442
        %5947 = vmatmul.mubr.bf16.gmra.mrb[0].mxu0 %v5441
        %v5948 = vpop.f32.mrb[0].mxu0
        %v5949 = vadd.f32 %v5560, %v5948
        %v5950 = vpop.f32.mrb[0].mxu0
        %v5951 = vadd.f32 %v5561, %v5950
        %v5952 = vpop.f32.mrb[0].mxu0
        %v5953 = vadd.f32 %v5562, %v5952
        %v5954 = vpop.f32.mrb[0].mxu0
        %v5955 = vadd.f32 %v5563, %v5954
        %5956 = vmatprep.mubr.bf16.mxu0 %v5444
        %5957 = vmatmul.mubr.bf16.gmra.mrb[0].mxu0 %v5443
        %v5958 = vpop.f32.mrb[0].mxu0
        %v5959 = vadd.f32 %v5564, %v5958
        %v5960 = vpop.f32.mrb[0].mxu0
        %v5961 = vadd.f32 %v5565, %v5960
        %v5962 = vpop.f32.mrb[0].mxu0
        %v5963 = vadd.f32 %v5566, %v5962
        %v5964 = vpop.f32.mrb[0].mxu0
        %v5965 = vadd.f32 %v5567, %v5964
        %5966 = vmatprep.mubr.bf16.mxu0 %v5446
        %5967 = vmatmul.mubr.bf16.gmra.mrb[0].mxu0 %v5445
        %v5968 = vpop.f32.mrb[0].mxu0
        %v5969 = vadd.f32 %v5568, %v5968
        %v5970 = vpop.f32.mrb[0].mxu0
        %v5971 = vadd.f32 %v5569, %v5970
        %v5972 = vpop.f32.mrb[0].mxu0
        %v5973 = vadd.f32 %v5570, %v5972
        %v5974 = vpop.f32.mrb[0].mxu0
        %v5975 = vadd.f32 %v5571, %v5974
        %5976 = vmatprep.mubr.bf16.mxu0 %v5448
        %5977 = vmatmul.mubr.bf16.gmra.mrb[0].mxu0 %v5447
        %v5978 = vpop.f32.mrb[0].mxu0
        %v5979 = vadd.f32 %v5572, %v5978
        %v5980 = vpop.f32.mrb[0].mxu0
        %v5981 = vadd.f32 %v5573, %v5980
        %v5982 = vpop.f32.mrb[0].mxu0
        %v5983 = vadd.f32 %v5574, %v5982
        %v5984 = vpop.f32.mrb[0].mxu0
        %v5985 = vadd.f32 %v5575, %v5984
        %5986 = vmatprep.mubr.bf16.mxu0 %v5450
        %5987 = vmatmul.mubr.bf16.gmra.mrb[0].mxu0 %v5449
        %v5988 = vpop.f32.mrb[0].mxu0
        %v5989 = vadd.f32 %v5576, %v5988
        %v5990 = vpop.f32.mrb[0].mxu0
        %v5991 = vadd.f32 %v5577, %v5990
        %v5992 = vpop.f32.mrb[0].mxu0
        %v5993 = vadd.f32 %v5578, %v5992
        %v5994 = vpop.f32.mrb[0].mxu0
        %v5995 = vadd.f32 %v5579, %v5994
        %5996 = vmatprep.mubr.bf16.mxu0 %v5452
        %5997 = vmatmul.mubr.bf16.gmra.mrb[0].mxu0 %v5451
        %v5998 = vpop.f32.mrb[0].mxu0
        %v5999 = vadd.f32 %v5580, %v5998
        %v6000 = vpop.f32.mrb[0].mxu0
        %v6001 = vadd.f32 %v5581, %v6000
        %v6002 = vpop.f32.mrb[0].mxu0
        %v6003 = vadd.f32 %v5582, %v6002
        %v6004 = vpop.f32.mrb[0].mxu0
        %v6005 = vadd.f32 %v5583, %v6004
        %6006 = vmatprep.mubr.bf16.mxu0 %v5454
        %6007 = vmatmul.mubr.bf16.gmra.mrb[0].mxu0 %v5453
        %v6008 = vpop.f32.mrb[0].mxu0
        %v6009 = vadd.f32 %v5584, %v6008
        %v6010 = vpop.f32.mrb[0].mxu0
        %v6011 = vadd.f32 %v5585, %v6010
        %v6012 = vpop.f32.mrb[0].mxu0
        %v6013 = vadd.f32 %v5586, %v6012
        %v6014 = vpop.f32.mrb[0].mxu0
        %v6015 = vadd.f32 %v5587, %v6014
        %6016 = vmatprep.mubr.bf16.mxu0 %v5456
        %6017 = vmatmul.mubr.bf16.gmra.mrb[0].mxu0 %v5455
        %v6018 = vpop.f32.mrb[0].mxu0
        %v6019 = vadd.f32 %v5588, %v6018
        %v6020 = vpop.f32.mrb[0].mxu0
        %v6021 = vadd.f32 %v5589, %v6020
        %v6022 = vpop.f32.mrb[0].mxu0
        %v6023 = vadd.f32 %v5590, %v6022
        %v6024 = vpop.f32.mrb[0].mxu0
        %v6025 = vadd.f32 %v5591, %v6024
        %6026 = vmatprep.mubr.bf16.mxu0 %v5458
        %6027 = vmatmul.mubr.bf16.gmra.mrb[0].mxu0 %v5457
        %v6028 = vpop.f32.mrb[0].mxu0
        %v6029 = vadd.f32 %v5592, %v6028
        %v6030 = vpop.f32.mrb[0].mxu0
        %v6031 = vadd.f32 %v5593, %v6030
        %v6032 = vpop.f32.mrb[0].mxu0
        %v6033 = vadd.f32 %v5594, %v6032
        %v6034 = vpop.f32.mrb[0].mxu0
        %v6035 = vadd.f32 %v5595, %v6034
        %6036 = vmatprep.mubr.bf16.mxu0 %v5460
        %6037 = vmatmul.mubr.bf16.gmra.mrb[0].mxu0 %v5459
        %v6038 = vpop.f32.mrb[0].mxu0
        %v6039 = vadd.f32 %v5596, %v6038
        %v6040 = vpop.f32.mrb[0].mxu0
        %v6041 = vadd.f32 %v5597, %v6040
        %v6042 = vpop.f32.mrb[0].mxu0
        %v6043 = vadd.f32 %v5598, %v6042
        %v6044 = vpop.f32.mrb[0].mxu0
        %v6045 = vadd.f32 %v5599, %v6044
        %6046 = vmatprep.mubr.bf16.mxu0 %v5462
        %6047 = vmatmul.mubr.bf16.gmra.mrb[0].mxu0 %v5461
        %v6048 = vpop.f32.mrb[0].mxu0
        %v6049 = vadd.f32 %v5600, %v6048
        %v6050 = vpop.f32.mrb[0].mxu0
        %v6051 = vadd.f32 %v5601, %v6050
        %v6052 = vpop.f32.mrb[0].mxu0
        %v6053 = vadd.f32 %v5602, %v6052
        %v6054 = vpop.f32.mrb[0].mxu0
        %v6055 = vadd.f32 %v5603, %v6054
        %6056 = vmatprep.mubr.bf16.mxu0 %v5464
        %6057 = vmatmul.mubr.bf16.gmra.mrb[0].mxu0 %v5463
        %v6058 = vpop.f32.mrb[0].mxu0
        %v6059 = vadd.f32 %v5604, %v6058
        %v6060 = vpop.f32.mrb[0].mxu0
        %v6061 = vadd.f32 %v5605, %v6060
        %v6062 = vpop.f32.mrb[0].mxu0
        %v6063 = vadd.f32 %v5606, %v6062
        %v6064 = vpop.f32.mrb[0].mxu0
        %v6065 = vadd.f32 %v5607, %v6064
        %6066 = vmatprep.mubr.bf16.mxu0 %v5466
        %6067 = vmatmul.mubr.bf16.gmra.mrb[0].mxu0 %v5465
        %v6068 = vpop.f32.mrb[0].mxu0
        %v6069 = vadd.f32 %v5608, %v6068
        %v6070 = vpop.f32.mrb[0].mxu0
        %v6071 = vadd.f32 %v5609, %v6070
        %v6072 = vpop.f32.mrb[0].mxu0
        %v6073 = vadd.f32 %v5610, %v6072
        %v6074 = vpop.f32.mrb[0].mxu0
        %v6075 = vadd.f32 %v5611, %v6074
        %6076 = vmatprep.mubr.bf16.mxu0 %v5468
        %6077 = vmatmul.mubr.bf16.gmra.mrb[0].mxu0 %v5467
        %v6078 = vpop.f32.mrb[0].mxu0
        %v6079 = vadd.f32 %v5612, %v6078
        %v6080 = vpop.f32.mrb[0].mxu0
        %v6081 = vadd.f32 %v5613, %v6080
        %v6082 = vpop.f32.mrb[0].mxu0
        %v6083 = vadd.f32 %v5614, %v6082
        %v6084 = vpop.f32.mrb[0].mxu0
        %v6085 = vadd.f32 %v5615, %v6084
        %6086 = vmatprep.mubr.bf16.mxu0 %v5470
        %6087 = vmatmul.mubr.bf16.gmra.mrb[0].mxu0 %v5469
        %v6088 = vpop.f32.mrb[0].mxu0
        %v6089 = vadd.f32 %v5616, %v6088
        %v6090 = vpop.f32.mrb[0].mxu0
        %v6091 = vadd.f32 %v5617, %v6090
        %v6092 = vpop.f32.mrb[0].mxu0
        %v6093 = vadd.f32 %v5618, %v6092
        %v6094 = vpop.f32.mrb[0].mxu0
        %v6095 = vadd.f32 %v5619, %v6094
        %6096 = vmatprep.mubr.bf16.mxu0 %v5472
        %6097 = vmatmul.mubr.bf16.gmra.mrb[0].mxu0 %v5471
        %v6098 = vpop.f32.mrb[0].mxu0
        %v6099 = vadd.f32 %v5620, %v6098
        %v6100 = vpop.f32.mrb[0].mxu0
        %v6101 = vadd.f32 %v5621, %v6100
        %v6102 = vpop.f32.mrb[0].mxu0
        %v6103 = vadd.f32 %v5622, %v6102
        %v6104 = vpop.f32.mrb[0].mxu0
        %v6105 = vadd.f32 %v5623, %v6104
        %6106 = vmatprep.mubr.bf16.mxu0 %v5474
        %6107 = vmatmul.mubr.bf16.gmra.mrb[0].mxu0 %v5473
        %v6108 = vpop.f32.mrb[0].mxu0
        %v6109 = vadd.f32 %v5624, %v6108
        %v6110 = vpop.f32.mrb[0].mxu0
        %v6111 = vadd.f32 %v5625, %v6110
        %v6112 = vpop.f32.mrb[0].mxu0
        %v6113 = vadd.f32 %v5626, %v6112
        %v6114 = vpop.f32.mrb[0].mxu0
        %v6115 = vadd.f32 %v5627, %v6114
        %6116 = vmatprep.mubr.bf16.mxu0 %v5476
        %6117 = vmatmul.mubr.bf16.gmra.mrb[0].mxu0 %v5475
        %v6118 = vpop.f32.mrb[0].mxu0
        %v6119 = vadd.f32 %v5628, %v6118
        %v6120 = vpop.f32.mrb[0].mxu0
        %v6121 = vadd.f32 %v5629, %v6120
        %v6122 = vpop.f32.mrb[0].mxu0
        %v6123 = vadd.f32 %v5630, %v6122
        %v6124 = vpop.f32.mrb[0].mxu0
        %v6125 = vadd.f32 %v5631, %v6124
        %6126 = vmatprep.mubr.bf16.mxu0 %v5478
        %6127 = vmatmul.mubr.bf16.gmra.mrb[0].mxu0 %v5477
        %v6128 = vpop.f32.mrb[0].mxu0
        %v6129 = vadd.f32 %v5632, %v6128
        %v6130 = vpop.f32.mrb[0].mxu0
        %v6131 = vadd.f32 %v5633, %v6130
        %v6132 = vpop.f32.mrb[0].mxu0
        %v6133 = vadd.f32 %v5634, %v6132
        %v6134 = vpop.f32.mrb[0].mxu0
        %v6135 = vadd.f32 %v5635, %v6134
        %6136 = vmatprep.mubr.bf16.mxu0 %v5480
        %6137 = vmatmul.mubr.bf16.gmra.mrb[0].mxu0 %v5479
        %v6138 = vpop.f32.mrb[0].mxu0
        %v6139 = vadd.f32 %v5636, %v6138
        %v6140 = vpop.f32.mrb[0].mxu0
        %v6141 = vadd.f32 %v5637, %v6140
        %v6142 = vpop.f32.mrb[0].mxu0
        %v6143 = vadd.f32 %v5638, %v6142
        %v6144 = vpop.f32.mrb[0].mxu0
        %v6145 = vadd.f32 %v5639, %v6144
        %6146 = vmatprep.mubr.bf16.mxu0 %v5482
        %6147 = vmatmul.mubr.bf16.gmra.mrb[0].mxu0 %v5481
        %v6148 = vpop.f32.mrb[0].mxu0
        %v6149 = vadd.f32 %v5640, %v6148
        %v6150 = vpop.f32.mrb[0].mxu0
        %v6151 = vadd.f32 %v5641, %v6150
        %v6152 = vpop.f32.mrb[0].mxu0
        %v6153 = vadd.f32 %v5642, %v6152
        %v6154 = vpop.f32.mrb[0].mxu0
        %v6155 = vadd.f32 %v5643, %v6154
        %6156 = vdwg.mxu0
        %v6157 = vpack.c.bf16 %v5843, %v5839
        %v6158 = vpack.c.bf16 %v5845, %v5841
        %v6159 = vpack.c.bf16 %v5853, %v5849
        %v6160 = vpack.c.bf16 %v5855, %v5851
        %v6161 = vpack.c.bf16 %v5863, %v5859
        %v6162 = vpack.c.bf16 %v5865, %v5861
        %v6163 = vpack.c.bf16 %v5873, %v5869
        %v6164 = vpack.c.bf16 %v5875, %v5871
        %v6165 = vpack.c.bf16 %v5883, %v5879
        %v6166 = vpack.c.bf16 %v5885, %v5881
        %v6167 = vpack.c.bf16 %v5893, %v5889
        %v6168 = vpack.c.bf16 %v5895, %v5891
        %v6169 = vpack.c.bf16 %v5903, %v5899
        %v6170 = vpack.c.bf16 %v5905, %v5901
        %v6171 = vpack.c.bf16 %v5913, %v5909
        %v6172 = vpack.c.bf16 %v5915, %v5911
        %v6173 = vpack.c.bf16 %v5923, %v5919
        %v6174 = vpack.c.bf16 %v5925, %v5921
        %v6175 = vpack.c.bf16 %v5933, %v5929
        %v6176 = vpack.c.bf16 %v5935, %v5931
        %v6177 = vpack.c.bf16 %v5943, %v5939
        %v6178 = vpack.c.bf16 %v5945, %v5941
        %v6179 = vpack.c.bf16 %v5953, %v5949
        %v6180 = vpack.c.bf16 %v5955, %v5951
        %v6181 = vpack.c.bf16 %v5963, %v5959
        %v6182 = vpack.c.bf16 %v5965, %v5961
        %v6183 = vpack.c.bf16 %v5973, %v5969
        %v6184 = vpack.c.bf16 %v5975, %v5971
        %v6185 = vpack.c.bf16 %v5983, %v5979
        %v6186 = vpack.c.bf16 %v5985, %v5981
        %v6187 = vpack.c.bf16 %v5993, %v5989
        %v6188 = vpack.c.bf16 %v5995, %v5991
        %v6189 = vpack.c.bf16 %v6003, %v5999
        %v6190 = vpack.c.bf16 %v6005, %v6001
        %v6191 = vpack.c.bf16 %v6013, %v6009
        %v6192 = vpack.c.bf16 %v6015, %v6011
        %v6193 = vpack.c.bf16 %v6023, %v6019
        %v6194 = vpack.c.bf16 %v6025, %v6021
        %v6195 = vpack.c.bf16 %v6033, %v6029
        %v6196 = vpack.c.bf16 %v6035, %v6031
        %v6197 = vpack.c.bf16 %v6043, %v6039
        %v6198 = vpack.c.bf16 %v6045, %v6041
        %v6199 = vpack.c.bf16 %v6053, %v6049
        %v6200 = vpack.c.bf16 %v6055, %v6051
        %v6201 = vpack.c.bf16 %v6063, %v6059
        %v6202 = vpack.c.bf16 %v6065, %v6061
        %v6203 = vpack.c.bf16 %v6073, %v6069
        %v6204 = vpack.c.bf16 %v6075, %v6071
        %v6205 = vpack.c.bf16 %v6083, %v6079
        %v6206 = vpack.c.bf16 %v6085, %v6081
        %v6207 = vpack.c.bf16 %v6093, %v6089
        %v6208 = vpack.c.bf16 %v6095, %v6091
        %v6209 = vpack.c.bf16 %v6103, %v6099
        %v6210 = vpack.c.bf16 %v6105, %v6101
        %v6211 = vpack.c.bf16 %v6113, %v6109
        %v6212 = vpack.c.bf16 %v6115, %v6111
        %v6213 = vpack.c.bf16 %v6123, %v6119
        %v6214 = vpack.c.bf16 %v6125, %v6121
        %v6215 = vpack.c.bf16 %v6133, %v6129
        %v6216 = vpack.c.bf16 %v6135, %v6131
        %v6217 = vpack.c.bf16 %v6143, %v6139
        %v6218 = vpack.c.bf16 %v6145, %v6141
        %v6219 = vpack.c.bf16 %v6153, %v6149
        %v6220 = vpack.c.bf16 %v6155, %v6151
        %s6221 = scalar_lea.vmem %s3, 10
        %v6222 = vld [vmem:[%s6221] sm:$0x3]
        %v6224 = vlaneseq
        %v6225 = vshrl.u32 %v6224, 7
        %v6226 = vsub.s32 0, %v6225
        %v6227 = vrot.slane %v6222, %v6226
        %v6228 = vlaneseq
        %v6229 = vshrl.u32 %v6228, 7
        %v6230 = vsub.s32 1, %v6229
        %v6231 = vrot.slane %v6222, %v6230
        %v6234 = vpack.c.bf16 %v6227, %v6227
        %v6235 = vpack.c.bf16 %v6231, %v6231
        %v6237 = vpack.i.b16 %v6234, %v6234
        %v6239 = vlaneseq
        %v6240 = vshrl.u32 %v6239, 7
        %v6241 = vsub.s32 0, %v6240
        %v6242 = vrot.slane %v6237, %v6241
        %v6244 = vpack.i.b16 %v6235, %v6235
        %v6246 = vlaneseq
        %v6247 = vshrl.u32 %v6246, 7
        %v6248 = vsub.s32 0, %v6247
        %v6249 = vrot.slane %v6244, %v6248
        %v6250 = vadd.bf16 %v6157, %v6242
        %v6251 = vadd.bf16 %v6158, %v6249
        %v6252 = vadd.bf16 %v6159, %v6242
        %v6253 = vadd.bf16 %v6160, %v6249
        %v6254 = vadd.bf16 %v6161, %v6242
        %v6255 = vadd.bf16 %v6162, %v6249
        %v6256 = vadd.bf16 %v6163, %v6242
        %v6257 = vadd.bf16 %v6164, %v6249
        %v6258 = vadd.bf16 %v6165, %v6242
        %v6259 = vadd.bf16 %v6166, %v6249
        %v6260 = vadd.bf16 %v6167, %v6242
        %v6261 = vadd.bf16 %v6168, %v6249
        %v6262 = vadd.bf16 %v6169, %v6242
        %v6263 = vadd.bf16 %v6170, %v6249
        %v6264 = vadd.bf16 %v6171, %v6242
        %v6265 = vadd.bf16 %v6172, %v6249
        %v6266 = vadd.bf16 %v6173, %v6242
        %v6267 = vadd.bf16 %v6174, %v6249
        %v6268 = vadd.bf16 %v6175, %v6242
        %v6269 = vadd.bf16 %v6176, %v6249
        %v6270 = vadd.bf16 %v6177, %v6242
        %v6271 = vadd.bf16 %v6178, %v6249
        %v6272 = vadd.bf16 %v6179, %v6242
        %v6273 = vadd.bf16 %v6180, %v6249
        %v6274 = vadd.bf16 %v6181, %v6242
        %v6275 = vadd.bf16 %v6182, %v6249
        %v6276 = vadd.bf16 %v6183, %v6242
        %v6277 = vadd.bf16 %v6184, %v6249
        %v6278 = vadd.bf16 %v6185, %v6242
        %v6279 = vadd.bf16 %v6186, %v6249
        %v6280 = vadd.bf16 %v6187, %v6242
        %v6281 = vadd.bf16 %v6188, %v6249
        %v6282 = vadd.bf16 %v6189, %v6242
        %v6283 = vadd.bf16 %v6190, %v6249
        %v6284 = vadd.bf16 %v6191, %v6242
        %v6285 = vadd.bf16 %v6192, %v6249
        %v6286 = vadd.bf16 %v6193, %v6242
        %v6287 = vadd.bf16 %v6194, %v6249
        %v6288 = vadd.bf16 %v6195, %v6242
        %v6289 = vadd.bf16 %v6196, %v6249
        %v6290 = vadd.bf16 %v6197, %v6242
        %v6291 = vadd.bf16 %v6198, %v6249
        %v6292 = vadd.bf16 %v6199, %v6242
        %v6293 = vadd.bf16 %v6200, %v6249
        %v6294 = vadd.bf16 %v6201, %v6242
        %v6295 = vadd.bf16 %v6202, %v6249
        %v6296 = vadd.bf16 %v6203, %v6242
        %v6297 = vadd.bf16 %v6204, %v6249
        %v6298 = vadd.bf16 %v6205, %v6242
        %v6299 = vadd.bf16 %v6206, %v6249
        %v6300 = vadd.bf16 %v6207, %v6242
        %v6301 = vadd.bf16 %v6208, %v6249
        %v6302 = vadd.bf16 %v6209, %v6242
        %v6303 = vadd.bf16 %v6210, %v6249
        %v6304 = vadd.bf16 %v6211, %v6242
        %v6305 = vadd.bf16 %v6212, %v6249
        %v6306 = vadd.bf16 %v6213, %v6242
        %v6307 = vadd.bf16 %v6214, %v6249
        %v6308 = vadd.bf16 %v6215, %v6242
        %v6309 = vadd.bf16 %v6216, %v6249
        %v6310 = vadd.bf16 %v6217, %v6242
        %v6311 = vadd.bf16 %v6218, %v6249
        %v6312 = vadd.bf16 %v6219, %v6242
        %v6313 = vadd.bf16 %v6220, %v6249
        %v6314 = vmax.bf16 %v6250, 0
        %v6315 = vmax.bf16 %v6251, 0
        %v6316 = vmax.bf16 %v6252, 0
        %v6317 = vmax.bf16 %v6253, 0
        %v6318 = vmax.bf16 %v6254, 0
        %v6319 = vmax.bf16 %v6255, 0
        %v6320 = vmax.bf16 %v6256, 0
        %v6321 = vmax.bf16 %v6257, 0
        %v6322 = vmax.bf16 %v6258, 0
        %v6323 = vmax.bf16 %v6259, 0
        %v6324 = vmax.bf16 %v6260, 0
        %v6325 = vmax.bf16 %v6261, 0
        %v6326 = vmax.bf16 %v6262, 0
        %v6327 = vmax.bf16 %v6263, 0
        %v6328 = vmax.bf16 %v6264, 0
        %v6329 = vmax.bf16 %v6265, 0
        %v6330 = vmax.bf16 %v6266, 0
        %v6331 = vmax.bf16 %v6267, 0
        %v6332 = vmax.bf16 %v6268, 0
        %v6333 = vmax.bf16 %v6269, 0
        %v6334 = vmax.bf16 %v6270, 0
        %v6335 = vmax.bf16 %v6271, 0
        %v6336 = vmax.bf16 %v6272, 0
        %v6337 = vmax.bf16 %v6273, 0
        %v6338 = vmax.bf16 %v6274, 0
        %v6339 = vmax.bf16 %v6275, 0
        %v6340 = vmax.bf16 %v6276, 0
        %v6341 = vmax.bf16 %v6277, 0
        %v6342 = vmax.bf16 %v6278, 0
        %v6343 = vmax.bf16 %v6279, 0
        %v6344 = vmax.bf16 %v6280, 0
        %v6345 = vmax.bf16 %v6281, 0
        %v6346 = vmax.bf16 %v6282, 0
        %v6347 = vmax.bf16 %v6283, 0
        %v6348 = vmax.bf16 %v6284, 0
        %v6349 = vmax.bf16 %v6285, 0
        %v6350 = vmax.bf16 %v6286, 0
        %v6351 = vmax.bf16 %v6287, 0
        %v6352 = vmax.bf16 %v6288, 0
        %v6353 = vmax.bf16 %v6289, 0
        %v6354 = vmax.bf16 %v6290, 0
        %v6355 = vmax.bf16 %v6291, 0
        %v6356 = vmax.bf16 %v6292, 0
        %v6357 = vmax.bf16 %v6293, 0
        %v6358 = vmax.bf16 %v6294, 0
        %v6359 = vmax.bf16 %v6295, 0
        %v6360 = vmax.bf16 %v6296, 0
        %v6361 = vmax.bf16 %v6297, 0
        %v6362 = vmax.bf16 %v6298, 0
        %v6363 = vmax.bf16 %v6299, 0
        %v6364 = vmax.bf16 %v6300, 0
        %v6365 = vmax.bf16 %v6301, 0
        %v6366 = vmax.bf16 %v6302, 0
        %v6367 = vmax.bf16 %v6303, 0
        %v6368 = vmax.bf16 %v6304, 0
        %v6369 = vmax.bf16 %v6305, 0
        %v6370 = vmax.bf16 %v6306, 0
        %v6371 = vmax.bf16 %v6307, 0
        %v6372 = vmax.bf16 %v6308, 0
        %v6373 = vmax.bf16 %v6309, 0
        %v6374 = vmax.bf16 %v6310, 0
        %v6375 = vmax.bf16 %v6311, 0
        %v6376 = vmax.bf16 %v6312, 0
        %v6377 = vmax.bf16 %v6313, 0
        %6378 = vst [vmem:[#allocation2] sm:$0xff] %v6314
        %6379 = vst [vmem:[#allocation2 + $0x8] sm:$0xff] %v6315
        %6380 = vst [vmem:[#allocation2 + $0x10] sm:$0xff] %v6316
        %6381 = vst [vmem:[#allocation2 + $0x18] sm:$0xff] %v6317
        %6382 = vst [vmem:[#allocation2 + $0x20] sm:$0xff] %v6318
        %6383 = vst [vmem:[#allocation2 + $0x28] sm:$0xff] %v6319
        %6384 = vst [vmem:[#allocation2 + $0x30] sm:$0xff] %v6320
        %6385 = vst [vmem:[#allocation2 + $0x38] sm:$0xff] %v6321
        %6386 = vst [vmem:[#allocation2 + $0x40] sm:$0xff] %v6322
        %6387 = vst [vmem:[#allocation2 + $0x48] sm:$0xff] %v6323
        %6388 = vst [vmem:[#allocation2 + $0x50] sm:$0xff] %v6324
        %6389 = vst [vmem:[#allocation2 + $0x58] sm:$0xff] %v6325
        %6390 = vst [vmem:[#allocation2 + $0x60] sm:$0xff] %v6326
        %6391 = vst [vmem:[#allocation2 + $0x68] sm:$0xff] %v6327
        %6392 = vst [vmem:[#allocation2 + $0x70] sm:$0xff] %v6328
        %6393 = vst [vmem:[#allocation2 + $0x78] sm:$0xff] %v6329
        %6394 = vst [vmem:[#allocation2 + $0x80] sm:$0xff] %v6330
        %6395 = vst [vmem:[#allocation2 + $0x88] sm:$0xff] %v6331
        %6396 = vst [vmem:[#allocation2 + $0x90] sm:$0xff] %v6332
        %6397 = vst [vmem:[#allocation2 + $0x98] sm:$0xff] %v6333
        %6398 = vst [vmem:[#allocation2 + $0xa0] sm:$0xff] %v6334
        %6399 = vst [vmem:[#allocation2 + $0xa8] sm:$0xff] %v6335
        %6400 = vst [vmem:[#allocation2 + $0xb0] sm:$0xff] %v6336
        %6401 = vst [vmem:[#allocation2 + $0xb8] sm:$0xff] %v6337
        %6402 = vst [vmem:[#allocation2 + $0xc0] sm:$0xff] %v6338
        %6403 = vst [vmem:[#allocation2 + $0xc8] sm:$0xff] %v6339
        %6404 = vst [vmem:[#allocation2 + $0xd0] sm:$0xff] %v6340
        %6405 = vst [vmem:[#allocation2 + $0xd8] sm:$0xff] %v6341
        %6406 = vst [vmem:[#allocation2 + $0xe0] sm:$0xff] %v6342
        %6407 = vst [vmem:[#allocation2 + $0xe8] sm:$0xff] %v6343
        %6408 = vst [vmem:[#allocation2 + $0xf0] sm:$0xff] %v6344
        %6409 = vst [vmem:[#allocation2 + $0xf8] sm:$0xff] %v6345
        %6410 = vst [vmem:[#allocation2 + $0x100] sm:$0xff] %v6346
        %6411 = vst [vmem:[#allocation2 + $0x108] sm:$0xff] %v6347
        %6412 = vst [vmem:[#allocation2 + $0x110] sm:$0xff] %v6348
        %6413 = vst [vmem:[#allocation2 + $0x118] sm:$0xff] %v6349
        %6414 = vst [vmem:[#allocation2 + $0x120] sm:$0xff] %v6350
        %6415 = vst [vmem:[#allocation2 + $0x128] sm:$0xff] %v6351
        %6416 = vst [vmem:[#allocation2 + $0x130] sm:$0xff] %v6352
        %6417 = vst [vmem:[#allocation2 + $0x138] sm:$0xff] %v6353
        %6418 = vst [vmem:[#allocation2 + $0x140] sm:$0xff] %v6354
        %6419 = vst [vmem:[#allocation2 + $0x148] sm:$0xff] %v6355
        %6420 = vst [vmem:[#allocation2 + $0x150] sm:$0xff] %v6356
        %6421 = vst [vmem:[#allocation2 + $0x158] sm:$0xff] %v6357
        %6422 = vst [vmem:[#allocation2 + $0x160] sm:$0xff] %v6358
        %6423 = vst [vmem:[#allocation2 + $0x168] sm:$0xff] %v6359
        %6424 = vst [vmem:[#allocation2 + $0x170] sm:$0xff] %v6360
        %6425 = vst [vmem:[#allocation2 + $0x178] sm:$0xff] %v6361
        %6426 = vst [vmem:[#allocation2 + $0x180] sm:$0xff] %v6362
        %6427 = vst [vmem:[#allocation2 + $0x188] sm:$0xff] %v6363
        %6428 = vst [vmem:[#allocation2 + $0x190] sm:$0xff] %v6364
        %6429 = vst [vmem:[#allocation2 + $0x198] sm:$0xff] %v6365
        %6430 = vst [vmem:[#allocation2 + $0x1a0] sm:$0xff] %v6366
        %6431 = vst [vmem:[#allocation2 + $0x1a8] sm:$0xff] %v6367
        %6432 = vst [vmem:[#allocation2 + $0x1b0] sm:$0xff] %v6368
        %6433 = vst [vmem:[#allocation2 + $0x1b8] sm:$0xff] %v6369
        %6434 = vst [vmem:[#allocation2 + $0x1c0] sm:$0xff] %v6370
        %6435 = vst [vmem:[#allocation2 + $0x1c8] sm:$0xff] %v6371
        %6436 = vst [vmem:[#allocation2 + $0x1d0] sm:$0xff] %v6372
        %6437 = vst [vmem:[#allocation2 + $0x1d8] sm:$0xff] %v6373
        %6438 = vst [vmem:[#allocation2 + $0x1e0] sm:$0xff] %v6374
        %6439 = vst [vmem:[#allocation2 + $0x1e8] sm:$0xff] %v6375
        %6440 = vst [vmem:[#allocation2 + $0x1f0] sm:$0xff] %v6376
        %6441 = vst [vmem:[#allocation2 + $0x1f8] sm:$0xff] %v6377
        %v6442 = vld [vmem:[#allocation2] sm:$0xff]
        %v6443 = vld [vmem:[#allocation2 + $0x8] sm:$0xff]
        %v6444 = vld [vmem:[#allocation2 + $0x10] sm:$0xff]
        %v6445 = vld [vmem:[#allocation2 + $0x18] sm:$0xff]
        %v6446 = vld [vmem:[#allocation2 + $0x20] sm:$0xff]
        %v6447 = vld [vmem:[#allocation2 + $0x28] sm:$0xff]
        %v6448 = vld [vmem:[#allocation2 + $0x30] sm:$0xff]
        %v6449 = vld [vmem:[#allocation2 + $0x38] sm:$0xff]
        %v6450 = vld [vmem:[#allocation2 + $0x40] sm:$0xff]
        %v6451 = vld [vmem:[#allocation2 + $0x48] sm:$0xff]
        %v6452 = vld [vmem:[#allocation2 + $0x50] sm:$0xff]
        %v6453 = vld [vmem:[#allocation2 + $0x58] sm:$0xff]
        %v6454 = vld [vmem:[#allocation2 + $0x60] sm:$0xff]
        %v6455 = vld [vmem:[#allocation2 + $0x68] sm:$0xff]
        %v6456 = vld [vmem:[#allocation2 + $0x70] sm:$0xff]
        %v6457 = vld [vmem:[#allocation2 + $0x78] sm:$0xff]
        %v6458 = vld [vmem:[#allocation2 + $0x80] sm:$0xff]
        %v6459 = vld [vmem:[#allocation2 + $0x88] sm:$0xff]
        %v6460 = vld [vmem:[#allocation2 + $0x90] sm:$0xff]
        %v6461 = vld [vmem:[#allocation2 + $0x98] sm:$0xff]
        %v6462 = vld [vmem:[#allocation2 + $0xa0] sm:$0xff]
        %v6463 = vld [vmem:[#allocation2 + $0xa8] sm:$0xff]
        %v6464 = vld [vmem:[#allocation2 + $0xb0] sm:$0xff]
        %v6465 = vld [vmem:[#allocation2 + $0xb8] sm:$0xff]
        %v6466 = vld [vmem:[#allocation2 + $0xc0] sm:$0xff]
        %v6467 = vld [vmem:[#allocation2 + $0xc8] sm:$0xff]
        %v6468 = vld [vmem:[#allocation2 + $0xd0] sm:$0xff]
        %v6469 = vld [vmem:[#allocation2 + $0xd8] sm:$0xff]
        %v6470 = vld [vmem:[#allocation2 + $0xe0] sm:$0xff]
        %v6471 = vld [vmem:[#allocation2 + $0xe8] sm:$0xff]
        %v6472 = vld [vmem:[#allocation2 + $0xf0] sm:$0xff]
        %v6473 = vld [vmem:[#allocation2 + $0xf8] sm:$0xff]
        %v6474 = vld [vmem:[#allocation2 + $0x100] sm:$0xff]
        %v6475 = vld [vmem:[#allocation2 + $0x108] sm:$0xff]
        %v6476 = vld [vmem:[#allocation2 + $0x110] sm:$0xff]
        %v6477 = vld [vmem:[#allocation2 + $0x118] sm:$0xff]
        %v6478 = vld [vmem:[#allocation2 + $0x120] sm:$0xff]
        %v6479 = vld [vmem:[#allocation2 + $0x128] sm:$0xff]
        %v6480 = vld [vmem:[#allocation2 + $0x130] sm:$0xff]
        %v6481 = vld [vmem:[#allocation2 + $0x138] sm:$0xff]
        %v6482 = vld [vmem:[#allocation2 + $0x140] sm:$0xff]
        %v6483 = vld [vmem:[#allocation2 + $0x148] sm:$0xff]
        %v6484 = vld [vmem:[#allocation2 + $0x150] sm:$0xff]
        %v6485 = vld [vmem:[#allocation2 + $0x158] sm:$0xff]
        %v6486 = vld [vmem:[#allocation2 + $0x160] sm:$0xff]
        %v6487 = vld [vmem:[#allocation2 + $0x168] sm:$0xff]
        %v6488 = vld [vmem:[#allocation2 + $0x170] sm:$0xff]
        %v6489 = vld [vmem:[#allocation2 + $0x178] sm:$0xff]
        %v6490 = vld [vmem:[#allocation2 + $0x180] sm:$0xff]
        %v6491 = vld [vmem:[#allocation2 + $0x188] sm:$0xff]
        %v6492 = vld [vmem:[#allocation2 + $0x190] sm:$0xff]
        %v6493 = vld [vmem:[#allocation2 + $0x198] sm:$0xff]
        %v6494 = vld [vmem:[#allocation2 + $0x1a0] sm:$0xff]
        %v6495 = vld [vmem:[#allocation2 + $0x1a8] sm:$0xff]
        %v6496 = vld [vmem:[#allocation2 + $0x1b0] sm:$0xff]
        %v6497 = vld [vmem:[#allocation2 + $0x1b8] sm:$0xff]
        %v6498 = vld [vmem:[#allocation2 + $0x1c0] sm:$0xff]
        %v6499 = vld [vmem:[#allocation2 + $0x1c8] sm:$0xff]
        %v6500 = vld [vmem:[#allocation2 + $0x1d0] sm:$0xff]
        %v6501 = vld [vmem:[#allocation2 + $0x1d8] sm:$0xff]
        %v6502 = vld [vmem:[#allocation2 + $0x1e0] sm:$0xff]
        %v6503 = vld [vmem:[#allocation2 + $0x1e8] sm:$0xff]
        %v6504 = vld [vmem:[#allocation2 + $0x1f0] sm:$0xff]
        %v6505 = vld [vmem:[#allocation2 + $0x1f8] sm:$0xff]
        %s6506 = scalar_lea.vmem [#allocation4], 1280
        %v6507 = vld [vmem:[%s6506] sm:$0xff]
        %v6508 = vld [vmem:[%s6506 + $0x8] sm:$0xff]
        %v6509 = vld [vmem:[%s6506 + $0x10] sm:$0xff]
        %v6510 = vld [vmem:[%s6506 + $0x18] sm:$0xff]
        %v6511 = vld [vmem:[%s6506 + $0x20] sm:$0xff]
        %v6512 = vld [vmem:[%s6506 + $0x28] sm:$0xff]
        %v6513 = vld [vmem:[%s6506 + $0x30] sm:$0xff]
        %v6514 = vld [vmem:[%s6506 + $0x38] sm:$0xff]
        %v6515 = vld [vmem:[%s6506 + $0x40] sm:$0xff]
        %v6516 = vld [vmem:[%s6506 + $0x48] sm:$0xff]
        %v6517 = vld [vmem:[%s6506 + $0x50] sm:$0xff]
        %v6518 = vld [vmem:[%s6506 + $0x58] sm:$0xff]
        %v6519 = vld [vmem:[%s6506 + $0x60] sm:$0xff]
        %v6520 = vld [vmem:[%s6506 + $0x68] sm:$0xff]
        %v6521 = vld [vmem:[%s6506 + $0x70] sm:$0xff]
        %v6522 = vld [vmem:[%s6506 + $0x78] sm:$0xff]
        %v6523 = vld [vmem:[%s6506 + $0x80] sm:$0xff]
        %v6524 = vld [vmem:[%s6506 + $0x88] sm:$0xff]
        %v6525 = vld [vmem:[%s6506 + $0x90] sm:$0xff]
        %v6526 = vld [vmem:[%s6506 + $0x98] sm:$0xff]
        %v6527 = vld [vmem:[%s6506 + $0xa0] sm:$0xff]
        %v6528 = vld [vmem:[%s6506 + $0xa8] sm:$0xff]
        %v6529 = vld [vmem:[%s6506 + $0xb0] sm:$0xff]
        %v6530 = vld [vmem:[%s6506 + $0xb8] sm:$0xff]
        %v6531 = vld [vmem:[%s6506 + $0xc0] sm:$0xff]
        %v6532 = vld [vmem:[%s6506 + $0xc8] sm:$0xff]
        %v6533 = vld [vmem:[%s6506 + $0xd0] sm:$0xff]
        %v6534 = vld [vmem:[%s6506 + $0xd8] sm:$0xff]
        %v6535 = vld [vmem:[%s6506 + $0xe0] sm:$0xff]
        %v6536 = vld [vmem:[%s6506 + $0xe8] sm:$0xff]
        %v6537 = vld [vmem:[%s6506 + $0xf0] sm:$0xff]
        %v6538 = vld [vmem:[%s6506 + $0xf8] sm:$0xff]
        %v6571 = vunpack.c.l.b16 %v6507
        %v6572 = vunpack.c.h.b16 %v6507
        %v6573 = vunpack.c.l.b16 %v6508
        %v6574 = vunpack.c.h.b16 %v6508
        %v6575 = vunpack.c.l.b16 %v6509
        %v6576 = vunpack.c.h.b16 %v6509
        %v6577 = vunpack.c.l.b16 %v6510
        %v6578 = vunpack.c.h.b16 %v6510
        %v6579 = vunpack.c.l.b16 %v6511
        %v6580 = vunpack.c.h.b16 %v6511
        %v6581 = vunpack.c.l.b16 %v6512
        %v6582 = vunpack.c.h.b16 %v6512
        %v6583 = vunpack.c.l.b16 %v6513
        %v6584 = vunpack.c.h.b16 %v6513
        %v6585 = vunpack.c.l.b16 %v6514
        %v6586 = vunpack.c.h.b16 %v6514
        %v6587 = vunpack.c.l.b16 %v6515
        %v6588 = vunpack.c.h.b16 %v6515
        %v6589 = vunpack.c.l.b16 %v6516
        %v6590 = vunpack.c.h.b16 %v6516
        %v6591 = vunpack.c.l.b16 %v6517
        %v6592 = vunpack.c.h.b16 %v6517
        %v6593 = vunpack.c.l.b16 %v6518
        %v6594 = vunpack.c.h.b16 %v6518
        %v6595 = vunpack.c.l.b16 %v6519
        %v6596 = vunpack.c.h.b16 %v6519
        %v6597 = vunpack.c.l.b16 %v6520
        %v6598 = vunpack.c.h.b16 %v6520
        %v6599 = vunpack.c.l.b16 %v6521
        %v6600 = vunpack.c.h.b16 %v6521
        %v6601 = vunpack.c.l.b16 %v6522
        %v6602 = vunpack.c.h.b16 %v6522
        %v6603 = vunpack.c.l.b16 %v6523
        %v6604 = vunpack.c.h.b16 %v6523
        %v6605 = vunpack.c.l.b16 %v6524
        %v6606 = vunpack.c.h.b16 %v6524
        %v6607 = vunpack.c.l.b16 %v6525
        %v6608 = vunpack.c.h.b16 %v6525
        %v6609 = vunpack.c.l.b16 %v6526
        %v6610 = vunpack.c.h.b16 %v6526
        %v6611 = vunpack.c.l.b16 %v6527
        %v6612 = vunpack.c.h.b16 %v6527
        %v6613 = vunpack.c.l.b16 %v6528
        %v6614 = vunpack.c.h.b16 %v6528
        %v6615 = vunpack.c.l.b16 %v6529
        %v6616 = vunpack.c.h.b16 %v6529
        %v6617 = vunpack.c.l.b16 %v6530
        %v6618 = vunpack.c.h.b16 %v6530
        %v6619 = vunpack.c.l.b16 %v6531
        %v6620 = vunpack.c.h.b16 %v6531
        %v6621 = vunpack.c.l.b16 %v6532
        %v6622 = vunpack.c.h.b16 %v6532
        %v6623 = vunpack.c.l.b16 %v6533
        %v6624 = vunpack.c.h.b16 %v6533
        %v6625 = vunpack.c.l.b16 %v6534
        %v6626 = vunpack.c.h.b16 %v6534
        %v6627 = vunpack.c.l.b16 %v6535
        %v6628 = vunpack.c.h.b16 %v6535
        %v6629 = vunpack.c.l.b16 %v6536
        %v6630 = vunpack.c.h.b16 %v6536
        %v6631 = vunpack.c.l.b16 %v6537
        %v6632 = vunpack.c.h.b16 %v6537
        %v6633 = vunpack.c.l.b16 %v6538
        %v6634 = vunpack.c.h.b16 %v6538
        %v6635 = vpack.c.b16 %v6573, %v6571
        %v6636 = vpack.c.b16 %v6574, %v6572
        %v6637 = vpack.c.b16 %v6577, %v6575
        %v6638 = vpack.c.b16 %v6578, %v6576
        %v6639 = vpack.c.b16 %v6581, %v6579
        %v6640 = vpack.c.b16 %v6582, %v6580
        %v6641 = vpack.c.b16 %v6585, %v6583
        %v6642 = vpack.c.b16 %v6586, %v6584
        %v6643 = vpack.c.b16 %v6589, %v6587
        %v6644 = vpack.c.b16 %v6590, %v6588
        %v6645 = vpack.c.b16 %v6593, %v6591
        %v6646 = vpack.c.b16 %v6594, %v6592
        %v6647 = vpack.c.b16 %v6597, %v6595
        %v6648 = vpack.c.b16 %v6598, %v6596
        %v6649 = vpack.c.b16 %v6601, %v6599
        %v6650 = vpack.c.b16 %v6602, %v6600
        %v6651 = vpack.c.b16 %v6605, %v6603
        %v6652 = vpack.c.b16 %v6606, %v6604
        %v6653 = vpack.c.b16 %v6609, %v6607
        %v6654 = vpack.c.b16 %v6610, %v6608
        %v6655 = vpack.c.b16 %v6613, %v6611
        %v6656 = vpack.c.b16 %v6614, %v6612
        %v6657 = vpack.c.b16 %v6617, %v6615
        %v6658 = vpack.c.b16 %v6618, %v6616
        %v6659 = vpack.c.b16 %v6621, %v6619
        %v6660 = vpack.c.b16 %v6622, %v6620
        %v6661 = vpack.c.b16 %v6625, %v6623
        %v6662 = vpack.c.b16 %v6626, %v6624
        %v6663 = vpack.c.b16 %v6629, %v6627
        %v6664 = vpack.c.b16 %v6630, %v6628
        %v6665 = vpack.c.b16 %v6633, %v6631
        %v6666 = vpack.c.b16 %v6634, %v6632
        %6699 = vmatprep.subr.bf16.mxu0 %v6636
        %6700 = vmatpush1.bf16.msra.mxu0 %v6635
        %6701 = vmatprep.subr.bf16.mxu0 %v6638
        %6702 = vmatpush1.bf16.msra.mxu0 %v6637
        %6703 = vmatprep.subr.bf16.mxu0 %v6640
        %6704 = vmatpush1.bf16.msra.mxu0 %v6639
        %6705 = vmatprep.subr.bf16.mxu0 %v6642
        %6706 = vmatpush1.bf16.msra.mxu0 %v6641
        %6707 = vmatprep.subr.bf16.mxu0 %v6644
        %6708 = vmatpush1.bf16.msra.mxu0 %v6643
        %6709 = vmatprep.subr.bf16.mxu0 %v6646
        %6710 = vmatpush1.bf16.msra.mxu0 %v6645
        %6711 = vmatprep.subr.bf16.mxu0 %v6648
        %6712 = vmatpush1.bf16.msra.mxu0 %v6647
        %6713 = vmatprep.subr.bf16.mxu0 %v6650
        %6714 = vmatpush1.bf16.msra.mxu0 %v6649
        %6715 = vmatprep.subr.bf16.mxu0 %v6652
        %6716 = vmatpush1.bf16.msra.mxu0 %v6651
        %6717 = vmatprep.subr.bf16.mxu0 %v6654
        %6718 = vmatpush1.bf16.msra.mxu0 %v6653
        %6719 = vmatprep.subr.bf16.mxu0 %v6656
        %6720 = vmatpush1.bf16.msra.mxu0 %v6655
        %6721 = vmatprep.subr.bf16.mxu0 %v6658
        %6722 = vmatpush1.bf16.msra.mxu0 %v6657
        %6723 = vmatprep.subr.bf16.mxu0 %v6660
        %6724 = vmatpush1.bf16.msra.mxu0 %v6659
        %6725 = vmatprep.subr.bf16.mxu0 %v6662
        %6726 = vmatpush1.bf16.msra.mxu0 %v6661
        %6727 = vmatprep.subr.bf16.mxu0 %v6664
        %6728 = vmatpush1.bf16.msra.mxu0 %v6663
        %6729 = vmatprep.subr.bf16.mxu0 %v6666
        %6730 = vmatpush1.bf16.msra.mxu0 %v6665
        %6731 = vmatprep.mubr.bf16.mxu0 %v6443
        %6732 = vmatmul.mubr.bf16.gmra.mrb[0].mxu0 %v6442
        %v6733 = vpop.f32.mrb[0].mxu0
        %v6734 = vadd.f32 0.0, %v6733
        %v6735 = vpop.f32.mrb[0].mxu0
        %v6736 = vadd.f32 0.0, %v6735
        %v6737 = vpop.f32.mrb[0].mxu0
        %v6738 = vadd.f32 0.0, %v6737
        %v6739 = vpop.f32.mrb[0].mxu0
        %v6740 = vadd.f32 0.0, %v6739
        %6741 = vmatprep.mubr.bf16.mxu0 %v6445
        %6742 = vmatmul.mubr.bf16.gmra.mrb[0].mxu0 %v6444
        %v6743 = vpop.f32.mrb[0].mxu0
        %v6744 = vadd.f32 0.0, %v6743
        %v6745 = vpop.f32.mrb[0].mxu0
        %v6746 = vadd.f32 0.0, %v6745
        %v6747 = vpop.f32.mrb[0].mxu0
        %v6748 = vadd.f32 0.0, %v6747
        %v6749 = vpop.f32.mrb[0].mxu0
        %v6750 = vadd.f32 0.0, %v6749
        %6751 = vmatprep.mubr.bf16.mxu0 %v6447
        %6752 = vmatmul.mubr.bf16.gmra.mrb[0].mxu0 %v6446
        %v6753 = vpop.f32.mrb[0].mxu0
        %v6754 = vadd.f32 0.0, %v6753
        %v6755 = vpop.f32.mrb[0].mxu0
        %v6756 = vadd.f32 0.0, %v6755
        %v6757 = vpop.f32.mrb[0].mxu0
        %v6758 = vadd.f32 0.0, %v6757
        %v6759 = vpop.f32.mrb[0].mxu0
        %v6760 = vadd.f32 0.0, %v6759
        %6761 = vmatprep.mubr.bf16.mxu0 %v6449
        %6762 = vmatmul.mubr.bf16.gmra.mrb[0].mxu0 %v6448
        %v6763 = vpop.f32.mrb[0].mxu0
        %v6764 = vadd.f32 0.0, %v6763
        %v6765 = vpop.f32.mrb[0].mxu0
        %v6766 = vadd.f32 0.0, %v6765
        %v6767 = vpop.f32.mrb[0].mxu0
        %v6768 = vadd.f32 0.0, %v6767
        %v6769 = vpop.f32.mrb[0].mxu0
        %v6770 = vadd.f32 0.0, %v6769
        %6771 = vmatprep.mubr.bf16.mxu0 %v6451
        %6772 = vmatmul.mubr.bf16.gmra.mrb[0].mxu0 %v6450
        %v6773 = vpop.f32.mrb[0].mxu0
        %v6774 = vadd.f32 0.0, %v6773
        %v6775 = vpop.f32.mrb[0].mxu0
        %v6776 = vadd.f32 0.0, %v6775
        %v6777 = vpop.f32.mrb[0].mxu0
        %v6778 = vadd.f32 0.0, %v6777
        %v6779 = vpop.f32.mrb[0].mxu0
        %v6780 = vadd.f32 0.0, %v6779
        %6781 = vmatprep.mubr.bf16.mxu0 %v6453
        %6782 = vmatmul.mubr.bf16.gmra.mrb[0].mxu0 %v6452
        %v6783 = vpop.f32.mrb[0].mxu0
        %v6784 = vadd.f32 0.0, %v6783
        %v6785 = vpop.f32.mrb[0].mxu0
        %v6786 = vadd.f32 0.0, %v6785
        %v6787 = vpop.f32.mrb[0].mxu0
        %v6788 = vadd.f32 0.0, %v6787
        %v6789 = vpop.f32.mrb[0].mxu0
        %v6790 = vadd.f32 0.0, %v6789
        %6791 = vmatprep.mubr.bf16.mxu0 %v6455
        %6792 = vmatmul.mubr.bf16.gmra.mrb[0].mxu0 %v6454
        %v6793 = vpop.f32.mrb[0].mxu0
        %v6794 = vadd.f32 0.0, %v6793
        %v6795 = vpop.f32.mrb[0].mxu0
        %v6796 = vadd.f32 0.0, %v6795
        %v6797 = vpop.f32.mrb[0].mxu0
        %v6798 = vadd.f32 0.0, %v6797
        %v6799 = vpop.f32.mrb[0].mxu0
        %v6800 = vadd.f32 0.0, %v6799
        %6801 = vmatprep.mubr.bf16.mxu0 %v6457
        %6802 = vmatmul.mubr.bf16.gmra.mrb[0].mxu0 %v6456
        %v6803 = vpop.f32.mrb[0].mxu0
        %v6804 = vadd.f32 0.0, %v6803
        %v6805 = vpop.f32.mrb[0].mxu0
        %v6806 = vadd.f32 0.0, %v6805
        %v6807 = vpop.f32.mrb[0].mxu0
        %v6808 = vadd.f32 0.0, %v6807
        %v6809 = vpop.f32.mrb[0].mxu0
        %v6810 = vadd.f32 0.0, %v6809
        %6811 = vmatprep.mubr.bf16.mxu0 %v6459
        %6812 = vmatmul.mubr.bf16.gmra.mrb[0].mxu0 %v6458
        %v6813 = vpop.f32.mrb[0].mxu0
        %v6814 = vadd.f32 0.0, %v6813
        %v6815 = vpop.f32.mrb[0].mxu0
        %v6816 = vadd.f32 0.0, %v6815
        %v6817 = vpop.f32.mrb[0].mxu0
        %v6818 = vadd.f32 0.0, %v6817
        %v6819 = vpop.f32.mrb[0].mxu0
        %v6820 = vadd.f32 0.0, %v6819
        %6821 = vmatprep.mubr.bf16.mxu0 %v6461
        %6822 = vmatmul.mubr.bf16.gmra.mrb[0].mxu0 %v6460
        %v6823 = vpop.f32.mrb[0].mxu0
        %v6824 = vadd.f32 0.0, %v6823
        %v6825 = vpop.f32.mrb[0].mxu0
        %v6826 = vadd.f32 0.0, %v6825
        %v6827 = vpop.f32.mrb[0].mxu0
        %v6828 = vadd.f32 0.0, %v6827
        %v6829 = vpop.f32.mrb[0].mxu0
        %v6830 = vadd.f32 0.0, %v6829
        %6831 = vmatprep.mubr.bf16.mxu0 %v6463
        %6832 = vmatmul.mubr.bf16.gmra.mrb[0].mxu0 %v6462
        %v6833 = vpop.f32.mrb[0].mxu0
        %v6834 = vadd.f32 0.0, %v6833
        %v6835 = vpop.f32.mrb[0].mxu0
        %v6836 = vadd.f32 0.0, %v6835
        %v6837 = vpop.f32.mrb[0].mxu0
        %v6838 = vadd.f32 0.0, %v6837
        %v6839 = vpop.f32.mrb[0].mxu0
        %v6840 = vadd.f32 0.0, %v6839
        %6841 = vmatprep.mubr.bf16.mxu0 %v6465
        %6842 = vmatmul.mubr.bf16.gmra.mrb[0].mxu0 %v6464
        %v6843 = vpop.f32.mrb[0].mxu0
        %v6844 = vadd.f32 0.0, %v6843
        %v6845 = vpop.f32.mrb[0].mxu0
        %v6846 = vadd.f32 0.0, %v6845
        %v6847 = vpop.f32.mrb[0].mxu0
        %v6848 = vadd.f32 0.0, %v6847
        %v6849 = vpop.f32.mrb[0].mxu0
        %v6850 = vadd.f32 0.0, %v6849
        %6851 = vmatprep.mubr.bf16.mxu0 %v6467
        %6852 = vmatmul.mubr.bf16.gmra.mrb[0].mxu0 %v6466
        %v6853 = vpop.f32.mrb[0].mxu0
        %v6854 = vadd.f32 0.0, %v6853
        %v6855 = vpop.f32.mrb[0].mxu0
        %v6856 = vadd.f32 0.0, %v6855
        %v6857 = vpop.f32.mrb[0].mxu0
        %v6858 = vadd.f32 0.0, %v6857
        %v6859 = vpop.f32.mrb[0].mxu0
        %v6860 = vadd.f32 0.0, %v6859
        %6861 = vmatprep.mubr.bf16.mxu0 %v6469
        %6862 = vmatmul.mubr.bf16.gmra.mrb[0].mxu0 %v6468
        %v6863 = vpop.f32.mrb[0].mxu0
        %v6864 = vadd.f32 0.0, %v6863
        %v6865 = vpop.f32.mrb[0].mxu0
        %v6866 = vadd.f32 0.0, %v6865
        %v6867 = vpop.f32.mrb[0].mxu0
        %v6868 = vadd.f32 0.0, %v6867
        %v6869 = vpop.f32.mrb[0].mxu0
        %v6870 = vadd.f32 0.0, %v6869
        %6871 = vmatprep.mubr.bf16.mxu0 %v6471
        %6872 = vmatmul.mubr.bf16.gmra.mrb[0].mxu0 %v6470
        %v6873 = vpop.f32.mrb[0].mxu0
        %v6874 = vadd.f32 0.0, %v6873
        %v6875 = vpop.f32.mrb[0].mxu0
        %v6876 = vadd.f32 0.0, %v6875
        %v6877 = vpop.f32.mrb[0].mxu0
        %v6878 = vadd.f32 0.0, %v6877
        %v6879 = vpop.f32.mrb[0].mxu0
        %v6880 = vadd.f32 0.0, %v6879
        %6881 = vmatprep.mubr.bf16.mxu0 %v6473
        %6882 = vmatmul.mubr.bf16.gmra.mrb[0].mxu0 %v6472
        %v6883 = vpop.f32.mrb[0].mxu0
        %v6884 = vadd.f32 0.0, %v6883
        %v6885 = vpop.f32.mrb[0].mxu0
        %v6886 = vadd.f32 0.0, %v6885
        %v6887 = vpop.f32.mrb[0].mxu0
        %v6888 = vadd.f32 0.0, %v6887
        %v6889 = vpop.f32.mrb[0].mxu0
        %v6890 = vadd.f32 0.0, %v6889
        %6891 = vmatprep.mubr.bf16.mxu0 %v6475
        %6892 = vmatmul.mubr.bf16.gmra.mrb[0].mxu0 %v6474
        %v6893 = vpop.f32.mrb[0].mxu0
        %v6894 = vadd.f32 0.0, %v6893
        %v6895 = vpop.f32.mrb[0].mxu0
        %v6896 = vadd.f32 0.0, %v6895
        %v6897 = vpop.f32.mrb[0].mxu0
        %v6898 = vadd.f32 0.0, %v6897
        %v6899 = vpop.f32.mrb[0].mxu0
        %v6900 = vadd.f32 0.0, %v6899
        %6901 = vmatprep.mubr.bf16.mxu0 %v6477
        %6902 = vmatmul.mubr.bf16.gmra.mrb[0].mxu0 %v6476
        %v6903 = vpop.f32.mrb[0].mxu0
        %v6904 = vadd.f32 0.0, %v6903
        %v6905 = vpop.f32.mrb[0].mxu0
        %v6906 = vadd.f32 0.0, %v6905
        %v6907 = vpop.f32.mrb[0].mxu0
        %v6908 = vadd.f32 0.0, %v6907
        %v6909 = vpop.f32.mrb[0].mxu0
        %v6910 = vadd.f32 0.0, %v6909
        %6911 = vmatprep.mubr.bf16.mxu0 %v6479
        %6912 = vmatmul.mubr.bf16.gmra.mrb[0].mxu0 %v6478
        %v6913 = vpop.f32.mrb[0].mxu0
        %v6914 = vadd.f32 0.0, %v6913
        %v6915 = vpop.f32.mrb[0].mxu0
        %v6916 = vadd.f32 0.0, %v6915
        %v6917 = vpop.f32.mrb[0].mxu0
        %v6918 = vadd.f32 0.0, %v6917
        %v6919 = vpop.f32.mrb[0].mxu0
        %v6920 = vadd.f32 0.0, %v6919
        %6921 = vmatprep.mubr.bf16.mxu0 %v6481
        %6922 = vmatmul.mubr.bf16.gmra.mrb[0].mxu0 %v6480
        %v6923 = vpop.f32.mrb[0].mxu0
        %v6924 = vadd.f32 0.0, %v6923
        %v6925 = vpop.f32.mrb[0].mxu0
        %v6926 = vadd.f32 0.0, %v6925
        %v6927 = vpop.f32.mrb[0].mxu0
        %v6928 = vadd.f32 0.0, %v6927
        %v6929 = vpop.f32.mrb[0].mxu0
        %v6930 = vadd.f32 0.0, %v6929
        %6931 = vmatprep.mubr.bf16.mxu0 %v6483
        %6932 = vmatmul.mubr.bf16.gmra.mrb[0].mxu0 %v6482
        %v6933 = vpop.f32.mrb[0].mxu0
        %v6934 = vadd.f32 0.0, %v6933
        %v6935 = vpop.f32.mrb[0].mxu0
        %v6936 = vadd.f32 0.0, %v6935
        %v6937 = vpop.f32.mrb[0].mxu0
        %v6938 = vadd.f32 0.0, %v6937
        %v6939 = vpop.f32.mrb[0].mxu0
        %v6940 = vadd.f32 0.0, %v6939
        %6941 = vmatprep.mubr.bf16.mxu0 %v6485
        %6942 = vmatmul.mubr.bf16.gmra.mrb[0].mxu0 %v6484
        %v6943 = vpop.f32.mrb[0].mxu0
        %v6944 = vadd.f32 0.0, %v6943
        %v6945 = vpop.f32.mrb[0].mxu0
        %v6946 = vadd.f32 0.0, %v6945
        %v6947 = vpop.f32.mrb[0].mxu0
        %v6948 = vadd.f32 0.0, %v6947
        %v6949 = vpop.f32.mrb[0].mxu0
        %v6950 = vadd.f32 0.0, %v6949
        %6951 = vmatprep.mubr.bf16.mxu0 %v6487
        %6952 = vmatmul.mubr.bf16.gmra.mrb[0].mxu0 %v6486
        %v6953 = vpop.f32.mrb[0].mxu0
        %v6954 = vadd.f32 0.0, %v6953
        %v6955 = vpop.f32.mrb[0].mxu0
        %v6956 = vadd.f32 0.0, %v6955
        %v6957 = vpop.f32.mrb[0].mxu0
        %v6958 = vadd.f32 0.0, %v6957
        %v6959 = vpop.f32.mrb[0].mxu0
        %v6960 = vadd.f32 0.0, %v6959
        %6961 = vmatprep.mubr.bf16.mxu0 %v6489
        %6962 = vmatmul.mubr.bf16.gmra.mrb[0].mxu0 %v6488
        %v6963 = vpop.f32.mrb[0].mxu0
        %v6964 = vadd.f32 0.0, %v6963
        %v6965 = vpop.f32.mrb[0].mxu0
        %v6966 = vadd.f32 0.0, %v6965
        %v6967 = vpop.f32.mrb[0].mxu0
        %v6968 = vadd.f32 0.0, %v6967
        %v6969 = vpop.f32.mrb[0].mxu0
        %v6970 = vadd.f32 0.0, %v6969
        %6971 = vmatprep.mubr.bf16.mxu0 %v6491
        %6972 = vmatmul.mubr.bf16.gmra.mrb[0].mxu0 %v6490
        %v6973 = vpop.f32.mrb[0].mxu0
        %v6974 = vadd.f32 0.0, %v6973
        %v6975 = vpop.f32.mrb[0].mxu0
        %v6976 = vadd.f32 0.0, %v6975
        %v6977 = vpop.f32.mrb[0].mxu0
        %v6978 = vadd.f32 0.0, %v6977
        %v6979 = vpop.f32.mrb[0].mxu0
        %v6980 = vadd.f32 0.0, %v6979
        %6981 = vmatprep.mubr.bf16.mxu0 %v6493
        %6982 = vmatmul.mubr.bf16.gmra.mrb[0].mxu0 %v6492
        %v6983 = vpop.f32.mrb[0].mxu0
        %v6984 = vadd.f32 0.0, %v6983
        %v6985 = vpop.f32.mrb[0].mxu0
        %v6986 = vadd.f32 0.0, %v6985
        %v6987 = vpop.f32.mrb[0].mxu0
        %v6988 = vadd.f32 0.0, %v6987
        %v6989 = vpop.f32.mrb[0].mxu0
        %v6990 = vadd.f32 0.0, %v6989
        %6991 = vmatprep.mubr.bf16.mxu0 %v6495
        %6992 = vmatmul.mubr.bf16.gmra.mrb[0].mxu0 %v6494
        %v6993 = vpop.f32.mrb[0].mxu0
        %v6994 = vadd.f32 0.0, %v6993
        %v6995 = vpop.f32.mrb[0].mxu0
        %v6996 = vadd.f32 0.0, %v6995
        %v6997 = vpop.f32.mrb[0].mxu0
        %v6998 = vadd.f32 0.0, %v6997
        %v6999 = vpop.f32.mrb[0].mxu0
        %v7000 = vadd.f32 0.0, %v6999
        %7001 = vmatprep.mubr.bf16.mxu0 %v6497
        %7002 = vmatmul.mubr.bf16.gmra.mrb[0].mxu0 %v6496
        %v7003 = vpop.f32.mrb[0].mxu0
        %v7004 = vadd.f32 0.0, %v7003
        %v7005 = vpop.f32.mrb[0].mxu0
        %v7006 = vadd.f32 0.0, %v7005
        %v7007 = vpop.f32.mrb[0].mxu0
        %v7008 = vadd.f32 0.0, %v7007
        %v7009 = vpop.f32.mrb[0].mxu0
        %v7010 = vadd.f32 0.0, %v7009
        %7011 = vmatprep.mubr.bf16.mxu0 %v6499
        %7012 = vmatmul.mubr.bf16.gmra.mrb[0].mxu0 %v6498
        %v7013 = vpop.f32.mrb[0].mxu0
        %v7014 = vadd.f32 0.0, %v7013
        %v7015 = vpop.f32.mrb[0].mxu0
        %v7016 = vadd.f32 0.0, %v7015
        %v7017 = vpop.f32.mrb[0].mxu0
        %v7018 = vadd.f32 0.0, %v7017
        %v7019 = vpop.f32.mrb[0].mxu0
        %v7020 = vadd.f32 0.0, %v7019
        %7021 = vmatprep.mubr.bf16.mxu0 %v6501
        %7022 = vmatmul.mubr.bf16.gmra.mrb[0].mxu0 %v6500
        %v7023 = vpop.f32.mrb[0].mxu0
        %v7024 = vadd.f32 0.0, %v7023
        %v7025 = vpop.f32.mrb[0].mxu0
        %v7026 = vadd.f32 0.0, %v7025
        %v7027 = vpop.f32.mrb[0].mxu0
        %v7028 = vadd.f32 0.0, %v7027
        %v7029 = vpop.f32.mrb[0].mxu0
        %v7030 = vadd.f32 0.0, %v7029
        %7031 = vmatprep.mubr.bf16.mxu0 %v6503
        %7032 = vmatmul.mubr.bf16.gmra.mrb[0].mxu0 %v6502
        %v7033 = vpop.f32.mrb[0].mxu0
        %v7034 = vadd.f32 0.0, %v7033
        %v7035 = vpop.f32.mrb[0].mxu0
        %v7036 = vadd.f32 0.0, %v7035
        %v7037 = vpop.f32.mrb[0].mxu0
        %v7038 = vadd.f32 0.0, %v7037
        %v7039 = vpop.f32.mrb[0].mxu0
        %v7040 = vadd.f32 0.0, %v7039
        %7041 = vmatprep.mubr.bf16.mxu0 %v6505
        %7042 = vmatmul.mubr.bf16.gmra.mrb[0].mxu0 %v6504
        %v7043 = vpop.f32.mrb[0].mxu0
        %v7044 = vadd.f32 0.0, %v7043
        %v7045 = vpop.f32.mrb[0].mxu0
        %v7046 = vadd.f32 0.0, %v7045
        %v7047 = vpop.f32.mrb[0].mxu0
        %v7048 = vadd.f32 0.0, %v7047
        %v7049 = vpop.f32.mrb[0].mxu0
        %v7050 = vadd.f32 0.0, %v7049
        %7051 = vdwg.mxu0
        %v7052 = vpack.c.bf16 %v6738, %v6734
        %v7053 = vpack.c.bf16 %v6740, %v6736
        %v7054 = vpack.c.bf16 %v6748, %v6744
        %v7055 = vpack.c.bf16 %v6750, %v6746
        %v7056 = vpack.c.bf16 %v6758, %v6754
        %v7057 = vpack.c.bf16 %v6760, %v6756
        %v7058 = vpack.c.bf16 %v6768, %v6764
        %v7059 = vpack.c.bf16 %v6770, %v6766
        %v7060 = vpack.c.bf16 %v6778, %v6774
        %v7061 = vpack.c.bf16 %v6780, %v6776
        %v7062 = vpack.c.bf16 %v6788, %v6784
        %v7063 = vpack.c.bf16 %v6790, %v6786
        %v7064 = vpack.c.bf16 %v6798, %v6794
        %v7065 = vpack.c.bf16 %v6800, %v6796
        %v7066 = vpack.c.bf16 %v6808, %v6804
        %v7067 = vpack.c.bf16 %v6810, %v6806
        %v7068 = vpack.c.bf16 %v6818, %v6814
        %v7069 = vpack.c.bf16 %v6820, %v6816
        %v7070 = vpack.c.bf16 %v6828, %v6824
        %v7071 = vpack.c.bf16 %v6830, %v6826
        %v7072 = vpack.c.bf16 %v6838, %v6834
        %v7073 = vpack.c.bf16 %v6840, %v6836
        %v7074 = vpack.c.bf16 %v6848, %v6844
        %v7075 = vpack.c.bf16 %v6850, %v6846
        %v7076 = vpack.c.bf16 %v6858, %v6854
        %v7077 = vpack.c.bf16 %v6860, %v6856
        %v7078 = vpack.c.bf16 %v6868, %v6864
        %v7079 = vpack.c.bf16 %v6870, %v6866
        %v7080 = vpack.c.bf16 %v6878, %v6874
        %v7081 = vpack.c.bf16 %v6880, %v6876
        %v7082 = vpack.c.bf16 %v6888, %v6884
        %v7083 = vpack.c.bf16 %v6890, %v6886
        %v7084 = vpack.c.bf16 %v6898, %v6894
        %v7085 = vpack.c.bf16 %v6900, %v6896
        %v7086 = vpack.c.bf16 %v6908, %v6904
        %v7087 = vpack.c.bf16 %v6910, %v6906
        %v7088 = vpack.c.bf16 %v6918, %v6914
        %v7089 = vpack.c.bf16 %v6920, %v6916
        %v7090 = vpack.c.bf16 %v6928, %v6924
        %v7091 = vpack.c.bf16 %v6930, %v6926
        %v7092 = vpack.c.bf16 %v6938, %v6934
        %v7093 = vpack.c.bf16 %v6940, %v6936
        %v7094 = vpack.c.bf16 %v6948, %v6944
        %v7095 = vpack.c.bf16 %v6950, %v6946
        %v7096 = vpack.c.bf16 %v6958, %v6954
        %v7097 = vpack.c.bf16 %v6960, %v6956
        %v7098 = vpack.c.bf16 %v6968, %v6964
        %v7099 = vpack.c.bf16 %v6970, %v6966
        %v7100 = vpack.c.bf16 %v6978, %v6974
        %v7101 = vpack.c.bf16 %v6980, %v6976
        %v7102 = vpack.c.bf16 %v6988, %v6984
        %v7103 = vpack.c.bf16 %v6990, %v6986
        %v7104 = vpack.c.bf16 %v6998, %v6994
        %v7105 = vpack.c.bf16 %v7000, %v6996
        %v7106 = vpack.c.bf16 %v7008, %v7004
        %v7107 = vpack.c.bf16 %v7010, %v7006
        %v7108 = vpack.c.bf16 %v7018, %v7014
        %v7109 = vpack.c.bf16 %v7020, %v7016
        %v7110 = vpack.c.bf16 %v7028, %v7024
        %v7111 = vpack.c.bf16 %v7030, %v7026
        %v7112 = vpack.c.bf16 %v7038, %v7034
        %v7113 = vpack.c.bf16 %v7040, %v7036
        %v7114 = vpack.c.bf16 %v7048, %v7044
        %v7115 = vpack.c.bf16 %v7050, %v7046
        %s7116 = scalar_lea.vmem %s3, 12
        %v7117 = vld [vmem:[%s7116] sm:$0x3]
        %v7119 = vlaneseq
        %v7120 = vshrl.u32 %v7119, 7
        %v7121 = vsub.s32 0, %v7120
        %v7122 = vrot.slane %v7117, %v7121
        %v7123 = vlaneseq
        %v7124 = vshrl.u32 %v7123, 7
        %v7125 = vsub.s32 1, %v7124
        %v7126 = vrot.slane %v7117, %v7125
        %v7129 = vpack.c.bf16 %v7122, %v7122
        %v7130 = vpack.c.bf16 %v7126, %v7126
        %v7132 = vpack.i.b16 %v7129, %v7129
        %v7134 = vlaneseq
        %v7135 = vshrl.u32 %v7134, 7
        %v7136 = vsub.s32 0, %v7135
        %v7137 = vrot.slane %v7132, %v7136
        %v7139 = vpack.i.b16 %v7130, %v7130
        %v7141 = vlaneseq
        %v7142 = vshrl.u32 %v7141, 7
        %v7143 = vsub.s32 0, %v7142
        %v7144 = vrot.slane %v7139, %v7143
        %v7145 = vadd.bf16 %v7052, %v7137
        %v7146 = vadd.bf16 %v7053, %v7144
        %v7147 = vadd.bf16 %v7054, %v7137
        %v7148 = vadd.bf16 %v7055, %v7144
        %v7149 = vadd.bf16 %v7056, %v7137
        %v7150 = vadd.bf16 %v7057, %v7144
        %v7151 = vadd.bf16 %v7058, %v7137
        %v7152 = vadd.bf16 %v7059, %v7144
        %v7153 = vadd.bf16 %v7060, %v7137
        %v7154 = vadd.bf16 %v7061, %v7144
        %v7155 = vadd.bf16 %v7062, %v7137
        %v7156 = vadd.bf16 %v7063, %v7144
        %v7157 = vadd.bf16 %v7064, %v7137
        %v7158 = vadd.bf16 %v7065, %v7144
        %v7159 = vadd.bf16 %v7066, %v7137
        %v7160 = vadd.bf16 %v7067, %v7144
        %v7161 = vadd.bf16 %v7068, %v7137
        %v7162 = vadd.bf16 %v7069, %v7144
        %v7163 = vadd.bf16 %v7070, %v7137
        %v7164 = vadd.bf16 %v7071, %v7144
        %v7165 = vadd.bf16 %v7072, %v7137
        %v7166 = vadd.bf16 %v7073, %v7144
        %v7167 = vadd.bf16 %v7074, %v7137
        %v7168 = vadd.bf16 %v7075, %v7144
        %v7169 = vadd.bf16 %v7076, %v7137
        %v7170 = vadd.bf16 %v7077, %v7144
        %v7171 = vadd.bf16 %v7078, %v7137
        %v7172 = vadd.bf16 %v7079, %v7144
        %v7173 = vadd.bf16 %v7080, %v7137
        %v7174 = vadd.bf16 %v7081, %v7144
        %v7175 = vadd.bf16 %v7082, %v7137
        %v7176 = vadd.bf16 %v7083, %v7144
        %v7177 = vadd.bf16 %v7084, %v7137
        %v7178 = vadd.bf16 %v7085, %v7144
        %v7179 = vadd.bf16 %v7086, %v7137
        %v7180 = vadd.bf16 %v7087, %v7144
        %v7181 = vadd.bf16 %v7088, %v7137
        %v7182 = vadd.bf16 %v7089, %v7144
        %v7183 = vadd.bf16 %v7090, %v7137
        %v7184 = vadd.bf16 %v7091, %v7144
        %v7185 = vadd.bf16 %v7092, %v7137
        %v7186 = vadd.bf16 %v7093, %v7144
        %v7187 = vadd.bf16 %v7094, %v7137
        %v7188 = vadd.bf16 %v7095, %v7144
        %v7189 = vadd.bf16 %v7096, %v7137
        %v7190 = vadd.bf16 %v7097, %v7144
        %v7191 = vadd.bf16 %v7098, %v7137
        %v7192 = vadd.bf16 %v7099, %v7144
        %v7193 = vadd.bf16 %v7100, %v7137
        %v7194 = vadd.bf16 %v7101, %v7144
        %v7195 = vadd.bf16 %v7102, %v7137
        %v7196 = vadd.bf16 %v7103, %v7144
        %v7197 = vadd.bf16 %v7104, %v7137
        %v7198 = vadd.bf16 %v7105, %v7144
        %v7199 = vadd.bf16 %v7106, %v7137
        %v7200 = vadd.bf16 %v7107, %v7144
        %v7201 = vadd.bf16 %v7108, %v7137
        %v7202 = vadd.bf16 %v7109, %v7144
        %v7203 = vadd.bf16 %v7110, %v7137
        %v7204 = vadd.bf16 %v7111, %v7144
        %v7205 = vadd.bf16 %v7112, %v7137
        %v7206 = vadd.bf16 %v7113, %v7144
        %v7207 = vadd.bf16 %v7114, %v7137
        %v7208 = vadd.bf16 %v7115, %v7144
        %v7209 = vmax.bf16 %v7145, 0
        %v7210 = vmax.bf16 %v7146, 0
        %v7211 = vmax.bf16 %v7147, 0
        %v7212 = vmax.bf16 %v7148, 0
        %v7213 = vmax.bf16 %v7149, 0
        %v7214 = vmax.bf16 %v7150, 0
        %v7215 = vmax.bf16 %v7151, 0
        %v7216 = vmax.bf16 %v7152, 0
        %v7217 = vmax.bf16 %v7153, 0
        %v7218 = vmax.bf16 %v7154, 0
        %v7219 = vmax.bf16 %v7155, 0
        %v7220 = vmax.bf16 %v7156, 0
        %v7221 = vmax.bf16 %v7157, 0
        %v7222 = vmax.bf16 %v7158, 0
        %v7223 = vmax.bf16 %v7159, 0
        %v7224 = vmax.bf16 %v7160, 0
        %v7225 = vmax.bf16 %v7161, 0
        %v7226 = vmax.bf16 %v7162, 0
        %v7227 = vmax.bf16 %v7163, 0
        %v7228 = vmax.bf16 %v7164, 0
        %v7229 = vmax.bf16 %v7165, 0
        %v7230 = vmax.bf16 %v7166, 0
        %v7231 = vmax.bf16 %v7167, 0
        %v7232 = vmax.bf16 %v7168, 0
        %v7233 = vmax.bf16 %v7169, 0
        %v7234 = vmax.bf16 %v7170, 0
        %v7235 = vmax.bf16 %v7171, 0
        %v7236 = vmax.bf16 %v7172, 0
        %v7237 = vmax.bf16 %v7173, 0
        %v7238 = vmax.bf16 %v7174, 0
        %v7239 = vmax.bf16 %v7175, 0
        %v7240 = vmax.bf16 %v7176, 0
        %v7241 = vmax.bf16 %v7177, 0
        %v7242 = vmax.bf16 %v7178, 0
        %v7243 = vmax.bf16 %v7179, 0
        %v7244 = vmax.bf16 %v7180, 0
        %v7245 = vmax.bf16 %v7181, 0
        %v7246 = vmax.bf16 %v7182, 0
        %v7247 = vmax.bf16 %v7183, 0
        %v7248 = vmax.bf16 %v7184, 0
        %v7249 = vmax.bf16 %v7185, 0
        %v7250 = vmax.bf16 %v7186, 0
        %v7251 = vmax.bf16 %v7187, 0
        %v7252 = vmax.bf16 %v7188, 0
        %v7253 = vmax.bf16 %v7189, 0
        %v7254 = vmax.bf16 %v7190, 0
        %v7255 = vmax.bf16 %v7191, 0
        %v7256 = vmax.bf16 %v7192, 0
        %v7257 = vmax.bf16 %v7193, 0
        %v7258 = vmax.bf16 %v7194, 0
        %v7259 = vmax.bf16 %v7195, 0
        %v7260 = vmax.bf16 %v7196, 0
        %v7261 = vmax.bf16 %v7197, 0
        %v7262 = vmax.bf16 %v7198, 0
        %v7263 = vmax.bf16 %v7199, 0
        %v7264 = vmax.bf16 %v7200, 0
        %v7265 = vmax.bf16 %v7201, 0
        %v7266 = vmax.bf16 %v7202, 0
        %v7267 = vmax.bf16 %v7203, 0
        %v7268 = vmax.bf16 %v7204, 0
        %v7269 = vmax.bf16 %v7205, 0
        %v7270 = vmax.bf16 %v7206, 0
        %v7271 = vmax.bf16 %v7207, 0
        %v7272 = vmax.bf16 %v7208, 0
        %7273 = vst [vmem:[#allocation2] sm:$0xff] %v7209
        %7274 = vst [vmem:[#allocation2 + $0x8] sm:$0xff] %v7210
        %7275 = vst [vmem:[#allocation2 + $0x10] sm:$0xff] %v7211
        %7276 = vst [vmem:[#allocation2 + $0x18] sm:$0xff] %v7212
        %7277 = vst [vmem:[#allocation2 + $0x20] sm:$0xff] %v7213
        %7278 = vst [vmem:[#allocation2 + $0x28] sm:$0xff] %v7214
        %7279 = vst [vmem:[#allocation2 + $0x30] sm:$0xff] %v7215
        %7280 = vst [vmem:[#allocation2 + $0x38] sm:$0xff] %v7216
        %7281 = vst [vmem:[#allocation2 + $0x40] sm:$0xff] %v7217
        %7282 = vst [vmem:[#allocation2 + $0x48] sm:$0xff] %v7218
        %7283 = vst [vmem:[#allocation2 + $0x50] sm:$0xff] %v7219
        %7284 = vst [vmem:[#allocation2 + $0x58] sm:$0xff] %v7220
        %7285 = vst [vmem:[#allocation2 + $0x60] sm:$0xff] %v7221
        %7286 = vst [vmem:[#allocation2 + $0x68] sm:$0xff] %v7222
        %7287 = vst [vmem:[#allocation2 + $0x70] sm:$0xff] %v7223
        %7288 = vst [vmem:[#allocation2 + $0x78] sm:$0xff] %v7224
        %7289 = vst [vmem:[#allocation2 + $0x80] sm:$0xff] %v7225
        %7290 = vst [vmem:[#allocation2 + $0x88] sm:$0xff] %v7226
        %7291 = vst [vmem:[#allocation2 + $0x90] sm:$0xff] %v7227
        %7292 = vst [vmem:[#allocation2 + $0x98] sm:$0xff] %v7228
        %7293 = vst [vmem:[#allocation2 + $0xa0] sm:$0xff] %v7229
        %7294 = vst [vmem:[#allocation2 + $0xa8] sm:$0xff] %v7230
        %7295 = vst [vmem:[#allocation2 + $0xb0] sm:$0xff] %v7231
        %7296 = vst [vmem:[#allocation2 + $0xb8] sm:$0xff] %v7232
        %7297 = vst [vmem:[#allocation2 + $0xc0] sm:$0xff] %v7233
        %7298 = vst [vmem:[#allocation2 + $0xc8] sm:$0xff] %v7234
        %7299 = vst [vmem:[#allocation2 + $0xd0] sm:$0xff] %v7235
        %7300 = vst [vmem:[#allocation2 + $0xd8] sm:$0xff] %v7236
        %7301 = vst [vmem:[#allocation2 + $0xe0] sm:$0xff] %v7237
        %7302 = vst [vmem:[#allocation2 + $0xe8] sm:$0xff] %v7238
        %7303 = vst [vmem:[#allocation2 + $0xf0] sm:$0xff] %v7239
        %7304 = vst [vmem:[#allocation2 + $0xf8] sm:$0xff] %v7240
        %7305 = vst [vmem:[#allocation2 + $0x100] sm:$0xff] %v7241
        %7306 = vst [vmem:[#allocation2 + $0x108] sm:$0xff] %v7242
        %7307 = vst [vmem:[#allocation2 + $0x110] sm:$0xff] %v7243
        %7308 = vst [vmem:[#allocation2 + $0x118] sm:$0xff] %v7244
        %7309 = vst [vmem:[#allocation2 + $0x120] sm:$0xff] %v7245
        %7310 = vst [vmem:[#allocation2 + $0x128] sm:$0xff] %v7246
        %7311 = vst [vmem:[#allocation2 + $0x130] sm:$0xff] %v7247
        %7312 = vst [vmem:[#allocation2 + $0x138] sm:$0xff] %v7248
        %7313 = vst [vmem:[#allocation2 + $0x140] sm:$0xff] %v7249
        %7314 = vst [vmem:[#allocation2 + $0x148] sm:$0xff] %v7250
        %7315 = vst [vmem:[#allocation2 + $0x150] sm:$0xff] %v7251
        %7316 = vst [vmem:[#allocation2 + $0x158] sm:$0xff] %v7252
        %7317 = vst [vmem:[#allocation2 + $0x160] sm:$0xff] %v7253
        %7318 = vst [vmem:[#allocation2 + $0x168] sm:$0xff] %v7254
        %7319 = vst [vmem:[#allocation2 + $0x170] sm:$0xff] %v7255
        %7320 = vst [vmem:[#allocation2 + $0x178] sm:$0xff] %v7256
        %7321 = vst [vmem:[#allocation2 + $0x180] sm:$0xff] %v7257
        %7322 = vst [vmem:[#allocation2 + $0x188] sm:$0xff] %v7258
        %7323 = vst [vmem:[#allocation2 + $0x190] sm:$0xff] %v7259
        %7324 = vst [vmem:[#allocation2 + $0x198] sm:$0xff] %v7260
        %7325 = vst [vmem:[#allocation2 + $0x1a0] sm:$0xff] %v7261
        %7326 = vst [vmem:[#allocation2 + $0x1a8] sm:$0xff] %v7262
        %7327 = vst [vmem:[#allocation2 + $0x1b0] sm:$0xff] %v7263
        %7328 = vst [vmem:[#allocation2 + $0x1b8] sm:$0xff] %v7264
        %7329 = vst [vmem:[#allocation2 + $0x1c0] sm:$0xff] %v7265
        %7330 = vst [vmem:[#allocation2 + $0x1c8] sm:$0xff] %v7266
        %7331 = vst [vmem:[#allocation2 + $0x1d0] sm:$0xff] %v7267
        %7332 = vst [vmem:[#allocation2 + $0x1d8] sm:$0xff] %v7268
        %7333 = vst [vmem:[#allocation2 + $0x1e0] sm:$0xff] %v7269
        %7334 = vst [vmem:[#allocation2 + $0x1e8] sm:$0xff] %v7270
        %7335 = vst [vmem:[#allocation2 + $0x1f0] sm:$0xff] %v7271
        %7336 = vst [vmem:[#allocation2 + $0x1f8] sm:$0xff] %v7272
        %v7337 = vld [vmem:[#allocation2] sm:$0xff]
        %v7338 = vld [vmem:[#allocation2 + $0x8] sm:$0xff]
        %v7339 = vld [vmem:[#allocation2 + $0x10] sm:$0xff]
        %v7340 = vld [vmem:[#allocation2 + $0x18] sm:$0xff]
        %v7341 = vld [vmem:[#allocation2 + $0x20] sm:$0xff]
        %v7342 = vld [vmem:[#allocation2 + $0x28] sm:$0xff]
        %v7343 = vld [vmem:[#allocation2 + $0x30] sm:$0xff]
        %v7344 = vld [vmem:[#allocation2 + $0x38] sm:$0xff]
        %v7345 = vld [vmem:[#allocation2 + $0x40] sm:$0xff]
        %v7346 = vld [vmem:[#allocation2 + $0x48] sm:$0xff]
        %v7347 = vld [vmem:[#allocation2 + $0x50] sm:$0xff]
        %v7348 = vld [vmem:[#allocation2 + $0x58] sm:$0xff]
        %v7349 = vld [vmem:[#allocation2 + $0x60] sm:$0xff]
        %v7350 = vld [vmem:[#allocation2 + $0x68] sm:$0xff]
        %v7351 = vld [vmem:[#allocation2 + $0x70] sm:$0xff]
        %v7352 = vld [vmem:[#allocation2 + $0x78] sm:$0xff]
        %v7353 = vld [vmem:[#allocation2 + $0x80] sm:$0xff]
        %v7354 = vld [vmem:[#allocation2 + $0x88] sm:$0xff]
        %v7355 = vld [vmem:[#allocation2 + $0x90] sm:$0xff]
        %v7356 = vld [vmem:[#allocation2 + $0x98] sm:$0xff]
        %v7357 = vld [vmem:[#allocation2 + $0xa0] sm:$0xff]
        %v7358 = vld [vmem:[#allocation2 + $0xa8] sm:$0xff]
        %v7359 = vld [vmem:[#allocation2 + $0xb0] sm:$0xff]
        %v7360 = vld [vmem:[#allocation2 + $0xb8] sm:$0xff]
        %v7361 = vld [vmem:[#allocation2 + $0xc0] sm:$0xff]
        %v7362 = vld [vmem:[#allocation2 + $0xc8] sm:$0xff]
        %v7363 = vld [vmem:[#allocation2 + $0xd0] sm:$0xff]
        %v7364 = vld [vmem:[#allocation2 + $0xd8] sm:$0xff]
        %v7365 = vld [vmem:[#allocation2 + $0xe0] sm:$0xff]
        %v7366 = vld [vmem:[#allocation2 + $0xe8] sm:$0xff]
        %v7367 = vld [vmem:[#allocation2 + $0xf0] sm:$0xff]
        %v7368 = vld [vmem:[#allocation2 + $0xf8] sm:$0xff]
        %v7369 = vld [vmem:[#allocation2 + $0x100] sm:$0xff]
        %v7370 = vld [vmem:[#allocation2 + $0x108] sm:$0xff]
        %v7371 = vld [vmem:[#allocation2 + $0x110] sm:$0xff]
        %v7372 = vld [vmem:[#allocation2 + $0x118] sm:$0xff]
        %v7373 = vld [vmem:[#allocation2 + $0x120] sm:$0xff]
        %v7374 = vld [vmem:[#allocation2 + $0x128] sm:$0xff]
        %v7375 = vld [vmem:[#allocation2 + $0x130] sm:$0xff]
        %v7376 = vld [vmem:[#allocation2 + $0x138] sm:$0xff]
        %v7377 = vld [vmem:[#allocation2 + $0x140] sm:$0xff]
        %v7378 = vld [vmem:[#allocation2 + $0x148] sm:$0xff]
        %v7379 = vld [vmem:[#allocation2 + $0x150] sm:$0xff]
        %v7380 = vld [vmem:[#allocation2 + $0x158] sm:$0xff]
        %v7381 = vld [vmem:[#allocation2 + $0x160] sm:$0xff]
        %v7382 = vld [vmem:[#allocation2 + $0x168] sm:$0xff]
        %v7383 = vld [vmem:[#allocation2 + $0x170] sm:$0xff]
        %v7384 = vld [vmem:[#allocation2 + $0x178] sm:$0xff]
        %v7385 = vld [vmem:[#allocation2 + $0x180] sm:$0xff]
        %v7386 = vld [vmem:[#allocation2 + $0x188] sm:$0xff]
        %v7387 = vld [vmem:[#allocation2 + $0x190] sm:$0xff]
        %v7388 = vld [vmem:[#allocation2 + $0x198] sm:$0xff]
        %v7389 = vld [vmem:[#allocation2 + $0x1a0] sm:$0xff]
        %v7390 = vld [vmem:[#allocation2 + $0x1a8] sm:$0xff]
        %v7391 = vld [vmem:[#allocation2 + $0x1b0] sm:$0xff]
        %v7392 = vld [vmem:[#allocation2 + $0x1b8] sm:$0xff]
        %v7393 = vld [vmem:[#allocation2 + $0x1c0] sm:$0xff]
        %v7394 = vld [vmem:[#allocation2 + $0x1c8] sm:$0xff]
        %v7395 = vld [vmem:[#allocation2 + $0x1d0] sm:$0xff]
        %v7396 = vld [vmem:[#allocation2 + $0x1d8] sm:$0xff]
        %v7397 = vld [vmem:[#allocation2 + $0x1e0] sm:$0xff]
        %v7398 = vld [vmem:[#allocation2 + $0x1e8] sm:$0xff]
        %v7399 = vld [vmem:[#allocation2 + $0x1f0] sm:$0xff]
        %v7400 = vld [vmem:[#allocation2 + $0x1f8] sm:$0xff]
        %s7401 = scalar_lea.vmem [#allocation4], 1536
        %v7402 = vld [vmem:[%s7401] sm:$0xff]
        %v7403 = vld [vmem:[%s7401 + $0x8] sm:$0xff]
        %v7404 = vld [vmem:[%s7401 + $0x10] sm:$0xff]
        %v7405 = vld [vmem:[%s7401 + $0x18] sm:$0xff]
        %v7406 = vld [vmem:[%s7401 + $0x20] sm:$0xff]
        %v7407 = vld [vmem:[%s7401 + $0x28] sm:$0xff]
        %v7408 = vld [vmem:[%s7401 + $0x30] sm:$0xff]
        %v7409 = vld [vmem:[%s7401 + $0x38] sm:$0xff]
        %v7410 = vld [vmem:[%s7401 + $0x40] sm:$0xff]
        %v7411 = vld [vmem:[%s7401 + $0x48] sm:$0xff]
        %v7412 = vld [vmem:[%s7401 + $0x50] sm:$0xff]
        %v7413 = vld [vmem:[%s7401 + $0x58] sm:$0xff]
        %v7414 = vld [vmem:[%s7401 + $0x60] sm:$0xff]
        %v7415 = vld [vmem:[%s7401 + $0x68] sm:$0xff]
        %v7416 = vld [vmem:[%s7401 + $0x70] sm:$0xff]
        %v7417 = vld [vmem:[%s7401 + $0x78] sm:$0xff]
        %v7418 = vld [vmem:[%s7401 + $0x80] sm:$0xff]
        %v7419 = vld [vmem:[%s7401 + $0x88] sm:$0xff]
        %v7420 = vld [vmem:[%s7401 + $0x90] sm:$0xff]
        %v7421 = vld [vmem:[%s7401 + $0x98] sm:$0xff]
        %v7422 = vld [vmem:[%s7401 + $0xa0] sm:$0xff]
        %v7423 = vld [vmem:[%s7401 + $0xa8] sm:$0xff]
        %v7424 = vld [vmem:[%s7401 + $0xb0] sm:$0xff]
        %v7425 = vld [vmem:[%s7401 + $0xb8] sm:$0xff]
        %v7426 = vld [vmem:[%s7401 + $0xc0] sm:$0xff]
        %v7427 = vld [vmem:[%s7401 + $0xc8] sm:$0xff]
        %v7428 = vld [vmem:[%s7401 + $0xd0] sm:$0xff]
        %v7429 = vld [vmem:[%s7401 + $0xd8] sm:$0xff]
        %v7430 = vld [vmem:[%s7401 + $0xe0] sm:$0xff]
        %v7431 = vld [vmem:[%s7401 + $0xe8] sm:$0xff]
        %v7432 = vld [vmem:[%s7401 + $0xf0] sm:$0xff]
        %v7433 = vld [vmem:[%s7401 + $0xf8] sm:$0xff]
        %v7466 = vunpack.c.l.b16 %v7402
        %v7467 = vunpack.c.h.b16 %v7402
        %v7468 = vunpack.c.l.b16 %v7403
        %v7469 = vunpack.c.h.b16 %v7403
        %v7470 = vunpack.c.l.b16 %v7404
        %v7471 = vunpack.c.h.b16 %v7404
        %v7472 = vunpack.c.l.b16 %v7405
        %v7473 = vunpack.c.h.b16 %v7405
        %v7474 = vunpack.c.l.b16 %v7406
        %v7475 = vunpack.c.h.b16 %v7406
        %v7476 = vunpack.c.l.b16 %v7407
        %v7477 = vunpack.c.h.b16 %v7407
        %v7478 = vunpack.c.l.b16 %v7408
        %v7479 = vunpack.c.h.b16 %v7408
        %v7480 = vunpack.c.l.b16 %v7409
        %v7481 = vunpack.c.h.b16 %v7409
        %v7482 = vunpack.c.l.b16 %v7410
        %v7483 = vunpack.c.h.b16 %v7410
        %v7484 = vunpack.c.l.b16 %v7411
        %v7485 = vunpack.c.h.b16 %v7411
        %v7486 = vunpack.c.l.b16 %v7412
        %v7487 = vunpack.c.h.b16 %v7412
        %v7488 = vunpack.c.l.b16 %v7413
        %v7489 = vunpack.c.h.b16 %v7413
        %v7490 = vunpack.c.l.b16 %v7414
        %v7491 = vunpack.c.h.b16 %v7414
        %v7492 = vunpack.c.l.b16 %v7415
        %v7493 = vunpack.c.h.b16 %v7415
        %v7494 = vunpack.c.l.b16 %v7416
        %v7495 = vunpack.c.h.b16 %v7416
        %v7496 = vunpack.c.l.b16 %v7417
        %v7497 = vunpack.c.h.b16 %v7417
        %v7498 = vunpack.c.l.b16 %v7418
        %v7499 = vunpack.c.h.b16 %v7418
        %v7500 = vunpack.c.l.b16 %v7419
        %v7501 = vunpack.c.h.b16 %v7419
        %v7502 = vunpack.c.l.b16 %v7420
        %v7503 = vunpack.c.h.b16 %v7420
        %v7504 = vunpack.c.l.b16 %v7421
        %v7505 = vunpack.c.h.b16 %v7421
        %v7506 = vunpack.c.l.b16 %v7422
        %v7507 = vunpack.c.h.b16 %v7422
        %v7508 = vunpack.c.l.b16 %v7423
        %v7509 = vunpack.c.h.b16 %v7423
        %v7510 = vunpack.c.l.b16 %v7424
        %v7511 = vunpack.c.h.b16 %v7424
        %v7512 = vunpack.c.l.b16 %v7425
        %v7513 = vunpack.c.h.b16 %v7425
        %v7514 = vunpack.c.l.b16 %v7426
        %v7515 = vunpack.c.h.b16 %v7426
        %v7516 = vunpack.c.l.b16 %v7427
        %v7517 = vunpack.c.h.b16 %v7427
        %v7518 = vunpack.c.l.b16 %v7428
        %v7519 = vunpack.c.h.b16 %v7428
        %v7520 = vunpack.c.l.b16 %v7429
        %v7521 = vunpack.c.h.b16 %v7429
        %v7522 = vunpack.c.l.b16 %v7430
        %v7523 = vunpack.c.h.b16 %v7430
        %v7524 = vunpack.c.l.b16 %v7431
        %v7525 = vunpack.c.h.b16 %v7431
        %v7526 = vunpack.c.l.b16 %v7432
        %v7527 = vunpack.c.h.b16 %v7432
        %v7528 = vunpack.c.l.b16 %v7433
        %v7529 = vunpack.c.h.b16 %v7433
        %v7530 = vpack.c.b16 %v7468, %v7466
        %v7531 = vpack.c.b16 %v7469, %v7467
        %v7532 = vpack.c.b16 %v7472, %v7470
        %v7533 = vpack.c.b16 %v7473, %v7471
        %v7534 = vpack.c.b16 %v7476, %v7474
        %v7535 = vpack.c.b16 %v7477, %v7475
        %v7536 = vpack.c.b16 %v7480, %v7478
        %v7537 = vpack.c.b16 %v7481, %v7479
        %v7538 = vpack.c.b16 %v7484, %v7482
        %v7539 = vpack.c.b16 %v7485, %v7483
        %v7540 = vpack.c.b16 %v7488, %v7486
        %v7541 = vpack.c.b16 %v7489, %v7487
        %v7542 = vpack.c.b16 %v7492, %v7490
        %v7543 = vpack.c.b16 %v7493, %v7491
        %v7544 = vpack.c.b16 %v7496, %v7494
        %v7545 = vpack.c.b16 %v7497, %v7495
        %v7546 = vpack.c.b16 %v7500, %v7498
        %v7547 = vpack.c.b16 %v7501, %v7499
        %v7548 = vpack.c.b16 %v7504, %v7502
        %v7549 = vpack.c.b16 %v7505, %v7503
        %v7550 = vpack.c.b16 %v7508, %v7506
        %v7551 = vpack.c.b16 %v7509, %v7507
        %v7552 = vpack.c.b16 %v7512, %v7510
        %v7553 = vpack.c.b16 %v7513, %v7511
        %v7554 = vpack.c.b16 %v7516, %v7514
        %v7555 = vpack.c.b16 %v7517, %v7515
        %v7556 = vpack.c.b16 %v7520, %v7518
        %v7557 = vpack.c.b16 %v7521, %v7519
        %v7558 = vpack.c.b16 %v7524, %v7522
        %v7559 = vpack.c.b16 %v7525, %v7523
        %v7560 = vpack.c.b16 %v7528, %v7526
        %v7561 = vpack.c.b16 %v7529, %v7527
        %7594 = vmatprep.subr.bf16.mxu0 %v7531
        %7595 = vmatpush1.bf16.msra.mxu0 %v7530
        %7596 = vmatprep.subr.bf16.mxu0 %v7533
        %7597 = vmatpush1.bf16.msra.mxu0 %v7532
        %7598 = vmatprep.subr.bf16.mxu0 %v7535
        %7599 = vmatpush1.bf16.msra.mxu0 %v7534
        %7600 = vmatprep.subr.bf16.mxu0 %v7537
        %7601 = vmatpush1.bf16.msra.mxu0 %v7536
        %7602 = vmatprep.subr.bf16.mxu0 %v7539
        %7603 = vmatpush1.bf16.msra.mxu0 %v7538
        %7604 = vmatprep.subr.bf16.mxu0 %v7541
        %7605 = vmatpush1.bf16.msra.mxu0 %v7540
        %7606 = vmatprep.subr.bf16.mxu0 %v7543
        %7607 = vmatpush1.bf16.msra.mxu0 %v7542
        %7608 = vmatprep.subr.bf16.mxu0 %v7545
        %7609 = vmatpush1.bf16.msra.mxu0 %v7544
        %7610 = vmatprep.subr.bf16.mxu0 %v7547
        %7611 = vmatpush1.bf16.msra.mxu0 %v7546
        %7612 = vmatprep.subr.bf16.mxu0 %v7549
        %7613 = vmatpush1.bf16.msra.mxu0 %v7548
        %7614 = vmatprep.subr.bf16.mxu0 %v7551
        %7615 = vmatpush1.bf16.msra.mxu0 %v7550
        %7616 = vmatprep.subr.bf16.mxu0 %v7553
        %7617 = vmatpush1.bf16.msra.mxu0 %v7552
        %7618 = vmatprep.subr.bf16.mxu0 %v7555
        %7619 = vmatpush1.bf16.msra.mxu0 %v7554
        %7620 = vmatprep.subr.bf16.mxu0 %v7557
        %7621 = vmatpush1.bf16.msra.mxu0 %v7556
        %7622 = vmatprep.subr.bf16.mxu0 %v7559
        %7623 = vmatpush1.bf16.msra.mxu0 %v7558
        %7624 = vmatprep.subr.bf16.mxu0 %v7561
        %7625 = vmatpush1.bf16.msra.mxu0 %v7560
        %7626 = vmatprep.mubr.bf16.mxu0 %v7338
        %7627 = vmatmul.mubr.bf16.gmra.mrb[0].mxu0 %v7337
        %v7628 = vpop.f32.mrb[0].mxu0
        %v7629 = vadd.f32 0.0, %v7628
        %v7630 = vpop.f32.mrb[0].mxu0
        %v7631 = vadd.f32 0.0, %v7630
        %v7632 = vpop.f32.mrb[0].mxu0
        %v7633 = vadd.f32 0.0, %v7632
        %v7634 = vpop.f32.mrb[0].mxu0
        %v7635 = vadd.f32 0.0, %v7634
        %7636 = vmatprep.mubr.bf16.mxu0 %v7340
        %7637 = vmatmul.mubr.bf16.gmra.mrb[0].mxu0 %v7339
        %v7638 = vpop.f32.mrb[0].mxu0
        %v7639 = vadd.f32 0.0, %v7638
        %v7640 = vpop.f32.mrb[0].mxu0
        %v7641 = vadd.f32 0.0, %v7640
        %v7642 = vpop.f32.mrb[0].mxu0
        %v7643 = vadd.f32 0.0, %v7642
        %v7644 = vpop.f32.mrb[0].mxu0
        %v7645 = vadd.f32 0.0, %v7644
        %7646 = vmatprep.mubr.bf16.mxu0 %v7342
        %7647 = vmatmul.mubr.bf16.gmra.mrb[0].mxu0 %v7341
        %v7648 = vpop.f32.mrb[0].mxu0
        %v7649 = vadd.f32 0.0, %v7648
        %v7650 = vpop.f32.mrb[0].mxu0
        %v7651 = vadd.f32 0.0, %v7650
        %v7652 = vpop.f32.mrb[0].mxu0
        %v7653 = vadd.f32 0.0, %v7652
        %v7654 = vpop.f32.mrb[0].mxu0
        %v7655 = vadd.f32 0.0, %v7654
        %7656 = vmatprep.mubr.bf16.mxu0 %v7344
        %7657 = vmatmul.mubr.bf16.gmra.mrb[0].mxu0 %v7343
        %v7658 = vpop.f32.mrb[0].mxu0
        %v7659 = vadd.f32 0.0, %v7658
        %v7660 = vpop.f32.mrb[0].mxu0
        %v7661 = vadd.f32 0.0, %v7660
        %v7662 = vpop.f32.mrb[0].mxu0
        %v7663 = vadd.f32 0.0, %v7662
        %v7664 = vpop.f32.mrb[0].mxu0
        %v7665 = vadd.f32 0.0, %v7664
        %7666 = vmatprep.mubr.bf16.mxu0 %v7346
        %7667 = vmatmul.mubr.bf16.gmra.mrb[0].mxu0 %v7345
        %v7668 = vpop.f32.mrb[0].mxu0
        %v7669 = vadd.f32 0.0, %v7668
        %v7670 = vpop.f32.mrb[0].mxu0
        %v7671 = vadd.f32 0.0, %v7670
        %v7672 = vpop.f32.mrb[0].mxu0
        %v7673 = vadd.f32 0.0, %v7672
        %v7674 = vpop.f32.mrb[0].mxu0
        %v7675 = vadd.f32 0.0, %v7674
        %7676 = vmatprep.mubr.bf16.mxu0 %v7348
        %7677 = vmatmul.mubr.bf16.gmra.mrb[0].mxu0 %v7347
        %v7678 = vpop.f32.mrb[0].mxu0
        %v7679 = vadd.f32 0.0, %v7678
        %v7680 = vpop.f32.mrb[0].mxu0
        %v7681 = vadd.f32 0.0, %v7680
        %v7682 = vpop.f32.mrb[0].mxu0
        %v7683 = vadd.f32 0.0, %v7682
        %v7684 = vpop.f32.mrb[0].mxu0
        %v7685 = vadd.f32 0.0, %v7684
        %7686 = vmatprep.mubr.bf16.mxu0 %v7350
        %7687 = vmatmul.mubr.bf16.gmra.mrb[0].mxu0 %v7349
        %v7688 = vpop.f32.mrb[0].mxu0
        %v7689 = vadd.f32 0.0, %v7688
        %v7690 = vpop.f32.mrb[0].mxu0
        %v7691 = vadd.f32 0.0, %v7690
        %v7692 = vpop.f32.mrb[0].mxu0
        %v7693 = vadd.f32 0.0, %v7692
        %v7694 = vpop.f32.mrb[0].mxu0
        %v7695 = vadd.f32 0.0, %v7694
        %7696 = vmatprep.mubr.bf16.mxu0 %v7352
        %7697 = vmatmul.mubr.bf16.gmra.mrb[0].mxu0 %v7351
        %v7698 = vpop.f32.mrb[0].mxu0
        %v7699 = vadd.f32 0.0, %v7698
        %v7700 = vpop.f32.mrb[0].mxu0
        %v7701 = vadd.f32 0.0, %v7700
        %v7702 = vpop.f32.mrb[0].mxu0
        %v7703 = vadd.f32 0.0, %v7702
        %v7704 = vpop.f32.mrb[0].mxu0
        %v7705 = vadd.f32 0.0, %v7704
        %7706 = vmatprep.mubr.bf16.mxu0 %v7354
        %7707 = vmatmul.mubr.bf16.gmra.mrb[0].mxu0 %v7353
        %v7708 = vpop.f32.mrb[0].mxu0
        %v7709 = vadd.f32 0.0, %v7708
        %v7710 = vpop.f32.mrb[0].mxu0
        %v7711 = vadd.f32 0.0, %v7710
        %v7712 = vpop.f32.mrb[0].mxu0
        %v7713 = vadd.f32 0.0, %v7712
        %v7714 = vpop.f32.mrb[0].mxu0
        %v7715 = vadd.f32 0.0, %v7714
        %7716 = vmatprep.mubr.bf16.mxu0 %v7356
        %7717 = vmatmul.mubr.bf16.gmra.mrb[0].mxu0 %v7355
        %v7718 = vpop.f32.mrb[0].mxu0
        %v7719 = vadd.f32 0.0, %v7718
        %v7720 = vpop.f32.mrb[0].mxu0
        %v7721 = vadd.f32 0.0, %v7720
        %v7722 = vpop.f32.mrb[0].mxu0
        %v7723 = vadd.f32 0.0, %v7722
        %v7724 = vpop.f32.mrb[0].mxu0
        %v7725 = vadd.f32 0.0, %v7724
        %7726 = vmatprep.mubr.bf16.mxu0 %v7358
        %7727 = vmatmul.mubr.bf16.gmra.mrb[0].mxu0 %v7357
        %v7728 = vpop.f32.mrb[0].mxu0
        %v7729 = vadd.f32 0.0, %v7728
        %v7730 = vpop.f32.mrb[0].mxu0
        %v7731 = vadd.f32 0.0, %v7730
        %v7732 = vpop.f32.mrb[0].mxu0
        %v7733 = vadd.f32 0.0, %v7732
        %v7734 = vpop.f32.mrb[0].mxu0
        %v7735 = vadd.f32 0.0, %v7734
        %7736 = vmatprep.mubr.bf16.mxu0 %v7360
        %7737 = vmatmul.mubr.bf16.gmra.mrb[0].mxu0 %v7359
        %v7738 = vpop.f32.mrb[0].mxu0
        %v7739 = vadd.f32 0.0, %v7738
        %v7740 = vpop.f32.mrb[0].mxu0
        %v7741 = vadd.f32 0.0, %v7740
        %v7742 = vpop.f32.mrb[0].mxu0
        %v7743 = vadd.f32 0.0, %v7742
        %v7744 = vpop.f32.mrb[0].mxu0
        %v7745 = vadd.f32 0.0, %v7744
        %7746 = vmatprep.mubr.bf16.mxu0 %v7362
        %7747 = vmatmul.mubr.bf16.gmra.mrb[0].mxu0 %v7361
        %v7748 = vpop.f32.mrb[0].mxu0
        %v7749 = vadd.f32 0.0, %v7748
        %v7750 = vpop.f32.mrb[0].mxu0
        %v7751 = vadd.f32 0.0, %v7750
        %v7752 = vpop.f32.mrb[0].mxu0
        %v7753 = vadd.f32 0.0, %v7752
        %v7754 = vpop.f32.mrb[0].mxu0
        %v7755 = vadd.f32 0.0, %v7754
        %7756 = vmatprep.mubr.bf16.mxu0 %v7364
        %7757 = vmatmul.mubr.bf16.gmra.mrb[0].mxu0 %v7363
        %v7758 = vpop.f32.mrb[0].mxu0
        %v7759 = vadd.f32 0.0, %v7758
        %v7760 = vpop.f32.mrb[0].mxu0
        %v7761 = vadd.f32 0.0, %v7760
        %v7762 = vpop.f32.mrb[0].mxu0
        %v7763 = vadd.f32 0.0, %v7762
        %v7764 = vpop.f32.mrb[0].mxu0
        %v7765 = vadd.f32 0.0, %v7764
        %7766 = vmatprep.mubr.bf16.mxu0 %v7366
        %7767 = vmatmul.mubr.bf16.gmra.mrb[0].mxu0 %v7365
        %v7768 = vpop.f32.mrb[0].mxu0
        %v7769 = vadd.f32 0.0, %v7768
        %v7770 = vpop.f32.mrb[0].mxu0
        %v7771 = vadd.f32 0.0, %v7770
        %v7772 = vpop.f32.mrb[0].mxu0
        %v7773 = vadd.f32 0.0, %v7772
        %v7774 = vpop.f32.mrb[0].mxu0
        %v7775 = vadd.f32 0.0, %v7774
        %7776 = vmatprep.mubr.bf16.mxu0 %v7368
        %7777 = vmatmul.mubr.bf16.gmra.mrb[0].mxu0 %v7367
        %v7778 = vpop.f32.mrb[0].mxu0
        %v7779 = vadd.f32 0.0, %v7778
        %v7780 = vpop.f32.mrb[0].mxu0
        %v7781 = vadd.f32 0.0, %v7780
        %v7782 = vpop.f32.mrb[0].mxu0
        %v7783 = vadd.f32 0.0, %v7782
        %v7784 = vpop.f32.mrb[0].mxu0
        %v7785 = vadd.f32 0.0, %v7784
        %7786 = vmatprep.mubr.bf16.mxu0 %v7370
        %7787 = vmatmul.mubr.bf16.gmra.mrb[0].mxu0 %v7369
        %v7788 = vpop.f32.mrb[0].mxu0
        %v7789 = vadd.f32 0.0, %v7788
        %v7790 = vpop.f32.mrb[0].mxu0
        %v7791 = vadd.f32 0.0, %v7790
        %v7792 = vpop.f32.mrb[0].mxu0
        %v7793 = vadd.f32 0.0, %v7792
        %v7794 = vpop.f32.mrb[0].mxu0
        %v7795 = vadd.f32 0.0, %v7794
        %7796 = vmatprep.mubr.bf16.mxu0 %v7372
        %7797 = vmatmul.mubr.bf16.gmra.mrb[0].mxu0 %v7371
        %v7798 = vpop.f32.mrb[0].mxu0
        %v7799 = vadd.f32 0.0, %v7798
        %v7800 = vpop.f32.mrb[0].mxu0
        %v7801 = vadd.f32 0.0, %v7800
        %v7802 = vpop.f32.mrb[0].mxu0
        %v7803 = vadd.f32 0.0, %v7802
        %v7804 = vpop.f32.mrb[0].mxu0
        %v7805 = vadd.f32 0.0, %v7804
        %7806 = vmatprep.mubr.bf16.mxu0 %v7374
        %7807 = vmatmul.mubr.bf16.gmra.mrb[0].mxu0 %v7373
        %v7808 = vpop.f32.mrb[0].mxu0
        %v7809 = vadd.f32 0.0, %v7808
        %v7810 = vpop.f32.mrb[0].mxu0
        %v7811 = vadd.f32 0.0, %v7810
        %v7812 = vpop.f32.mrb[0].mxu0
        %v7813 = vadd.f32 0.0, %v7812
        %v7814 = vpop.f32.mrb[0].mxu0
        %v7815 = vadd.f32 0.0, %v7814
        %7816 = vmatprep.mubr.bf16.mxu0 %v7376
        %7817 = vmatmul.mubr.bf16.gmra.mrb[0].mxu0 %v7375
        %v7818 = vpop.f32.mrb[0].mxu0
        %v7819 = vadd.f32 0.0, %v7818
        %v7820 = vpop.f32.mrb[0].mxu0
        %v7821 = vadd.f32 0.0, %v7820
        %v7822 = vpop.f32.mrb[0].mxu0
        %v7823 = vadd.f32 0.0, %v7822
        %v7824 = vpop.f32.mrb[0].mxu0
        %v7825 = vadd.f32 0.0, %v7824
        %7826 = vmatprep.mubr.bf16.mxu0 %v7378
        %7827 = vmatmul.mubr.bf16.gmra.mrb[0].mxu0 %v7377
        %v7828 = vpop.f32.mrb[0].mxu0
        %v7829 = vadd.f32 0.0, %v7828
        %v7830 = vpop.f32.mrb[0].mxu0
        %v7831 = vadd.f32 0.0, %v7830
        %v7832 = vpop.f32.mrb[0].mxu0
        %v7833 = vadd.f32 0.0, %v7832
        %v7834 = vpop.f32.mrb[0].mxu0
        %v7835 = vadd.f32 0.0, %v7834
        %7836 = vmatprep.mubr.bf16.mxu0 %v7380
        %7837 = vmatmul.mubr.bf16.gmra.mrb[0].mxu0 %v7379
        %v7838 = vpop.f32.mrb[0].mxu0
        %v7839 = vadd.f32 0.0, %v7838
        %v7840 = vpop.f32.mrb[0].mxu0
        %v7841 = vadd.f32 0.0, %v7840
        %v7842 = vpop.f32.mrb[0].mxu0
        %v7843 = vadd.f32 0.0, %v7842
        %v7844 = vpop.f32.mrb[0].mxu0
        %v7845 = vadd.f32 0.0, %v7844
        %7846 = vmatprep.mubr.bf16.mxu0 %v7382
        %7847 = vmatmul.mubr.bf16.gmra.mrb[0].mxu0 %v7381
        %v7848 = vpop.f32.mrb[0].mxu0
        %v7849 = vadd.f32 0.0, %v7848
        %v7850 = vpop.f32.mrb[0].mxu0
        %v7851 = vadd.f32 0.0, %v7850
        %v7852 = vpop.f32.mrb[0].mxu0
        %v7853 = vadd.f32 0.0, %v7852
        %v7854 = vpop.f32.mrb[0].mxu0
        %v7855 = vadd.f32 0.0, %v7854
        %7856 = vmatprep.mubr.bf16.mxu0 %v7384
        %7857 = vmatmul.mubr.bf16.gmra.mrb[0].mxu0 %v7383
        %v7858 = vpop.f32.mrb[0].mxu0
        %v7859 = vadd.f32 0.0, %v7858
        %v7860 = vpop.f32.mrb[0].mxu0
        %v7861 = vadd.f32 0.0, %v7860
        %v7862 = vpop.f32.mrb[0].mxu0
        %v7863 = vadd.f32 0.0, %v7862
        %v7864 = vpop.f32.mrb[0].mxu0
        %v7865 = vadd.f32 0.0, %v7864
        %7866 = vmatprep.mubr.bf16.mxu0 %v7386
        %7867 = vmatmul.mubr.bf16.gmra.mrb[0].mxu0 %v7385
        %v7868 = vpop.f32.mrb[0].mxu0
        %v7869 = vadd.f32 0.0, %v7868
        %v7870 = vpop.f32.mrb[0].mxu0
        %v7871 = vadd.f32 0.0, %v7870
        %v7872 = vpop.f32.mrb[0].mxu0
        %v7873 = vadd.f32 0.0, %v7872
        %v7874 = vpop.f32.mrb[0].mxu0
        %v7875 = vadd.f32 0.0, %v7874
        %7876 = vmatprep.mubr.bf16.mxu0 %v7388
        %7877 = vmatmul.mubr.bf16.gmra.mrb[0].mxu0 %v7387
        %v7878 = vpop.f32.mrb[0].mxu0
        %v7879 = vadd.f32 0.0, %v7878
        %v7880 = vpop.f32.mrb[0].mxu0
        %v7881 = vadd.f32 0.0, %v7880
        %v7882 = vpop.f32.mrb[0].mxu0
        %v7883 = vadd.f32 0.0, %v7882
        %v7884 = vpop.f32.mrb[0].mxu0
        %v7885 = vadd.f32 0.0, %v7884
        %7886 = vmatprep.mubr.bf16.mxu0 %v7390
        %7887 = vmatmul.mubr.bf16.gmra.mrb[0].mxu0 %v7389
        %v7888 = vpop.f32.mrb[0].mxu0
        %v7889 = vadd.f32 0.0, %v7888
        %v7890 = vpop.f32.mrb[0].mxu0
        %v7891 = vadd.f32 0.0, %v7890
        %v7892 = vpop.f32.mrb[0].mxu0
        %v7893 = vadd.f32 0.0, %v7892
        %v7894 = vpop.f32.mrb[0].mxu0
        %v7895 = vadd.f32 0.0, %v7894
        %7896 = vmatprep.mubr.bf16.mxu0 %v7392
        %7897 = vmatmul.mubr.bf16.gmra.mrb[0].mxu0 %v7391
        %v7898 = vpop.f32.mrb[0].mxu0
        %v7899 = vadd.f32 0.0, %v7898
        %v7900 = vpop.f32.mrb[0].mxu0
        %v7901 = vadd.f32 0.0, %v7900
        %v7902 = vpop.f32.mrb[0].mxu0
        %v7903 = vadd.f32 0.0, %v7902
        %v7904 = vpop.f32.mrb[0].mxu0
        %v7905 = vadd.f32 0.0, %v7904
        %7906 = vmatprep.mubr.bf16.mxu0 %v7394
        %7907 = vmatmul.mubr.bf16.gmra.mrb[0].mxu0 %v7393
        %v7908 = vpop.f32.mrb[0].mxu0
        %v7909 = vadd.f32 0.0, %v7908
        %v7910 = vpop.f32.mrb[0].mxu0
        %v7911 = vadd.f32 0.0, %v7910
        %v7912 = vpop.f32.mrb[0].mxu0
        %v7913 = vadd.f32 0.0, %v7912
        %v7914 = vpop.f32.mrb[0].mxu0
        %v7915 = vadd.f32 0.0, %v7914
        %7916 = vmatprep.mubr.bf16.mxu0 %v7396
        %7917 = vmatmul.mubr.bf16.gmra.mrb[0].mxu0 %v7395
        %v7918 = vpop.f32.mrb[0].mxu0
        %v7919 = vadd.f32 0.0, %v7918
        %v7920 = vpop.f32.mrb[0].mxu0
        %v7921 = vadd.f32 0.0, %v7920
        %v7922 = vpop.f32.mrb[0].mxu0
        %v7923 = vadd.f32 0.0, %v7922
        %v7924 = vpop.f32.mrb[0].mxu0
        %v7925 = vadd.f32 0.0, %v7924
        %7926 = vmatprep.mubr.bf16.mxu0 %v7398
        %7927 = vmatmul.mubr.bf16.gmra.mrb[0].mxu0 %v7397
        %v7928 = vpop.f32.mrb[0].mxu0
        %v7929 = vadd.f32 0.0, %v7928
        %v7930 = vpop.f32.mrb[0].mxu0
        %v7931 = vadd.f32 0.0, %v7930
        %v7932 = vpop.f32.mrb[0].mxu0
        %v7933 = vadd.f32 0.0, %v7932
        %v7934 = vpop.f32.mrb[0].mxu0
        %v7935 = vadd.f32 0.0, %v7934
        %7936 = vmatprep.mubr.bf16.mxu0 %v7400
        %7937 = vmatmul.mubr.bf16.gmra.mrb[0].mxu0 %v7399
        %v7938 = vpop.f32.mrb[0].mxu0
        %v7939 = vadd.f32 0.0, %v7938
        %v7940 = vpop.f32.mrb[0].mxu0
        %v7941 = vadd.f32 0.0, %v7940
        %v7942 = vpop.f32.mrb[0].mxu0
        %v7943 = vadd.f32 0.0, %v7942
        %v7944 = vpop.f32.mrb[0].mxu0
        %v7945 = vadd.f32 0.0, %v7944
        %7946 = vdwg.mxu0
        %v7947 = vpack.c.bf16 %v7633, %v7629
        %v7948 = vpack.c.bf16 %v7635, %v7631
        %v7949 = vpack.c.bf16 %v7643, %v7639
        %v7950 = vpack.c.bf16 %v7645, %v7641
        %v7951 = vpack.c.bf16 %v7653, %v7649
        %v7952 = vpack.c.bf16 %v7655, %v7651
        %v7953 = vpack.c.bf16 %v7663, %v7659
        %v7954 = vpack.c.bf16 %v7665, %v7661
        %v7955 = vpack.c.bf16 %v7673, %v7669
        %v7956 = vpack.c.bf16 %v7675, %v7671
        %v7957 = vpack.c.bf16 %v7683, %v7679
        %v7958 = vpack.c.bf16 %v7685, %v7681
        %v7959 = vpack.c.bf16 %v7693, %v7689
        %v7960 = vpack.c.bf16 %v7695, %v7691
        %v7961 = vpack.c.bf16 %v7703, %v7699
        %v7962 = vpack.c.bf16 %v7705, %v7701
        %v7963 = vpack.c.bf16 %v7713, %v7709
        %v7964 = vpack.c.bf16 %v7715, %v7711
        %v7965 = vpack.c.bf16 %v7723, %v7719
        %v7966 = vpack.c.bf16 %v7725, %v7721
        %v7967 = vpack.c.bf16 %v7733, %v7729
        %v7968 = vpack.c.bf16 %v7735, %v7731
        %v7969 = vpack.c.bf16 %v7743, %v7739
        %v7970 = vpack.c.bf16 %v7745, %v7741
        %v7971 = vpack.c.bf16 %v7753, %v7749
        %v7972 = vpack.c.bf16 %v7755, %v7751
        %v7973 = vpack.c.bf16 %v7763, %v7759
        %v7974 = vpack.c.bf16 %v7765, %v7761
        %v7975 = vpack.c.bf16 %v7773, %v7769
        %v7976 = vpack.c.bf16 %v7775, %v7771
        %v7977 = vpack.c.bf16 %v7783, %v7779
        %v7978 = vpack.c.bf16 %v7785, %v7781
        %v7979 = vpack.c.bf16 %v7793, %v7789
        %v7980 = vpack.c.bf16 %v7795, %v7791
        %v7981 = vpack.c.bf16 %v7803, %v7799
        %v7982 = vpack.c.bf16 %v7805, %v7801
        %v7983 = vpack.c.bf16 %v7813, %v7809
        %v7984 = vpack.c.bf16 %v7815, %v7811
        %v7985 = vpack.c.bf16 %v7823, %v7819
        %v7986 = vpack.c.bf16 %v7825, %v7821
        %v7987 = vpack.c.bf16 %v7833, %v7829
        %v7988 = vpack.c.bf16 %v7835, %v7831
        %v7989 = vpack.c.bf16 %v7843, %v7839
        %v7990 = vpack.c.bf16 %v7845, %v7841
        %v7991 = vpack.c.bf16 %v7853, %v7849
        %v7992 = vpack.c.bf16 %v7855, %v7851
        %v7993 = vpack.c.bf16 %v7863, %v7859
        %v7994 = vpack.c.bf16 %v7865, %v7861
        %v7995 = vpack.c.bf16 %v7873, %v7869
        %v7996 = vpack.c.bf16 %v7875, %v7871
        %v7997 = vpack.c.bf16 %v7883, %v7879
        %v7998 = vpack.c.bf16 %v7885, %v7881
        %v7999 = vpack.c.bf16 %v7893, %v7889
        %v8000 = vpack.c.bf16 %v7895, %v7891
        %v8001 = vpack.c.bf16 %v7903, %v7899
        %v8002 = vpack.c.bf16 %v7905, %v7901
        %v8003 = vpack.c.bf16 %v7913, %v7909
        %v8004 = vpack.c.bf16 %v7915, %v7911
        %v8005 = vpack.c.bf16 %v7923, %v7919
        %v8006 = vpack.c.bf16 %v7925, %v7921
        %v8007 = vpack.c.bf16 %v7933, %v7929
        %v8008 = vpack.c.bf16 %v7935, %v7931
        %v8009 = vpack.c.bf16 %v7943, %v7939
        %v8010 = vpack.c.bf16 %v7945, %v7941
        %s8011 = scalar_lea.vmem %s3, 14
        %v8012 = vld [vmem:[%s8011] sm:$0x3]
        %v8014 = vlaneseq
        %v8015 = vshrl.u32 %v8014, 7
        %v8016 = vsub.s32 0, %v8015
        %v8017 = vrot.slane %v8012, %v8016
        %v8018 = vlaneseq
        %v8019 = vshrl.u32 %v8018, 7
        %v8020 = vsub.s32 1, %v8019
        %v8021 = vrot.slane %v8012, %v8020
        %v8024 = vpack.c.bf16 %v8017, %v8017
        %v8025 = vpack.c.bf16 %v8021, %v8021
        %v8027 = vpack.i.b16 %v8024, %v8024
        %v8029 = vlaneseq
        %v8030 = vshrl.u32 %v8029, 7
        %v8031 = vsub.s32 0, %v8030
        %v8032 = vrot.slane %v8027, %v8031
        %v8034 = vpack.i.b16 %v8025, %v8025
        %v8036 = vlaneseq
        %v8037 = vshrl.u32 %v8036, 7
        %v8038 = vsub.s32 0, %v8037
        %v8039 = vrot.slane %v8034, %v8038
        %v8040 = vadd.bf16 %v7947, %v8032
        %v8041 = vadd.bf16 %v7948, %v8039
        %v8042 = vadd.bf16 %v7949, %v8032
        %v8043 = vadd.bf16 %v7950, %v8039
        %v8044 = vadd.bf16 %v7951, %v8032
        %v8045 = vadd.bf16 %v7952, %v8039
        %v8046 = vadd.bf16 %v7953, %v8032
        %v8047 = vadd.bf16 %v7954, %v8039
        %v8048 = vadd.bf16 %v7955, %v8032
        %v8049 = vadd.bf16 %v7956, %v8039
        %v8050 = vadd.bf16 %v7957, %v8032
        %v8051 = vadd.bf16 %v7958, %v8039
        %v8052 = vadd.bf16 %v7959, %v8032
        %v8053 = vadd.bf16 %v7960, %v8039
        %v8054 = vadd.bf16 %v7961, %v8032
        %v8055 = vadd.bf16 %v7962, %v8039
        %v8056 = vadd.bf16 %v7963, %v8032
        %v8057 = vadd.bf16 %v7964, %v8039
        %v8058 = vadd.bf16 %v7965, %v8032
        %v8059 = vadd.bf16 %v7966, %v8039
        %v8060 = vadd.bf16 %v7967, %v8032
        %v8061 = vadd.bf16 %v7968, %v8039
        %v8062 = vadd.bf16 %v7969, %v8032
        %v8063 = vadd.bf16 %v7970, %v8039
        %v8064 = vadd.bf16 %v7971, %v8032
        %v8065 = vadd.bf16 %v7972, %v8039
        %v8066 = vadd.bf16 %v7973, %v8032
        %v8067 = vadd.bf16 %v7974, %v8039
        %v8068 = vadd.bf16 %v7975, %v8032
        %v8069 = vadd.bf16 %v7976, %v8039
        %v8070 = vadd.bf16 %v7977, %v8032
        %v8071 = vadd.bf16 %v7978, %v8039
        %v8072 = vadd.bf16 %v7979, %v8032
        %v8073 = vadd.bf16 %v7980, %v8039
        %v8074 = vadd.bf16 %v7981, %v8032
        %v8075 = vadd.bf16 %v7982, %v8039
        %v8076 = vadd.bf16 %v7983, %v8032
        %v8077 = vadd.bf16 %v7984, %v8039
        %v8078 = vadd.bf16 %v7985, %v8032
        %v8079 = vadd.bf16 %v7986, %v8039
        %v8080 = vadd.bf16 %v7987, %v8032
        %v8081 = vadd.bf16 %v7988, %v8039
        %v8082 = vadd.bf16 %v7989, %v8032
        %v8083 = vadd.bf16 %v7990, %v8039
        %v8084 = vadd.bf16 %v7991, %v8032
        %v8085 = vadd.bf16 %v7992, %v8039
        %v8086 = vadd.bf16 %v7993, %v8032
        %v8087 = vadd.bf16 %v7994, %v8039
        %v8088 = vadd.bf16 %v7995, %v8032
        %v8089 = vadd.bf16 %v7996, %v8039
        %v8090 = vadd.bf16 %v7997, %v8032
        %v8091 = vadd.bf16 %v7998, %v8039
        %v8092 = vadd.bf16 %v7999, %v8032
        %v8093 = vadd.bf16 %v8000, %v8039
        %v8094 = vadd.bf16 %v8001, %v8032
        %v8095 = vadd.bf16 %v8002, %v8039
        %v8096 = vadd.bf16 %v8003, %v8032
        %v8097 = vadd.bf16 %v8004, %v8039
        %v8098 = vadd.bf16 %v8005, %v8032
        %v8099 = vadd.bf16 %v8006, %v8039
        %v8100 = vadd.bf16 %v8007, %v8032
        %v8101 = vadd.bf16 %v8008, %v8039
        %v8102 = vadd.bf16 %v8009, %v8032
        %v8103 = vadd.bf16 %v8010, %v8039
        %v8104 = vmax.bf16 %v8040, 0
        %v8105 = vmax.bf16 %v8041, 0
        %v8106 = vmax.bf16 %v8042, 0
        %v8107 = vmax.bf16 %v8043, 0
        %v8108 = vmax.bf16 %v8044, 0
        %v8109 = vmax.bf16 %v8045, 0
        %v8110 = vmax.bf16 %v8046, 0
        %v8111 = vmax.bf16 %v8047, 0
        %v8112 = vmax.bf16 %v8048, 0
        %v8113 = vmax.bf16 %v8049, 0
        %v8114 = vmax.bf16 %v8050, 0
        %v8115 = vmax.bf16 %v8051, 0
        %v8116 = vmax.bf16 %v8052, 0
        %v8117 = vmax.bf16 %v8053, 0
        %v8118 = vmax.bf16 %v8054, 0
        %v8119 = vmax.bf16 %v8055, 0
        %v8120 = vmax.bf16 %v8056, 0
        %v8121 = vmax.bf16 %v8057, 0
        %v8122 = vmax.bf16 %v8058, 0
        %v8123 = vmax.bf16 %v8059, 0
        %v8124 = vmax.bf16 %v8060, 0
        %v8125 = vmax.bf16 %v8061, 0
        %v8126 = vmax.bf16 %v8062, 0
        %v8127 = vmax.bf16 %v8063, 0
        %v8128 = vmax.bf16 %v8064, 0
        %v8129 = vmax.bf16 %v8065, 0
        %v8130 = vmax.bf16 %v8066, 0
        %v8131 = vmax.bf16 %v8067, 0
        %v8132 = vmax.bf16 %v8068, 0
        %v8133 = vmax.bf16 %v8069, 0
        %v8134 = vmax.bf16 %v8070, 0
        %v8135 = vmax.bf16 %v8071, 0
        %v8136 = vmax.bf16 %v8072, 0
        %v8137 = vmax.bf16 %v8073, 0
        %v8138 = vmax.bf16 %v8074, 0
        %v8139 = vmax.bf16 %v8075, 0
        %v8140 = vmax.bf16 %v8076, 0
        %v8141 = vmax.bf16 %v8077, 0
        %v8142 = vmax.bf16 %v8078, 0
        %v8143 = vmax.bf16 %v8079, 0
        %v8144 = vmax.bf16 %v8080, 0
        %v8145 = vmax.bf16 %v8081, 0
        %v8146 = vmax.bf16 %v8082, 0
        %v8147 = vmax.bf16 %v8083, 0
        %v8148 = vmax.bf16 %v8084, 0
        %v8149 = vmax.bf16 %v8085, 0
        %v8150 = vmax.bf16 %v8086, 0
        %v8151 = vmax.bf16 %v8087, 0
        %v8152 = vmax.bf16 %v8088, 0
        %v8153 = vmax.bf16 %v8089, 0
        %v8154 = vmax.bf16 %v8090, 0
        %v8155 = vmax.bf16 %v8091, 0
        %v8156 = vmax.bf16 %v8092, 0
        %v8157 = vmax.bf16 %v8093, 0
        %v8158 = vmax.bf16 %v8094, 0
        %v8159 = vmax.bf16 %v8095, 0
        %v8160 = vmax.bf16 %v8096, 0
        %v8161 = vmax.bf16 %v8097, 0
        %v8162 = vmax.bf16 %v8098, 0
        %v8163 = vmax.bf16 %v8099, 0
        %v8164 = vmax.bf16 %v8100, 0
        %v8165 = vmax.bf16 %v8101, 0
        %v8166 = vmax.bf16 %v8102, 0
        %v8167 = vmax.bf16 %v8103, 0
        %8168 = vst [vmem:[#allocation2] sm:$0xff] %v8104
        %8169 = vst [vmem:[#allocation2 + $0x8] sm:$0xff] %v8105
        %8170 = vst [vmem:[#allocation2 + $0x10] sm:$0xff] %v8106
        %8171 = vst [vmem:[#allocation2 + $0x18] sm:$0xff] %v8107
        %8172 = vst [vmem:[#allocation2 + $0x20] sm:$0xff] %v8108
        %8173 = vst [vmem:[#allocation2 + $0x28] sm:$0xff] %v8109
        %8174 = vst [vmem:[#allocation2 + $0x30] sm:$0xff] %v8110
        %8175 = vst [vmem:[#allocation2 + $0x38] sm:$0xff] %v8111
        %8176 = vst [vmem:[#allocation2 + $0x40] sm:$0xff] %v8112
        %8177 = vst [vmem:[#allocation2 + $0x48] sm:$0xff] %v8113
        %8178 = vst [vmem:[#allocation2 + $0x50] sm:$0xff] %v8114
        %8179 = vst [vmem:[#allocation2 + $0x58] sm:$0xff] %v8115
        %8180 = vst [vmem:[#allocation2 + $0x60] sm:$0xff] %v8116
        %8181 = vst [vmem:[#allocation2 + $0x68] sm:$0xff] %v8117
        %8182 = vst [vmem:[#allocation2 + $0x70] sm:$0xff] %v8118
        %8183 = vst [vmem:[#allocation2 + $0x78] sm:$0xff] %v8119
        %8184 = vst [vmem:[#allocation2 + $0x80] sm:$0xff] %v8120
        %8185 = vst [vmem:[#allocation2 + $0x88] sm:$0xff] %v8121
        %8186 = vst [vmem:[#allocation2 + $0x90] sm:$0xff] %v8122
        %8187 = vst [vmem:[#allocation2 + $0x98] sm:$0xff] %v8123
        %8188 = vst [vmem:[#allocation2 + $0xa0] sm:$0xff] %v8124
        %8189 = vst [vmem:[#allocation2 + $0xa8] sm:$0xff] %v8125
        %8190 = vst [vmem:[#allocation2 + $0xb0] sm:$0xff] %v8126
        %8191 = vst [vmem:[#allocation2 + $0xb8] sm:$0xff] %v8127
        %8192 = vst [vmem:[#allocation2 + $0xc0] sm:$0xff] %v8128
        %8193 = vst [vmem:[#allocation2 + $0xc8] sm:$0xff] %v8129
        %8194 = vst [vmem:[#allocation2 + $0xd0] sm:$0xff] %v8130
        %8195 = vst [vmem:[#allocation2 + $0xd8] sm:$0xff] %v8131
        %8196 = vst [vmem:[#allocation2 + $0xe0] sm:$0xff] %v8132
        %8197 = vst [vmem:[#allocation2 + $0xe8] sm:$0xff] %v8133
        %8198 = vst [vmem:[#allocation2 + $0xf0] sm:$0xff] %v8134
        %8199 = vst [vmem:[#allocation2 + $0xf8] sm:$0xff] %v8135
        %8200 = vst [vmem:[#allocation2 + $0x100] sm:$0xff] %v8136
        %8201 = vst [vmem:[#allocation2 + $0x108] sm:$0xff] %v8137
        %8202 = vst [vmem:[#allocation2 + $0x110] sm:$0xff] %v8138
        %8203 = vst [vmem:[#allocation2 + $0x118] sm:$0xff] %v8139
        %8204 = vst [vmem:[#allocation2 + $0x120] sm:$0xff] %v8140
        %8205 = vst [vmem:[#allocation2 + $0x128] sm:$0xff] %v8141
        %8206 = vst [vmem:[#allocation2 + $0x130] sm:$0xff] %v8142
        %8207 = vst [vmem:[#allocation2 + $0x138] sm:$0xff] %v8143
        %8208 = vst [vmem:[#allocation2 + $0x140] sm:$0xff] %v8144
        %8209 = vst [vmem:[#allocation2 + $0x148] sm:$0xff] %v8145
        %8210 = vst [vmem:[#allocation2 + $0x150] sm:$0xff] %v8146
        %8211 = vst [vmem:[#allocation2 + $0x158] sm:$0xff] %v8147
        %8212 = vst [vmem:[#allocation2 + $0x160] sm:$0xff] %v8148
        %8213 = vst [vmem:[#allocation2 + $0x168] sm:$0xff] %v8149
        %8214 = vst [vmem:[#allocation2 + $0x170] sm:$0xff] %v8150
        %8215 = vst [vmem:[#allocation2 + $0x178] sm:$0xff] %v8151
        %8216 = vst [vmem:[#allocation2 + $0x180] sm:$0xff] %v8152
        %8217 = vst [vmem:[#allocation2 + $0x188] sm:$0xff] %v8153
        %8218 = vst [vmem:[#allocation2 + $0x190] sm:$0xff] %v8154
        %8219 = vst [vmem:[#allocation2 + $0x198] sm:$0xff] %v8155
        %8220 = vst [vmem:[#allocation2 + $0x1a0] sm:$0xff] %v8156
        %8221 = vst [vmem:[#allocation2 + $0x1a8] sm:$0xff] %v8157
        %8222 = vst [vmem:[#allocation2 + $0x1b0] sm:$0xff] %v8158
        %8223 = vst [vmem:[#allocation2 + $0x1b8] sm:$0xff] %v8159
        %8224 = vst [vmem:[#allocation2 + $0x1c0] sm:$0xff] %v8160
        %8225 = vst [vmem:[#allocation2 + $0x1c8] sm:$0xff] %v8161
        %8226 = vst [vmem:[#allocation2 + $0x1d0] sm:$0xff] %v8162
        %8227 = vst [vmem:[#allocation2 + $0x1d8] sm:$0xff] %v8163
        %8228 = vst [vmem:[#allocation2 + $0x1e0] sm:$0xff] %v8164
        %8229 = vst [vmem:[#allocation2 + $0x1e8] sm:$0xff] %v8165
        %8230 = vst [vmem:[#allocation2 + $0x1f0] sm:$0xff] %v8166
        %8231 = vst [vmem:[#allocation2 + $0x1f8] sm:$0xff] %v8167
        %v8232 = vld [vmem:[#allocation2] sm:$0xff]
        %v8233 = vld [vmem:[#allocation2 + $0x8] sm:$0xff]
        %v8234 = vld [vmem:[#allocation2 + $0x10] sm:$0xff]
        %v8235 = vld [vmem:[#allocation2 + $0x18] sm:$0xff]
        %v8236 = vld [vmem:[#allocation2 + $0x20] sm:$0xff]
        %v8237 = vld [vmem:[#allocation2 + $0x28] sm:$0xff]
        %v8238 = vld [vmem:[#allocation2 + $0x30] sm:$0xff]
        %v8239 = vld [vmem:[#allocation2 + $0x38] sm:$0xff]
        %v8240 = vld [vmem:[#allocation2 + $0x40] sm:$0xff]
        %v8241 = vld [vmem:[#allocation2 + $0x48] sm:$0xff]
        %v8242 = vld [vmem:[#allocation2 + $0x50] sm:$0xff]
        %v8243 = vld [vmem:[#allocation2 + $0x58] sm:$0xff]
        %v8244 = vld [vmem:[#allocation2 + $0x60] sm:$0xff]
        %v8245 = vld [vmem:[#allocation2 + $0x68] sm:$0xff]
        %v8246 = vld [vmem:[#allocation2 + $0x70] sm:$0xff]
        %v8247 = vld [vmem:[#allocation2 + $0x78] sm:$0xff]
        %v8248 = vld [vmem:[#allocation2 + $0x80] sm:$0xff]
        %v8249 = vld [vmem:[#allocation2 + $0x88] sm:$0xff]
        %v8250 = vld [vmem:[#allocation2 + $0x90] sm:$0xff]
        %v8251 = vld [vmem:[#allocation2 + $0x98] sm:$0xff]
        %v8252 = vld [vmem:[#allocation2 + $0xa0] sm:$0xff]
        %v8253 = vld [vmem:[#allocation2 + $0xa8] sm:$0xff]
        %v8254 = vld [vmem:[#allocation2 + $0xb0] sm:$0xff]
        %v8255 = vld [vmem:[#allocation2 + $0xb8] sm:$0xff]
        %v8256 = vld [vmem:[#allocation2 + $0xc0] sm:$0xff]
        %v8257 = vld [vmem:[#allocation2 + $0xc8] sm:$0xff]
        %v8258 = vld [vmem:[#allocation2 + $0xd0] sm:$0xff]
        %v8259 = vld [vmem:[#allocation2 + $0xd8] sm:$0xff]
        %v8260 = vld [vmem:[#allocation2 + $0xe0] sm:$0xff]
        %v8261 = vld [vmem:[#allocation2 + $0xe8] sm:$0xff]
        %v8262 = vld [vmem:[#allocation2 + $0xf0] sm:$0xff]
        %v8263 = vld [vmem:[#allocation2 + $0xf8] sm:$0xff]
        %v8264 = vld [vmem:[#allocation2 + $0x100] sm:$0xff]
        %v8265 = vld [vmem:[#allocation2 + $0x108] sm:$0xff]
        %v8266 = vld [vmem:[#allocation2 + $0x110] sm:$0xff]
        %v8267 = vld [vmem:[#allocation2 + $0x118] sm:$0xff]
        %v8268 = vld [vmem:[#allocation2 + $0x120] sm:$0xff]
        %v8269 = vld [vmem:[#allocation2 + $0x128] sm:$0xff]
        %v8270 = vld [vmem:[#allocation2 + $0x130] sm:$0xff]
        %v8271 = vld [vmem:[#allocation2 + $0x138] sm:$0xff]
        %v8272 = vld [vmem:[#allocation2 + $0x140] sm:$0xff]
        %v8273 = vld [vmem:[#allocation2 + $0x148] sm:$0xff]
        %v8274 = vld [vmem:[#allocation2 + $0x150] sm:$0xff]
        %v8275 = vld [vmem:[#allocation2 + $0x158] sm:$0xff]
        %v8276 = vld [vmem:[#allocation2 + $0x160] sm:$0xff]
        %v8277 = vld [vmem:[#allocation2 + $0x168] sm:$0xff]
        %v8278 = vld [vmem:[#allocation2 + $0x170] sm:$0xff]
        %v8279 = vld [vmem:[#allocation2 + $0x178] sm:$0xff]
        %v8280 = vld [vmem:[#allocation2 + $0x180] sm:$0xff]
        %v8281 = vld [vmem:[#allocation2 + $0x188] sm:$0xff]
        %v8282 = vld [vmem:[#allocation2 + $0x190] sm:$0xff]
        %v8283 = vld [vmem:[#allocation2 + $0x198] sm:$0xff]
        %v8284 = vld [vmem:[#allocation2 + $0x1a0] sm:$0xff]
        %v8285 = vld [vmem:[#allocation2 + $0x1a8] sm:$0xff]
        %v8286 = vld [vmem:[#allocation2 + $0x1b0] sm:$0xff]
        %v8287 = vld [vmem:[#allocation2 + $0x1b8] sm:$0xff]
        %v8288 = vld [vmem:[#allocation2 + $0x1c0] sm:$0xff]
        %v8289 = vld [vmem:[#allocation2 + $0x1c8] sm:$0xff]
        %v8290 = vld [vmem:[#allocation2 + $0x1d0] sm:$0xff]
        %v8291 = vld [vmem:[#allocation2 + $0x1d8] sm:$0xff]
        %v8292 = vld [vmem:[#allocation2 + $0x1e0] sm:$0xff]
        %v8293 = vld [vmem:[#allocation2 + $0x1e8] sm:$0xff]
        %v8294 = vld [vmem:[#allocation2 + $0x1f0] sm:$0xff]
        %v8295 = vld [vmem:[#allocation2 + $0x1f8] sm:$0xff]
        %v8296 = vld [vmem:[%s4] sm:$0xf]
        %v8297 = vld [vmem:[%s4 + $0x4] sm:$0xf]
        %v8298 = vld [vmem:[%s4 + $0x8] sm:$0xf]
        %v8299 = vld [vmem:[%s4 + $0xc] sm:$0xf]
        %v8300 = vld [vmem:[%s4 + $0x10] sm:$0xf]
        %v8301 = vld [vmem:[%s4 + $0x14] sm:$0xf]
        %v8302 = vld [vmem:[%s4 + $0x18] sm:$0xf]
        %v8303 = vld [vmem:[%s4 + $0x1c] sm:$0xf]
        %v8304 = vld [vmem:[%s4 + $0x20] sm:$0xf]
        %v8305 = vld [vmem:[%s4 + $0x24] sm:$0xf]
        %v8306 = vld [vmem:[%s4 + $0x28] sm:$0xf]
        %v8307 = vld [vmem:[%s4 + $0x2c] sm:$0xf]
        %v8308 = vld [vmem:[%s4 + $0x30] sm:$0xf]
        %v8309 = vld [vmem:[%s4 + $0x34] sm:$0xf]
        %v8310 = vld [vmem:[%s4 + $0x38] sm:$0xf]
        %v8311 = vld [vmem:[%s4 + $0x3c] sm:$0xf]
        %v8312 = vld [vmem:[%s4 + $0x40] sm:$0xf]
        %v8313 = vld [vmem:[%s4 + $0x44] sm:$0xf]
        %v8314 = vld [vmem:[%s4 + $0x48] sm:$0xf]
        %v8315 = vld [vmem:[%s4 + $0x4c] sm:$0xf]
        %v8316 = vld [vmem:[%s4 + $0x50] sm:$0xf]
        %v8317 = vld [vmem:[%s4 + $0x54] sm:$0xf]
        %v8318 = vld [vmem:[%s4 + $0x58] sm:$0xf]
        %v8319 = vld [vmem:[%s4 + $0x5c] sm:$0xf]
        %v8320 = vld [vmem:[%s4 + $0x60] sm:$0xf]
        %v8321 = vld [vmem:[%s4 + $0x64] sm:$0xf]
        %v8322 = vld [vmem:[%s4 + $0x68] sm:$0xf]
        %v8323 = vld [vmem:[%s4 + $0x6c] sm:$0xf]
        %v8324 = vld [vmem:[%s4 + $0x70] sm:$0xf]
        %v8325 = vld [vmem:[%s4 + $0x74] sm:$0xf]
        %v8326 = vld [vmem:[%s4 + $0x78] sm:$0xf]
        %v8327 = vld [vmem:[%s4 + $0x7c] sm:$0xf]
        %v8328 = vld [vmem:[%s5] sm:$0x1]
        %v8330 = vlaneseq
        %v8331 = vshrl.u32 %v8330, 7
        %v8332 = vsub.s32 0, %v8331
        %v8333 = vrot.slane %v8328, %v8332
        %v8367 = vunpack.c.l.b16 %v8296
        %v8368 = vunpack.c.l.b16 %v8297
        %v8369 = vunpack.c.l.b16 %v8298
        %v8370 = vunpack.c.l.b16 %v8299
        %v8371 = vunpack.c.l.b16 %v8300
        %v8372 = vunpack.c.l.b16 %v8301
        %v8373 = vunpack.c.l.b16 %v8302
        %v8374 = vunpack.c.l.b16 %v8303
        %v8375 = vunpack.c.l.b16 %v8304
        %v8376 = vunpack.c.l.b16 %v8305
        %v8377 = vunpack.c.l.b16 %v8306
        %v8378 = vunpack.c.l.b16 %v8307
        %v8379 = vunpack.c.l.b16 %v8308
        %v8380 = vunpack.c.l.b16 %v8309
        %v8381 = vunpack.c.l.b16 %v8310
        %v8382 = vunpack.c.l.b16 %v8311
        %v8383 = vunpack.c.l.b16 %v8312
        %v8384 = vunpack.c.l.b16 %v8313
        %v8385 = vunpack.c.l.b16 %v8314
        %v8386 = vunpack.c.l.b16 %v8315
        %v8387 = vunpack.c.l.b16 %v8316
        %v8388 = vunpack.c.l.b16 %v8317
        %v8389 = vunpack.c.l.b16 %v8318
        %v8390 = vunpack.c.l.b16 %v8319
        %v8391 = vunpack.c.l.b16 %v8320
        %v8392 = vunpack.c.l.b16 %v8321
        %v8393 = vunpack.c.l.b16 %v8322
        %v8394 = vunpack.c.l.b16 %v8323
        %v8395 = vunpack.c.l.b16 %v8324
        %v8396 = vunpack.c.l.b16 %v8325
        %v8397 = vunpack.c.l.b16 %v8326
        %v8398 = vunpack.c.l.b16 %v8327
        %v8399 = vpack.c.b16 %v8368, %v8367
        %v8400 = vpack.c.b16 %v8370, %v8369
        %v8401 = vpack.c.b16 %v8372, %v8371
        %v8402 = vpack.c.b16 %v8374, %v8373
        %v8403 = vpack.c.b16 %v8376, %v8375
        %v8404 = vpack.c.b16 %v8378, %v8377
        %v8405 = vpack.c.b16 %v8380, %v8379
        %v8406 = vpack.c.b16 %v8382, %v8381
        %v8407 = vpack.c.b16 %v8384, %v8383
        %v8408 = vpack.c.b16 %v8386, %v8385
        %v8409 = vpack.c.b16 %v8388, %v8387
        %v8410 = vpack.c.b16 %v8390, %v8389
        %v8411 = vpack.c.b16 %v8392, %v8391
        %v8412 = vpack.c.b16 %v8394, %v8393
        %v8413 = vpack.c.b16 %v8396, %v8395
        %v8414 = vpack.c.b16 %v8398, %v8397
        %8431 = vmatprep.subr.bf16.mxu0 0
        %8432 = vmatpush1.bf16.msra.mxu0 %v8399
        %8433 = vmatprep.subr.bf16.mxu0 0
        %8434 = vmatpush1.bf16.msra.mxu0 %v8400
        %8435 = vmatprep.subr.bf16.mxu0 0
        %8436 = vmatpush1.bf16.msra.mxu0 %v8401
        %8437 = vmatprep.subr.bf16.mxu0 0
        %8438 = vmatpush1.bf16.msra.mxu0 %v8402
        %8439 = vmatprep.subr.bf16.mxu0 0
        %8440 = vmatpush1.bf16.msra.mxu0 %v8403
        %8441 = vmatprep.subr.bf16.mxu0 0
        %8442 = vmatpush1.bf16.msra.mxu0 %v8404
        %8443 = vmatprep.subr.bf16.mxu0 0
        %8444 = vmatpush1.bf16.msra.mxu0 %v8405
        %8445 = vmatprep.subr.bf16.mxu0 0
        %8446 = vmatpush1.bf16.msra.mxu0 %v8406
        %8447 = vmatprep.subr.bf16.mxu0 0
        %8448 = vmatpush1.bf16.msra.mxu0 %v8407
        %8449 = vmatprep.subr.bf16.mxu0 0
        %8450 = vmatpush1.bf16.msra.mxu0 %v8408
        %8451 = vmatprep.subr.bf16.mxu0 0
        %8452 = vmatpush1.bf16.msra.mxu0 %v8409
        %8453 = vmatprep.subr.bf16.mxu0 0
        %8454 = vmatpush1.bf16.msra.mxu0 %v8410
        %8455 = vmatprep.subr.bf16.mxu0 0
        %8456 = vmatpush1.bf16.msra.mxu0 %v8411
        %8457 = vmatprep.subr.bf16.mxu0 0
        %8458 = vmatpush1.bf16.msra.mxu0 %v8412
        %8459 = vmatprep.subr.bf16.mxu0 0
        %8460 = vmatpush1.bf16.msra.mxu0 %v8413
        %8461 = vmatprep.subr.bf16.mxu0 0
        %8462 = vmatpush1.bf16.msra.mxu0 %v8414
        %8463 = vmatprep.mubr.bf16.mxu0 %v8233
        %8464 = vmatmul.mubr.bf16.gmra.mrb[0].mxu0 %v8232
        %v8465 = vpop.f32.mrb[0].mxu0
        %v8466 = vadd.f32 %v8333, %v8465
        %v8467 = vpop.f32.mrb[0].mxu0
        %v8468 = vpop.f32.mrb[0].mxu0
        %v8469 = vadd.f32 %v8333, %v8468
        %v8470 = vpop.f32.mrb[0].mxu0
        %8471 = vmatprep.mubr.bf16.mxu0 %v8235
        %8472 = vmatmul.mubr.bf16.gmra.mrb[0].mxu0 %v8234
        %v8473 = vpop.f32.mrb[0].mxu0
        %v8474 = vadd.f32 %v8333, %v8473
        %v8475 = vpop.f32.mrb[0].mxu0
        %v8476 = vpop.f32.mrb[0].mxu0
        %v8477 = vadd.f32 %v8333, %v8476
        %v8478 = vpop.f32.mrb[0].mxu0
        %8479 = vmatprep.mubr.bf16.mxu0 %v8237
        %8480 = vmatmul.mubr.bf16.gmra.mrb[0].mxu0 %v8236
        %v8481 = vpop.f32.mrb[0].mxu0
        %v8482 = vadd.f32 %v8333, %v8481
        %v8483 = vpop.f32.mrb[0].mxu0
        %v8484 = vpop.f32.mrb[0].mxu0
        %v8485 = vadd.f32 %v8333, %v8484
        %v8486 = vpop.f32.mrb[0].mxu0
        %8487 = vmatprep.mubr.bf16.mxu0 %v8239
        %8488 = vmatmul.mubr.bf16.gmra.mrb[0].mxu0 %v8238
        %v8489 = vpop.f32.mrb[0].mxu0
        %v8490 = vadd.f32 %v8333, %v8489
        %v8491 = vpop.f32.mrb[0].mxu0
        %v8492 = vpop.f32.mrb[0].mxu0
        %v8493 = vadd.f32 %v8333, %v8492
        %v8494 = vpop.f32.mrb[0].mxu0
        %8495 = vmatprep.mubr.bf16.mxu0 %v8241
        %8496 = vmatmul.mubr.bf16.gmra.mrb[0].mxu0 %v8240
        %v8497 = vpop.f32.mrb[0].mxu0
        %v8498 = vadd.f32 %v8333, %v8497
        %v8499 = vpop.f32.mrb[0].mxu0
        %v8500 = vpop.f32.mrb[0].mxu0
        %v8501 = vadd.f32 %v8333, %v8500
        %v8502 = vpop.f32.mrb[0].mxu0
        %8503 = vmatprep.mubr.bf16.mxu0 %v8243
        %8504 = vmatmul.mubr.bf16.gmra.mrb[0].mxu0 %v8242
        %v8505 = vpop.f32.mrb[0].mxu0
        %v8506 = vadd.f32 %v8333, %v8505
        %v8507 = vpop.f32.mrb[0].mxu0
        %v8508 = vpop.f32.mrb[0].mxu0
        %v8509 = vadd.f32 %v8333, %v8508
        %v8510 = vpop.f32.mrb[0].mxu0
        %8511 = vmatprep.mubr.bf16.mxu0 %v8245
        %8512 = vmatmul.mubr.bf16.gmra.mrb[0].mxu0 %v8244
        %v8513 = vpop.f32.mrb[0].mxu0
        %v8514 = vadd.f32 %v8333, %v8513
        %v8515 = vpop.f32.mrb[0].mxu0
        %v8516 = vpop.f32.mrb[0].mxu0
        %v8517 = vadd.f32 %v8333, %v8516
        %v8518 = vpop.f32.mrb[0].mxu0
        %8519 = vmatprep.mubr.bf16.mxu0 %v8247
        %8520 = vmatmul.mubr.bf16.gmra.mrb[0].mxu0 %v8246
        %v8521 = vpop.f32.mrb[0].mxu0
        %v8522 = vadd.f32 %v8333, %v8521
        %v8523 = vpop.f32.mrb[0].mxu0
        %v8524 = vpop.f32.mrb[0].mxu0
        %v8525 = vadd.f32 %v8333, %v8524
        %v8526 = vpop.f32.mrb[0].mxu0
        %8527 = vmatprep.mubr.bf16.mxu0 %v8249
        %8528 = vmatmul.mubr.bf16.gmra.mrb[0].mxu0 %v8248
        %v8529 = vpop.f32.mrb[0].mxu0
        %v8530 = vadd.f32 %v8333, %v8529
        %v8531 = vpop.f32.mrb[0].mxu0
        %v8532 = vpop.f32.mrb[0].mxu0
        %v8533 = vadd.f32 %v8333, %v8532
        %v8534 = vpop.f32.mrb[0].mxu0
        %8535 = vmatprep.mubr.bf16.mxu0 %v8251
        %8536 = vmatmul.mubr.bf16.gmra.mrb[0].mxu0 %v8250
        %v8537 = vpop.f32.mrb[0].mxu0
        %v8538 = vadd.f32 %v8333, %v8537
        %v8539 = vpop.f32.mrb[0].mxu0
        %v8540 = vpop.f32.mrb[0].mxu0
        %v8541 = vadd.f32 %v8333, %v8540
        %v8542 = vpop.f32.mrb[0].mxu0
        %8543 = vmatprep.mubr.bf16.mxu0 %v8253
        %8544 = vmatmul.mubr.bf16.gmra.mrb[0].mxu0 %v8252
        %v8545 = vpop.f32.mrb[0].mxu0
        %v8546 = vadd.f32 %v8333, %v8545
        %v8547 = vpop.f32.mrb[0].mxu0
        %v8548 = vpop.f32.mrb[0].mxu0
        %v8549 = vadd.f32 %v8333, %v8548
        %v8550 = vpop.f32.mrb[0].mxu0
        %8551 = vmatprep.mubr.bf16.mxu0 %v8255
        %8552 = vmatmul.mubr.bf16.gmra.mrb[0].mxu0 %v8254
        %v8553 = vpop.f32.mrb[0].mxu0
        %v8554 = vadd.f32 %v8333, %v8553
        %v8555 = vpop.f32.mrb[0].mxu0
        %v8556 = vpop.f32.mrb[0].mxu0
        %v8557 = vadd.f32 %v8333, %v8556
        %v8558 = vpop.f32.mrb[0].mxu0
        %8559 = vmatprep.mubr.bf16.mxu0 %v8257
        %8560 = vmatmul.mubr.bf16.gmra.mrb[0].mxu0 %v8256
        %v8561 = vpop.f32.mrb[0].mxu0
        %v8562 = vadd.f32 %v8333, %v8561
        %v8563 = vpop.f32.mrb[0].mxu0
        %v8564 = vpop.f32.mrb[0].mxu0
        %v8565 = vadd.f32 %v8333, %v8564
        %v8566 = vpop.f32.mrb[0].mxu0
        %8567 = vmatprep.mubr.bf16.mxu0 %v8259
        %8568 = vmatmul.mubr.bf16.gmra.mrb[0].mxu0 %v8258
        %v8569 = vpop.f32.mrb[0].mxu0
        %v8570 = vadd.f32 %v8333, %v8569
        %v8571 = vpop.f32.mrb[0].mxu0
        %v8572 = vpop.f32.mrb[0].mxu0
        %v8573 = vadd.f32 %v8333, %v8572
        %v8574 = vpop.f32.mrb[0].mxu0
        %8575 = vmatprep.mubr.bf16.mxu0 %v8261
        %8576 = vmatmul.mubr.bf16.gmra.mrb[0].mxu0 %v8260
        %v8577 = vpop.f32.mrb[0].mxu0
        %v8578 = vadd.f32 %v8333, %v8577
        %v8579 = vpop.f32.mrb[0].mxu0
        %v8580 = vpop.f32.mrb[0].mxu0
        %v8581 = vadd.f32 %v8333, %v8580
        %v8582 = vpop.f32.mrb[0].mxu0
        %8583 = vmatprep.mubr.bf16.mxu0 %v8263
        %8584 = vmatmul.mubr.bf16.gmra.mrb[0].mxu0 %v8262
        %v8585 = vpop.f32.mrb[0].mxu0
        %v8586 = vadd.f32 %v8333, %v8585
        %v8587 = vpop.f32.mrb[0].mxu0
        %v8588 = vpop.f32.mrb[0].mxu0
        %v8589 = vadd.f32 %v8333, %v8588
        %v8590 = vpop.f32.mrb[0].mxu0
        %8591 = vmatprep.mubr.bf16.mxu0 %v8265
        %8592 = vmatmul.mubr.bf16.gmra.mrb[0].mxu0 %v8264
        %v8593 = vpop.f32.mrb[0].mxu0
        %v8594 = vadd.f32 %v8333, %v8593
        %v8595 = vpop.f32.mrb[0].mxu0
        %v8596 = vpop.f32.mrb[0].mxu0
        %v8597 = vadd.f32 %v8333, %v8596
        %v8598 = vpop.f32.mrb[0].mxu0
        %8599 = vmatprep.mubr.bf16.mxu0 %v8267
        %8600 = vmatmul.mubr.bf16.gmra.mrb[0].mxu0 %v8266
        %v8601 = vpop.f32.mrb[0].mxu0
        %v8602 = vadd.f32 %v8333, %v8601
        %v8603 = vpop.f32.mrb[0].mxu0
        %v8604 = vpop.f32.mrb[0].mxu0
        %v8605 = vadd.f32 %v8333, %v8604
        %v8606 = vpop.f32.mrb[0].mxu0
        %8607 = vmatprep.mubr.bf16.mxu0 %v8269
        %8608 = vmatmul.mubr.bf16.gmra.mrb[0].mxu0 %v8268
        %v8609 = vpop.f32.mrb[0].mxu0
        %v8610 = vadd.f32 %v8333, %v8609
        %v8611 = vpop.f32.mrb[0].mxu0
        %v8612 = vpop.f32.mrb[0].mxu0
        %v8613 = vadd.f32 %v8333, %v8612
        %v8614 = vpop.f32.mrb[0].mxu0
        %8615 = vmatprep.mubr.bf16.mxu0 %v8271
        %8616 = vmatmul.mubr.bf16.gmra.mrb[0].mxu0 %v8270
        %v8617 = vpop.f32.mrb[0].mxu0
        %v8618 = vadd.f32 %v8333, %v8617
        %v8619 = vpop.f32.mrb[0].mxu0
        %v8620 = vpop.f32.mrb[0].mxu0
        %v8621 = vadd.f32 %v8333, %v8620
        %v8622 = vpop.f32.mrb[0].mxu0
        %8623 = vmatprep.mubr.bf16.mxu0 %v8273
        %8624 = vmatmul.mubr.bf16.gmra.mrb[0].mxu0 %v8272
        %v8625 = vpop.f32.mrb[0].mxu0
        %v8626 = vadd.f32 %v8333, %v8625
        %v8627 = vpop.f32.mrb[0].mxu0
        %v8628 = vpop.f32.mrb[0].mxu0
        %v8629 = vadd.f32 %v8333, %v8628
        %v8630 = vpop.f32.mrb[0].mxu0
        %8631 = vmatprep.mubr.bf16.mxu0 %v8275
        %8632 = vmatmul.mubr.bf16.gmra.mrb[0].mxu0 %v8274
        %v8633 = vpop.f32.mrb[0].mxu0
        %v8634 = vadd.f32 %v8333, %v8633
        %v8635 = vpop.f32.mrb[0].mxu0
        %v8636 = vpop.f32.mrb[0].mxu0
        %v8637 = vadd.f32 %v8333, %v8636
        %v8638 = vpop.f32.mrb[0].mxu0
        %8639 = vmatprep.mubr.bf16.mxu0 %v8277
        %8640 = vmatmul.mubr.bf16.gmra.mrb[0].mxu0 %v8276
        %v8641 = vpop.f32.mrb[0].mxu0
        %v8642 = vadd.f32 %v8333, %v8641
        %v8643 = vpop.f32.mrb[0].mxu0
        %v8644 = vpop.f32.mrb[0].mxu0
        %v8645 = vadd.f32 %v8333, %v8644
        %v8646 = vpop.f32.mrb[0].mxu0
        %8647 = vmatprep.mubr.bf16.mxu0 %v8279
        %8648 = vmatmul.mubr.bf16.gmra.mrb[0].mxu0 %v8278
        %v8649 = vpop.f32.mrb[0].mxu0
        %v8650 = vadd.f32 %v8333, %v8649
        %v8651 = vpop.f32.mrb[0].mxu0
        %v8652 = vpop.f32.mrb[0].mxu0
        %v8653 = vadd.f32 %v8333, %v8652
        %v8654 = vpop.f32.mrb[0].mxu0
        %8655 = vmatprep.mubr.bf16.mxu0 %v8281
        %8656 = vmatmul.mubr.bf16.gmra.mrb[0].mxu0 %v8280
        %v8657 = vpop.f32.mrb[0].mxu0
        %v8658 = vadd.f32 %v8333, %v8657
        %v8659 = vpop.f32.mrb[0].mxu0
        %v8660 = vpop.f32.mrb[0].mxu0
        %v8661 = vadd.f32 %v8333, %v8660
        %v8662 = vpop.f32.mrb[0].mxu0
        %8663 = vmatprep.mubr.bf16.mxu0 %v8283
        %8664 = vmatmul.mubr.bf16.gmra.mrb[0].mxu0 %v8282
        %v8665 = vpop.f32.mrb[0].mxu0
        %v8666 = vadd.f32 %v8333, %v8665
        %v8667 = vpop.f32.mrb[0].mxu0
        %v8668 = vpop.f32.mrb[0].mxu0
        %v8669 = vadd.f32 %v8333, %v8668
        %v8670 = vpop.f32.mrb[0].mxu0
        %8671 = vmatprep.mubr.bf16.mxu0 %v8285
        %8672 = vmatmul.mubr.bf16.gmra.mrb[0].mxu0 %v8284
        %v8673 = vpop.f32.mrb[0].mxu0
        %v8674 = vadd.f32 %v8333, %v8673
        %v8675 = vpop.f32.mrb[0].mxu0
        %v8676 = vpop.f32.mrb[0].mxu0
        %v8677 = vadd.f32 %v8333, %v8676
        %v8678 = vpop.f32.mrb[0].mxu0
        %8679 = vmatprep.mubr.bf16.mxu0 %v8287
        %8680 = vmatmul.mubr.bf16.gmra.mrb[0].mxu0 %v8286
        %v8681 = vpop.f32.mrb[0].mxu0
        %v8682 = vadd.f32 %v8333, %v8681
        %v8683 = vpop.f32.mrb[0].mxu0
        %v8684 = vpop.f32.mrb[0].mxu0
        %v8685 = vadd.f32 %v8333, %v8684
        %v8686 = vpop.f32.mrb[0].mxu0
        %8687 = vmatprep.mubr.bf16.mxu0 %v8289
        %8688 = vmatmul.mubr.bf16.gmra.mrb[0].mxu0 %v8288
        %v8689 = vpop.f32.mrb[0].mxu0
        %v8690 = vadd.f32 %v8333, %v8689
        %v8691 = vpop.f32.mrb[0].mxu0
        %v8692 = vpop.f32.mrb[0].mxu0
        %v8693 = vadd.f32 %v8333, %v8692
        %v8694 = vpop.f32.mrb[0].mxu0
        %8695 = vmatprep.mubr.bf16.mxu0 %v8291
        %8696 = vmatmul.mubr.bf16.gmra.mrb[0].mxu0 %v8290
        %v8697 = vpop.f32.mrb[0].mxu0
        %v8698 = vadd.f32 %v8333, %v8697
        %v8699 = vpop.f32.mrb[0].mxu0
        %v8700 = vpop.f32.mrb[0].mxu0
        %v8701 = vadd.f32 %v8333, %v8700
        %v8702 = vpop.f32.mrb[0].mxu0
        %8703 = vmatprep.mubr.bf16.mxu0 %v8293
        %8704 = vmatmul.mubr.bf16.gmra.mrb[0].mxu0 %v8292
        %v8705 = vpop.f32.mrb[0].mxu0
        %v8706 = vadd.f32 %v8333, %v8705
        %v8707 = vpop.f32.mrb[0].mxu0
        %v8708 = vpop.f32.mrb[0].mxu0
        %v8709 = vadd.f32 %v8333, %v8708
        %v8710 = vpop.f32.mrb[0].mxu0
        %8711 = vmatprep.mubr.bf16.mxu0 %v8295
        %8712 = vmatmul.mubr.bf16.gmra.mrb[0].mxu0 %v8294
        %v8713 = vpop.f32.mrb[0].mxu0
        %v8714 = vadd.f32 %v8333, %v8713
        %v8715 = vpop.f32.mrb[0].mxu0
        %v8716 = vpop.f32.mrb[0].mxu0
        %v8717 = vadd.f32 %v8333, %v8716
        %v8718 = vpop.f32.mrb[0].mxu0
        %8719 = vdwg.mxu0
        %8720 = vst [vmem:[%s260] sm:$0xff] %v8466
        %8721 = vst [vmem:[%s260 + $0x8] sm:$0xff] %v8469
        %8722 = vst [vmem:[%s260 + $0x10] sm:$0xff] %v8474
        %8723 = vst [vmem:[%s260 + $0x18] sm:$0xff] %v8477
        %8724 = vst [vmem:[%s260 + $0x20] sm:$0xff] %v8482
        %8725 = vst [vmem:[%s260 + $0x28] sm:$0xff] %v8485
        %8726 = vst [vmem:[%s260 + $0x30] sm:$0xff] %v8490
        %8727 = vst [vmem:[%s260 + $0x38] sm:$0xff] %v8493
        %8728 = vst [vmem:[%s260 + $0x40] sm:$0xff] %v8498
        %8729 = vst [vmem:[%s260 + $0x48] sm:$0xff] %v8501
        %8730 = vst [vmem:[%s260 + $0x50] sm:$0xff] %v8506
        %8731 = vst [vmem:[%s260 + $0x58] sm:$0xff] %v8509
        %8732 = vst [vmem:[%s260 + $0x60] sm:$0xff] %v8514
        %8733 = vst [vmem:[%s260 + $0x68] sm:$0xff] %v8517
        %8734 = vst [vmem:[%s260 + $0x70] sm:$0xff] %v8522
        %8735 = vst [vmem:[%s260 + $0x78] sm:$0xff] %v8525
        %8736 = vst [vmem:[%s260 + $0x80] sm:$0xff] %v8530
        %8737 = vst [vmem:[%s260 + $0x88] sm:$0xff] %v8533
        %8738 = vst [vmem:[%s260 + $0x90] sm:$0xff] %v8538
        %8739 = vst [vmem:[%s260 + $0x98] sm:$0xff] %v8541
        %8740 = vst [vmem:[%s260 + $0xa0] sm:$0xff] %v8546
        %8741 = vst [vmem:[%s260 + $0xa8] sm:$0xff] %v8549
        %8742 = vst [vmem:[%s260 + $0xb0] sm:$0xff] %v8554
        %8743 = vst [vmem:[%s260 + $0xb8] sm:$0xff] %v8557
        %8744 = vst [vmem:[%s260 + $0xc0] sm:$0xff] %v8562
        %8745 = vst [vmem:[%s260 + $0xc8] sm:$0xff] %v8565
        %8746 = vst [vmem:[%s260 + $0xd0] sm:$0xff] %v8570
        %8747 = vst [vmem:[%s260 + $0xd8] sm:$0xff] %v8573
        %8748 = vst [vmem:[%s260 + $0xe0] sm:$0xff] %v8578
        %8749 = vst [vmem:[%s260 + $0xe8] sm:$0xff] %v8581
        %8750 = vst [vmem:[%s260 + $0xf0] sm:$0xff] %v8586
        %8751 = vst [vmem:[%s260 + $0xf8] sm:$0xff] %v8589
        %8752 = vst [vmem:[%s260 + $0x100] sm:$0xff] %v8594
        %8753 = vst [vmem:[%s260 + $0x108] sm:$0xff] %v8597
        %8754 = vst [vmem:[%s260 + $0x110] sm:$0xff] %v8602
        %8755 = vst [vmem:[%s260 + $0x118] sm:$0xff] %v8605
        %8756 = vst [vmem:[%s260 + $0x120] sm:$0xff] %v8610
        %8757 = vst [vmem:[%s260 + $0x128] sm:$0xff] %v8613
        %8758 = vst [vmem:[%s260 + $0x130] sm:$0xff] %v8618
        %8759 = vst [vmem:[%s260 + $0x138] sm:$0xff] %v8621
        %8760 = vst [vmem:[%s260 + $0x140] sm:$0xff] %v8626
        %8761 = vst [vmem:[%s260 + $0x148] sm:$0xff] %v8629
        %8762 = vst [vmem:[%s260 + $0x150] sm:$0xff] %v8634
        %8763 = vst [vmem:[%s260 + $0x158] sm:$0xff] %v8637
        %8764 = vst [vmem:[%s260 + $0x160] sm:$0xff] %v8642
        %8765 = vst [vmem:[%s260 + $0x168] sm:$0xff] %v8645
        %8766 = vst [vmem:[%s260 + $0x170] sm:$0xff] %v8650
        %8767 = vst [vmem:[%s260 + $0x178] sm:$0xff] %v8653
        %8768 = vst [vmem:[%s260 + $0x180] sm:$0xff] %v8658
        %8769 = vst [vmem:[%s260 + $0x188] sm:$0xff] %v8661
        %8770 = vst [vmem:[%s260 + $0x190] sm:$0xff] %v8666
        %8771 = vst [vmem:[%s260 + $0x198] sm:$0xff] %v8669
        %8772 = vst [vmem:[%s260 + $0x1a0] sm:$0xff] %v8674
        %8773 = vst [vmem:[%s260 + $0x1a8] sm:$0xff] %v8677
        %8774 = vst [vmem:[%s260 + $0x1b0] sm:$0xff] %v8682
        %8775 = vst [vmem:[%s260 + $0x1b8] sm:$0xff] %v8685
        %8776 = vst [vmem:[%s260 + $0x1c0] sm:$0xff] %v8690
        %8777 = vst [vmem:[%s260 + $0x1c8] sm:$0xff] %v8693
        %8778 = vst [vmem:[%s260 + $0x1d0] sm:$0xff] %v8698
        %8779 = vst [vmem:[%s260 + $0x1d8] sm:$0xff] %v8701
        %8780 = vst [vmem:[%s260 + $0x1e0] sm:$0xff] %v8706
        %8781 = vst [vmem:[%s260 + $0x1e8] sm:$0xff] %v8709
        %8782 = vst [vmem:[%s260 + $0x1f0] sm:$0xff] %v8714
        %8783 = vst [vmem:[%s260 + $0x1f8] sm:$0xff] %v8717
        %s8784 = sand.u32 %s160, 1
        %s8785 = scalar_lea.sflag [#allocation6], %s8784
        %s8786 = sand.u32 %s160, 1
        %s8787 = smul.addr %s8786, 512
        %s8788 = scalar_lea.vmem [#allocation7], %s8787
        // Predicated region
        $region49: #{tpu_custom_call.1} parent=43 // pred_check
          %p8789 = pneg %p170
        $region50: #{tpu_custom_call.1} parent=43 // pred_check_branch
          %8791 = sbr.rel (%p8789) target = $region52
        $region51: #{tpu_custom_call.1} parent=43 // pred_region
          %s8792 = smul.u32 64, %s21
          %s8794 = ssub.s32 8192, 8192
          %8795 = vsyncadd %s8785, %s8794
          %s8796 = smul.addr %s8792, 128
          %s8797 = scalar_lea.hbm %s6, %s8796
          %s8798 = sshll.u32 %s8788, 4
          %s8799 = int_to_ptr.vmem [resolvable:$true] %s8798
          %8804 = dma.vmem_to_hbm [thread:$0]  %s8799, 8192, %s8797, %s8785, 128, 128, 8
        $region52: #{tpu_custom_call.1} parent=43 // pred_fallthru
          _
      $region44: #{tpu_custom_call.1} parent=5 // pred_fallthru
        _
      %p8805 = scmp.le.s32.totalorder 2, %s16
      // Predicated region
      $region53: #{tpu_custom_call.1} parent=5 // pred_check
        %p8806 = pneg %p8805
      $region54: #{tpu_custom_call.1} parent=5 // pred_check_branch
        %8808 = sbr.rel (%p8806) target = $region56
      $region55: #{tpu_custom_call.1} parent=5 // pred_region
        %s8809 = ssub.s32 %s16, 2
        // Predicated region
        $region57: #{tpu_custom_call.1} parent=55 // pred_check
          %p8810 = pneg %p176
        $region58: #{tpu_custom_call.1} parent=55 // pred_check_branch
          %8812 = sbr.rel (%p8810) target = $region60
        $region59: #{tpu_custom_call.1} parent=55 // pred_region
          %s8813 = sand.u32 %s161, 1
          %s8814 = scalar_lea.sflag [#allocation6], %s8813
          %s8815 = sand.u32 %s161, 1
          %s8816 = smul.addr %s8815, 512
          %s8817 = scalar_lea.vmem [#allocation7], %s8816
          %8818 = dma.done %s8814, 8192
        $region60: #{tpu_custom_call.1} parent=55 // pred_fallthru
          _
      $region56: #{tpu_custom_call.1} parent=5 // pred_fallthru
        _
    $region6: #{tpu_custom_call.1} parent=1 // loop_footer
      %s20 = sadd.s32 1, %s16
    $region7: #{tpu_custom_call.1} parent=1 // loop_footer_branch
      %15 = sbr.rel target = $region3
    $region8: #{tpu_custom_call.1} parent=1 // loop_exit
      _
    %8819 = vsyncpa [#allocation5], 1
    %s8820 = scalar_lea.sflag [#allocation5], 1
    %8821 = vsyncpa %s8820, 1
    %8822 = vsyncpa [#allocation6], 1
    %s8823 = scalar_lea.sflag [#allocation6], 1
    %8824 = vsyncpa %s8823, 1

</llo_original>
